<compile_context>
chip_gen: v7x
topology: tpu7x:2x2x1
jax: 0.10.0
libtpu: 0.0.40
codegen_flags: <defaults>
</compile_context>

<pallas_src>
import functools

import jax
import jax.numpy as jnp
from jax import lax
from jax.experimental import pallas as pl
from jax.experimental.pallas import tpu as pltpu


def _round_up(x, m):
    return ((x + m - 1) // m) * m


def _tpu_vmem_capacity_bytes() -> int:
    """Per-core VMEM capacity; conservative fallback = v7x's 64 MiB."""
    try:
        cap = getattr(pltpu.get_tpu_info(), "vmem_capacity_bytes", None)
        if cap:
            return int(cap)
    except Exception:  # noqa: BLE001 - emulator / older-jax fallback
        pass
    return 64 * 1024 * 1024


def _choose_t_block(nb_steps, c_in, c_out, f_in_pad, l_out_pad,
                    budget_bytes, max_tb=8):
    """Largest divisor of nb_steps (<= max_tb, bounds trace size) whose
    buffered input/output blocks + f32 membrane scratch fit the VMEM budget."""
    best = 1
    for tb in range(1, min(nb_steps, max_tb) + 1):
        if nb_steps % tb:
            continue
        need = (3 * tb * c_in * f_in_pad * 2       # bf16 x block (<= 3 bufs)
                + 2 * tb * c_out * l_out_pad * 4   # f32 out block (2 bufs)
                + c_out * l_out_pad * 4)           # membrane scratch
        if need <= budget_bytes:
            best = tb
    return best


def _readout_kernel(x_ref, w_ref, b_ref, o_ref, mem_ref, *,
                    alpha, tap_offsets, f_in_pad, l_out_pad, t_block):
    """One grid step = (batch b, time-block tb); tb is innermost/sequential.

    x_ref:   (Tb, C_in, F_in_pad)   bf16 flat padded input, lane-dense
    w_ref:   (kh*kw, C_out, C_in)   f32 conv weight, scale & (1-alpha) folded
    b_ref:   (C_out, 1)             f32 conv bias,   scale & (1-alpha) folded
    o_ref:   (Tb, C_out, L_out_pad) membrane potentials for this block
    mem_ref: (C_out, L_out_pad)     f32 scratch carrying state across tb
    """
    tb = pl.program_id(1)

    @pl.when(tb == 0)
    def _():
        mem_ref[...] = jnp.zeros_like(mem_ref)

    c_out = o_ref.shape[1]
    xs = x_ref[...].astype(jnp.float32)               # (Tb, C_in, F_in_pad)

    # On-chip im2col: lane-rotate the flat spatial axis so that dense output
    # position p reads input p + off, then one small MXU matmul per
    # (kernel tap, local time step), accumulated in f32.  (MXU utilization is
    # irrelevant here — the kernel is HBM/overhead bound, per the review.)
    bias_row = jnp.broadcast_to(b_ref[...], (c_out, l_out_pad))
    acc = [bias_row for _ in range(t_block)]
    for idx, off in enumerate(tap_offsets):
        xr = xs if off == 0 else pltpu.roll(xs, f_in_pad - off, axis=2)
        if l_out_pad != f_in_pad:
            xr = xr[:, :, :l_out_pad]                  # 128-aligned slice
        w_tap = w_ref[idx]                             # (C_out, C_in)
        for t in range(t_block):                       # statically unrolled
            acc[t] = acc[t] + jnp.dot(w_tap, xr[t],
                                      preferred_element_type=jnp.float32)

    # LI2d: non-spiking leaky integrator, f32 recurrence (unrolled over Tb).
    mem = mem_ref[...]
    for t in range(t_block):
        mem = alpha * mem + acc[t]
        o_ref[t] = mem.astype(o_ref.dtype)
    mem_ref[...] = mem


def readout_conv2d_block(x, weight, bias, *, stride, padding, dilation,
                         alpha, scale, decay_input=True,
                         stream_dtype=jnp.bfloat16, out_dtype=None):
    """x: (T, B, C_in, H, W) time-major NCHW per step.
    weight: (C_out, C_in, kh, kw) (PyTorch OIHW); bias: (C_out,).
    Returns (T, B, C_out, H_out, W_out) membrane potentials (LI2d readout)."""
    T, B, C_in, H, W = x.shape
    C_out, _, kh, kw = weight.shape
    sh, sw = stride
    ph, pw = padding
    dh, dw = dilation
    H_pad, W_pad = H + 2 * ph, W + 2 * pw
    H_out = (H_pad - dh * (kh - 1) - 1) // sh + 1
    W_out = (W_pad - dw * (kw - 1) - 1) // sw + 1
    # Dense (stride-1) output grid computed by the kernel; strided outputs are
    # a cheap wrapper slice of it.
    H_dense = H_pad - dh * (kh - 1)

    L_out = H_dense * W_pad                       # dense output lanes (valid)
    L_out_pad = _round_up(L_out, 128)             # lane-dense output width
    F_in = H_pad * W_pad + dw * (kw - 1)          # max tap offset + L_out
    F_in_pad = _round_up(F_in, 128)               # >= L_out_pad by construction

    if out_dtype is None:
        out_dtype = x.dtype

    # ---- thin wrapper glue: ONE pass over the input (no 9x im2col) ---------
    # TODO(synk): padding_mode other than 'zeros' not implemented.
    xp = jnp.pad(x, ((0, 0), (0, 0), (0, 0), (ph, ph), (pw, pw)))
    xf = xp.reshape(T, B, C_in, H_pad * W_pad)
    xf = jnp.pad(xf, ((0, 0), (0, 0), (0, 0), (0, F_in_pad - H_pad * W_pad)))
    # TODO(synk): on v7x the streamed operand could be fp8 (e4m3) for another
    #             ~2x on the dominant HBM term; bf16 is portable to v5e/v6e.
    xk = xf.astype(stream_dtype)                  # (T, B, C_in, F_in_pad)

    # Fold ScaleLayer and the LI2d (1 - alpha) input decay into the conv
    # parameters so the in-kernel epilogue is just  mem = alpha*mem + y.
    gain = float(scale) * ((1.0 - float(alpha)) if decay_input else 1.0)
    w_taps = (weight.astype(jnp.float32) * gain)
    w_taps = w_taps.transpose(2, 3, 0, 1).reshape(kh * kw, C_out, C_in)
    b_col = (bias.astype(jnp.float32) * gain).reshape(C_out, 1)
    tap_offsets = tuple(ki * dh * W_pad + kj * dw
                        for ki in range(kh) for kj in range(kw))

    # ---- tiling: generation-aware time blocking -----------------------------
    vmem_cap = _tpu_vmem_capacity_bytes()
    t_block = _choose_t_block(T, C_in, C_out, F_in_pad, L_out_pad,
                              budget_bytes=int(vmem_cap * 0.4))
    num_t = T // t_block
    # Batch is the "parallel" axis (spans both v7x TensorCores when B >= 2);
    # the blocked time axis stays innermost so the per-batch membrane scratch
    # is re-zeroed at tb == 0.
    # TODO(synk): for B == 1 with large images, split the flat spatial axis
    #             (needs halo handling) to keep both v7x cores busy; large B
    #             could also fold several batches into the lane axis.
    grid = (B, num_t)

    kernel = functools.partial(
        _readout_kernel, alpha=float(alpha), tap_offsets=tap_offsets,
        f_in_pad=F_in_pad, l_out_pad=L_out_pad, t_block=t_block)

    x_spec_kwargs = {}
    if num_t >= 4:
        # Deeper input buffering only pays when the sequential axis is long.
        x_spec_kwargs["pipeline_mode"] = pl.Buffered(3)
    x_spec = pl.BlockSpec((t_block, None, C_in, F_in_pad),
                          lambda b, t: (t, b, 0, 0), **x_spec_kwargs)

    out = pl.pallas_call(
        kernel,
        out_shape=jax.ShapeDtypeStruct((T, B, C_out, L_out_pad), out_dtype),
        grid_spec=pltpu.PrefetchScalarGridSpec(
            num_scalar_prefetch=0,
            grid=grid,
            in_specs=[
                x_spec,
                pl.BlockSpec((kh * kw, C_out, C_in), lambda b, t: (0, 0, 0)),
                pl.BlockSpec((C_out, 1), lambda b, t: (0, 0)),
            ],
            out_specs=pl.BlockSpec((t_block, None, C_out, L_out_pad),
                                   lambda b, t: (t, b, 0, 0)),
            scratch_shapes=[pltpu.VMEM((C_out, L_out_pad), jnp.float32)],
        ),
        compiler_params=pltpu.CompilerParams(
            dimension_semantics=("parallel", "arbitrary"),
            vmem_limit_bytes=int(vmem_cap * 3 // 4)),
    )(xk, w_taps, b_col)

    # (T, B, C_out, L_out_pad): keep valid dense columns, then the stride grid.
    # Note: padded / invalid lanes carry bias-accumulated garbage in the
    # membrane — benign, discarded here.
    out = out[..., :L_out].reshape(T, B, C_out, H_dense, W_pad)
    out = out[:, :, :, :(H_out - 1) * sh + 1:sh, :(W_out - 1) * sw + 1:sw]
    return out


def _reference(x, weight, bias, stride, padding, dilation, alpha, scale,
               decay_input=True):
    """Pure-JAX f32 reference of the PyTorch forward (Conv2d -> Scale -> LI2d)."""
    T, B, C_in, H, W = x.shape
    xf = x.reshape(T * B, C_in, H, W)
    y = lax.conv_general_dilated(
        xf, weight, window_strides=stride,
        padding=[(padding[0], padding[0]), (padding[1], padding[1])],
        rhs_dilation=dilation,
        dimension_numbers=('NCHW', 'OIHW', 'NCHW'))
    y = (y + bias.reshape(1, -1, 1, 1)) * scale
    y = y.reshape(T, B, *y.shape[1:])

    def step(mem, inp):
        mem = alpha * mem + ((1.0 - alpha) * inp if decay_input else inp)
        return mem, mem

    mem0 = jnp.zeros_like(y[0])
    _, out = lax.scan(step, mem0, y)
    return out


if __name__ == "__main__":
    # Module hyper-parameters (small, consistent with __init__ signature).
    nb_steps = 4
    batch = 2
    input_channels, output_channels = 4, 8
    H = W = 16
    kernel_size = (3, 3)
    stride = (1, 1)
    padding = (1, 1)
    dilation = (1, 1)
    use_bias = True
    scale_flag, scale_factor = True, 0.5
    alpha_out = 0.9                     # LI2d membrane decay
    decay_input = True
    weight_init = {"weight_init_dist": "normal_",
                   "weight_mean": 0.0, "weight_std": 0.1}

    key = jax.random.PRNGKey(0)
    kx, kw_, kb = jax.random.split(key, 3)

    # Deterministic parameter init (normal_ branch of init_weights).
    fan = input_channels * kernel_size[0] * kernel_size[1]
    w_std = weight_init["weight_std"] / jnp.sqrt(jnp.float32(fan))
    weight = (weight_init["weight_mean"]
              + w_std * jax.random.normal(
                  kw_, (output_channels, input_channels, *kernel_size),
                  dtype=jnp.float32))
    if use_bias:
        b_bound = 1.0 / jnp.sqrt(jnp.float32(fan))
        bias = jax.random.uniform(kb, (output_channels,), dtype=jnp.float32,
                                  minval=-b_bound, maxval=b_bound)
    else:
        bias = jnp.zeros((output_channels,), dtype=jnp.float32)

    x = jax.random.normal(
        kx, (nb_steps, batch, input_channels, H, W), dtype=jnp.float32)

    out = readout_conv2d_block(
        x, weight, bias, stride=stride, padding=padding, dilation=dilation,
        alpha=alpha_out, scale=scale_factor, decay_input=decay_input)
    out = jax.block_until_ready(out)

    ref = _reference(x, weight, bias, stride, padding, dilation,
                     alpha_out, scale_factor, decay_input)
    assert out.shape == (nb_steps, batch, output_channels, H, W), out.shape
    # Tolerance sized for the bf16-streamed input with f32 accumulation and an
    # f32 recurrence; semantic errors (wrong alpha/scale/tap layout) would be
    # orders of magnitude larger.
    assert jnp.allclose(out, ref, atol=1e-3, rtol=1e-2), \
        float(jnp.max(jnp.abs(out - ref)))

    print("KERNEL_OK")
</pallas_src>

<mosaic_0001>
module attributes {stable_mosaic.version = 11 : i64} {
  func.func @_readout_kernel(%arg0: i32, %arg1: i32, %arg2: memref<4x1x4x384xbf16, #tpu.memory_space<vmem>>, %arg3: memref<9x8x4xf32, #tpu.memory_space<vmem>>, %arg4: memref<8x1xf32, #tpu.memory_space<vmem>>, %arg5: memref<4x1x8x384xf32, #tpu.memory_space<vmem>>, %arg6: memref<8x384xf32, #tpu.memory_space<vmem>>) attributes {dimension_semantics = [#tpu.dimension_semantics<parallel>, #tpu.dimension_semantics<arbitrary>], iteration_bounds = array<i64: 2, 1>, scalar_prefetch = 0 : i64, scratch_operands = 1 : i64, tpu.core_type = #tpu.core_type<tc>, window_params = [{transform_indices = @transform_0, window_bounds = array<i64: 4, 1, 4, 384>}, {pipeline_mode = #tpu.pipeline_mode<synchronous>, transform_indices = @transform_1, window_bounds = array<i64: 9, 8, 4>}, {pipeline_mode = #tpu.pipeline_mode<synchronous>, transform_indices = @transform_2, window_bounds = array<i64: 8, 1>}, {transform_indices = @transform_3, window_bounds = array<i64: 4, 1, 8, 384>}]} {
    %c0_i32 = arith.constant 0 : i32
    %0 = arith.cmpi eq, %arg1, %c0_i32 : i32
    %1 = arith.extui %0 : i1 to i32
    %c0_i32_0 = arith.constant 0 : i32
    %2 = arith.cmpi ne, %1, %c0_i32_0 : i32
    scf.if %2 {
      %cst_84 = arith.constant 0.000000e+00 : f32
      %205 = vector.broadcast %cst_84 : f32 to vector<8x384xf32>
      %c0_85 = arith.constant 0 : index
      %c0_86 = arith.constant 0 : index
      %206 = vector.load %arg6[%c0_85, %c0_86] : memref<8x384xf32, #tpu.memory_space<vmem>>, vector<8x384xf32>
      tpu.vector_store %arg6[%c0_85, %c0_86], %205 {strides = array<i32>} : memref<8x384xf32, #tpu.memory_space<vmem>>, vector<8x384xf32>,
    } else {
    }
    %c0 = arith.constant 0 : index
    %c0_1 = arith.constant 0 : index
    %c0_2 = arith.constant 0 : index
    %c0_3 = arith.constant 0 : index
    %3 = vector.load %arg2[%c0, %c0_1, %c0_2, %c0_3] : memref<4x1x4x384xbf16, #tpu.memory_space<vmem>>, vector<4x1x4x384xbf16>
    %4 = vector.shape_cast %3 : vector<4x1x4x384xbf16> to vector<4x4x384xbf16>
    %5 = arith.extf %4 : vector<4x4x384xbf16> to vector<4x4x384xf32>
    %c0_4 = arith.constant 0 : index
    %c0_5 = arith.constant 0 : index
    %6 = vector.load %arg4[%c0_4, %c0_5] : memref<8x1xf32, #tpu.memory_space<vmem>>, vector<8x1xf32>
    %7 = vector.shape_cast %6 : vector<8x1xf32> to vector<8x1xf32>
    %8 = vector.broadcast %7 : vector<8x1xf32> to vector<8x384xf32>
    %c0_6 = arith.constant 0 : index
    %c0_7 = arith.constant 0 : index
    %c0_8 = arith.constant 0 : index
    %9 = vector.load %arg3[%c0_6, %c0_7, %c0_8] : memref<9x8x4xf32, #tpu.memory_space<vmem>>, vector<1x8x4xf32>
    %10 = vector.shape_cast %9 : vector<1x8x4xf32> to vector<8x4xf32>
    %11 = vector.extract_strided_slice %5 {offsets = [0, 0, 0], sizes = [1, 4, 384], strides = [1, 1, 1]} : vector<4x4x384xf32> to vector<1x4x384xf32>
    %12 = vector.shape_cast %11 : vector<1x4x384xf32> to vector<4x384xf32>
    %cst = arith.constant dense<0.000000e+00> : vector<8x384xf32>
    %13 = tpu.matmul %10, %12, %cst {dimension_numbers = #tpu.dot_dimension_numbers<[1], [0], [0], [1], [0, 0, 1, 1], [], []>} : vector<8x4xf32>, vector<4x384xf32>, vector<8x384xf32> -> vector<8x384xf32>
    %14 = arith.addf %8, %13 : vector<8x384xf32>
    %15 = vector.extract_strided_slice %5 {offsets = [1, 0, 0], sizes = [1, 4, 384], strides = [1, 1, 1]} : vector<4x4x384xf32> to vector<1x4x384xf32>
    %16 = vector.shape_cast %15 : vector<1x4x384xf32> to vector<4x384xf32>
    %cst_9 = arith.constant dense<0.000000e+00> : vector<8x384xf32>
    %17 = tpu.matmul %10, %16, %cst_9 {dimension_numbers = #tpu.dot_dimension_numbers<[1], [0], [0], [1], [0, 0, 1, 1], [], []>} : vector<8x4xf32>, vector<4x384xf32>, vector<8x384xf32> -> vector<8x384xf32>
    %18 = arith.addf %8, %17 : vector<8x384xf32>
    %19 = vector.extract_strided_slice %5 {offsets = [2, 0, 0], sizes = [1, 4, 384], strides = [1, 1, 1]} : vector<4x4x384xf32> to vector<1x4x384xf32>
    %20 = vector.shape_cast %19 : vector<1x4x384xf32> to vector<4x384xf32>
    %cst_10 = arith.constant dense<0.000000e+00> : vector<8x384xf32>
    %21 = tpu.matmul %10, %20, %cst_10 {dimension_numbers = #tpu.dot_dimension_numbers<[1], [0], [0], [1], [0, 0, 1, 1], [], []>} : vector<8x4xf32>, vector<4x384xf32>, vector<8x384xf32> -> vector<8x384xf32>
    %22 = arith.addf %8, %21 : vector<8x384xf32>
    %23 = vector.extract_strided_slice %5 {offsets = [3, 0, 0], sizes = [1, 4, 384], strides = [1, 1, 1]} : vector<4x4x384xf32> to vector<1x4x384xf32>
    %24 = vector.shape_cast %23 : vector<1x4x384xf32> to vector<4x384xf32>
    %cst_11 = arith.constant dense<0.000000e+00> : vector<8x384xf32>
    %25 = tpu.matmul %10, %24, %cst_11 {dimension_numbers = #tpu.dot_dimension_numbers<[1], [0], [0], [1], [0, 0, 1, 1], [], []>} : vector<8x4xf32>, vector<4x384xf32>, vector<8x384xf32> -> vector<8x384xf32>
    %26 = arith.addf %8, %25 : vector<8x384xf32>
    %c383_i32 = arith.constant 383 : i32
    %27 = tpu.dynamic_rotate %5 by %c383_i32 dim 2 : vector<4x4x384xf32>, i32 -> vector<4x4x384xf32>
    %c1 = arith.constant 1 : index
    %c0_12 = arith.constant 0 : index
    %c0_13 = arith.constant 0 : index
    %28 = vector.load %arg3[%c1, %c0_12, %c0_13] : memref<9x8x4xf32, #tpu.memory_space<vmem>>, vector<1x8x4xf32>
    %29 = vector.shape_cast %28 : vector<1x8x4xf32> to vector<8x4xf32>
    %30 = vector.extract_strided_slice %27 {offsets = [0, 0, 0], sizes = [1, 4, 384], strides = [1, 1, 1]} : vector<4x4x384xf32> to vector<1x4x384xf32>
    %31 = vector.shape_cast %30 : vector<1x4x384xf32> to vector<4x384xf32>
    %cst_14 = arith.constant dense<0.000000e+00> : vector<8x384xf32>
    %32 = tpu.matmul %29, %31, %cst_14 {dimension_numbers = #tpu.dot_dimension_numbers<[1], [0], [0], [1], [0, 0, 1, 1], [], []>} : vector<8x4xf32>, vector<4x384xf32>, vector<8x384xf32> -> vector<8x384xf32>
    %33 = arith.addf %14, %32 : vector<8x384xf32>
    %34 = vector.extract_strided_slice %27 {offsets = [1, 0, 0], sizes = [1, 4, 384], strides = [1, 1, 1]} : vector<4x4x384xf32> to vector<1x4x384xf32>
    %35 = vector.shape_cast %34 : vector<1x4x384xf32> to vector<4x384xf32>
    %cst_15 = arith.constant dense<0.000000e+00> : vector<8x384xf32>
    %36 = tpu.matmul %29, %35, %cst_15 {dimension_numbers = #tpu.dot_dimension_numbers<[1], [0], [0], [1], [0, 0, 1, 1], [], []>} : vector<8x4xf32>, vector<4x384xf32>, vector<8x384xf32> -> vector<8x384xf32>
    %37 = arith.addf %18, %36 : vector<8x384xf32>
    %38 = vector.extract_strided_slice %27 {offsets = [2, 0, 0], sizes = [1, 4, 384], strides = [1, 1, 1]} : vector<4x4x384xf32> to vector<1x4x384xf32>
    %39 = vector.shape_cast %38 : vector<1x4x384xf32> to vector<4x384xf32>
    %cst_16 = arith.constant dense<0.000000e+00> : vector<8x384xf32>
    %40 = tpu.matmul %29, %39, %cst_16 {dimension_numbers = #tpu.dot_dimension_numbers<[1], [0], [0], [1], [0, 0, 1, 1], [], []>} : vector<8x4xf32>, vector<4x384xf32>, vector<8x384xf32> -> vector<8x384xf32>
    %41 = arith.addf %22, %40 : vector<8x384xf32>
    %42 = vector.extract_strided_slice %27 {offsets = [3, 0, 0], sizes = [1, 4, 384], strides = [1, 1, 1]} : vector<4x4x384xf32> to vector<1x4x384xf32>
    %43 = vector.shape_cast %42 : vector<1x4x384xf32> to vector<4x384xf32>
    %cst_17 = arith.constant dense<0.000000e+00> : vector<8x384xf32>
    %44 = tpu.matmul %29, %43, %cst_17 {dimension_numbers = #tpu.dot_dimension_numbers<[1], [0], [0], [1], [0, 0, 1, 1], [], []>} : vector<8x4xf32>, vector<4x384xf32>, vector<8x384xf32> -> vector<8x384xf32>
    %45 = arith.addf %26, %44 : vector<8x384xf32>
    %c382_i32 = arith.constant 382 : i32
    %46 = tpu.dynamic_rotate %5 by %c382_i32 dim 2 : vector<4x4x384xf32>, i32 -> vector<4x4x384xf32>
    %c2 = arith.constant 2 : index
    %c0_18 = arith.constant 0 : index
    %c0_19 = arith.constant 0 : index
    %47 = vector.load %arg3[%c2, %c0_18, %c0_19] : memref<9x8x4xf32, #tpu.memory_space<vmem>>, vector<1x8x4xf32>
    %48 = vector.shape_cast %47 : vector<1x8x4xf32> to vector<8x4xf32>
    %49 = vector.extract_strided_slice %46 {offsets = [0, 0, 0], sizes = [1, 4, 384], strides = [1, 1, 1]} : vector<4x4x384xf32> to vector<1x4x384xf32>
    %50 = vector.shape_cast %49 : vector<1x4x384xf32> to vector<4x384xf32>
    %cst_20 = arith.constant dense<0.000000e+00> : vector<8x384xf32>
    %51 = tpu.matmul %48, %50, %cst_20 {dimension_numbers = #tpu.dot_dimension_numbers<[1], [0], [0], [1], [0, 0, 1, 1], [], []>} : vector<8x4xf32>, vector<4x384xf32>, vector<8x384xf32> -> vector<8x384xf32>
    %52 = arith.addf %33, %51 : vector<8x384xf32>
    %53 = vector.extract_strided_slice %46 {offsets = [1, 0, 0], sizes = [1, 4, 384], strides = [1, 1, 1]} : vector<4x4x384xf32> to vector<1x4x384xf32>
    %54 = vector.shape_cast %53 : vector<1x4x384xf32> to vector<4x384xf32>
    %cst_21 = arith.constant dense<0.000000e+00> : vector<8x384xf32>
    %55 = tpu.matmul %48, %54, %cst_21 {dimension_numbers = #tpu.dot_dimension_numbers<[1], [0], [0], [1], [0, 0, 1, 1], [], []>} : vector<8x4xf32>, vector<4x384xf32>, vector<8x384xf32> -> vector<8x384xf32>
    %56 = arith.addf %37, %55 : vector<8x384xf32>
    %57 = vector.extract_strided_slice %46 {offsets = [2, 0, 0], sizes = [1, 4, 384], strides = [1, 1, 1]} : vector<4x4x384xf32> to vector<1x4x384xf32>
    %58 = vector.shape_cast %57 : vector<1x4x384xf32> to vector<4x384xf32>
    %cst_22 = arith.constant dense<0.000000e+00> : vector<8x384xf32>
    %59 = tpu.matmul %48, %58, %cst_22 {dimension_numbers = #tpu.dot_dimension_numbers<[1], [0], [0], [1], [0, 0, 1, 1], [], []>} : vector<8x4xf32>, vector<4x384xf32>, vector<8x384xf32> -> vector<8x384xf32>
    %60 = arith.addf %41, %59 : vector<8x384xf32>
    %61 = vector.extract_strided_slice %46 {offsets = [3, 0, 0], sizes = [1, 4, 384], strides = [1, 1, 1]} : vector<4x4x384xf32> to vector<1x4x384xf32>
    %62 = vector.shape_cast %61 : vector<1x4x384xf32> to vector<4x384xf32>
    %cst_23 = arith.constant dense<0.000000e+00> : vector<8x384xf32>
    %63 = tpu.matmul %48, %62, %cst_23 {dimension_numbers = #tpu.dot_dimension_numbers<[1], [0], [0], [1], [0, 0, 1, 1], [], []>} : vector<8x4xf32>, vector<4x384xf32>, vector<8x384xf32> -> vector<8x384xf32>
    %64 = arith.addf %45, %63 : vector<8x384xf32>
    %c366_i32 = arith.constant 366 : i32
    %65 = tpu.dynamic_rotate %5 by %c366_i32 dim 2 : vector<4x4x384xf32>, i32 -> vector<4x4x384xf32>
    %c3 = arith.constant 3 : index
    %c0_24 = arith.constant 0 : index
    %c0_25 = arith.constant 0 : index
    %66 = vector.load %arg3[%c3, %c0_24, %c0_25] : memref<9x8x4xf32, #tpu.memory_space<vmem>>, vector<1x8x4xf32>
    %67 = vector.shape_cast %66 : vector<1x8x4xf32> to vector<8x4xf32>
    %68 = vector.extract_strided_slice %65 {offsets = [0, 0, 0], sizes = [1, 4, 384], strides = [1, 1, 1]} : vector<4x4x384xf32> to vector<1x4x384xf32>
    %69 = vector.shape_cast %68 : vector<1x4x384xf32> to vector<4x384xf32>
    %cst_26 = arith.constant dense<0.000000e+00> : vector<8x384xf32>
    %70 = tpu.matmul %67, %69, %cst_26 {dimension_numbers = #tpu.dot_dimension_numbers<[1], [0], [0], [1], [0, 0, 1, 1], [], []>} : vector<8x4xf32>, vector<4x384xf32>, vector<8x384xf32> -> vector<8x384xf32>
    %71 = arith.addf %52, %70 : vector<8x384xf32>
    %72 = vector.extract_strided_slice %65 {offsets = [1, 0, 0], sizes = [1, 4, 384], strides = [1, 1, 1]} : vector<4x4x384xf32> to vector<1x4x384xf32>
    %73 = vector.shape_cast %72 : vector<1x4x384xf32> to vector<4x384xf32>
    %cst_27 = arith.constant dense<0.000000e+00> : vector<8x384xf32>
    %74 = tpu.matmul %67, %73, %cst_27 {dimension_numbers = #tpu.dot_dimension_numbers<[1], [0], [0], [1], [0, 0, 1, 1], [], []>} : vector<8x4xf32>, vector<4x384xf32>, vector<8x384xf32> -> vector<8x384xf32>
    %75 = arith.addf %56, %74 : vector<8x384xf32>
    %76 = vector.extract_strided_slice %65 {offsets = [2, 0, 0], sizes = [1, 4, 384], strides = [1, 1, 1]} : vector<4x4x384xf32> to vector<1x4x384xf32>
    %77 = vector.shape_cast %76 : vector<1x4x384xf32> to vector<4x384xf32>
    %cst_28 = arith.constant dense<0.000000e+00> : vector<8x384xf32>
    %78 = tpu.matmul %67, %77, %cst_28 {dimension_numbers = #tpu.dot_dimension_numbers<[1], [0], [0], [1], [0, 0, 1, 1], [], []>} : vector<8x4xf32>, vector<4x384xf32>, vector<8x384xf32> -> vector<8x384xf32>
    %79 = arith.addf %60, %78 : vector<8x384xf32>
    %80 = vector.extract_strided_slice %65 {offsets = [3, 0, 0], sizes = [1, 4, 384], strides = [1, 1, 1]} : vector<4x4x384xf32> to vector<1x4x384xf32>
    %81 = vector.shape_cast %80 : vector<1x4x384xf32> to vector<4x384xf32>
    %cst_29 = arith.constant dense<0.000000e+00> : vector<8x384xf32>
    %82 = tpu.matmul %67, %81, %cst_29 {dimension_numbers = #tpu.dot_dimension_numbers<[1], [0], [0], [1], [0, 0, 1, 1], [], []>} : vector<8x4xf32>, vector<4x384xf32>, vector<8x384xf32> -> vector<8x384xf32>
    %83 = arith.addf %64, %82 : vector<8x384xf32>
    %c365_i32 = arith.constant 365 : i32
    %84 = tpu.dynamic_rotate %5 by %c365_i32 dim 2 : vector<4x4x384xf32>, i32 -> vector<4x4x384xf32>
    %c4 = arith.constant 4 : index
    %c0_30 = arith.constant 0 : index
    %c0_31 = arith.constant 0 : index
    %85 = vector.load %arg3[%c4, %c0_30, %c0_31] : memref<9x8x4xf32, #tpu.memory_space<vmem>>, vector<1x8x4xf32>
    %86 = vector.shape_cast %85 : vector<1x8x4xf32> to vector<8x4xf32>
    %87 = vector.extract_strided_slice %84 {offsets = [0, 0, 0], sizes = [1, 4, 384], strides = [1, 1, 1]} : vector<4x4x384xf32> to vector<1x4x384xf32>
    %88 = vector.shape_cast %87 : vector<1x4x384xf32> to vector<4x384xf32>
    %cst_32 = arith.constant dense<0.000000e+00> : vector<8x384xf32>
    %89 = tpu.matmul %86, %88, %cst_32 {dimension_numbers = #tpu.dot_dimension_numbers<[1], [0], [0], [1], [0, 0, 1, 1], [], []>} : vector<8x4xf32>, vector<4x384xf32>, vector<8x384xf32> -> vector<8x384xf32>
    %90 = arith.addf %71, %89 : vector<8x384xf32>
    %91 = vector.extract_strided_slice %84 {offsets = [1, 0, 0], sizes = [1, 4, 384], strides = [1, 1, 1]} : vector<4x4x384xf32> to vector<1x4x384xf32>
    %92 = vector.shape_cast %91 : vector<1x4x384xf32> to vector<4x384xf32>
    %cst_33 = arith.constant dense<0.000000e+00> : vector<8x384xf32>
    %93 = tpu.matmul %86, %92, %cst_33 {dimension_numbers = #tpu.dot_dimension_numbers<[1], [0], [0], [1], [0, 0, 1, 1], [], []>} : vector<8x4xf32>, vector<4x384xf32>, vector<8x384xf32> -> vector<8x384xf32>
    %94 = arith.addf %75, %93 : vector<8x384xf32>
    %95 = vector.extract_strided_slice %84 {offsets = [2, 0, 0], sizes = [1, 4, 384], strides = [1, 1, 1]} : vector<4x4x384xf32> to vector<1x4x384xf32>
    %96 = vector.shape_cast %95 : vector<1x4x384xf32> to vector<4x384xf32>
    %cst_34 = arith.constant dense<0.000000e+00> : vector<8x384xf32>
    %97 = tpu.matmul %86, %96, %cst_34 {dimension_numbers = #tpu.dot_dimension_numbers<[1], [0], [0], [1], [0, 0, 1, 1], [], []>} : vector<8x4xf32>, vector<4x384xf32>, vector<8x384xf32> -> vector<8x384xf32>
    %98 = arith.addf %79, %97 : vector<8x384xf32>
    %99 = vector.extract_strided_slice %84 {offsets = [3, 0, 0], sizes = [1, 4, 384], strides = [1, 1, 1]} : vector<4x4x384xf32> to vector<1x4x384xf32>
    %100 = vector.shape_cast %99 : vector<1x4x384xf32> to vector<4x384xf32>
    %cst_35 = arith.constant dense<0.000000e+00> : vector<8x384xf32>
    %101 = tpu.matmul %86, %100, %cst_35 {dimension_numbers = #tpu.dot_dimension_numbers<[1], [0], [0], [1], [0, 0, 1, 1], [], []>} : vector<8x4xf32>, vector<4x384xf32>, vector<8x384xf32> -> vector<8x384xf32>
    %102 = arith.addf %83, %101 : vector<8x384xf32>
    %c364_i32 = arith.constant 364 : i32
    %103 = tpu.dynamic_rotate %5 by %c364_i32 dim 2 : vector<4x4x384xf32>, i32 -> vector<4x4x384xf32>
    %c5 = arith.constant 5 : index
    %c0_36 = arith.constant 0 : index
    %c0_37 = arith.constant 0 : index
    %104 = vector.load %arg3[%c5, %c0_36, %c0_37] : memref<9x8x4xf32, #tpu.memory_space<vmem>>, vector<1x8x4xf32>
    %105 = vector.shape_cast %104 : vector<1x8x4xf32> to vector<8x4xf32>
    %106 = vector.extract_strided_slice %103 {offsets = [0, 0, 0], sizes = [1, 4, 384], strides = [1, 1, 1]} : vector<4x4x384xf32> to vector<1x4x384xf32>
    %107 = vector.shape_cast %106 : vector<1x4x384xf32> to vector<4x384xf32>
    %cst_38 = arith.constant dense<0.000000e+00> : vector<8x384xf32>
    %108 = tpu.matmul %105, %107, %cst_38 {dimension_numbers = #tpu.dot_dimension_numbers<[1], [0], [0], [1], [0, 0, 1, 1], [], []>} : vector<8x4xf32>, vector<4x384xf32>, vector<8x384xf32> -> vector<8x384xf32>
    %109 = arith.addf %90, %108 : vector<8x384xf32>
    %110 = vector.extract_strided_slice %103 {offsets = [1, 0, 0], sizes = [1, 4, 384], strides = [1, 1, 1]} : vector<4x4x384xf32> to vector<1x4x384xf32>
    %111 = vector.shape_cast %110 : vector<1x4x384xf32> to vector<4x384xf32>
    %cst_39 = arith.constant dense<0.000000e+00> : vector<8x384xf32>
    %112 = tpu.matmul %105, %111, %cst_39 {dimension_numbers = #tpu.dot_dimension_numbers<[1], [0], [0], [1], [0, 0, 1, 1], [], []>} : vector<8x4xf32>, vector<4x384xf32>, vector<8x384xf32> -> vector<8x384xf32>
    %113 = arith.addf %94, %112 : vector<8x384xf32>
    %114 = vector.extract_strided_slice %103 {offsets = [2, 0, 0], sizes = [1, 4, 384], strides = [1, 1, 1]} : vector<4x4x384xf32> to vector<1x4x384xf32>
    %115 = vector.shape_cast %114 : vector<1x4x384xf32> to vector<4x384xf32>
    %cst_40 = arith.constant dense<0.000000e+00> : vector<8x384xf32>
    %116 = tpu.matmul %105, %115, %cst_40 {dimension_numbers = #tpu.dot_dimension_numbers<[1], [0], [0], [1], [0, 0, 1, 1], [], []>} : vector<8x4xf32>, vector<4x384xf32>, vector<8x384xf32> -> vector<8x384xf32>
    %117 = arith.addf %98, %116 : vector<8x384xf32>
    %118 = vector.extract_strided_slice %103 {offsets = [3, 0, 0], sizes = [1, 4, 384], strides = [1, 1, 1]} : vector<4x4x384xf32> to vector<1x4x384xf32>
    %119 = vector.shape_cast %118 : vector<1x4x384xf32> to vector<4x384xf32>
    %cst_41 = arith.constant dense<0.000000e+00> : vector<8x384xf32>
    %120 = tpu.matmul %105, %119, %cst_41 {dimension_numbers = #tpu.dot_dimension_numbers<[1], [0], [0], [1], [0, 0, 1, 1], [], []>} : vector<8x4xf32>, vector<4x384xf32>, vector<8x384xf32> -> vector<8x384xf32>
    %121 = arith.addf %102, %120 : vector<8x384xf32>
    %c348_i32 = arith.constant 348 : i32
    %122 = tpu.dynamic_rotate %5 by %c348_i32 dim 2 : vector<4x4x384xf32>, i32 -> vector<4x4x384xf32>
    %c6 = arith.constant 6 : index
    %c0_42 = arith.constant 0 : index
    %c0_43 = arith.constant 0 : index
    %123 = vector.load %arg3[%c6, %c0_42, %c0_43] : memref<9x8x4xf32, #tpu.memory_space<vmem>>, vector<1x8x4xf32>
    %124 = vector.shape_cast %123 : vector<1x8x4xf32> to vector<8x4xf32>
    %125 = vector.extract_strided_slice %122 {offsets = [0, 0, 0], sizes = [1, 4, 384], strides = [1, 1, 1]} : vector<4x4x384xf32> to vector<1x4x384xf32>
    %126 = vector.shape_cast %125 : vector<1x4x384xf32> to vector<4x384xf32>
    %cst_44 = arith.constant dense<0.000000e+00> : vector<8x384xf32>
    %127 = tpu.matmul %124, %126, %cst_44 {dimension_numbers = #tpu.dot_dimension_numbers<[1], [0], [0], [1], [0, 0, 1, 1], [], []>} : vector<8x4xf32>, vector<4x384xf32>, vector<8x384xf32> -> vector<8x384xf32>
    %128 = arith.addf %109, %127 : vector<8x384xf32>
    %129 = vector.extract_strided_slice %122 {offsets = [1, 0, 0], sizes = [1, 4, 384], strides = [1, 1, 1]} : vector<4x4x384xf32> to vector<1x4x384xf32>
    %130 = vector.shape_cast %129 : vector<1x4x384xf32> to vector<4x384xf32>
    %cst_45 = arith.constant dense<0.000000e+00> : vector<8x384xf32>
    %131 = tpu.matmul %124, %130, %cst_45 {dimension_numbers = #tpu.dot_dimension_numbers<[1], [0], [0], [1], [0, 0, 1, 1], [], []>} : vector<8x4xf32>, vector<4x384xf32>, vector<8x384xf32> -> vector<8x384xf32>
    %132 = arith.addf %113, %131 : vector<8x384xf32>
    %133 = vector.extract_strided_slice %122 {offsets = [2, 0, 0], sizes = [1, 4, 384], strides = [1, 1, 1]} : vector<4x4x384xf32> to vector<1x4x384xf32>
    %134 = vector.shape_cast %133 : vector<1x4x384xf32> to vector<4x384xf32>
    %cst_46 = arith.constant dense<0.000000e+00> : vector<8x384xf32>
    %135 = tpu.matmul %124, %134, %cst_46 {dimension_numbers = #tpu.dot_dimension_numbers<[1], [0], [0], [1], [0, 0, 1, 1], [], []>} : vector<8x4xf32>, vector<4x384xf32>, vector<8x384xf32> -> vector<8x384xf32>
    %136 = arith.addf %117, %135 : vector<8x384xf32>
    %137 = vector.extract_strided_slice %122 {offsets = [3, 0, 0], sizes = [1, 4, 384], strides = [1, 1, 1]} : vector<4x4x384xf32> to vector<1x4x384xf32>
    %138 = vector.shape_cast %137 : vector<1x4x384xf32> to vector<4x384xf32>
    %cst_47 = arith.constant dense<0.000000e+00> : vector<8x384xf32>
    %139 = tpu.matmul %124, %138, %cst_47 {dimension_numbers = #tpu.dot_dimension_numbers<[1], [0], [0], [1], [0, 0, 1, 1], [], []>} : vector<8x4xf32>, vector<4x384xf32>, vector<8x384xf32> -> vector<8x384xf32>
    %140 = arith.addf %121, %139 : vector<8x384xf32>
    %c347_i32 = arith.constant 347 : i32
    %141 = tpu.dynamic_rotate %5 by %c347_i32 dim 2 : vector<4x4x384xf32>, i32 -> vector<4x4x384xf32>
    %c7 = arith.constant 7 : index
    %c0_48 = arith.constant 0 : index
    %c0_49 = arith.constant 0 : index
    %142 = vector.load %arg3[%c7, %c0_48, %c0_49] : memref<9x8x4xf32, #tpu.memory_space<vmem>>, vector<1x8x4xf32>
    %143 = vector.shape_cast %142 : vector<1x8x4xf32> to vector<8x4xf32>
    %144 = vector.extract_strided_slice %141 {offsets = [0, 0, 0], sizes = [1, 4, 384], strides = [1, 1, 1]} : vector<4x4x384xf32> to vector<1x4x384xf32>
    %145 = vector.shape_cast %144 : vector<1x4x384xf32> to vector<4x384xf32>
    %cst_50 = arith.constant dense<0.000000e+00> : vector<8x384xf32>
    %146 = tpu.matmul %143, %145, %cst_50 {dimension_numbers = #tpu.dot_dimension_numbers<[1], [0], [0], [1], [0, 0, 1, 1], [], []>} : vector<8x4xf32>, vector<4x384xf32>, vector<8x384xf32> -> vector<8x384xf32>
    %147 = arith.addf %128, %146 : vector<8x384xf32>
    %148 = vector.extract_strided_slice %141 {offsets = [1, 0, 0], sizes = [1, 4, 384], strides = [1, 1, 1]} : vector<4x4x384xf32> to vector<1x4x384xf32>
    %149 = vector.shape_cast %148 : vector<1x4x384xf32> to vector<4x384xf32>
    %cst_51 = arith.constant dense<0.000000e+00> : vector<8x384xf32>
    %150 = tpu.matmul %143, %149, %cst_51 {dimension_numbers = #tpu.dot_dimension_numbers<[1], [0], [0], [1], [0, 0, 1, 1], [], []>} : vector<8x4xf32>, vector<4x384xf32>, vector<8x384xf32> -> vector<8x384xf32>
    %151 = arith.addf %132, %150 : vector<8x384xf32>
    %152 = vector.extract_strided_slice %141 {offsets = [2, 0, 0], sizes = [1, 4, 384], strides = [1, 1, 1]} : vector<4x4x384xf32> to vector<1x4x384xf32>
    %153 = vector.shape_cast %152 : vector<1x4x384xf32> to vector<4x384xf32>
    %cst_52 = arith.constant dense<0.000000e+00> : vector<8x384xf32>
    %154 = tpu.matmul %143, %153, %cst_52 {dimension_numbers = #tpu.dot_dimension_numbers<[1], [0], [0], [1], [0, 0, 1, 1], [], []>} : vector<8x4xf32>, vector<4x384xf32>, vector<8x384xf32> -> vector<8x384xf32>
    %155 = arith.addf %136, %154 : vector<8x384xf32>
    %156 = vector.extract_strided_slice %141 {offsets = [3, 0, 0], sizes = [1, 4, 384], strides = [1, 1, 1]} : vector<4x4x384xf32> to vector<1x4x384xf32>
    %157 = vector.shape_cast %156 : vector<1x4x384xf32> to vector<4x384xf32>
    %cst_53 = arith.constant dense<0.000000e+00> : vector<8x384xf32>
    %158 = tpu.matmul %143, %157, %cst_53 {dimension_numbers = #tpu.dot_dimension_numbers<[1], [0], [0], [1], [0, 0, 1, 1], [], []>} : vector<8x4xf32>, vector<4x384xf32>, vector<8x384xf32> -> vector<8x384xf32>
    %159 = arith.addf %140, %158 : vector<8x384xf32>
    %c346_i32 = arith.constant 346 : i32
    %160 = tpu.dynamic_rotate %5 by %c346_i32 dim 2 : vector<4x4x384xf32>, i32 -> vector<4x4x384xf32>
    %c8 = arith.constant 8 : index
    %c0_54 = arith.constant 0 : index
    %c0_55 = arith.constant 0 : index
    %161 = vector.load %arg3[%c8, %c0_54, %c0_55] : memref<9x8x4xf32, #tpu.memory_space<vmem>>, vector<1x8x4xf32>
    %162 = vector.shape_cast %161 : vector<1x8x4xf32> to vector<8x4xf32>
    %163 = vector.extract_strided_slice %160 {offsets = [0, 0, 0], sizes = [1, 4, 384], strides = [1, 1, 1]} : vector<4x4x384xf32> to vector<1x4x384xf32>
    %164 = vector.shape_cast %163 : vector<1x4x384xf32> to vector<4x384xf32>
    %cst_56 = arith.constant dense<0.000000e+00> : vector<8x384xf32>
    %165 = tpu.matmul %162, %164, %cst_56 {dimension_numbers = #tpu.dot_dimension_numbers<[1], [0], [0], [1], [0, 0, 1, 1], [], []>} : vector<8x4xf32>, vector<4x384xf32>, vector<8x384xf32> -> vector<8x384xf32>
    %166 = arith.addf %147, %165 : vector<8x384xf32>
    %167 = vector.extract_strided_slice %160 {offsets = [1, 0, 0], sizes = [1, 4, 384], strides = [1, 1, 1]} : vector<4x4x384xf32> to vector<1x4x384xf32>
    %168 = vector.shape_cast %167 : vector<1x4x384xf32> to vector<4x384xf32>
    %cst_57 = arith.constant dense<0.000000e+00> : vector<8x384xf32>
    %169 = tpu.matmul %162, %168, %cst_57 {dimension_numbers = #tpu.dot_dimension_numbers<[1], [0], [0], [1], [0, 0, 1, 1], [], []>} : vector<8x4xf32>, vector<4x384xf32>, vector<8x384xf32> -> vector<8x384xf32>
    %170 = arith.addf %151, %169 : vector<8x384xf32>
    %171 = vector.extract_strided_slice %160 {offsets = [2, 0, 0], sizes = [1, 4, 384], strides = [1, 1, 1]} : vector<4x4x384xf32> to vector<1x4x384xf32>
    %172 = vector.shape_cast %171 : vector<1x4x384xf32> to vector<4x384xf32>
    %cst_58 = arith.constant dense<0.000000e+00> : vector<8x384xf32>
    %173 = tpu.matmul %162, %172, %cst_58 {dimension_numbers = #tpu.dot_dimension_numbers<[1], [0], [0], [1], [0, 0, 1, 1], [], []>} : vector<8x4xf32>, vector<4x384xf32>, vector<8x384xf32> -> vector<8x384xf32>
    %174 = arith.addf %155, %173 : vector<8x384xf32>
    %175 = vector.extract_strided_slice %160 {offsets = [3, 0, 0], sizes = [1, 4, 384], strides = [1, 1, 1]} : vector<4x4x384xf32> to vector<1x4x384xf32>
    %176 = vector.shape_cast %175 : vector<1x4x384xf32> to vector<4x384xf32>
    %cst_59 = arith.constant dense<0.000000e+00> : vector<8x384xf32>
    %177 = tpu.matmul %162, %176, %cst_59 {dimension_numbers = #tpu.dot_dimension_numbers<[1], [0], [0], [1], [0, 0, 1, 1], [], []>} : vector<8x4xf32>, vector<4x384xf32>, vector<8x384xf32> -> vector<8x384xf32>
    %178 = arith.addf %159, %177 : vector<8x384xf32>
    %c0_60 = arith.constant 0 : index
    %c0_61 = arith.constant 0 : index
    %179 = vector.load %arg6[%c0_60, %c0_61] : memref<8x384xf32, #tpu.memory_space<vmem>>, vector<8x384xf32>
    %cst_62 = arith.constant 0.899999976 : f32
    %180 = vector.broadcast %cst_62 : f32 to vector<8x384xf32>
    %181 = arith.mulf %180, %179 : vector<8x384xf32>
    %182 = arith.addf %181, %166 : vector<8x384xf32>
    %c0_63 = arith.constant 0 : index
    %c0_64 = arith.constant 0 : index
    %c0_65 = arith.constant 0 : index
    %c0_66 = arith.constant 0 : index
    %183 = vector.load %arg5[%c0_63, %c0_64, %c0_65, %c0_66] : memref<4x1x8x384xf32, #tpu.memory_space<vmem>>, vector<1x1x8x384xf32>
    %184 = vector.shape_cast %183 : vector<1x1x8x384xf32> to vector<8x384xf32>
    %185 = vector.shape_cast %182 : vector<8x384xf32> to vector<1x1x8x384xf32>
    tpu.vector_store %arg5[%c0_63, %c0_64, %c0_65, %c0_66], %185 {strides = array<i32>} : memref<4x1x8x384xf32, #tpu.memory_space<vmem>>, vector<1x1x8x384xf32>,
    %cst_67 = arith.constant 0.899999976 : f32
    %186 = vector.broadcast %cst_67 : f32 to vector<8x384xf32>
    %187 = arith.mulf %186, %182 : vector<8x384xf32>
    %188 = arith.addf %187, %170 : vector<8x384xf32>
    %c1_68 = arith.constant 1 : index
    %c0_69 = arith.constant 0 : index
    %c0_70 = arith.constant 0 : index
    %c0_71 = arith.constant 0 : index
    %189 = vector.load %arg5[%c1_68, %c0_69, %c0_70, %c0_71] : memref<4x1x8x384xf32, #tpu.memory_space<vmem>>, vector<1x1x8x384xf32>
    %190 = vector.shape_cast %189 : vector<1x1x8x384xf32> to vector<8x384xf32>
    %191 = vector.shape_cast %188 : vector<8x384xf32> to vector<1x1x8x384xf32>
    tpu.vector_store %arg5[%c1_68, %c0_69, %c0_70, %c0_71], %191 {strides = array<i32>} : memref<4x1x8x384xf32, #tpu.memory_space<vmem>>, vector<1x1x8x384xf32>,
    %cst_72 = arith.constant 0.899999976 : f32
    %192 = vector.broadcast %cst_72 : f32 to vector<8x384xf32>
    %193 = arith.mulf %192, %188 : vector<8x384xf32>
    %194 = arith.addf %193, %174 : vector<8x384xf32>
    %c2_73 = arith.constant 2 : index
    %c0_74 = arith.constant 0 : index
    %c0_75 = arith.constant 0 : index
    %c0_76 = arith.constant 0 : index
    %195 = vector.load %arg5[%c2_73, %c0_74, %c0_75, %c0_76] : memref<4x1x8x384xf32, #tpu.memory_space<vmem>>, vector<1x1x8x384xf32>
    %196 = vector.shape_cast %195 : vector<1x1x8x384xf32> to vector<8x384xf32>
    %197 = vector.shape_cast %194 : vector<8x384xf32> to vector<1x1x8x384xf32>
    tpu.vector_store %arg5[%c2_73, %c0_74, %c0_75, %c0_76], %197 {strides = array<i32>} : memref<4x1x8x384xf32, #tpu.memory_space<vmem>>, vector<1x1x8x384xf32>,
    %cst_77 = arith.constant 0.899999976 : f32
    %198 = vector.broadcast %cst_77 : f32 to vector<8x384xf32>
    %199 = arith.mulf %198, %194 : vector<8x384xf32>
    %200 = arith.addf %199, %178 : vector<8x384xf32>
    %c3_78 = arith.constant 3 : index
    %c0_79 = arith.constant 0 : index
    %c0_80 = arith.constant 0 : index
    %c0_81 = arith.constant 0 : index
    %201 = vector.load %arg5[%c3_78, %c0_79, %c0_80, %c0_81] : memref<4x1x8x384xf32, #tpu.memory_space<vmem>>, vector<1x1x8x384xf32>
    %202 = vector.shape_cast %201 : vector<1x1x8x384xf32> to vector<8x384xf32>
    %203 = vector.shape_cast %200 : vector<8x384xf32> to vector<1x1x8x384xf32>
    tpu.vector_store %arg5[%c3_78, %c0_79, %c0_80, %c0_81], %203 {strides = array<i32>} : memref<4x1x8x384xf32, #tpu.memory_space<vmem>>, vector<1x1x8x384xf32>,
    %c0_82 = arith.constant 0 : index
    %c0_83 = arith.constant 0 : index
    %204 = vector.load %arg6[%c0_82, %c0_83] : memref<8x384xf32, #tpu.memory_space<vmem>>, vector<8x384xf32>
    tpu.vector_store %arg6[%c0_82, %c0_83], %200 {strides = array<i32>} : memref<8x384xf32, #tpu.memory_space<vmem>>, vector<8x384xf32>,
    return
  }
  func.func @transform_0(%arg0: i32, %arg1: i32) -> (i32, i32, i32, i32) {
    %c0_i32 = arith.constant 0 : i32
    %c0_i32_0 = arith.constant 0 : i32
    %c0_i32_1 = arith.constant 0 : i32
    return %arg1, %arg0, %c0_i32, %c0_i32_0 : i32, i32, i32, i32
  }
  func.func @transform_1(%arg0: i32, %arg1: i32) -> (i32, i32, i32) {
    %c0_i32 = arith.constant 0 : i32
    %c0_i32_0 = arith.constant 0 : i32
    %c0_i32_1 = arith.constant 0 : i32
    %c0_i32_2 = arith.constant 0 : i32
    return %c0_i32, %c0_i32_0, %c0_i32_1 : i32, i32, i32
  }
  func.func @transform_2(%arg0: i32, %arg1: i32) -> (i32, i32) {
    %c0_i32 = arith.constant 0 : i32
    %c0_i32_0 = arith.constant 0 : i32
    %c0_i32_1 = arith.constant 0 : i32
    return %c0_i32, %c0_i32_0 : i32, i32
  }
  func.func @transform_3(%arg0: i32, %arg1: i32) -> (i32, i32, i32, i32) {
    %c0_i32 = arith.constant 0 : i32
    %c0_i32_0 = arith.constant 0 : i32
    %c0_i32_1 = arith.constant 0 : i32
    return %arg1, %arg0, %c0_i32, %c0_i32_0 : i32, i32, i32, i32
  }
}

</mosaic_0001>

<llo_original>
// kernel: tpu_custom_call.1
$region0: #{tpu_custom_call.1}
  #allocation0 [shape = 'u32[]', space=smem, size = 0x4, offset = 0x4, fixed_abs, tag = 'smem constant byte address 0x4 - core index']
  #allocation1 [shape = 'u32[144,128]{1,0:T(1,128)}', space=vmem, size = 0x12000, scoped, tag = 'internal scratch']
  #allocation2 [shape = 'f32[8,384]{1,0:T(8,128)}', space=vmem, size = 0x3000, scoped, tag = 'scratch operand']
  %s0 = inlined_call_operand.vmem [shape: bf16[4,2,4,384], index: 0, kind: input, shape index: {}]
  %s1 = inlined_call_operand.vmem [shape: f32[9,8,4], index: 1, kind: input, shape index: {}]
  %s2 = inlined_call_operand.vmem [shape: f32[8,1], index: 2, kind: input, shape index: {}]
  %s3 = inlined_call_operand.hbm [shape: f32[4,2,8,384], index: 3, kind: output, shape index: {}]
  %s4 = sld [smem:[#allocation0]]
  $region90: #{tpu_custom_call.1} parent=0
    _
  %s6 = ssub.s32 1, %s4
  %s7 = scalar_select 0, %s6, %s4
  $region1: #{tpu_custom_call.1} parent=0
    #allocation3 [shape = 'u8[24576]{0}', space=vmem, size = 0x6000, scoped, tag = 'input window, operand 0']
    #allocation4 [shape = 'u8[98304]{0}', space=vmem, size = 0x18000, scoped, tag = 'output window, operand 0']
    #allocation5 [shape = 's32[2]{0}', space=sflag, size = 0x8, scoped, tag = 'scoped memory for tpu_custom_call.1']
    %8 = vsyncpa [#allocation5], 0
    %s9 = scalar_lea.sflag [#allocation5], 1
    %10 = vsyncpa %s9, 0
    loop: start=0, step=1, limit=4
    $region2: #{tpu_custom_call.1} parent=1 // loop_pre_header
      _
    $region3: #{tpu_custom_call.1} parent=1 // loop_header
      %s12 = sphi 0, %s16
      %p13 = scmp.ge.s32.totalorder %s12, 4
      %s19 = sphi 0, %s31
      %s20 = sphi 0, %s27
      %s21 = sphi 0, %s19
      %s22 = sphi 0, %s20
      %s23 = sphi 0, %s21
      %s24 = sphi 0, %s22
      %s36 = sphi 0, %s38
      %s39 = sphi 0, %s36
      %s40 = sphi 0, %s39
      %s56 = sphi 0, %s40
      %s60 = sphi 0, %s60
      %s62 = sphi 0, %s60
      %s63 = sphi 0, %s62
      %s77 = sphi 0, %s63
      %s81 = sphi 0, %s81
      %s83 = sphi 0, %s81
      %s84 = sphi 0, %s83
      %s98 = sphi 0, %s84
      %s106 = sphi 0, %s108
      %s109 = sphi 0, %s106
      %s110 = sphi 0, %s109
      %s126 = sphi 0, %s110
    $region4: #{tpu_custom_call.1} parent=1 // loop_header_branch
      %15 = sbr.rel (%p13) target = $region8
    $region5: #{tpu_custom_call.1} parent=1 // loop_body
      %s17 = ssub.s32 %s12, 1
      %s18 = ssub.s32 %s12, 2
      %s25 = sadd.s32 1, %s20
      %p26 = scmp.ge.s32.totalorder %s25, 1
      %s27 = scalar_select %p26, 0, %s25
      %s28 = sadd.s32 1, %s19
      %s29 = scalar_select %p26, %s28, %s19
      %p30 = scmp.ge.s32.totalorder %s29, 2
      %s31 = scalar_select %p30, 0, %s29
      %s32 = ssub.s32 %s20, %s27
      %s33 = ssub.s32 %s19, %s31
      %s34 = sor.u32 %s32, %s33
      %p35 = scmp.eq.s32.totalorder %s34, 0
      %s37 = sadd.s32 %s36, 1
      %s38 = scalar_select %p35, %s36, %s37
      %p41 = pneg %p35
      %p42 = scmp.eq.s32.totalorder %s12, 1
      %p43 = por %p41, %p42
      %p44 = scmp.ne.s32.totalorder %s36, %s39
      %p45 = scmp.eq.s32.totalorder %s12, 0
      %p46 = por %p44, %p45
      %p47 = scmp.ne.s32.totalorder %s36, %s39
      %p48 = scmp.eq.s32.totalorder %s17, 1
      %p49 = por %p47, %p48
      %p50 = scmp.ne.s32.totalorder %s39, %s40
      %p51 = scmp.eq.s32.totalorder %s17, 0
      %p52 = por %p50, %p51
      %p53 = scmp.ne.s32.totalorder %s39, %s40
      %p54 = scmp.eq.s32.totalorder %s18, 1
      %p55 = por %p53, %p54
      %p57 = scmp.ne.s32.totalorder %s40, %s56
      %p58 = scmp.eq.s32.totalorder %s18, 0
      %p59 = por %p57, %p58
      %s61 = sadd.s32 %s60, 1
      %p64 = scmp.eq.s32.totalorder %s12, 1
      %p65 = scmp.ne.s32.totalorder %s60, %s62
      %p66 = scmp.eq.s32.totalorder %s12, 0
      %p67 = por %p65, %p66
      %p68 = scmp.ne.s32.totalorder %s60, %s62
      %p69 = scmp.eq.s32.totalorder %s17, 1
      %p70 = por %p68, %p69
      %p71 = scmp.ne.s32.totalorder %s62, %s63
      %p72 = scmp.eq.s32.totalorder %s17, 0
      %p73 = por %p71, %p72
      %p74 = scmp.ne.s32.totalorder %s62, %s63
      %p75 = scmp.eq.s32.totalorder %s18, 1
      %p76 = por %p74, %p75
      %p78 = scmp.ne.s32.totalorder %s63, %s77
      %p79 = scmp.eq.s32.totalorder %s18, 0
      %p80 = por %p78, %p79
      %s82 = sadd.s32 %s81, 1
      %p85 = scmp.eq.s32.totalorder %s12, 1
      %p86 = scmp.ne.s32.totalorder %s81, %s83
      %p87 = scmp.eq.s32.totalorder %s12, 0
      %p88 = por %p86, %p87
      %p89 = scmp.ne.s32.totalorder %s81, %s83
      %p90 = scmp.eq.s32.totalorder %s17, 1
      %p91 = por %p89, %p90
      %p92 = scmp.ne.s32.totalorder %s83, %s84
      %p93 = scmp.eq.s32.totalorder %s17, 0
      %p94 = por %p92, %p93
      %p95 = scmp.ne.s32.totalorder %s83, %s84
      %p96 = scmp.eq.s32.totalorder %s18, 1
      %p97 = por %p95, %p96
      %p99 = scmp.ne.s32.totalorder %s84, %s98
      %p100 = scmp.eq.s32.totalorder %s18, 0
      %p101 = por %p99, %p100
      %s102 = ssub.s32 %s20, %s27
      %s103 = ssub.s32 %s19, %s31
      %s104 = sor.u32 %s102, %s103
      %p105 = scmp.eq.s32.totalorder %s104, 0
      %s107 = sadd.s32 %s106, 1
      %s108 = scalar_select %p105, %s106, %s107
      %p111 = pneg %p105
      %p112 = scmp.eq.s32.totalorder %s12, 1
      %p113 = por %p111, %p112
      %p114 = scmp.ne.s32.totalorder %s106, %s109
      %p115 = scmp.eq.s32.totalorder %s12, 0
      %p116 = por %p114, %p115
      %p117 = scmp.ne.s32.totalorder %s106, %s109
      %p118 = scmp.eq.s32.totalorder %s17, 1
      %p119 = por %p117, %p118
      %p120 = scmp.ne.s32.totalorder %s109, %s110
      %p121 = scmp.eq.s32.totalorder %s17, 0
      %p122 = por %p120, %p121
      %p123 = scmp.ne.s32.totalorder %s109, %s110
      %p124 = scmp.eq.s32.totalorder %s18, 1
      %p125 = por %p123, %p124
      %p127 = scmp.ne.s32.totalorder %s110, %s126
      %p128 = scmp.eq.s32.totalorder %s18, 0
      %p129 = por %p127, %p128
      %p130 = scmp.le.s32.totalorder 1, %s12
      %p131 = scmp.lt.s32.totalorder %s12, 3
      %p132 = pnand %p130, %p131
      %p133 = pneg %p132
      // Predicated region
      $region9: #{tpu_custom_call.1} parent=5 // pred_check
        _
      $region10: #{tpu_custom_call.1} parent=5 // pred_check_branch
        %135 = sbr.rel (%p132) target = $region12
      $region11: #{tpu_custom_call.1} parent=5 // pred_region
        %s136 = ssub.s32 %s12, 1
        // Predicated region
        $region13: #{tpu_custom_call.1} parent=11 // pred_check
          %p137 = pneg %p73
        $region14: #{tpu_custom_call.1} parent=11 // pred_check_branch
          %139 = sbr.rel (%p137) target = $region16
        $region15: #{tpu_custom_call.1} parent=11 // pred_region
          _
        $region16: #{tpu_custom_call.1} parent=11 // pred_fallthru
          _
        // Predicated region
        $region17: #{tpu_custom_call.1} parent=11 // pred_check
          %p140 = pneg %p94
        $region18: #{tpu_custom_call.1} parent=11 // pred_check_branch
          %142 = sbr.rel (%p140) target = $region20
        $region19: #{tpu_custom_call.1} parent=11 // pred_region
          _
        $region20: #{tpu_custom_call.1} parent=11 // pred_fallthru
          _
      $region12: #{tpu_custom_call.1} parent=5 // pred_fallthru
        _
      %p143 = scmp.lt.s32.totalorder %s12, 2
      // Predicated region
      $region21: #{tpu_custom_call.1} parent=5 // pred_check
        %p144 = pneg %p143
      $region22: #{tpu_custom_call.1} parent=5 // pred_check_branch
        %146 = sbr.rel (%p144) target = $region24
      $region23: #{tpu_custom_call.1} parent=5 // pred_region
        // Predicated region
        $region25: #{tpu_custom_call.1} parent=23 // pred_check
          %p147 = pneg %p46
        $region26: #{tpu_custom_call.1} parent=23 // pred_check_branch
          %149 = sbr.rel (%p147) target = $region28
        $region27: #{tpu_custom_call.1} parent=23 // pred_region
          %s150 = sand.u32 %s36, 1
          %s151 = sand.u32 %s36, 1
          %s152 = smul.addr %s151, 24
          %s153 = scalar_lea.vmem [#allocation3], %s152
          %s154 = smul.u32 4, %s20
          %s155 = smul.addr %s19, 3
          %s156 = smul.addr %s154, 6
          %s157 = sadd.s32 %s155, %s156
          %s158 = smul.addr %s157, 2
          %s159 = scalar_lea.vmem %s0, %s158
          // Predicated region
          $region29: #{tpu_custom_call.1} parent=27 // pred_check
            _
          $region30: #{tpu_custom_call.1} parent=27 // pred_check_branch
            %161 = sbr.rel (0) target = $region32
          $region31: #{tpu_custom_call.1} parent=27 // pred_region
            // Predicated region
            $region33: #{tpu_custom_call.1} parent=31 // pred_check
              _
            $region34: #{tpu_custom_call.1} parent=31 // pred_check_branch
              %163 = sbr.rel target = $region36
            $region35: #{tpu_custom_call.1} parent=31 // pred_region
              // Predicated region
              $region48: #{tpu_custom_call.1} parent=35 // pred_check
                _
              $region49: #{tpu_custom_call.1} parent=35 // pred_check_branch
                %184 = sbr.rel (0) target = $region51
              $region50: #{tpu_custom_call.1} parent=35 // pred_region
                loop: start=0, step=1, limit=1
                $region52: #{tpu_custom_call.1} parent=50 // loop_pre_header
                  _
                $region53: #{tpu_custom_call.1} parent=50 // loop_header
                  %s186 = sphi 0, %s190
                  %p187 = scmp.ge.s32.totalorder %s186, 1
                  %s191 = sphi %s159, %s159
                  %s192 = sphi %s153, %s153
                $region54: #{tpu_custom_call.1} parent=50 // loop_header_branch
                  %189 = sbr.rel (%p187) target = $region58
                $region55: #{tpu_custom_call.1} parent=50 // loop_body
                  _
                $region56: #{tpu_custom_call.1} parent=50 // loop_footer
                  %s190 = sadd.s32 1, %s186
                $region57: #{tpu_custom_call.1} parent=50 // loop_footer_branch
                  %185 = sbr.rel target = $region53
                $region58: #{tpu_custom_call.1} parent=50 // loop_exit
                  _
                loop: start=0, step=1, limit=1
                $region59: #{tpu_custom_call.1} parent=50 // loop_pre_header
                  _
                $region60: #{tpu_custom_call.1} parent=50 // loop_header
                  %s195 = sphi 0, %s199
                  %p196 = scmp.ge.s32.totalorder %s195, 1
                  %s200 = sphi %s159, %s159
                  %s201 = sphi %s153, %s153
                $region61: #{tpu_custom_call.1} parent=50 // loop_header_branch
                  %198 = sbr.rel (%p196) target = $region65
                $region62: #{tpu_custom_call.1} parent=50 // loop_body
                  %v202 = vld [vmem:[%s200] sm:$0x3f]
                  %203 = vst [vmem:[%s201] sm:$0x3f] %v202
                  %v204 = vld [vmem:[%s200 + $0xc] sm:$0x3f]
                  %205 = vst [vmem:[%s201 + $0x6] sm:$0x3f] %v204
                  %v206 = vld [vmem:[%s200 + $0x18] sm:$0x3f]
                  %207 = vst [vmem:[%s201 + $0xc] sm:$0x3f] %v206
                  %v208 = vld [vmem:[%s200 + $0x24] sm:$0x3f]
                  %209 = vst [vmem:[%s201 + $0x12] sm:$0x3f] %v208
                $region63: #{tpu_custom_call.1} parent=50 // loop_footer
                  %s199 = sadd.s32 1, %s195
                $region64: #{tpu_custom_call.1} parent=50 // loop_footer_branch
                  %194 = sbr.rel target = $region60
                $region65: #{tpu_custom_call.1} parent=50 // loop_exit
                  _
              $region51: #{tpu_custom_call.1} parent=35 // pred_fallthru
                _
            $region36: #{tpu_custom_call.1} parent=31 // pred_fallthru
              _
            // Predicated region
            $region37: #{tpu_custom_call.1} parent=31 // pred_check
              _
            $region38: #{tpu_custom_call.1} parent=31 // pred_check_branch
              %165 = sbr.rel (0) target = $region40
            $region39: #{tpu_custom_call.1} parent=31 // pred_region
              loop: start=0, step=1, limit=1
              $region41: #{tpu_custom_call.1} parent=39 // loop_pre_header
                _
              $region42: #{tpu_custom_call.1} parent=39 // loop_header
                %s168 = sphi 0, %s172
                %p169 = scmp.ge.s32.totalorder %s168, 1
                %s173 = sphi %s159, %s159
                %s174 = sphi %s153, %s153
              $region43: #{tpu_custom_call.1} parent=39 // loop_header_branch
                %171 = sbr.rel (%p169) target = $region47
              $region44: #{tpu_custom_call.1} parent=39 // loop_body
                %v175 = vld [vmem:[%s173] sm:$0x3f]
                %176 = vst [vmem:[%s174] sm:$0x3f] %v175
                %v177 = vld [vmem:[%s173 + $0xc] sm:$0x3f]
                %178 = vst [vmem:[%s174 + $0x6] sm:$0x3f] %v177
                %v179 = vld [vmem:[%s173 + $0x18] sm:$0x3f]
                %180 = vst [vmem:[%s174 + $0xc] sm:$0x3f] %v179
                %v181 = vld [vmem:[%s173 + $0x24] sm:$0x3f]
                %182 = vst [vmem:[%s174 + $0x12] sm:$0x3f] %v181
              $region45: #{tpu_custom_call.1} parent=39 // loop_footer
                %s172 = sadd.s32 1, %s168
              $region46: #{tpu_custom_call.1} parent=39 // loop_footer_branch
                %167 = sbr.rel target = $region42
              $region47: #{tpu_custom_call.1} parent=39 // loop_exit
                _
            $region40: #{tpu_custom_call.1} parent=31 // pred_fallthru
              _
          $region32: #{tpu_custom_call.1} parent=27 // pred_fallthru
            _
          %210 = vnop
        $region28: #{tpu_custom_call.1} parent=23 // pred_fallthru
          _
      $region24: #{tpu_custom_call.1} parent=5 // pred_fallthru
        _
      %p211 = scmp.le.s32.totalorder 1, %s12
      %p212 = scmp.lt.s32.totalorder %s12, 3
      %p213 = pnand %p211, %p212
      %p214 = pneg %p213
      // Predicated region
      $region66: #{tpu_custom_call.1} parent=5 // pred_check
        _
      $region67: #{tpu_custom_call.1} parent=5 // pred_check_branch
        %216 = sbr.rel (%p213) target = $region69
      $region68: #{tpu_custom_call.1} parent=5 // pred_region
        %s217 = ssub.s32 %s12, 1
        %s218 = sand.u32 %s39, 1
        %s219 = sand.u32 %s39, 1
        %s220 = smul.addr %s219, 24
        %s221 = scalar_lea.vmem [#allocation3], %s220
        // Predicated region
        $region70: #{tpu_custom_call.1} parent=68 // pred_check
          %p222 = pneg %p52
        $region71: #{tpu_custom_call.1} parent=68 // pred_check_branch
          %224 = sbr.rel (%p222) target = $region73
        $region72: #{tpu_custom_call.1} parent=68 // pred_region
          _
        $region73: #{tpu_custom_call.1} parent=68 // pred_fallthru
          _
        %s225 = sand.u32 %s39, 1
        %s226 = sand.u32 %s39, 1
        %s227 = smul.addr %s226, 24
        %s228 = scalar_lea.vmem [#allocation3], %s227
        %p229 = pneg %p52
        %p230 = pneg %p49
        %p231 = pneg %p73
        %p232 = pneg %p70
        %p233 = pneg %p94
        %p234 = pneg %p91
        %p235 = pneg %p122
        %p236 = pneg %p119
        %s237 = sand.u32 %s109, 1
        %s238 = scalar_lea.sflag [#allocation5], %s237
        %s239 = sand.u32 %s109, 1
        %s240 = smul.addr %s239, 96
        %s241 = scalar_lea.vmem [#allocation4], %s240
        %s242 = smul.u32 4, %s22
        %s243 = smul.u32 4, %s22
        %p244 = scmp.eq.s32.totalorder %s22, 0
        // Predicated region
        $region74: #{tpu_custom_call.1} parent=68 // pred_check
          %p245 = pneg %p244
        $region75: #{tpu_custom_call.1} parent=68 // pred_check_branch
          %247 = sbr.rel (%p245) target = $region77
        $region76: #{tpu_custom_call.1} parent=68 // pred_region
          %248 = vst [vmem:[#allocation2] sm:$0xff] 0.0
          %249 = vst [vmem:[#allocation2 + $0x8] sm:$0xff] 0.0
          %250 = vst [vmem:[#allocation2 + $0x10] sm:$0xff] 0.0
        $region77: #{tpu_custom_call.1} parent=68 // pred_fallthru
          _
        %v251 = vld [vmem:[%s221] sm:$0x3f]
        %v252 = vld [vmem:[%s221 + $0x6] sm:$0x3f]
        %v253 = vld [vmem:[%s221 + $0xc] sm:$0x3f]
        %v254 = vld [vmem:[%s221 + $0x12] sm:$0x3f]
        %v255 = vunpack.c.l.bf16 %v251
        %v256 = vunpack.c.h.bf16 %v251
        %v257 = vunpack.c.l.bf16 %v252
        %v258 = vunpack.c.h.bf16 %v252
        %v259 = vunpack.c.l.bf16 %v253
        %v260 = vunpack.c.h.bf16 %v253
        %v261 = vunpack.c.l.bf16 %v254
        %v262 = vunpack.c.h.bf16 %v254
        %v263 = vld [vmem:[%s2] sm:$0xff]
        %265 = vset.pattern.permute.xlu0 0
        %266 = vperm.xlu0 %265, %v263
        %v267 = vpop.permute.xlu0 %266
        %v269 = vld [vmem:[%s1] sm:$0xff]
        %v272 = vcombine.high %v255, %v255
        %vm273 = vcmask 31744
        %v275 = vsel %vm273, %v269, 0
        %vm277 = vcmask 1043456
        %v278 = vsel %vm277, %v255, 0
        %v280 = vsel %vm277, %v272, 0
        %v282 = vsel %vm277, %v256, 0
        %284 = vmatprep.subr.mxu0 %v280
        %285 = vmatpush1.msra.mxu0 %v278
        %286 = vmatprep.subr.mxu0 0.0
        %287 = vmatpush1.msra.mxu0 0.0
        %288 = vmatprep.subr.mxu0 0.0
        %289 = vmatpush1.msra.mxu0 0.0
        %290 = vmatprep.subr.mxu0 0.0
        %291 = vmatpush1.msra.mxu0 0.0
        %292 = vmatprep.subr.mxu0 0.0
        %293 = vmatpush1.msra.mxu0 0.0
        %294 = vmatprep.subr.mxu0 0.0
        %295 = vmatpush1.msra.mxu0 0.0
        %296 = vmatprep.subr.mxu0 0.0
        %297 = vmatpush1.msra.mxu0 0.0
        %298 = vmatprep.subr.mxu0 0.0
        %299 = vmatpush1.msra.mxu0 0.0
        %300 = vmatprep.subr.mxu0 0.0
        %301 = vmatpush1.msra.mxu0 0.0
        %302 = vmatprep.subr.mxu0 0.0
        %303 = vmatpush1.msra.mxu0 0.0
        %304 = vmatprep.subr.mxu0 0.0
        %305 = vmatpush1.msra.mxu0 0.0
        %306 = vmatprep.subr.mxu0 0.0
        %307 = vmatpush1.msra.mxu0 0.0
        %308 = vmatprep.subr.mxu0 0.0
        %309 = vmatpush1.msra.mxu0 0.0
        %310 = vmatprep.subr.mxu0 0.0
        %311 = vmatpush1.msra.mxu0 0.0
        %312 = vmatprep.subr.mxu0 0.0
        %313 = vmatpush1.msra.mxu0 0.0
        %314 = vmatprep.subr.mxu0 0.0
        %315 = vmatpush1.msra.mxu0 0.0
        %316 = vmatprep.subr.mxu0 0.0
        %317 = vmatpush1.msra.mxu0 0.0
        %318 = vmatprep.subr.mxu0 0.0
        %319 = vmatpush1.msra.mxu0 0.0
        %320 = vmatprep.subr.mxu0 0.0
        %321 = vmatpush1.msra.mxu0 0.0
        %322 = vmatprep.subr.mxu0 0.0
        %323 = vmatpush1.msra.mxu0 0.0
        %324 = vmatprep.subr.mxu0 0.0
        %325 = vmatpush1.msra.mxu0 0.0
        %326 = vmatprep.subr.mxu0 0.0
        %327 = vmatpush1.msra.mxu0 0.0
        %328 = vmatprep.subr.mxu0 0.0
        %329 = vmatpush1.msra.mxu0 0.0
        %330 = vmatprep.subr.mxu0 0.0
        %331 = vmatpush1.msra.mxu0 0.0
        %332 = vmatprep.subr.mxu0 0.0
        %333 = vmatpush1.msra.mxu0 0.0
        %334 = vmatprep.subr.mxu0 0.0
        %335 = vmatpush1.msra.mxu0 0.0
        %336 = vmatprep.subr.mxu0 0.0
        %337 = vmatpush1.msra.mxu0 0.0
        %338 = vmatprep.subr.mxu0 0.0
        %339 = vmatpush1.msra.mxu0 0.0
        %340 = vmatprep.subr.mxu0 0.0
        %341 = vmatpush1.msra.mxu0 0.0
        %342 = vmatprep.subr.mxu0 0.0
        %343 = vmatpush1.msra.mxu0 0.0
        %344 = vmatprep.subr.mxu0 0.0
        %345 = vmatpush1.msra.mxu0 0.0
        %346 = vmatprep.subr.mxu0 0.0
        %347 = vmatpush1.msra.mxu0 0.0
        %348 = vmatprep.mubr.f32.mxu0 0.0
        %349 = vmatmul.mubr.f32.gmra.mrb[0].mxu0 %v275
        %v350 = vpop.f32.mrb[0].mxu0
        %v351 = vadd.f32 0.0, %v350
        %v352 = vpop.f32.mrb[0].mxu0
        %v353 = vadd.f32 0.0, %v352
        %354 = vdwg.mxu0
        %355 = vmatprep.subr.mxu0 0.0
        %356 = vmatpush1.msra.mxu0 %v282
        %357 = vmatprep.subr.mxu0 0.0
        %358 = vmatpush1.msra.mxu0 0.0
        %359 = vmatprep.subr.mxu0 0.0
        %360 = vmatpush1.msra.mxu0 0.0
        %361 = vmatprep.subr.mxu0 0.0
        %362 = vmatpush1.msra.mxu0 0.0
        %363 = vmatprep.subr.mxu0 0.0
        %364 = vmatpush1.msra.mxu0 0.0
        %365 = vmatprep.subr.mxu0 0.0
        %366 = vmatpush1.msra.mxu0 0.0
        %367 = vmatprep.subr.mxu0 0.0
        %368 = vmatpush1.msra.mxu0 0.0
        %369 = vmatprep.subr.mxu0 0.0
        %370 = vmatpush1.msra.mxu0 0.0
        %371 = vmatprep.subr.mxu0 0.0
        %372 = vmatpush1.msra.mxu0 0.0
        %373 = vmatprep.subr.mxu0 0.0
        %374 = vmatpush1.msra.mxu0 0.0
        %375 = vmatprep.subr.mxu0 0.0
        %376 = vmatpush1.msra.mxu0 0.0
        %377 = vmatprep.subr.mxu0 0.0
        %378 = vmatpush1.msra.mxu0 0.0
        %379 = vmatprep.subr.mxu0 0.0
        %380 = vmatpush1.msra.mxu0 0.0
        %381 = vmatprep.subr.mxu0 0.0
        %382 = vmatpush1.msra.mxu0 0.0
        %383 = vmatprep.subr.mxu0 0.0
        %384 = vmatpush1.msra.mxu0 0.0
        %385 = vmatprep.subr.mxu0 0.0
        %386 = vmatpush1.msra.mxu0 0.0
        %387 = vmatprep.subr.mxu0 0.0
        %388 = vmatpush1.msra.mxu0 0.0
        %389 = vmatprep.subr.mxu0 0.0
        %390 = vmatpush1.msra.mxu0 0.0
        %391 = vmatprep.subr.mxu0 0.0
        %392 = vmatpush1.msra.mxu0 0.0
        %393 = vmatprep.subr.mxu0 0.0
        %394 = vmatpush1.msra.mxu0 0.0
        %395 = vmatprep.subr.mxu0 0.0
        %396 = vmatpush1.msra.mxu0 0.0
        %397 = vmatprep.subr.mxu0 0.0
        %398 = vmatpush1.msra.mxu0 0.0
        %399 = vmatprep.subr.mxu0 0.0
        %400 = vmatpush1.msra.mxu0 0.0
        %401 = vmatprep.subr.mxu0 0.0
        %402 = vmatpush1.msra.mxu0 0.0
        %403 = vmatprep.subr.mxu0 0.0
        %404 = vmatpush1.msra.mxu0 0.0
        %405 = vmatprep.subr.mxu0 0.0
        %406 = vmatpush1.msra.mxu0 0.0
        %407 = vmatprep.subr.mxu0 0.0
        %408 = vmatpush1.msra.mxu0 0.0
        %409 = vmatprep.subr.mxu0 0.0
        %410 = vmatpush1.msra.mxu0 0.0
        %411 = vmatprep.subr.mxu0 0.0
        %412 = vmatpush1.msra.mxu0 0.0
        %413 = vmatprep.subr.mxu0 0.0
        %414 = vmatpush1.msra.mxu0 0.0
        %415 = vmatprep.subr.mxu0 0.0
        %416 = vmatpush1.msra.mxu0 0.0
        %417 = vmatprep.subr.mxu0 0.0
        %418 = vmatpush1.msra.mxu0 0.0
        %419 = vmatprep.mubr.f32.mxu0 0.0
        %420 = vmatmul.mubr.f32.gmra.mrb[0].mxu0 %v275
        %v421 = vpop.f32.mrb[0].mxu0
        %v422 = vadd.f32 0.0, %v421
        %v423 = vpop.f32.mrb[0].mxu0
        %424 = vdwg.mxu0
        %v425 = vadd.f32 %v267, %v351
        %v426 = vadd.f32 %v267, %v353
        %v427 = vadd.f32 %v267, %v422
        %v430 = vcombine.high %v257, %v257
        %v431 = vsel %vm277, %v257, 0
        %v433 = vsel %vm277, %v430, 0
        %v435 = vsel %vm277, %v258, 0
        %437 = vmatprep.subr.mxu0 %v433
        %438 = vmatpush1.msra.mxu0 %v431
        %439 = vmatprep.subr.mxu0 0.0
        %440 = vmatpush1.msra.mxu0 0.0
        %441 = vmatprep.subr.mxu0 0.0
        %442 = vmatpush1.msra.mxu0 0.0
        %443 = vmatprep.subr.mxu0 0.0
        %444 = vmatpush1.msra.mxu0 0.0
        %445 = vmatprep.subr.mxu0 0.0
        %446 = vmatpush1.msra.mxu0 0.0
        %447 = vmatprep.subr.mxu0 0.0
        %448 = vmatpush1.msra.mxu0 0.0
        %449 = vmatprep.subr.mxu0 0.0
        %450 = vmatpush1.msra.mxu0 0.0
        %451 = vmatprep.subr.mxu0 0.0
        %452 = vmatpush1.msra.mxu0 0.0
        %453 = vmatprep.subr.mxu0 0.0
        %454 = vmatpush1.msra.mxu0 0.0
        %455 = vmatprep.subr.mxu0 0.0
        %456 = vmatpush1.msra.mxu0 0.0
        %457 = vmatprep.subr.mxu0 0.0
        %458 = vmatpush1.msra.mxu0 0.0
        %459 = vmatprep.subr.mxu0 0.0
        %460 = vmatpush1.msra.mxu0 0.0
        %461 = vmatprep.subr.mxu0 0.0
        %462 = vmatpush1.msra.mxu0 0.0
        %463 = vmatprep.subr.mxu0 0.0
        %464 = vmatpush1.msra.mxu0 0.0
        %465 = vmatprep.subr.mxu0 0.0
        %466 = vmatpush1.msra.mxu0 0.0
        %467 = vmatprep.subr.mxu0 0.0
        %468 = vmatpush1.msra.mxu0 0.0
        %469 = vmatprep.subr.mxu0 0.0
        %470 = vmatpush1.msra.mxu0 0.0
        %471 = vmatprep.subr.mxu0 0.0
        %472 = vmatpush1.msra.mxu0 0.0
        %473 = vmatprep.subr.mxu0 0.0
        %474 = vmatpush1.msra.mxu0 0.0
        %475 = vmatprep.subr.mxu0 0.0
        %476 = vmatpush1.msra.mxu0 0.0
        %477 = vmatprep.subr.mxu0 0.0
        %478 = vmatpush1.msra.mxu0 0.0
        %479 = vmatprep.subr.mxu0 0.0
        %480 = vmatpush1.msra.mxu0 0.0
        %481 = vmatprep.subr.mxu0 0.0
        %482 = vmatpush1.msra.mxu0 0.0
        %483 = vmatprep.subr.mxu0 0.0
        %484 = vmatpush1.msra.mxu0 0.0
        %485 = vmatprep.subr.mxu0 0.0
        %486 = vmatpush1.msra.mxu0 0.0
        %487 = vmatprep.subr.mxu0 0.0
        %488 = vmatpush1.msra.mxu0 0.0
        %489 = vmatprep.subr.mxu0 0.0
        %490 = vmatpush1.msra.mxu0 0.0
        %491 = vmatprep.subr.mxu0 0.0
        %492 = vmatpush1.msra.mxu0 0.0
        %493 = vmatprep.subr.mxu0 0.0
        %494 = vmatpush1.msra.mxu0 0.0
        %495 = vmatprep.subr.mxu0 0.0
        %496 = vmatpush1.msra.mxu0 0.0
        %497 = vmatprep.subr.mxu0 0.0
        %498 = vmatpush1.msra.mxu0 0.0
        %499 = vmatprep.subr.mxu0 0.0
        %500 = vmatpush1.msra.mxu0 0.0
        %501 = vmatprep.mubr.f32.mxu0 0.0
        %502 = vmatmul.mubr.f32.gmra.mrb[0].mxu0 %v275
        %v503 = vpop.f32.mrb[0].mxu0
        %v504 = vadd.f32 0.0, %v503
        %v505 = vpop.f32.mrb[0].mxu0
        %v506 = vadd.f32 0.0, %v505
        %507 = vdwg.mxu0
        %508 = vmatprep.subr.mxu0 0.0
        %509 = vmatpush1.msra.mxu0 %v435
        %510 = vmatprep.subr.mxu0 0.0
        %511 = vmatpush1.msra.mxu0 0.0
        %512 = vmatprep.subr.mxu0 0.0
        %513 = vmatpush1.msra.mxu0 0.0
        %514 = vmatprep.subr.mxu0 0.0
        %515 = vmatpush1.msra.mxu0 0.0
        %516 = vmatprep.subr.mxu0 0.0
        %517 = vmatpush1.msra.mxu0 0.0
        %518 = vmatprep.subr.mxu0 0.0
        %519 = vmatpush1.msra.mxu0 0.0
        %520 = vmatprep.subr.mxu0 0.0
        %521 = vmatpush1.msra.mxu0 0.0
        %522 = vmatprep.subr.mxu0 0.0
        %523 = vmatpush1.msra.mxu0 0.0
        %524 = vmatprep.subr.mxu0 0.0
        %525 = vmatpush1.msra.mxu0 0.0
        %526 = vmatprep.subr.mxu0 0.0
        %527 = vmatpush1.msra.mxu0 0.0
        %528 = vmatprep.subr.mxu0 0.0
        %529 = vmatpush1.msra.mxu0 0.0
        %530 = vmatprep.subr.mxu0 0.0
        %531 = vmatpush1.msra.mxu0 0.0
        %532 = vmatprep.subr.mxu0 0.0
        %533 = vmatpush1.msra.mxu0 0.0
        %534 = vmatprep.subr.mxu0 0.0
        %535 = vmatpush1.msra.mxu0 0.0
        %536 = vmatprep.subr.mxu0 0.0
        %537 = vmatpush1.msra.mxu0 0.0
        %538 = vmatprep.subr.mxu0 0.0
        %539 = vmatpush1.msra.mxu0 0.0
        %540 = vmatprep.subr.mxu0 0.0
        %541 = vmatpush1.msra.mxu0 0.0
        %542 = vmatprep.subr.mxu0 0.0
        %543 = vmatpush1.msra.mxu0 0.0
        %544 = vmatprep.subr.mxu0 0.0
        %545 = vmatpush1.msra.mxu0 0.0
        %546 = vmatprep.subr.mxu0 0.0
        %547 = vmatpush1.msra.mxu0 0.0
        %548 = vmatprep.subr.mxu0 0.0
        %549 = vmatpush1.msra.mxu0 0.0
        %550 = vmatprep.subr.mxu0 0.0
        %551 = vmatpush1.msra.mxu0 0.0
        %552 = vmatprep.subr.mxu0 0.0
        %553 = vmatpush1.msra.mxu0 0.0
        %554 = vmatprep.subr.mxu0 0.0
        %555 = vmatpush1.msra.mxu0 0.0
        %556 = vmatprep.subr.mxu0 0.0
        %557 = vmatpush1.msra.mxu0 0.0
        %558 = vmatprep.subr.mxu0 0.0
        %559 = vmatpush1.msra.mxu0 0.0
        %560 = vmatprep.subr.mxu0 0.0
        %561 = vmatpush1.msra.mxu0 0.0
        %562 = vmatprep.subr.mxu0 0.0
        %563 = vmatpush1.msra.mxu0 0.0
        %564 = vmatprep.subr.mxu0 0.0
        %565 = vmatpush1.msra.mxu0 0.0
        %566 = vmatprep.subr.mxu0 0.0
        %567 = vmatpush1.msra.mxu0 0.0
        %568 = vmatprep.subr.mxu0 0.0
        %569 = vmatpush1.msra.mxu0 0.0
        %570 = vmatprep.subr.mxu0 0.0
        %571 = vmatpush1.msra.mxu0 0.0
        %572 = vmatprep.mubr.f32.mxu0 0.0
        %573 = vmatmul.mubr.f32.gmra.mrb[0].mxu0 %v275
        %v574 = vpop.f32.mrb[0].mxu0
        %v575 = vadd.f32 0.0, %v574
        %v576 = vpop.f32.mrb[0].mxu0
        %577 = vdwg.mxu0
        %v578 = vadd.f32 %v267, %v504
        %v579 = vadd.f32 %v267, %v506
        %v580 = vadd.f32 %v267, %v575
        %v583 = vcombine.high %v259, %v259
        %v584 = vsel %vm277, %v259, 0
        %v586 = vsel %vm277, %v583, 0
        %v588 = vsel %vm277, %v260, 0
        %590 = vmatprep.subr.mxu0 %v586
        %591 = vmatpush1.msra.mxu0 %v584
        %592 = vmatprep.subr.mxu0 0.0
        %593 = vmatpush1.msra.mxu0 0.0
        %594 = vmatprep.subr.mxu0 0.0
        %595 = vmatpush1.msra.mxu0 0.0
        %596 = vmatprep.subr.mxu0 0.0
        %597 = vmatpush1.msra.mxu0 0.0
        %598 = vmatprep.subr.mxu0 0.0
        %599 = vmatpush1.msra.mxu0 0.0
        %600 = vmatprep.subr.mxu0 0.0
        %601 = vmatpush1.msra.mxu0 0.0
        %602 = vmatprep.subr.mxu0 0.0
        %603 = vmatpush1.msra.mxu0 0.0
        %604 = vmatprep.subr.mxu0 0.0
        %605 = vmatpush1.msra.mxu0 0.0
        %606 = vmatprep.subr.mxu0 0.0
        %607 = vmatpush1.msra.mxu0 0.0
        %608 = vmatprep.subr.mxu0 0.0
        %609 = vmatpush1.msra.mxu0 0.0
        %610 = vmatprep.subr.mxu0 0.0
        %611 = vmatpush1.msra.mxu0 0.0
        %612 = vmatprep.subr.mxu0 0.0
        %613 = vmatpush1.msra.mxu0 0.0
        %614 = vmatprep.subr.mxu0 0.0
        %615 = vmatpush1.msra.mxu0 0.0
        %616 = vmatprep.subr.mxu0 0.0
        %617 = vmatpush1.msra.mxu0 0.0
        %618 = vmatprep.subr.mxu0 0.0
        %619 = vmatpush1.msra.mxu0 0.0
        %620 = vmatprep.subr.mxu0 0.0
        %621 = vmatpush1.msra.mxu0 0.0
        %622 = vmatprep.subr.mxu0 0.0
        %623 = vmatpush1.msra.mxu0 0.0
        %624 = vmatprep.subr.mxu0 0.0
        %625 = vmatpush1.msra.mxu0 0.0
        %626 = vmatprep.subr.mxu0 0.0
        %627 = vmatpush1.msra.mxu0 0.0
        %628 = vmatprep.subr.mxu0 0.0
        %629 = vmatpush1.msra.mxu0 0.0
        %630 = vmatprep.subr.mxu0 0.0
        %631 = vmatpush1.msra.mxu0 0.0
        %632 = vmatprep.subr.mxu0 0.0
        %633 = vmatpush1.msra.mxu0 0.0
        %634 = vmatprep.subr.mxu0 0.0
        %635 = vmatpush1.msra.mxu0 0.0
        %636 = vmatprep.subr.mxu0 0.0
        %637 = vmatpush1.msra.mxu0 0.0
        %638 = vmatprep.subr.mxu0 0.0
        %639 = vmatpush1.msra.mxu0 0.0
        %640 = vmatprep.subr.mxu0 0.0
        %641 = vmatpush1.msra.mxu0 0.0
        %642 = vmatprep.subr.mxu0 0.0
        %643 = vmatpush1.msra.mxu0 0.0
        %644 = vmatprep.subr.mxu0 0.0
        %645 = vmatpush1.msra.mxu0 0.0
        %646 = vmatprep.subr.mxu0 0.0
        %647 = vmatpush1.msra.mxu0 0.0
        %648 = vmatprep.subr.mxu0 0.0
        %649 = vmatpush1.msra.mxu0 0.0
        %650 = vmatprep.subr.mxu0 0.0
        %651 = vmatpush1.msra.mxu0 0.0
        %652 = vmatprep.subr.mxu0 0.0
        %653 = vmatpush1.msra.mxu0 0.0
        %654 = vmatprep.mubr.f32.mxu0 0.0
        %655 = vmatmul.mubr.f32.gmra.mrb[0].mxu0 %v275
        %v656 = vpop.f32.mrb[0].mxu0
        %v657 = vadd.f32 0.0, %v656
        %v658 = vpop.f32.mrb[0].mxu0
        %v659 = vadd.f32 0.0, %v658
        %660 = vdwg.mxu0
        %661 = vmatprep.subr.mxu0 0.0
        %662 = vmatpush1.msra.mxu0 %v588
        %663 = vmatprep.subr.mxu0 0.0
        %664 = vmatpush1.msra.mxu0 0.0
        %665 = vmatprep.subr.mxu0 0.0
        %666 = vmatpush1.msra.mxu0 0.0
        %667 = vmatprep.subr.mxu0 0.0
        %668 = vmatpush1.msra.mxu0 0.0
        %669 = vmatprep.subr.mxu0 0.0
        %670 = vmatpush1.msra.mxu0 0.0
        %671 = vmatprep.subr.mxu0 0.0
        %672 = vmatpush1.msra.mxu0 0.0
        %673 = vmatprep.subr.mxu0 0.0
        %674 = vmatpush1.msra.mxu0 0.0
        %675 = vmatprep.subr.mxu0 0.0
        %676 = vmatpush1.msra.mxu0 0.0
        %677 = vmatprep.subr.mxu0 0.0
        %678 = vmatpush1.msra.mxu0 0.0
        %679 = vmatprep.subr.mxu0 0.0
        %680 = vmatpush1.msra.mxu0 0.0
        %681 = vmatprep.subr.mxu0 0.0
        %682 = vmatpush1.msra.mxu0 0.0
        %683 = vmatprep.subr.mxu0 0.0
        %684 = vmatpush1.msra.mxu0 0.0
        %685 = vmatprep.subr.mxu0 0.0
        %686 = vmatpush1.msra.mxu0 0.0
        %687 = vmatprep.subr.mxu0 0.0
        %688 = vmatpush1.msra.mxu0 0.0
        %689 = vmatprep.subr.mxu0 0.0
        %690 = vmatpush1.msra.mxu0 0.0
        %691 = vmatprep.subr.mxu0 0.0
        %692 = vmatpush1.msra.mxu0 0.0
        %693 = vmatprep.subr.mxu0 0.0
        %694 = vmatpush1.msra.mxu0 0.0
        %695 = vmatprep.subr.mxu0 0.0
        %696 = vmatpush1.msra.mxu0 0.0
        %697 = vmatprep.subr.mxu0 0.0
        %698 = vmatpush1.msra.mxu0 0.0
        %699 = vmatprep.subr.mxu0 0.0
        %700 = vmatpush1.msra.mxu0 0.0
        %701 = vmatprep.subr.mxu0 0.0
        %702 = vmatpush1.msra.mxu0 0.0
        %703 = vmatprep.subr.mxu0 0.0
        %704 = vmatpush1.msra.mxu0 0.0
        %705 = vmatprep.subr.mxu0 0.0
        %706 = vmatpush1.msra.mxu0 0.0
        %707 = vmatprep.subr.mxu0 0.0
        %708 = vmatpush1.msra.mxu0 0.0
        %709 = vmatprep.subr.mxu0 0.0
        %710 = vmatpush1.msra.mxu0 0.0
        %711 = vmatprep.subr.mxu0 0.0
        %712 = vmatpush1.msra.mxu0 0.0
        %713 = vmatprep.subr.mxu0 0.0
        %714 = vmatpush1.msra.mxu0 0.0
        %715 = vmatprep.subr.mxu0 0.0
        %716 = vmatpush1.msra.mxu0 0.0
        %717 = vmatprep.subr.mxu0 0.0
        %718 = vmatpush1.msra.mxu0 0.0
        %719 = vmatprep.subr.mxu0 0.0
        %720 = vmatpush1.msra.mxu0 0.0
        %721 = vmatprep.subr.mxu0 0.0
        %722 = vmatpush1.msra.mxu0 0.0
        %723 = vmatprep.subr.mxu0 0.0
        %724 = vmatpush1.msra.mxu0 0.0
        %725 = vmatprep.mubr.f32.mxu0 0.0
        %726 = vmatmul.mubr.f32.gmra.mrb[0].mxu0 %v275
        %v727 = vpop.f32.mrb[0].mxu0
        %v728 = vadd.f32 0.0, %v727
        %v729 = vpop.f32.mrb[0].mxu0
        %730 = vdwg.mxu0
        %v731 = vadd.f32 %v267, %v657
        %v732 = vadd.f32 %v267, %v659
        %v733 = vadd.f32 %v267, %v728
        %v736 = vcombine.high %v261, %v261
        %v737 = vsel %vm277, %v261, 0
        %v739 = vsel %vm277, %v736, 0
        %v741 = vsel %vm277, %v262, 0
        %743 = vmatprep.subr.mxu0 %v739
        %744 = vmatpush1.msra.mxu0 %v737
        %745 = vmatprep.subr.mxu0 0.0
        %746 = vmatpush1.msra.mxu0 0.0
        %747 = vmatprep.subr.mxu0 0.0
        %748 = vmatpush1.msra.mxu0 0.0
        %749 = vmatprep.subr.mxu0 0.0
        %750 = vmatpush1.msra.mxu0 0.0
        %751 = vmatprep.subr.mxu0 0.0
        %752 = vmatpush1.msra.mxu0 0.0
        %753 = vmatprep.subr.mxu0 0.0
        %754 = vmatpush1.msra.mxu0 0.0
        %755 = vmatprep.subr.mxu0 0.0
        %756 = vmatpush1.msra.mxu0 0.0
        %757 = vmatprep.subr.mxu0 0.0
        %758 = vmatpush1.msra.mxu0 0.0
        %759 = vmatprep.subr.mxu0 0.0
        %760 = vmatpush1.msra.mxu0 0.0
        %761 = vmatprep.subr.mxu0 0.0
        %762 = vmatpush1.msra.mxu0 0.0
        %763 = vmatprep.subr.mxu0 0.0
        %764 = vmatpush1.msra.mxu0 0.0
        %765 = vmatprep.subr.mxu0 0.0
        %766 = vmatpush1.msra.mxu0 0.0
        %767 = vmatprep.subr.mxu0 0.0
        %768 = vmatpush1.msra.mxu0 0.0
        %769 = vmatprep.subr.mxu0 0.0
        %770 = vmatpush1.msra.mxu0 0.0
        %771 = vmatprep.subr.mxu0 0.0
        %772 = vmatpush1.msra.mxu0 0.0
        %773 = vmatprep.subr.mxu0 0.0
        %774 = vmatpush1.msra.mxu0 0.0
        %775 = vmatprep.subr.mxu0 0.0
        %776 = vmatpush1.msra.mxu0 0.0
        %777 = vmatprep.subr.mxu0 0.0
        %778 = vmatpush1.msra.mxu0 0.0
        %779 = vmatprep.subr.mxu0 0.0
        %780 = vmatpush1.msra.mxu0 0.0
        %781 = vmatprep.subr.mxu0 0.0
        %782 = vmatpush1.msra.mxu0 0.0
        %783 = vmatprep.subr.mxu0 0.0
        %784 = vmatpush1.msra.mxu0 0.0
        %785 = vmatprep.subr.mxu0 0.0
        %786 = vmatpush1.msra.mxu0 0.0
        %787 = vmatprep.subr.mxu0 0.0
        %788 = vmatpush1.msra.mxu0 0.0
        %789 = vmatprep.subr.mxu0 0.0
        %790 = vmatpush1.msra.mxu0 0.0
        %791 = vmatprep.subr.mxu0 0.0
        %792 = vmatpush1.msra.mxu0 0.0
        %793 = vmatprep.subr.mxu0 0.0
        %794 = vmatpush1.msra.mxu0 0.0
        %795 = vmatprep.subr.mxu0 0.0
        %796 = vmatpush1.msra.mxu0 0.0
        %797 = vmatprep.subr.mxu0 0.0
        %798 = vmatpush1.msra.mxu0 0.0
        %799 = vmatprep.subr.mxu0 0.0
        %800 = vmatpush1.msra.mxu0 0.0
        %801 = vmatprep.subr.mxu0 0.0
        %802 = vmatpush1.msra.mxu0 0.0
        %803 = vmatprep.subr.mxu0 0.0
        %804 = vmatpush1.msra.mxu0 0.0
        %805 = vmatprep.subr.mxu0 0.0
        %806 = vmatpush1.msra.mxu0 0.0
        %807 = vmatprep.mubr.f32.mxu0 0.0
        %808 = vmatmul.mubr.f32.gmra.mrb[0].mxu0 %v275
        %v809 = vpop.f32.mrb[0].mxu0
        %v810 = vadd.f32 0.0, %v809
        %v811 = vpop.f32.mrb[0].mxu0
        %v812 = vadd.f32 0.0, %v811
        %813 = vdwg.mxu0
        %814 = vmatprep.subr.mxu0 0.0
        %815 = vmatpush1.msra.mxu0 %v741
        %816 = vmatprep.subr.mxu0 0.0
        %817 = vmatpush1.msra.mxu0 0.0
        %818 = vmatprep.subr.mxu0 0.0
        %819 = vmatpush1.msra.mxu0 0.0
        %820 = vmatprep.subr.mxu0 0.0
        %821 = vmatpush1.msra.mxu0 0.0
        %822 = vmatprep.subr.mxu0 0.0
        %823 = vmatpush1.msra.mxu0 0.0
        %824 = vmatprep.subr.mxu0 0.0
        %825 = vmatpush1.msra.mxu0 0.0
        %826 = vmatprep.subr.mxu0 0.0
        %827 = vmatpush1.msra.mxu0 0.0
        %828 = vmatprep.subr.mxu0 0.0
        %829 = vmatpush1.msra.mxu0 0.0
        %830 = vmatprep.subr.mxu0 0.0
        %831 = vmatpush1.msra.mxu0 0.0
        %832 = vmatprep.subr.mxu0 0.0
        %833 = vmatpush1.msra.mxu0 0.0
        %834 = vmatprep.subr.mxu0 0.0
        %835 = vmatpush1.msra.mxu0 0.0
        %836 = vmatprep.subr.mxu0 0.0
        %837 = vmatpush1.msra.mxu0 0.0
        %838 = vmatprep.subr.mxu0 0.0
        %839 = vmatpush1.msra.mxu0 0.0
        %840 = vmatprep.subr.mxu0 0.0
        %841 = vmatpush1.msra.mxu0 0.0
        %842 = vmatprep.subr.mxu0 0.0
        %843 = vmatpush1.msra.mxu0 0.0
        %844 = vmatprep.subr.mxu0 0.0
        %845 = vmatpush1.msra.mxu0 0.0
        %846 = vmatprep.subr.mxu0 0.0
        %847 = vmatpush1.msra.mxu0 0.0
        %848 = vmatprep.subr.mxu0 0.0
        %849 = vmatpush1.msra.mxu0 0.0
        %850 = vmatprep.subr.mxu0 0.0
        %851 = vmatpush1.msra.mxu0 0.0
        %852 = vmatprep.subr.mxu0 0.0
        %853 = vmatpush1.msra.mxu0 0.0
        %854 = vmatprep.subr.mxu0 0.0
        %855 = vmatpush1.msra.mxu0 0.0
        %856 = vmatprep.subr.mxu0 0.0
        %857 = vmatpush1.msra.mxu0 0.0
        %858 = vmatprep.subr.mxu0 0.0
        %859 = vmatpush1.msra.mxu0 0.0
        %860 = vmatprep.subr.mxu0 0.0
        %861 = vmatpush1.msra.mxu0 0.0
        %862 = vmatprep.subr.mxu0 0.0
        %863 = vmatpush1.msra.mxu0 0.0
        %864 = vmatprep.subr.mxu0 0.0
        %865 = vmatpush1.msra.mxu0 0.0
        %866 = vmatprep.subr.mxu0 0.0
        %867 = vmatpush1.msra.mxu0 0.0
        %868 = vmatprep.subr.mxu0 0.0
        %869 = vmatpush1.msra.mxu0 0.0
        %870 = vmatprep.subr.mxu0 0.0
        %871 = vmatpush1.msra.mxu0 0.0
        %872 = vmatprep.subr.mxu0 0.0
        %873 = vmatpush1.msra.mxu0 0.0
        %874 = vmatprep.subr.mxu0 0.0
        %875 = vmatpush1.msra.mxu0 0.0
        %876 = vmatprep.subr.mxu0 0.0
        %877 = vmatpush1.msra.mxu0 0.0
        %878 = vmatprep.mubr.f32.mxu0 0.0
        %879 = vmatmul.mubr.f32.gmra.mrb[0].mxu0 %v275
        %v880 = vpop.f32.mrb[0].mxu0
        %v881 = vadd.f32 0.0, %v880
        %v882 = vpop.f32.mrb[0].mxu0
        %883 = vdwg.mxu0
        %v884 = vadd.f32 %v267, %v810
        %v885 = vadd.f32 %v267, %v812
        %v886 = vadd.f32 %v267, %v881
        %891 = vrot.lane.b32.xlu0 %v255, 127
        %v892 = vpop.permute.xlu0 %891
        %893 = vrot.lane.b32.xlu0 %v257, 127
        %v894 = vpop.permute.xlu0 %893
        %895 = vrot.lane.b32.xlu0 %v259, 127
        %v896 = vpop.permute.xlu0 %895
        %897 = vrot.lane.b32.xlu0 %v261, 127
        %v898 = vpop.permute.xlu0 %897
        %899 = vrot.lane.b32.xlu0 %v272, 127
        %v900 = vpop.permute.xlu0 %899
        %901 = vrot.lane.b32.xlu0 %v430, 127
        %v902 = vpop.permute.xlu0 %901
        %903 = vrot.lane.b32.xlu0 %v583, 127
        %v904 = vpop.permute.xlu0 %903
        %905 = vrot.lane.b32.xlu0 %v736, 127
        %v906 = vpop.permute.xlu0 %905
        %907 = vrot.lane.b32.xlu0 %v256, 127
        %v908 = vpop.permute.xlu0 %907
        %909 = vrot.lane.b32.xlu0 %v258, 127
        %v910 = vpop.permute.xlu0 %909
        %911 = vrot.lane.b32.xlu0 %v260, 127
        %v912 = vpop.permute.xlu0 %911
        %913 = vrot.lane.b32.xlu0 %v262, 127
        %v914 = vpop.permute.xlu0 %913
        %v915 = vlaneseq
        %v916 = vand.u32 %v915, 127
        %vm917 = vcmp.lt.s32.totalorder %v916, 127
        %v918 = vsel %vm917, %v900, %v908
        %v919 = vsel %vm917, %v902, %v910
        %v920 = vsel %vm917, %v904, %v912
        %v921 = vsel %vm917, %v906, %v914
        %v922 = vsel %vm917, %v892, %v900
        %v923 = vsel %vm917, %v894, %v902
        %v924 = vsel %vm917, %v896, %v904
        %v925 = vsel %vm917, %v898, %v906
        %v926 = vsel %vm917, %v908, %v892
        %v927 = vsel %vm917, %v910, %v894
        %v928 = vsel %vm917, %v912, %v896
        %v929 = vsel %vm917, %v914, %v898
        %s930 = scalar_lea.vmem %s1, 8
        %v931 = vld [vmem:[%s930] sm:$0xff]
        %v933 = vsel %vm273, %v931, 0
        %v936 = vsel %vm277, %v922, 0
        %v939 = vsel %vm277, %v918, 0
        %v942 = vsel %vm277, %v926, 0
        %944 = vmatprep.subr.mxu0 %v939
        %945 = vmatpush1.msra.mxu0 %v936
        %946 = vmatprep.subr.mxu0 0.0
        %947 = vmatpush1.msra.mxu0 0.0
        %948 = vmatprep.subr.mxu0 0.0
        %949 = vmatpush1.msra.mxu0 0.0
        %950 = vmatprep.subr.mxu0 0.0
        %951 = vmatpush1.msra.mxu0 0.0
        %952 = vmatprep.subr.mxu0 0.0
        %953 = vmatpush1.msra.mxu0 0.0
        %954 = vmatprep.subr.mxu0 0.0
        %955 = vmatpush1.msra.mxu0 0.0
        %956 = vmatprep.subr.mxu0 0.0
        %957 = vmatpush1.msra.mxu0 0.0
        %958 = vmatprep.subr.mxu0 0.0
        %959 = vmatpush1.msra.mxu0 0.0
        %960 = vmatprep.subr.mxu0 0.0
        %961 = vmatpush1.msra.mxu0 0.0
        %962 = vmatprep.subr.mxu0 0.0
        %963 = vmatpush1.msra.mxu0 0.0
        %964 = vmatprep.subr.mxu0 0.0
        %965 = vmatpush1.msra.mxu0 0.0
        %966 = vmatprep.subr.mxu0 0.0
        %967 = vmatpush1.msra.mxu0 0.0
        %968 = vmatprep.subr.mxu0 0.0
        %969 = vmatpush1.msra.mxu0 0.0
        %970 = vmatprep.subr.mxu0 0.0
        %971 = vmatpush1.msra.mxu0 0.0
        %972 = vmatprep.subr.mxu0 0.0
        %973 = vmatpush1.msra.mxu0 0.0
        %974 = vmatprep.subr.mxu0 0.0
        %975 = vmatpush1.msra.mxu0 0.0
        %976 = vmatprep.subr.mxu0 0.0
        %977 = vmatpush1.msra.mxu0 0.0
        %978 = vmatprep.subr.mxu0 0.0
        %979 = vmatpush1.msra.mxu0 0.0
        %980 = vmatprep.subr.mxu0 0.0
        %981 = vmatpush1.msra.mxu0 0.0
        %982 = vmatprep.subr.mxu0 0.0
        %983 = vmatpush1.msra.mxu0 0.0
        %984 = vmatprep.subr.mxu0 0.0
        %985 = vmatpush1.msra.mxu0 0.0
        %986 = vmatprep.subr.mxu0 0.0
        %987 = vmatpush1.msra.mxu0 0.0
        %988 = vmatprep.subr.mxu0 0.0
        %989 = vmatpush1.msra.mxu0 0.0
        %990 = vmatprep.subr.mxu0 0.0
        %991 = vmatpush1.msra.mxu0 0.0
        %992 = vmatprep.subr.mxu0 0.0
        %993 = vmatpush1.msra.mxu0 0.0
        %994 = vmatprep.subr.mxu0 0.0
        %995 = vmatpush1.msra.mxu0 0.0
        %996 = vmatprep.subr.mxu0 0.0
        %997 = vmatpush1.msra.mxu0 0.0
        %998 = vmatprep.subr.mxu0 0.0
        %999 = vmatpush1.msra.mxu0 0.0
        %1000 = vmatprep.subr.mxu0 0.0
        %1001 = vmatpush1.msra.mxu0 0.0
        %1002 = vmatprep.subr.mxu0 0.0
        %1003 = vmatpush1.msra.mxu0 0.0
        %1004 = vmatprep.subr.mxu0 0.0
        %1005 = vmatpush1.msra.mxu0 0.0
        %1006 = vmatprep.subr.mxu0 0.0
        %1007 = vmatpush1.msra.mxu0 0.0
        %1008 = vmatprep.mubr.f32.mxu0 0.0
        %1009 = vmatmul.mubr.f32.gmra.mrb[0].mxu0 %v933
        %v1010 = vpop.f32.mrb[0].mxu0
        %v1011 = vadd.f32 0.0, %v1010
        %v1012 = vpop.f32.mrb[0].mxu0
        %v1013 = vadd.f32 0.0, %v1012
        %1014 = vdwg.mxu0
        %1015 = vmatprep.subr.mxu0 0.0
        %1016 = vmatpush1.msra.mxu0 %v942
        %1017 = vmatprep.subr.mxu0 0.0
        %1018 = vmatpush1.msra.mxu0 0.0
        %1019 = vmatprep.subr.mxu0 0.0
        %1020 = vmatpush1.msra.mxu0 0.0
        %1021 = vmatprep.subr.mxu0 0.0
        %1022 = vmatpush1.msra.mxu0 0.0
        %1023 = vmatprep.subr.mxu0 0.0
        %1024 = vmatpush1.msra.mxu0 0.0
        %1025 = vmatprep.subr.mxu0 0.0
        %1026 = vmatpush1.msra.mxu0 0.0
        %1027 = vmatprep.subr.mxu0 0.0
        %1028 = vmatpush1.msra.mxu0 0.0
        %1029 = vmatprep.subr.mxu0 0.0
        %1030 = vmatpush1.msra.mxu0 0.0
        %1031 = vmatprep.subr.mxu0 0.0
        %1032 = vmatpush1.msra.mxu0 0.0
        %1033 = vmatprep.subr.mxu0 0.0
        %1034 = vmatpush1.msra.mxu0 0.0
        %1035 = vmatprep.subr.mxu0 0.0
        %1036 = vmatpush1.msra.mxu0 0.0
        %1037 = vmatprep.subr.mxu0 0.0
        %1038 = vmatpush1.msra.mxu0 0.0
        %1039 = vmatprep.subr.mxu0 0.0
        %1040 = vmatpush1.msra.mxu0 0.0
        %1041 = vmatprep.subr.mxu0 0.0
        %1042 = vmatpush1.msra.mxu0 0.0
        %1043 = vmatprep.subr.mxu0 0.0
        %1044 = vmatpush1.msra.mxu0 0.0
        %1045 = vmatprep.subr.mxu0 0.0
        %1046 = vmatpush1.msra.mxu0 0.0
        %1047 = vmatprep.subr.mxu0 0.0
        %1048 = vmatpush1.msra.mxu0 0.0
        %1049 = vmatprep.subr.mxu0 0.0
        %1050 = vmatpush1.msra.mxu0 0.0
        %1051 = vmatprep.subr.mxu0 0.0
        %1052 = vmatpush1.msra.mxu0 0.0
        %1053 = vmatprep.subr.mxu0 0.0
        %1054 = vmatpush1.msra.mxu0 0.0
        %1055 = vmatprep.subr.mxu0 0.0
        %1056 = vmatpush1.msra.mxu0 0.0
        %1057 = vmatprep.subr.mxu0 0.0
        %1058 = vmatpush1.msra.mxu0 0.0
        %1059 = vmatprep.subr.mxu0 0.0
        %1060 = vmatpush1.msra.mxu0 0.0
        %1061 = vmatprep.subr.mxu0 0.0
        %1062 = vmatpush1.msra.mxu0 0.0
        %1063 = vmatprep.subr.mxu0 0.0
        %1064 = vmatpush1.msra.mxu0 0.0
        %1065 = vmatprep.subr.mxu0 0.0
        %1066 = vmatpush1.msra.mxu0 0.0
        %1067 = vmatprep.subr.mxu0 0.0
        %1068 = vmatpush1.msra.mxu0 0.0
        %1069 = vmatprep.subr.mxu0 0.0
        %1070 = vmatpush1.msra.mxu0 0.0
        %1071 = vmatprep.subr.mxu0 0.0
        %1072 = vmatpush1.msra.mxu0 0.0
        %1073 = vmatprep.subr.mxu0 0.0
        %1074 = vmatpush1.msra.mxu0 0.0
        %1075 = vmatprep.subr.mxu0 0.0
        %1076 = vmatpush1.msra.mxu0 0.0
        %1077 = vmatprep.subr.mxu0 0.0
        %1078 = vmatpush1.msra.mxu0 0.0
        %1079 = vmatprep.mubr.f32.mxu0 0.0
        %1080 = vmatmul.mubr.f32.gmra.mrb[0].mxu0 %v933
        %v1081 = vpop.f32.mrb[0].mxu0
        %v1082 = vadd.f32 0.0, %v1081
        %v1083 = vpop.f32.mrb[0].mxu0
        %1084 = vdwg.mxu0
        %v1085 = vadd.f32 %v425, %v1011
        %v1086 = vadd.f32 %v426, %v1013
        %v1087 = vadd.f32 %v427, %v1082
        %v1089 = vsel %vm277, %v923, 0
        %v1092 = vsel %vm277, %v919, 0
        %v1095 = vsel %vm277, %v927, 0
        %1097 = vmatprep.subr.mxu0 %v1092
        %1098 = vmatpush1.msra.mxu0 %v1089
        %1099 = vmatprep.subr.mxu0 0.0
        %1100 = vmatpush1.msra.mxu0 0.0
        %1101 = vmatprep.subr.mxu0 0.0
        %1102 = vmatpush1.msra.mxu0 0.0
        %1103 = vmatprep.subr.mxu0 0.0
        %1104 = vmatpush1.msra.mxu0 0.0
        %1105 = vmatprep.subr.mxu0 0.0
        %1106 = vmatpush1.msra.mxu0 0.0
        %1107 = vmatprep.subr.mxu0 0.0
        %1108 = vmatpush1.msra.mxu0 0.0
        %1109 = vmatprep.subr.mxu0 0.0
        %1110 = vmatpush1.msra.mxu0 0.0
        %1111 = vmatprep.subr.mxu0 0.0
        %1112 = vmatpush1.msra.mxu0 0.0
        %1113 = vmatprep.subr.mxu0 0.0
        %1114 = vmatpush1.msra.mxu0 0.0
        %1115 = vmatprep.subr.mxu0 0.0
        %1116 = vmatpush1.msra.mxu0 0.0
        %1117 = vmatprep.subr.mxu0 0.0
        %1118 = vmatpush1.msra.mxu0 0.0
        %1119 = vmatprep.subr.mxu0 0.0
        %1120 = vmatpush1.msra.mxu0 0.0
        %1121 = vmatprep.subr.mxu0 0.0
        %1122 = vmatpush1.msra.mxu0 0.0
        %1123 = vmatprep.subr.mxu0 0.0
        %1124 = vmatpush1.msra.mxu0 0.0
        %1125 = vmatprep.subr.mxu0 0.0
        %1126 = vmatpush1.msra.mxu0 0.0
        %1127 = vmatprep.subr.mxu0 0.0
        %1128 = vmatpush1.msra.mxu0 0.0
        %1129 = vmatprep.subr.mxu0 0.0
        %1130 = vmatpush1.msra.mxu0 0.0
        %1131 = vmatprep.subr.mxu0 0.0
        %1132 = vmatpush1.msra.mxu0 0.0
        %1133 = vmatprep.subr.mxu0 0.0
        %1134 = vmatpush1.msra.mxu0 0.0
        %1135 = vmatprep.subr.mxu0 0.0
        %1136 = vmatpush1.msra.mxu0 0.0
        %1137 = vmatprep.subr.mxu0 0.0
        %1138 = vmatpush1.msra.mxu0 0.0
        %1139 = vmatprep.subr.mxu0 0.0
        %1140 = vmatpush1.msra.mxu0 0.0
        %1141 = vmatprep.subr.mxu0 0.0
        %1142 = vmatpush1.msra.mxu0 0.0
        %1143 = vmatprep.subr.mxu0 0.0
        %1144 = vmatpush1.msra.mxu0 0.0
        %1145 = vmatprep.subr.mxu0 0.0
        %1146 = vmatpush1.msra.mxu0 0.0
        %1147 = vmatprep.subr.mxu0 0.0
        %1148 = vmatpush1.msra.mxu0 0.0
        %1149 = vmatprep.subr.mxu0 0.0
        %1150 = vmatpush1.msra.mxu0 0.0
        %1151 = vmatprep.subr.mxu0 0.0
        %1152 = vmatpush1.msra.mxu0 0.0
        %1153 = vmatprep.subr.mxu0 0.0
        %1154 = vmatpush1.msra.mxu0 0.0
        %1155 = vmatprep.subr.mxu0 0.0
        %1156 = vmatpush1.msra.mxu0 0.0
        %1157 = vmatprep.subr.mxu0 0.0
        %1158 = vmatpush1.msra.mxu0 0.0
        %1159 = vmatprep.subr.mxu0 0.0
        %1160 = vmatpush1.msra.mxu0 0.0
        %1161 = vmatprep.mubr.f32.mxu0 0.0
        %1162 = vmatmul.mubr.f32.gmra.mrb[0].mxu0 %v933
        %v1163 = vpop.f32.mrb[0].mxu0
        %v1164 = vadd.f32 0.0, %v1163
        %v1165 = vpop.f32.mrb[0].mxu0
        %v1166 = vadd.f32 0.0, %v1165
        %1167 = vdwg.mxu0
        %1168 = vmatprep.subr.mxu0 0.0
        %1169 = vmatpush1.msra.mxu0 %v1095
        %1170 = vmatprep.subr.mxu0 0.0
        %1171 = vmatpush1.msra.mxu0 0.0
        %1172 = vmatprep.subr.mxu0 0.0
        %1173 = vmatpush1.msra.mxu0 0.0
        %1174 = vmatprep.subr.mxu0 0.0
        %1175 = vmatpush1.msra.mxu0 0.0
        %1176 = vmatprep.subr.mxu0 0.0
        %1177 = vmatpush1.msra.mxu0 0.0
        %1178 = vmatprep.subr.mxu0 0.0
        %1179 = vmatpush1.msra.mxu0 0.0
        %1180 = vmatprep.subr.mxu0 0.0
        %1181 = vmatpush1.msra.mxu0 0.0
        %1182 = vmatprep.subr.mxu0 0.0
        %1183 = vmatpush1.msra.mxu0 0.0
        %1184 = vmatprep.subr.mxu0 0.0
        %1185 = vmatpush1.msra.mxu0 0.0
        %1186 = vmatprep.subr.mxu0 0.0
        %1187 = vmatpush1.msra.mxu0 0.0
        %1188 = vmatprep.subr.mxu0 0.0
        %1189 = vmatpush1.msra.mxu0 0.0
        %1190 = vmatprep.subr.mxu0 0.0
        %1191 = vmatpush1.msra.mxu0 0.0
        %1192 = vmatprep.subr.mxu0 0.0
        %1193 = vmatpush1.msra.mxu0 0.0
        %1194 = vmatprep.subr.mxu0 0.0
        %1195 = vmatpush1.msra.mxu0 0.0
        %1196 = vmatprep.subr.mxu0 0.0
        %1197 = vmatpush1.msra.mxu0 0.0
        %1198 = vmatprep.subr.mxu0 0.0
        %1199 = vmatpush1.msra.mxu0 0.0
        %1200 = vmatprep.subr.mxu0 0.0
        %1201 = vmatpush1.msra.mxu0 0.0
        %1202 = vmatprep.subr.mxu0 0.0
        %1203 = vmatpush1.msra.mxu0 0.0
        %1204 = vmatprep.subr.mxu0 0.0
        %1205 = vmatpush1.msra.mxu0 0.0
        %1206 = vmatprep.subr.mxu0 0.0
        %1207 = vmatpush1.msra.mxu0 0.0
        %1208 = vmatprep.subr.mxu0 0.0
        %1209 = vmatpush1.msra.mxu0 0.0
        %1210 = vmatprep.subr.mxu0 0.0
        %1211 = vmatpush1.msra.mxu0 0.0
        %1212 = vmatprep.subr.mxu0 0.0
        %1213 = vmatpush1.msra.mxu0 0.0
        %1214 = vmatprep.subr.mxu0 0.0
        %1215 = vmatpush1.msra.mxu0 0.0
        %1216 = vmatprep.subr.mxu0 0.0
        %1217 = vmatpush1.msra.mxu0 0.0
        %1218 = vmatprep.subr.mxu0 0.0
        %1219 = vmatpush1.msra.mxu0 0.0
        %1220 = vmatprep.subr.mxu0 0.0
        %1221 = vmatpush1.msra.mxu0 0.0
        %1222 = vmatprep.subr.mxu0 0.0
        %1223 = vmatpush1.msra.mxu0 0.0
        %1224 = vmatprep.subr.mxu0 0.0
        %1225 = vmatpush1.msra.mxu0 0.0
        %1226 = vmatprep.subr.mxu0 0.0
        %1227 = vmatpush1.msra.mxu0 0.0
        %1228 = vmatprep.subr.mxu0 0.0
        %1229 = vmatpush1.msra.mxu0 0.0
        %1230 = vmatprep.subr.mxu0 0.0
        %1231 = vmatpush1.msra.mxu0 0.0
        %1232 = vmatprep.mubr.f32.mxu0 0.0
        %1233 = vmatmul.mubr.f32.gmra.mrb[0].mxu0 %v933
        %v1234 = vpop.f32.mrb[0].mxu0
        %v1235 = vadd.f32 0.0, %v1234
        %v1236 = vpop.f32.mrb[0].mxu0
        %1237 = vdwg.mxu0
        %v1238 = vadd.f32 %v578, %v1164
        %v1239 = vadd.f32 %v579, %v1166
        %v1240 = vadd.f32 %v580, %v1235
        %v1242 = vsel %vm277, %v924, 0
        %v1245 = vsel %vm277, %v920, 0
        %v1248 = vsel %vm277, %v928, 0
        %1250 = vmatprep.subr.mxu0 %v1245
        %1251 = vmatpush1.msra.mxu0 %v1242
        %1252 = vmatprep.subr.mxu0 0.0
        %1253 = vmatpush1.msra.mxu0 0.0
        %1254 = vmatprep.subr.mxu0 0.0
        %1255 = vmatpush1.msra.mxu0 0.0
        %1256 = vmatprep.subr.mxu0 0.0
        %1257 = vmatpush1.msra.mxu0 0.0
        %1258 = vmatprep.subr.mxu0 0.0
        %1259 = vmatpush1.msra.mxu0 0.0
        %1260 = vmatprep.subr.mxu0 0.0
        %1261 = vmatpush1.msra.mxu0 0.0
        %1262 = vmatprep.subr.mxu0 0.0
        %1263 = vmatpush1.msra.mxu0 0.0
        %1264 = vmatprep.subr.mxu0 0.0
        %1265 = vmatpush1.msra.mxu0 0.0
        %1266 = vmatprep.subr.mxu0 0.0
        %1267 = vmatpush1.msra.mxu0 0.0
        %1268 = vmatprep.subr.mxu0 0.0
        %1269 = vmatpush1.msra.mxu0 0.0
        %1270 = vmatprep.subr.mxu0 0.0
        %1271 = vmatpush1.msra.mxu0 0.0
        %1272 = vmatprep.subr.mxu0 0.0
        %1273 = vmatpush1.msra.mxu0 0.0
        %1274 = vmatprep.subr.mxu0 0.0
        %1275 = vmatpush1.msra.mxu0 0.0
        %1276 = vmatprep.subr.mxu0 0.0
        %1277 = vmatpush1.msra.mxu0 0.0
        %1278 = vmatprep.subr.mxu0 0.0
        %1279 = vmatpush1.msra.mxu0 0.0
        %1280 = vmatprep.subr.mxu0 0.0
        %1281 = vmatpush1.msra.mxu0 0.0
        %1282 = vmatprep.subr.mxu0 0.0
        %1283 = vmatpush1.msra.mxu0 0.0
        %1284 = vmatprep.subr.mxu0 0.0
        %1285 = vmatpush1.msra.mxu0 0.0
        %1286 = vmatprep.subr.mxu0 0.0
        %1287 = vmatpush1.msra.mxu0 0.0
        %1288 = vmatprep.subr.mxu0 0.0
        %1289 = vmatpush1.msra.mxu0 0.0
        %1290 = vmatprep.subr.mxu0 0.0
        %1291 = vmatpush1.msra.mxu0 0.0
        %1292 = vmatprep.subr.mxu0 0.0
        %1293 = vmatpush1.msra.mxu0 0.0
        %1294 = vmatprep.subr.mxu0 0.0
        %1295 = vmatpush1.msra.mxu0 0.0
        %1296 = vmatprep.subr.mxu0 0.0
        %1297 = vmatpush1.msra.mxu0 0.0
        %1298 = vmatprep.subr.mxu0 0.0
        %1299 = vmatpush1.msra.mxu0 0.0
        %1300 = vmatprep.subr.mxu0 0.0
        %1301 = vmatpush1.msra.mxu0 0.0
        %1302 = vmatprep.subr.mxu0 0.0
        %1303 = vmatpush1.msra.mxu0 0.0
        %1304 = vmatprep.subr.mxu0 0.0
        %1305 = vmatpush1.msra.mxu0 0.0
        %1306 = vmatprep.subr.mxu0 0.0
        %1307 = vmatpush1.msra.mxu0 0.0
        %1308 = vmatprep.subr.mxu0 0.0
        %1309 = vmatpush1.msra.mxu0 0.0
        %1310 = vmatprep.subr.mxu0 0.0
        %1311 = vmatpush1.msra.mxu0 0.0
        %1312 = vmatprep.subr.mxu0 0.0
        %1313 = vmatpush1.msra.mxu0 0.0
        %1314 = vmatprep.mubr.f32.mxu0 0.0
        %1315 = vmatmul.mubr.f32.gmra.mrb[0].mxu0 %v933
        %v1316 = vpop.f32.mrb[0].mxu0
        %v1317 = vadd.f32 0.0, %v1316
        %v1318 = vpop.f32.mrb[0].mxu0
        %v1319 = vadd.f32 0.0, %v1318
        %1320 = vdwg.mxu0
        %1321 = vmatprep.subr.mxu0 0.0
        %1322 = vmatpush1.msra.mxu0 %v1248
        %1323 = vmatprep.subr.mxu0 0.0
        %1324 = vmatpush1.msra.mxu0 0.0
        %1325 = vmatprep.subr.mxu0 0.0
        %1326 = vmatpush1.msra.mxu0 0.0
        %1327 = vmatprep.subr.mxu0 0.0
        %1328 = vmatpush1.msra.mxu0 0.0
        %1329 = vmatprep.subr.mxu0 0.0
        %1330 = vmatpush1.msra.mxu0 0.0
        %1331 = vmatprep.subr.mxu0 0.0
        %1332 = vmatpush1.msra.mxu0 0.0
        %1333 = vmatprep.subr.mxu0 0.0
        %1334 = vmatpush1.msra.mxu0 0.0
        %1335 = vmatprep.subr.mxu0 0.0
        %1336 = vmatpush1.msra.mxu0 0.0
        %1337 = vmatprep.subr.mxu0 0.0
        %1338 = vmatpush1.msra.mxu0 0.0
        %1339 = vmatprep.subr.mxu0 0.0
        %1340 = vmatpush1.msra.mxu0 0.0
        %1341 = vmatprep.subr.mxu0 0.0
        %1342 = vmatpush1.msra.mxu0 0.0
        %1343 = vmatprep.subr.mxu0 0.0
        %1344 = vmatpush1.msra.mxu0 0.0
        %1345 = vmatprep.subr.mxu0 0.0
        %1346 = vmatpush1.msra.mxu0 0.0
        %1347 = vmatprep.subr.mxu0 0.0
        %1348 = vmatpush1.msra.mxu0 0.0
        %1349 = vmatprep.subr.mxu0 0.0
        %1350 = vmatpush1.msra.mxu0 0.0
        %1351 = vmatprep.subr.mxu0 0.0
        %1352 = vmatpush1.msra.mxu0 0.0
        %1353 = vmatprep.subr.mxu0 0.0
        %1354 = vmatpush1.msra.mxu0 0.0
        %1355 = vmatprep.subr.mxu0 0.0
        %1356 = vmatpush1.msra.mxu0 0.0
        %1357 = vmatprep.subr.mxu0 0.0
        %1358 = vmatpush1.msra.mxu0 0.0
        %1359 = vmatprep.subr.mxu0 0.0
        %1360 = vmatpush1.msra.mxu0 0.0
        %1361 = vmatprep.subr.mxu0 0.0
        %1362 = vmatpush1.msra.mxu0 0.0
        %1363 = vmatprep.subr.mxu0 0.0
        %1364 = vmatpush1.msra.mxu0 0.0
        %1365 = vmatprep.subr.mxu0 0.0
        %1366 = vmatpush1.msra.mxu0 0.0
        %1367 = vmatprep.subr.mxu0 0.0
        %1368 = vmatpush1.msra.mxu0 0.0
        %1369 = vmatprep.subr.mxu0 0.0
        %1370 = vmatpush1.msra.mxu0 0.0
        %1371 = vmatprep.subr.mxu0 0.0
        %1372 = vmatpush1.msra.mxu0 0.0
        %1373 = vmatprep.subr.mxu0 0.0
        %1374 = vmatpush1.msra.mxu0 0.0
        %1375 = vmatprep.subr.mxu0 0.0
        %1376 = vmatpush1.msra.mxu0 0.0
        %1377 = vmatprep.subr.mxu0 0.0
        %1378 = vmatpush1.msra.mxu0 0.0
        %1379 = vmatprep.subr.mxu0 0.0
        %1380 = vmatpush1.msra.mxu0 0.0
        %1381 = vmatprep.subr.mxu0 0.0
        %1382 = vmatpush1.msra.mxu0 0.0
        %1383 = vmatprep.subr.mxu0 0.0
        %1384 = vmatpush1.msra.mxu0 0.0
        %1385 = vmatprep.mubr.f32.mxu0 0.0
        %1386 = vmatmul.mubr.f32.gmra.mrb[0].mxu0 %v933
        %v1387 = vpop.f32.mrb[0].mxu0
        %v1388 = vadd.f32 0.0, %v1387
        %v1389 = vpop.f32.mrb[0].mxu0
        %1390 = vdwg.mxu0
        %v1391 = vadd.f32 %v731, %v1317
        %v1392 = vadd.f32 %v732, %v1319
        %v1393 = vadd.f32 %v733, %v1388
        %v1395 = vsel %vm277, %v925, 0
        %v1398 = vsel %vm277, %v921, 0
        %v1401 = vsel %vm277, %v929, 0
        %1403 = vmatprep.subr.mxu0 %v1398
        %1404 = vmatpush1.msra.mxu0 %v1395
        %1405 = vmatprep.subr.mxu0 0.0
        %1406 = vmatpush1.msra.mxu0 0.0
        %1407 = vmatprep.subr.mxu0 0.0
        %1408 = vmatpush1.msra.mxu0 0.0
        %1409 = vmatprep.subr.mxu0 0.0
        %1410 = vmatpush1.msra.mxu0 0.0
        %1411 = vmatprep.subr.mxu0 0.0
        %1412 = vmatpush1.msra.mxu0 0.0
        %1413 = vmatprep.subr.mxu0 0.0
        %1414 = vmatpush1.msra.mxu0 0.0
        %1415 = vmatprep.subr.mxu0 0.0
        %1416 = vmatpush1.msra.mxu0 0.0
        %1417 = vmatprep.subr.mxu0 0.0
        %1418 = vmatpush1.msra.mxu0 0.0
        %1419 = vmatprep.subr.mxu0 0.0
        %1420 = vmatpush1.msra.mxu0 0.0
        %1421 = vmatprep.subr.mxu0 0.0
        %1422 = vmatpush1.msra.mxu0 0.0
        %1423 = vmatprep.subr.mxu0 0.0
        %1424 = vmatpush1.msra.mxu0 0.0
        %1425 = vmatprep.subr.mxu0 0.0
        %1426 = vmatpush1.msra.mxu0 0.0
        %1427 = vmatprep.subr.mxu0 0.0
        %1428 = vmatpush1.msra.mxu0 0.0
        %1429 = vmatprep.subr.mxu0 0.0
        %1430 = vmatpush1.msra.mxu0 0.0
        %1431 = vmatprep.subr.mxu0 0.0
        %1432 = vmatpush1.msra.mxu0 0.0
        %1433 = vmatprep.subr.mxu0 0.0
        %1434 = vmatpush1.msra.mxu0 0.0
        %1435 = vmatprep.subr.mxu0 0.0
        %1436 = vmatpush1.msra.mxu0 0.0
        %1437 = vmatprep.subr.mxu0 0.0
        %1438 = vmatpush1.msra.mxu0 0.0
        %1439 = vmatprep.subr.mxu0 0.0
        %1440 = vmatpush1.msra.mxu0 0.0
        %1441 = vmatprep.subr.mxu0 0.0
        %1442 = vmatpush1.msra.mxu0 0.0
        %1443 = vmatprep.subr.mxu0 0.0
        %1444 = vmatpush1.msra.mxu0 0.0
        %1445 = vmatprep.subr.mxu0 0.0
        %1446 = vmatpush1.msra.mxu0 0.0
        %1447 = vmatprep.subr.mxu0 0.0
        %1448 = vmatpush1.msra.mxu0 0.0
        %1449 = vmatprep.subr.mxu0 0.0
        %1450 = vmatpush1.msra.mxu0 0.0
        %1451 = vmatprep.subr.mxu0 0.0
        %1452 = vmatpush1.msra.mxu0 0.0
        %1453 = vmatprep.subr.mxu0 0.0
        %1454 = vmatpush1.msra.mxu0 0.0
        %1455 = vmatprep.subr.mxu0 0.0
        %1456 = vmatpush1.msra.mxu0 0.0
        %1457 = vmatprep.subr.mxu0 0.0
        %1458 = vmatpush1.msra.mxu0 0.0
        %1459 = vmatprep.subr.mxu0 0.0
        %1460 = vmatpush1.msra.mxu0 0.0
        %1461 = vmatprep.subr.mxu0 0.0
        %1462 = vmatpush1.msra.mxu0 0.0
        %1463 = vmatprep.subr.mxu0 0.0
        %1464 = vmatpush1.msra.mxu0 0.0
        %1465 = vmatprep.subr.mxu0 0.0
        %1466 = vmatpush1.msra.mxu0 0.0
        %1467 = vmatprep.mubr.f32.mxu0 0.0
        %1468 = vmatmul.mubr.f32.gmra.mrb[0].mxu0 %v933
        %v1469 = vpop.f32.mrb[0].mxu0
        %v1470 = vadd.f32 0.0, %v1469
        %v1471 = vpop.f32.mrb[0].mxu0
        %v1472 = vadd.f32 0.0, %v1471
        %1473 = vdwg.mxu0
        %1474 = vmatprep.subr.mxu0 0.0
        %1475 = vmatpush1.msra.mxu0 %v1401
        %1476 = vmatprep.subr.mxu0 0.0
        %1477 = vmatpush1.msra.mxu0 0.0
        %1478 = vmatprep.subr.mxu0 0.0
        %1479 = vmatpush1.msra.mxu0 0.0
        %1480 = vmatprep.subr.mxu0 0.0
        %1481 = vmatpush1.msra.mxu0 0.0
        %1482 = vmatprep.subr.mxu0 0.0
        %1483 = vmatpush1.msra.mxu0 0.0
        %1484 = vmatprep.subr.mxu0 0.0
        %1485 = vmatpush1.msra.mxu0 0.0
        %1486 = vmatprep.subr.mxu0 0.0
        %1487 = vmatpush1.msra.mxu0 0.0
        %1488 = vmatprep.subr.mxu0 0.0
        %1489 = vmatpush1.msra.mxu0 0.0
        %1490 = vmatprep.subr.mxu0 0.0
        %1491 = vmatpush1.msra.mxu0 0.0
        %1492 = vmatprep.subr.mxu0 0.0
        %1493 = vmatpush1.msra.mxu0 0.0
        %1494 = vmatprep.subr.mxu0 0.0
        %1495 = vmatpush1.msra.mxu0 0.0
        %1496 = vmatprep.subr.mxu0 0.0
        %1497 = vmatpush1.msra.mxu0 0.0
        %1498 = vmatprep.subr.mxu0 0.0
        %1499 = vmatpush1.msra.mxu0 0.0
        %1500 = vmatprep.subr.mxu0 0.0
        %1501 = vmatpush1.msra.mxu0 0.0
        %1502 = vmatprep.subr.mxu0 0.0
        %1503 = vmatpush1.msra.mxu0 0.0
        %1504 = vmatprep.subr.mxu0 0.0
        %1505 = vmatpush1.msra.mxu0 0.0
        %1506 = vmatprep.subr.mxu0 0.0
        %1507 = vmatpush1.msra.mxu0 0.0
        %1508 = vmatprep.subr.mxu0 0.0
        %1509 = vmatpush1.msra.mxu0 0.0
        %1510 = vmatprep.subr.mxu0 0.0
        %1511 = vmatpush1.msra.mxu0 0.0
        %1512 = vmatprep.subr.mxu0 0.0
        %1513 = vmatpush1.msra.mxu0 0.0
        %1514 = vmatprep.subr.mxu0 0.0
        %1515 = vmatpush1.msra.mxu0 0.0
        %1516 = vmatprep.subr.mxu0 0.0
        %1517 = vmatpush1.msra.mxu0 0.0
        %1518 = vmatprep.subr.mxu0 0.0
        %1519 = vmatpush1.msra.mxu0 0.0
        %1520 = vmatprep.subr.mxu0 0.0
        %1521 = vmatpush1.msra.mxu0 0.0
        %1522 = vmatprep.subr.mxu0 0.0
        %1523 = vmatpush1.msra.mxu0 0.0
        %1524 = vmatprep.subr.mxu0 0.0
        %1525 = vmatpush1.msra.mxu0 0.0
        %1526 = vmatprep.subr.mxu0 0.0
        %1527 = vmatpush1.msra.mxu0 0.0
        %1528 = vmatprep.subr.mxu0 0.0
        %1529 = vmatpush1.msra.mxu0 0.0
        %1530 = vmatprep.subr.mxu0 0.0
        %1531 = vmatpush1.msra.mxu0 0.0
        %1532 = vmatprep.subr.mxu0 0.0
        %1533 = vmatpush1.msra.mxu0 0.0
        %1534 = vmatprep.subr.mxu0 0.0
        %1535 = vmatpush1.msra.mxu0 0.0
        %1536 = vmatprep.subr.mxu0 0.0
        %1537 = vmatpush1.msra.mxu0 0.0
        %1538 = vmatprep.mubr.f32.mxu0 0.0
        %1539 = vmatmul.mubr.f32.gmra.mrb[0].mxu0 %v933
        %v1540 = vpop.f32.mrb[0].mxu0
        %v1541 = vadd.f32 0.0, %v1540
        %v1542 = vpop.f32.mrb[0].mxu0
        %1543 = vdwg.mxu0
        %v1544 = vadd.f32 %v884, %v1470
        %v1545 = vadd.f32 %v885, %v1472
        %v1546 = vadd.f32 %v886, %v1541
        %1547 = vrot.lane.b32.xlu0 %v255, 126
        %v1548 = vpop.permute.xlu0 %1547
        %1549 = vrot.lane.b32.xlu0 %v257, 126
        %v1550 = vpop.permute.xlu0 %1549
        %1551 = vrot.lane.b32.xlu0 %v259, 126
        %v1552 = vpop.permute.xlu0 %1551
        %1553 = vrot.lane.b32.xlu0 %v261, 126
        %v1554 = vpop.permute.xlu0 %1553
        %1555 = vrot.lane.b32.xlu0 %v272, 126
        %v1556 = vpop.permute.xlu0 %1555
        %1557 = vrot.lane.b32.xlu0 %v430, 126
        %v1558 = vpop.permute.xlu0 %1557
        %1559 = vrot.lane.b32.xlu0 %v583, 126
        %v1560 = vpop.permute.xlu0 %1559
        %1561 = vrot.lane.b32.xlu0 %v736, 126
        %v1562 = vpop.permute.xlu0 %1561
        %1563 = vrot.lane.b32.xlu0 %v256, 126
        %v1564 = vpop.permute.xlu0 %1563
        %1565 = vrot.lane.b32.xlu0 %v258, 126
        %v1566 = vpop.permute.xlu0 %1565
        %1567 = vrot.lane.b32.xlu0 %v260, 126
        %v1568 = vpop.permute.xlu0 %1567
        %1569 = vrot.lane.b32.xlu0 %v262, 126
        %v1570 = vpop.permute.xlu0 %1569
        %vm1571 = vcmp.lt.s32.totalorder %v916, 126
        %v1572 = vsel %vm1571, %v1556, %v1564
        %v1573 = vsel %vm1571, %v1558, %v1566
        %v1574 = vsel %vm1571, %v1560, %v1568
        %v1575 = vsel %vm1571, %v1562, %v1570
        %v1576 = vsel %vm1571, %v1548, %v1556
        %v1577 = vsel %vm1571, %v1550, %v1558
        %v1578 = vsel %vm1571, %v1552, %v1560
        %v1579 = vsel %vm1571, %v1554, %v1562
        %v1580 = vsel %vm1571, %v1564, %v1548
        %v1581 = vsel %vm1571, %v1566, %v1550
        %v1582 = vsel %vm1571, %v1568, %v1552
        %v1583 = vsel %vm1571, %v1570, %v1554
        %s1584 = scalar_lea.vmem %s1, 16
        %v1585 = vld [vmem:[%s1584] sm:$0xff]
        %v1587 = vsel %vm273, %v1585, 0
        %v1590 = vsel %vm277, %v1576, 0
        %v1593 = vsel %vm277, %v1572, 0
        %v1596 = vsel %vm277, %v1580, 0
        %1598 = vmatprep.subr.mxu0 %v1593
        %1599 = vmatpush1.msra.mxu0 %v1590
        %1600 = vmatprep.subr.mxu0 0.0
        %1601 = vmatpush1.msra.mxu0 0.0
        %1602 = vmatprep.subr.mxu0 0.0
        %1603 = vmatpush1.msra.mxu0 0.0
        %1604 = vmatprep.subr.mxu0 0.0
        %1605 = vmatpush1.msra.mxu0 0.0
        %1606 = vmatprep.subr.mxu0 0.0
        %1607 = vmatpush1.msra.mxu0 0.0
        %1608 = vmatprep.subr.mxu0 0.0
        %1609 = vmatpush1.msra.mxu0 0.0
        %1610 = vmatprep.subr.mxu0 0.0
        %1611 = vmatpush1.msra.mxu0 0.0
        %1612 = vmatprep.subr.mxu0 0.0
        %1613 = vmatpush1.msra.mxu0 0.0
        %1614 = vmatprep.subr.mxu0 0.0
        %1615 = vmatpush1.msra.mxu0 0.0
        %1616 = vmatprep.subr.mxu0 0.0
        %1617 = vmatpush1.msra.mxu0 0.0
        %1618 = vmatprep.subr.mxu0 0.0
        %1619 = vmatpush1.msra.mxu0 0.0
        %1620 = vmatprep.subr.mxu0 0.0
        %1621 = vmatpush1.msra.mxu0 0.0
        %1622 = vmatprep.subr.mxu0 0.0
        %1623 = vmatpush1.msra.mxu0 0.0
        %1624 = vmatprep.subr.mxu0 0.0
        %1625 = vmatpush1.msra.mxu0 0.0
        %1626 = vmatprep.subr.mxu0 0.0
        %1627 = vmatpush1.msra.mxu0 0.0
        %1628 = vmatprep.subr.mxu0 0.0
        %1629 = vmatpush1.msra.mxu0 0.0
        %1630 = vmatprep.subr.mxu0 0.0
        %1631 = vmatpush1.msra.mxu0 0.0
        %1632 = vmatprep.subr.mxu0 0.0
        %1633 = vmatpush1.msra.mxu0 0.0
        %1634 = vmatprep.subr.mxu0 0.0
        %1635 = vmatpush1.msra.mxu0 0.0
        %1636 = vmatprep.subr.mxu0 0.0
        %1637 = vmatpush1.msra.mxu0 0.0
        %1638 = vmatprep.subr.mxu0 0.0
        %1639 = vmatpush1.msra.mxu0 0.0
        %1640 = vmatprep.subr.mxu0 0.0
        %1641 = vmatpush1.msra.mxu0 0.0
        %1642 = vmatprep.subr.mxu0 0.0
        %1643 = vmatpush1.msra.mxu0 0.0
        %1644 = vmatprep.subr.mxu0 0.0
        %1645 = vmatpush1.msra.mxu0 0.0
        %1646 = vmatprep.subr.mxu0 0.0
        %1647 = vmatpush1.msra.mxu0 0.0
        %1648 = vmatprep.subr.mxu0 0.0
        %1649 = vmatpush1.msra.mxu0 0.0
        %1650 = vmatprep.subr.mxu0 0.0
        %1651 = vmatpush1.msra.mxu0 0.0
        %1652 = vmatprep.subr.mxu0 0.0
        %1653 = vmatpush1.msra.mxu0 0.0
        %1654 = vmatprep.subr.mxu0 0.0
        %1655 = vmatpush1.msra.mxu0 0.0
        %1656 = vmatprep.subr.mxu0 0.0
        %1657 = vmatpush1.msra.mxu0 0.0
        %1658 = vmatprep.subr.mxu0 0.0
        %1659 = vmatpush1.msra.mxu0 0.0
        %1660 = vmatprep.subr.mxu0 0.0
        %1661 = vmatpush1.msra.mxu0 0.0
        %1662 = vmatprep.mubr.f32.mxu0 0.0
        %1663 = vmatmul.mubr.f32.gmra.mrb[0].mxu0 %v1587
        %v1664 = vpop.f32.mrb[0].mxu0
        %v1665 = vadd.f32 0.0, %v1664
        %v1666 = vpop.f32.mrb[0].mxu0
        %v1667 = vadd.f32 0.0, %v1666
        %1668 = vdwg.mxu0
        %1669 = vmatprep.subr.mxu0 0.0
        %1670 = vmatpush1.msra.mxu0 %v1596
        %1671 = vmatprep.subr.mxu0 0.0
        %1672 = vmatpush1.msra.mxu0 0.0
        %1673 = vmatprep.subr.mxu0 0.0
        %1674 = vmatpush1.msra.mxu0 0.0
        %1675 = vmatprep.subr.mxu0 0.0
        %1676 = vmatpush1.msra.mxu0 0.0
        %1677 = vmatprep.subr.mxu0 0.0
        %1678 = vmatpush1.msra.mxu0 0.0
        %1679 = vmatprep.subr.mxu0 0.0
        %1680 = vmatpush1.msra.mxu0 0.0
        %1681 = vmatprep.subr.mxu0 0.0
        %1682 = vmatpush1.msra.mxu0 0.0
        %1683 = vmatprep.subr.mxu0 0.0
        %1684 = vmatpush1.msra.mxu0 0.0
        %1685 = vmatprep.subr.mxu0 0.0
        %1686 = vmatpush1.msra.mxu0 0.0
        %1687 = vmatprep.subr.mxu0 0.0
        %1688 = vmatpush1.msra.mxu0 0.0
        %1689 = vmatprep.subr.mxu0 0.0
        %1690 = vmatpush1.msra.mxu0 0.0
        %1691 = vmatprep.subr.mxu0 0.0
        %1692 = vmatpush1.msra.mxu0 0.0
        %1693 = vmatprep.subr.mxu0 0.0
        %1694 = vmatpush1.msra.mxu0 0.0
        %1695 = vmatprep.subr.mxu0 0.0
        %1696 = vmatpush1.msra.mxu0 0.0
        %1697 = vmatprep.subr.mxu0 0.0
        %1698 = vmatpush1.msra.mxu0 0.0
        %1699 = vmatprep.subr.mxu0 0.0
        %1700 = vmatpush1.msra.mxu0 0.0
        %1701 = vmatprep.subr.mxu0 0.0
        %1702 = vmatpush1.msra.mxu0 0.0
        %1703 = vmatprep.subr.mxu0 0.0
        %1704 = vmatpush1.msra.mxu0 0.0
        %1705 = vmatprep.subr.mxu0 0.0
        %1706 = vmatpush1.msra.mxu0 0.0
        %1707 = vmatprep.subr.mxu0 0.0
        %1708 = vmatpush1.msra.mxu0 0.0
        %1709 = vmatprep.subr.mxu0 0.0
        %1710 = vmatpush1.msra.mxu0 0.0
        %1711 = vmatprep.subr.mxu0 0.0
        %1712 = vmatpush1.msra.mxu0 0.0
        %1713 = vmatprep.subr.mxu0 0.0
        %1714 = vmatpush1.msra.mxu0 0.0
        %1715 = vmatprep.subr.mxu0 0.0
        %1716 = vmatpush1.msra.mxu0 0.0
        %1717 = vmatprep.subr.mxu0 0.0
        %1718 = vmatpush1.msra.mxu0 0.0
        %1719 = vmatprep.subr.mxu0 0.0
        %1720 = vmatpush1.msra.mxu0 0.0
        %1721 = vmatprep.subr.mxu0 0.0
        %1722 = vmatpush1.msra.mxu0 0.0
        %1723 = vmatprep.subr.mxu0 0.0
        %1724 = vmatpush1.msra.mxu0 0.0
        %1725 = vmatprep.subr.mxu0 0.0
        %1726 = vmatpush1.msra.mxu0 0.0
        %1727 = vmatprep.subr.mxu0 0.0
        %1728 = vmatpush1.msra.mxu0 0.0
        %1729 = vmatprep.subr.mxu0 0.0
        %1730 = vmatpush1.msra.mxu0 0.0
        %1731 = vmatprep.subr.mxu0 0.0
        %1732 = vmatpush1.msra.mxu0 0.0
        %1733 = vmatprep.mubr.f32.mxu0 0.0
        %1734 = vmatmul.mubr.f32.gmra.mrb[0].mxu0 %v1587
        %v1735 = vpop.f32.mrb[0].mxu0
        %v1736 = vadd.f32 0.0, %v1735
        %v1737 = vpop.f32.mrb[0].mxu0
        %1738 = vdwg.mxu0
        %v1739 = vadd.f32 %v1085, %v1665
        %v1740 = vadd.f32 %v1086, %v1667
        %v1741 = vadd.f32 %v1087, %v1736
        %v1743 = vsel %vm277, %v1577, 0
        %v1746 = vsel %vm277, %v1573, 0
        %v1749 = vsel %vm277, %v1581, 0
        %1751 = vmatprep.subr.mxu0 %v1746
        %1752 = vmatpush1.msra.mxu0 %v1743
        %1753 = vmatprep.subr.mxu0 0.0
        %1754 = vmatpush1.msra.mxu0 0.0
        %1755 = vmatprep.subr.mxu0 0.0
        %1756 = vmatpush1.msra.mxu0 0.0
        %1757 = vmatprep.subr.mxu0 0.0
        %1758 = vmatpush1.msra.mxu0 0.0
        %1759 = vmatprep.subr.mxu0 0.0
        %1760 = vmatpush1.msra.mxu0 0.0
        %1761 = vmatprep.subr.mxu0 0.0
        %1762 = vmatpush1.msra.mxu0 0.0
        %1763 = vmatprep.subr.mxu0 0.0
        %1764 = vmatpush1.msra.mxu0 0.0
        %1765 = vmatprep.subr.mxu0 0.0
        %1766 = vmatpush1.msra.mxu0 0.0
        %1767 = vmatprep.subr.mxu0 0.0
        %1768 = vmatpush1.msra.mxu0 0.0
        %1769 = vmatprep.subr.mxu0 0.0
        %1770 = vmatpush1.msra.mxu0 0.0
        %1771 = vmatprep.subr.mxu0 0.0
        %1772 = vmatpush1.msra.mxu0 0.0
        %1773 = vmatprep.subr.mxu0 0.0
        %1774 = vmatpush1.msra.mxu0 0.0
        %1775 = vmatprep.subr.mxu0 0.0
        %1776 = vmatpush1.msra.mxu0 0.0
        %1777 = vmatprep.subr.mxu0 0.0
        %1778 = vmatpush1.msra.mxu0 0.0
        %1779 = vmatprep.subr.mxu0 0.0
        %1780 = vmatpush1.msra.mxu0 0.0
        %1781 = vmatprep.subr.mxu0 0.0
        %1782 = vmatpush1.msra.mxu0 0.0
        %1783 = vmatprep.subr.mxu0 0.0
        %1784 = vmatpush1.msra.mxu0 0.0
        %1785 = vmatprep.subr.mxu0 0.0
        %1786 = vmatpush1.msra.mxu0 0.0
        %1787 = vmatprep.subr.mxu0 0.0
        %1788 = vmatpush1.msra.mxu0 0.0
        %1789 = vmatprep.subr.mxu0 0.0
        %1790 = vmatpush1.msra.mxu0 0.0
        %1791 = vmatprep.subr.mxu0 0.0
        %1792 = vmatpush1.msra.mxu0 0.0
        %1793 = vmatprep.subr.mxu0 0.0
        %1794 = vmatpush1.msra.mxu0 0.0
        %1795 = vmatprep.subr.mxu0 0.0
        %1796 = vmatpush1.msra.mxu0 0.0
        %1797 = vmatprep.subr.mxu0 0.0
        %1798 = vmatpush1.msra.mxu0 0.0
        %1799 = vmatprep.subr.mxu0 0.0
        %1800 = vmatpush1.msra.mxu0 0.0
        %1801 = vmatprep.subr.mxu0 0.0
        %1802 = vmatpush1.msra.mxu0 0.0
        %1803 = vmatprep.subr.mxu0 0.0
        %1804 = vmatpush1.msra.mxu0 0.0
        %1805 = vmatprep.subr.mxu0 0.0
        %1806 = vmatpush1.msra.mxu0 0.0
        %1807 = vmatprep.subr.mxu0 0.0
        %1808 = vmatpush1.msra.mxu0 0.0
        %1809 = vmatprep.subr.mxu0 0.0
        %1810 = vmatpush1.msra.mxu0 0.0
        %1811 = vmatprep.subr.mxu0 0.0
        %1812 = vmatpush1.msra.mxu0 0.0
        %1813 = vmatprep.subr.mxu0 0.0
        %1814 = vmatpush1.msra.mxu0 0.0
        %1815 = vmatprep.mubr.f32.mxu0 0.0
        %1816 = vmatmul.mubr.f32.gmra.mrb[0].mxu0 %v1587
        %v1817 = vpop.f32.mrb[0].mxu0
        %v1818 = vadd.f32 0.0, %v1817
        %v1819 = vpop.f32.mrb[0].mxu0
        %v1820 = vadd.f32 0.0, %v1819
        %1821 = vdwg.mxu0
        %1822 = vmatprep.subr.mxu0 0.0
        %1823 = vmatpush1.msra.mxu0 %v1749
        %1824 = vmatprep.subr.mxu0 0.0
        %1825 = vmatpush1.msra.mxu0 0.0
        %1826 = vmatprep.subr.mxu0 0.0
        %1827 = vmatpush1.msra.mxu0 0.0
        %1828 = vmatprep.subr.mxu0 0.0
        %1829 = vmatpush1.msra.mxu0 0.0
        %1830 = vmatprep.subr.mxu0 0.0
        %1831 = vmatpush1.msra.mxu0 0.0
        %1832 = vmatprep.subr.mxu0 0.0
        %1833 = vmatpush1.msra.mxu0 0.0
        %1834 = vmatprep.subr.mxu0 0.0
        %1835 = vmatpush1.msra.mxu0 0.0
        %1836 = vmatprep.subr.mxu0 0.0
        %1837 = vmatpush1.msra.mxu0 0.0
        %1838 = vmatprep.subr.mxu0 0.0
        %1839 = vmatpush1.msra.mxu0 0.0
        %1840 = vmatprep.subr.mxu0 0.0
        %1841 = vmatpush1.msra.mxu0 0.0
        %1842 = vmatprep.subr.mxu0 0.0
        %1843 = vmatpush1.msra.mxu0 0.0
        %1844 = vmatprep.subr.mxu0 0.0
        %1845 = vmatpush1.msra.mxu0 0.0
        %1846 = vmatprep.subr.mxu0 0.0
        %1847 = vmatpush1.msra.mxu0 0.0
        %1848 = vmatprep.subr.mxu0 0.0
        %1849 = vmatpush1.msra.mxu0 0.0
        %1850 = vmatprep.subr.mxu0 0.0
        %1851 = vmatpush1.msra.mxu0 0.0
        %1852 = vmatprep.subr.mxu0 0.0
        %1853 = vmatpush1.msra.mxu0 0.0
        %1854 = vmatprep.subr.mxu0 0.0
        %1855 = vmatpush1.msra.mxu0 0.0
        %1856 = vmatprep.subr.mxu0 0.0
        %1857 = vmatpush1.msra.mxu0 0.0
        %1858 = vmatprep.subr.mxu0 0.0
        %1859 = vmatpush1.msra.mxu0 0.0
        %1860 = vmatprep.subr.mxu0 0.0
        %1861 = vmatpush1.msra.mxu0 0.0
        %1862 = vmatprep.subr.mxu0 0.0
        %1863 = vmatpush1.msra.mxu0 0.0
        %1864 = vmatprep.subr.mxu0 0.0
        %1865 = vmatpush1.msra.mxu0 0.0
        %1866 = vmatprep.subr.mxu0 0.0
        %1867 = vmatpush1.msra.mxu0 0.0
        %1868 = vmatprep.subr.mxu0 0.0
        %1869 = vmatpush1.msra.mxu0 0.0
        %1870 = vmatprep.subr.mxu0 0.0
        %1871 = vmatpush1.msra.mxu0 0.0
        %1872 = vmatprep.subr.mxu0 0.0
        %1873 = vmatpush1.msra.mxu0 0.0
        %1874 = vmatprep.subr.mxu0 0.0
        %1875 = vmatpush1.msra.mxu0 0.0
        %1876 = vmatprep.subr.mxu0 0.0
        %1877 = vmatpush1.msra.mxu0 0.0
        %1878 = vmatprep.subr.mxu0 0.0
        %1879 = vmatpush1.msra.mxu0 0.0
        %1880 = vmatprep.subr.mxu0 0.0
        %1881 = vmatpush1.msra.mxu0 0.0
        %1882 = vmatprep.subr.mxu0 0.0
        %1883 = vmatpush1.msra.mxu0 0.0
        %1884 = vmatprep.subr.mxu0 0.0
        %1885 = vmatpush1.msra.mxu0 0.0
        %1886 = vmatprep.mubr.f32.mxu0 0.0
        %1887 = vmatmul.mubr.f32.gmra.mrb[0].mxu0 %v1587
        %v1888 = vpop.f32.mrb[0].mxu0
        %v1889 = vadd.f32 0.0, %v1888
        %v1890 = vpop.f32.mrb[0].mxu0
        %1891 = vdwg.mxu0
        %v1892 = vadd.f32 %v1238, %v1818
        %v1893 = vadd.f32 %v1239, %v1820
        %v1894 = vadd.f32 %v1240, %v1889
        %v1896 = vsel %vm277, %v1578, 0
        %v1899 = vsel %vm277, %v1574, 0
        %v1902 = vsel %vm277, %v1582, 0
        %1904 = vmatprep.subr.mxu0 %v1899
        %1905 = vmatpush1.msra.mxu0 %v1896
        %1906 = vmatprep.subr.mxu0 0.0
        %1907 = vmatpush1.msra.mxu0 0.0
        %1908 = vmatprep.subr.mxu0 0.0
        %1909 = vmatpush1.msra.mxu0 0.0
        %1910 = vmatprep.subr.mxu0 0.0
        %1911 = vmatpush1.msra.mxu0 0.0
        %1912 = vmatprep.subr.mxu0 0.0
        %1913 = vmatpush1.msra.mxu0 0.0
        %1914 = vmatprep.subr.mxu0 0.0
        %1915 = vmatpush1.msra.mxu0 0.0
        %1916 = vmatprep.subr.mxu0 0.0
        %1917 = vmatpush1.msra.mxu0 0.0
        %1918 = vmatprep.subr.mxu0 0.0
        %1919 = vmatpush1.msra.mxu0 0.0
        %1920 = vmatprep.subr.mxu0 0.0
        %1921 = vmatpush1.msra.mxu0 0.0
        %1922 = vmatprep.subr.mxu0 0.0
        %1923 = vmatpush1.msra.mxu0 0.0
        %1924 = vmatprep.subr.mxu0 0.0
        %1925 = vmatpush1.msra.mxu0 0.0
        %1926 = vmatprep.subr.mxu0 0.0
        %1927 = vmatpush1.msra.mxu0 0.0
        %1928 = vmatprep.subr.mxu0 0.0
        %1929 = vmatpush1.msra.mxu0 0.0
        %1930 = vmatprep.subr.mxu0 0.0
        %1931 = vmatpush1.msra.mxu0 0.0
        %1932 = vmatprep.subr.mxu0 0.0
        %1933 = vmatpush1.msra.mxu0 0.0
        %1934 = vmatprep.subr.mxu0 0.0
        %1935 = vmatpush1.msra.mxu0 0.0
        %1936 = vmatprep.subr.mxu0 0.0
        %1937 = vmatpush1.msra.mxu0 0.0
        %1938 = vmatprep.subr.mxu0 0.0
        %1939 = vmatpush1.msra.mxu0 0.0
        %1940 = vmatprep.subr.mxu0 0.0
        %1941 = vmatpush1.msra.mxu0 0.0
        %1942 = vmatprep.subr.mxu0 0.0
        %1943 = vmatpush1.msra.mxu0 0.0
        %1944 = vmatprep.subr.mxu0 0.0
        %1945 = vmatpush1.msra.mxu0 0.0
        %1946 = vmatprep.subr.mxu0 0.0
        %1947 = vmatpush1.msra.mxu0 0.0
        %1948 = vmatprep.subr.mxu0 0.0
        %1949 = vmatpush1.msra.mxu0 0.0
        %1950 = vmatprep.subr.mxu0 0.0
        %1951 = vmatpush1.msra.mxu0 0.0
        %1952 = vmatprep.subr.mxu0 0.0
        %1953 = vmatpush1.msra.mxu0 0.0
        %1954 = vmatprep.subr.mxu0 0.0
        %1955 = vmatpush1.msra.mxu0 0.0
        %1956 = vmatprep.subr.mxu0 0.0
        %1957 = vmatpush1.msra.mxu0 0.0
        %1958 = vmatprep.subr.mxu0 0.0
        %1959 = vmatpush1.msra.mxu0 0.0
        %1960 = vmatprep.subr.mxu0 0.0
        %1961 = vmatpush1.msra.mxu0 0.0
        %1962 = vmatprep.subr.mxu0 0.0
        %1963 = vmatpush1.msra.mxu0 0.0
        %1964 = vmatprep.subr.mxu0 0.0
        %1965 = vmatpush1.msra.mxu0 0.0
        %1966 = vmatprep.subr.mxu0 0.0
        %1967 = vmatpush1.msra.mxu0 0.0
        %1968 = vmatprep.mubr.f32.mxu0 0.0
        %1969 = vmatmul.mubr.f32.gmra.mrb[0].mxu0 %v1587
        %v1970 = vpop.f32.mrb[0].mxu0
        %v1971 = vadd.f32 0.0, %v1970
        %v1972 = vpop.f32.mrb[0].mxu0
        %v1973 = vadd.f32 0.0, %v1972
        %1974 = vdwg.mxu0
        %1975 = vmatprep.subr.mxu0 0.0
        %1976 = vmatpush1.msra.mxu0 %v1902
        %1977 = vmatprep.subr.mxu0 0.0
        %1978 = vmatpush1.msra.mxu0 0.0
        %1979 = vmatprep.subr.mxu0 0.0
        %1980 = vmatpush1.msra.mxu0 0.0
        %1981 = vmatprep.subr.mxu0 0.0
        %1982 = vmatpush1.msra.mxu0 0.0
        %1983 = vmatprep.subr.mxu0 0.0
        %1984 = vmatpush1.msra.mxu0 0.0
        %1985 = vmatprep.subr.mxu0 0.0
        %1986 = vmatpush1.msra.mxu0 0.0
        %1987 = vmatprep.subr.mxu0 0.0
        %1988 = vmatpush1.msra.mxu0 0.0
        %1989 = vmatprep.subr.mxu0 0.0
        %1990 = vmatpush1.msra.mxu0 0.0
        %1991 = vmatprep.subr.mxu0 0.0
        %1992 = vmatpush1.msra.mxu0 0.0
        %1993 = vmatprep.subr.mxu0 0.0
        %1994 = vmatpush1.msra.mxu0 0.0
        %1995 = vmatprep.subr.mxu0 0.0
        %1996 = vmatpush1.msra.mxu0 0.0
        %1997 = vmatprep.subr.mxu0 0.0
        %1998 = vmatpush1.msra.mxu0 0.0
        %1999 = vmatprep.subr.mxu0 0.0
        %2000 = vmatpush1.msra.mxu0 0.0
        %2001 = vmatprep.subr.mxu0 0.0
        %2002 = vmatpush1.msra.mxu0 0.0
        %2003 = vmatprep.subr.mxu0 0.0
        %2004 = vmatpush1.msra.mxu0 0.0
        %2005 = vmatprep.subr.mxu0 0.0
        %2006 = vmatpush1.msra.mxu0 0.0
        %2007 = vmatprep.subr.mxu0 0.0
        %2008 = vmatpush1.msra.mxu0 0.0
        %2009 = vmatprep.subr.mxu0 0.0
        %2010 = vmatpush1.msra.mxu0 0.0
        %2011 = vmatprep.subr.mxu0 0.0
        %2012 = vmatpush1.msra.mxu0 0.0
        %2013 = vmatprep.subr.mxu0 0.0
        %2014 = vmatpush1.msra.mxu0 0.0
        %2015 = vmatprep.subr.mxu0 0.0
        %2016 = vmatpush1.msra.mxu0 0.0
        %2017 = vmatprep.subr.mxu0 0.0
        %2018 = vmatpush1.msra.mxu0 0.0
        %2019 = vmatprep.subr.mxu0 0.0
        %2020 = vmatpush1.msra.mxu0 0.0
        %2021 = vmatprep.subr.mxu0 0.0
        %2022 = vmatpush1.msra.mxu0 0.0
        %2023 = vmatprep.subr.mxu0 0.0
        %2024 = vmatpush1.msra.mxu0 0.0
        %2025 = vmatprep.subr.mxu0 0.0
        %2026 = vmatpush1.msra.mxu0 0.0
        %2027 = vmatprep.subr.mxu0 0.0
        %2028 = vmatpush1.msra.mxu0 0.0
        %2029 = vmatprep.subr.mxu0 0.0
        %2030 = vmatpush1.msra.mxu0 0.0
        %2031 = vmatprep.subr.mxu0 0.0
        %2032 = vmatpush1.msra.mxu0 0.0
        %2033 = vmatprep.subr.mxu0 0.0
        %2034 = vmatpush1.msra.mxu0 0.0
        %2035 = vmatprep.subr.mxu0 0.0
        %2036 = vmatpush1.msra.mxu0 0.0
        %2037 = vmatprep.subr.mxu0 0.0
        %2038 = vmatpush1.msra.mxu0 0.0
        %2039 = vmatprep.mubr.f32.mxu0 0.0
        %2040 = vmatmul.mubr.f32.gmra.mrb[0].mxu0 %v1587
        %v2041 = vpop.f32.mrb[0].mxu0
        %v2042 = vadd.f32 0.0, %v2041
        %v2043 = vpop.f32.mrb[0].mxu0
        %2044 = vdwg.mxu0
        %v2045 = vadd.f32 %v1391, %v1971
        %v2046 = vadd.f32 %v1392, %v1973
        %v2047 = vadd.f32 %v1393, %v2042
        %v2049 = vsel %vm277, %v1579, 0
        %v2052 = vsel %vm277, %v1575, 0
        %v2055 = vsel %vm277, %v1583, 0
        %2057 = vmatprep.subr.mxu0 %v2052
        %2058 = vmatpush1.msra.mxu0 %v2049
        %2059 = vmatprep.subr.mxu0 0.0
        %2060 = vmatpush1.msra.mxu0 0.0
        %2061 = vmatprep.subr.mxu0 0.0
        %2062 = vmatpush1.msra.mxu0 0.0
        %2063 = vmatprep.subr.mxu0 0.0
        %2064 = vmatpush1.msra.mxu0 0.0
        %2065 = vmatprep.subr.mxu0 0.0
        %2066 = vmatpush1.msra.mxu0 0.0
        %2067 = vmatprep.subr.mxu0 0.0
        %2068 = vmatpush1.msra.mxu0 0.0
        %2069 = vmatprep.subr.mxu0 0.0
        %2070 = vmatpush1.msra.mxu0 0.0
        %2071 = vmatprep.subr.mxu0 0.0
        %2072 = vmatpush1.msra.mxu0 0.0
        %2073 = vmatprep.subr.mxu0 0.0
        %2074 = vmatpush1.msra.mxu0 0.0
        %2075 = vmatprep.subr.mxu0 0.0
        %2076 = vmatpush1.msra.mxu0 0.0
        %2077 = vmatprep.subr.mxu0 0.0
        %2078 = vmatpush1.msra.mxu0 0.0
        %2079 = vmatprep.subr.mxu0 0.0
        %2080 = vmatpush1.msra.mxu0 0.0
        %2081 = vmatprep.subr.mxu0 0.0
        %2082 = vmatpush1.msra.mxu0 0.0
        %2083 = vmatprep.subr.mxu0 0.0
        %2084 = vmatpush1.msra.mxu0 0.0
        %2085 = vmatprep.subr.mxu0 0.0
        %2086 = vmatpush1.msra.mxu0 0.0
        %2087 = vmatprep.subr.mxu0 0.0
        %2088 = vmatpush1.msra.mxu0 0.0
        %2089 = vmatprep.subr.mxu0 0.0
        %2090 = vmatpush1.msra.mxu0 0.0
        %2091 = vmatprep.subr.mxu0 0.0
        %2092 = vmatpush1.msra.mxu0 0.0
        %2093 = vmatprep.subr.mxu0 0.0
        %2094 = vmatpush1.msra.mxu0 0.0
        %2095 = vmatprep.subr.mxu0 0.0
        %2096 = vmatpush1.msra.mxu0 0.0
        %2097 = vmatprep.subr.mxu0 0.0
        %2098 = vmatpush1.msra.mxu0 0.0
        %2099 = vmatprep.subr.mxu0 0.0
        %2100 = vmatpush1.msra.mxu0 0.0
        %2101 = vmatprep.subr.mxu0 0.0
        %2102 = vmatpush1.msra.mxu0 0.0
        %2103 = vmatprep.subr.mxu0 0.0
        %2104 = vmatpush1.msra.mxu0 0.0
        %2105 = vmatprep.subr.mxu0 0.0
        %2106 = vmatpush1.msra.mxu0 0.0
        %2107 = vmatprep.subr.mxu0 0.0
        %2108 = vmatpush1.msra.mxu0 0.0
        %2109 = vmatprep.subr.mxu0 0.0
        %2110 = vmatpush1.msra.mxu0 0.0
        %2111 = vmatprep.subr.mxu0 0.0
        %2112 = vmatpush1.msra.mxu0 0.0
        %2113 = vmatprep.subr.mxu0 0.0
        %2114 = vmatpush1.msra.mxu0 0.0
        %2115 = vmatprep.subr.mxu0 0.0
        %2116 = vmatpush1.msra.mxu0 0.0
        %2117 = vmatprep.subr.mxu0 0.0
        %2118 = vmatpush1.msra.mxu0 0.0
        %2119 = vmatprep.subr.mxu0 0.0
        %2120 = vmatpush1.msra.mxu0 0.0
        %2121 = vmatprep.mubr.f32.mxu0 0.0
        %2122 = vmatmul.mubr.f32.gmra.mrb[0].mxu0 %v1587
        %v2123 = vpop.f32.mrb[0].mxu0
        %v2124 = vadd.f32 0.0, %v2123
        %v2125 = vpop.f32.mrb[0].mxu0
        %v2126 = vadd.f32 0.0, %v2125
        %2127 = vdwg.mxu0
        %2128 = vmatprep.subr.mxu0 0.0
        %2129 = vmatpush1.msra.mxu0 %v2055
        %2130 = vmatprep.subr.mxu0 0.0
        %2131 = vmatpush1.msra.mxu0 0.0
        %2132 = vmatprep.subr.mxu0 0.0
        %2133 = vmatpush1.msra.mxu0 0.0
        %2134 = vmatprep.subr.mxu0 0.0
        %2135 = vmatpush1.msra.mxu0 0.0
        %2136 = vmatprep.subr.mxu0 0.0
        %2137 = vmatpush1.msra.mxu0 0.0
        %2138 = vmatprep.subr.mxu0 0.0
        %2139 = vmatpush1.msra.mxu0 0.0
        %2140 = vmatprep.subr.mxu0 0.0
        %2141 = vmatpush1.msra.mxu0 0.0
        %2142 = vmatprep.subr.mxu0 0.0
        %2143 = vmatpush1.msra.mxu0 0.0
        %2144 = vmatprep.subr.mxu0 0.0
        %2145 = vmatpush1.msra.mxu0 0.0
        %2146 = vmatprep.subr.mxu0 0.0
        %2147 = vmatpush1.msra.mxu0 0.0
        %2148 = vmatprep.subr.mxu0 0.0
        %2149 = vmatpush1.msra.mxu0 0.0
        %2150 = vmatprep.subr.mxu0 0.0
        %2151 = vmatpush1.msra.mxu0 0.0
        %2152 = vmatprep.subr.mxu0 0.0
        %2153 = vmatpush1.msra.mxu0 0.0
        %2154 = vmatprep.subr.mxu0 0.0
        %2155 = vmatpush1.msra.mxu0 0.0
        %2156 = vmatprep.subr.mxu0 0.0
        %2157 = vmatpush1.msra.mxu0 0.0
        %2158 = vmatprep.subr.mxu0 0.0
        %2159 = vmatpush1.msra.mxu0 0.0
        %2160 = vmatprep.subr.mxu0 0.0
        %2161 = vmatpush1.msra.mxu0 0.0
        %2162 = vmatprep.subr.mxu0 0.0
        %2163 = vmatpush1.msra.mxu0 0.0
        %2164 = vmatprep.subr.mxu0 0.0
        %2165 = vmatpush1.msra.mxu0 0.0
        %2166 = vmatprep.subr.mxu0 0.0
        %2167 = vmatpush1.msra.mxu0 0.0
        %2168 = vmatprep.subr.mxu0 0.0
        %2169 = vmatpush1.msra.mxu0 0.0
        %2170 = vmatprep.subr.mxu0 0.0
        %2171 = vmatpush1.msra.mxu0 0.0
        %2172 = vmatprep.subr.mxu0 0.0
        %2173 = vmatpush1.msra.mxu0 0.0
        %2174 = vmatprep.subr.mxu0 0.0
        %2175 = vmatpush1.msra.mxu0 0.0
        %2176 = vmatprep.subr.mxu0 0.0
        %2177 = vmatpush1.msra.mxu0 0.0
        %2178 = vmatprep.subr.mxu0 0.0
        %2179 = vmatpush1.msra.mxu0 0.0
        %2180 = vmatprep.subr.mxu0 0.0
        %2181 = vmatpush1.msra.mxu0 0.0
        %2182 = vmatprep.subr.mxu0 0.0
        %2183 = vmatpush1.msra.mxu0 0.0
        %2184 = vmatprep.subr.mxu0 0.0
        %2185 = vmatpush1.msra.mxu0 0.0
        %2186 = vmatprep.subr.mxu0 0.0
        %2187 = vmatpush1.msra.mxu0 0.0
        %2188 = vmatprep.subr.mxu0 0.0
        %2189 = vmatpush1.msra.mxu0 0.0
        %2190 = vmatprep.subr.mxu0 0.0
        %2191 = vmatpush1.msra.mxu0 0.0
        %2192 = vmatprep.mubr.f32.mxu0 0.0
        %2193 = vmatmul.mubr.f32.gmra.mrb[0].mxu0 %v1587
        %v2194 = vpop.f32.mrb[0].mxu0
        %v2195 = vadd.f32 0.0, %v2194
        %v2196 = vpop.f32.mrb[0].mxu0
        %2197 = vdwg.mxu0
        %v2198 = vadd.f32 %v1544, %v2124
        %v2199 = vadd.f32 %v1545, %v2126
        %v2200 = vadd.f32 %v1546, %v2195
        %2201 = vrot.lane.b32.xlu0 %v255, 110
        %v2202 = vpop.permute.xlu0 %2201
        %2203 = vrot.lane.b32.xlu0 %v257, 110
        %v2204 = vpop.permute.xlu0 %2203
        %2205 = vrot.lane.b32.xlu0 %v259, 110
        %v2206 = vpop.permute.xlu0 %2205
        %2207 = vrot.lane.b32.xlu0 %v261, 110
        %v2208 = vpop.permute.xlu0 %2207
        %2209 = vrot.lane.b32.xlu0 %v272, 110
        %v2210 = vpop.permute.xlu0 %2209
        %2211 = vrot.lane.b32.xlu0 %v430, 110
        %v2212 = vpop.permute.xlu0 %2211
        %2213 = vrot.lane.b32.xlu0 %v583, 110
        %v2214 = vpop.permute.xlu0 %2213
        %2215 = vrot.lane.b32.xlu0 %v736, 110
        %v2216 = vpop.permute.xlu0 %2215
        %2217 = vrot.lane.b32.xlu0 %v256, 110
        %v2218 = vpop.permute.xlu0 %2217
        %2219 = vrot.lane.b32.xlu0 %v258, 110
        %v2220 = vpop.permute.xlu0 %2219
        %2221 = vrot.lane.b32.xlu0 %v260, 110
        %v2222 = vpop.permute.xlu0 %2221
        %2223 = vrot.lane.b32.xlu0 %v262, 110
        %v2224 = vpop.permute.xlu0 %2223
        %vm2225 = vcmp.lt.s32.totalorder %v916, 110
        %v2226 = vsel %vm2225, %v2210, %v2218
        %v2227 = vsel %vm2225, %v2212, %v2220
        %v2228 = vsel %vm2225, %v2214, %v2222
        %v2229 = vsel %vm2225, %v2216, %v2224
        %v2230 = vsel %vm2225, %v2202, %v2210
        %v2231 = vsel %vm2225, %v2204, %v2212
        %v2232 = vsel %vm2225, %v2206, %v2214
        %v2233 = vsel %vm2225, %v2208, %v2216
        %v2234 = vsel %vm2225, %v2218, %v2202
        %v2235 = vsel %vm2225, %v2220, %v2204
        %v2236 = vsel %vm2225, %v2222, %v2206
        %v2237 = vsel %vm2225, %v2224, %v2208
        %s2238 = scalar_lea.vmem %s1, 24
        %v2239 = vld [vmem:[%s2238] sm:$0xff]
        %v2241 = vsel %vm273, %v2239, 0
        %v2244 = vsel %vm277, %v2230, 0
        %v2247 = vsel %vm277, %v2226, 0
        %v2250 = vsel %vm277, %v2234, 0
        %2252 = vmatprep.subr.mxu0 %v2247
        %2253 = vmatpush1.msra.mxu0 %v2244
        %2254 = vmatprep.subr.mxu0 0.0
        %2255 = vmatpush1.msra.mxu0 0.0
        %2256 = vmatprep.subr.mxu0 0.0
        %2257 = vmatpush1.msra.mxu0 0.0
        %2258 = vmatprep.subr.mxu0 0.0
        %2259 = vmatpush1.msra.mxu0 0.0
        %2260 = vmatprep.subr.mxu0 0.0
        %2261 = vmatpush1.msra.mxu0 0.0
        %2262 = vmatprep.subr.mxu0 0.0
        %2263 = vmatpush1.msra.mxu0 0.0
        %2264 = vmatprep.subr.mxu0 0.0
        %2265 = vmatpush1.msra.mxu0 0.0
        %2266 = vmatprep.subr.mxu0 0.0
        %2267 = vmatpush1.msra.mxu0 0.0
        %2268 = vmatprep.subr.mxu0 0.0
        %2269 = vmatpush1.msra.mxu0 0.0
        %2270 = vmatprep.subr.mxu0 0.0
        %2271 = vmatpush1.msra.mxu0 0.0
        %2272 = vmatprep.subr.mxu0 0.0
        %2273 = vmatpush1.msra.mxu0 0.0
        %2274 = vmatprep.subr.mxu0 0.0
        %2275 = vmatpush1.msra.mxu0 0.0
        %2276 = vmatprep.subr.mxu0 0.0
        %2277 = vmatpush1.msra.mxu0 0.0
        %2278 = vmatprep.subr.mxu0 0.0
        %2279 = vmatpush1.msra.mxu0 0.0
        %2280 = vmatprep.subr.mxu0 0.0
        %2281 = vmatpush1.msra.mxu0 0.0
        %2282 = vmatprep.subr.mxu0 0.0
        %2283 = vmatpush1.msra.mxu0 0.0
        %2284 = vmatprep.subr.mxu0 0.0
        %2285 = vmatpush1.msra.mxu0 0.0
        %2286 = vmatprep.subr.mxu0 0.0
        %2287 = vmatpush1.msra.mxu0 0.0
        %2288 = vmatprep.subr.mxu0 0.0
        %2289 = vmatpush1.msra.mxu0 0.0
        %2290 = vmatprep.subr.mxu0 0.0
        %2291 = vmatpush1.msra.mxu0 0.0
        %2292 = vmatprep.subr.mxu0 0.0
        %2293 = vmatpush1.msra.mxu0 0.0
        %2294 = vmatprep.subr.mxu0 0.0
        %2295 = vmatpush1.msra.mxu0 0.0
        %2296 = vmatprep.subr.mxu0 0.0
        %2297 = vmatpush1.msra.mxu0 0.0
        %2298 = vmatprep.subr.mxu0 0.0
        %2299 = vmatpush1.msra.mxu0 0.0
        %2300 = vmatprep.subr.mxu0 0.0
        %2301 = vmatpush1.msra.mxu0 0.0
        %2302 = vmatprep.subr.mxu0 0.0
        %2303 = vmatpush1.msra.mxu0 0.0
        %2304 = vmatprep.subr.mxu0 0.0
        %2305 = vmatpush1.msra.mxu0 0.0
        %2306 = vmatprep.subr.mxu0 0.0
        %2307 = vmatpush1.msra.mxu0 0.0
        %2308 = vmatprep.subr.mxu0 0.0
        %2309 = vmatpush1.msra.mxu0 0.0
        %2310 = vmatprep.subr.mxu0 0.0
        %2311 = vmatpush1.msra.mxu0 0.0
        %2312 = vmatprep.subr.mxu0 0.0
        %2313 = vmatpush1.msra.mxu0 0.0
        %2314 = vmatprep.subr.mxu0 0.0
        %2315 = vmatpush1.msra.mxu0 0.0
        %2316 = vmatprep.mubr.f32.mxu0 0.0
        %2317 = vmatmul.mubr.f32.gmra.mrb[0].mxu0 %v2241
        %v2318 = vpop.f32.mrb[0].mxu0
        %v2319 = vadd.f32 0.0, %v2318
        %v2320 = vpop.f32.mrb[0].mxu0
        %v2321 = vadd.f32 0.0, %v2320
        %2322 = vdwg.mxu0
        %2323 = vmatprep.subr.mxu0 0.0
        %2324 = vmatpush1.msra.mxu0 %v2250
        %2325 = vmatprep.subr.mxu0 0.0
        %2326 = vmatpush1.msra.mxu0 0.0
        %2327 = vmatprep.subr.mxu0 0.0
        %2328 = vmatpush1.msra.mxu0 0.0
        %2329 = vmatprep.subr.mxu0 0.0
        %2330 = vmatpush1.msra.mxu0 0.0
        %2331 = vmatprep.subr.mxu0 0.0
        %2332 = vmatpush1.msra.mxu0 0.0
        %2333 = vmatprep.subr.mxu0 0.0
        %2334 = vmatpush1.msra.mxu0 0.0
        %2335 = vmatprep.subr.mxu0 0.0
        %2336 = vmatpush1.msra.mxu0 0.0
        %2337 = vmatprep.subr.mxu0 0.0
        %2338 = vmatpush1.msra.mxu0 0.0
        %2339 = vmatprep.subr.mxu0 0.0
        %2340 = vmatpush1.msra.mxu0 0.0
        %2341 = vmatprep.subr.mxu0 0.0
        %2342 = vmatpush1.msra.mxu0 0.0
        %2343 = vmatprep.subr.mxu0 0.0
        %2344 = vmatpush1.msra.mxu0 0.0
        %2345 = vmatprep.subr.mxu0 0.0
        %2346 = vmatpush1.msra.mxu0 0.0
        %2347 = vmatprep.subr.mxu0 0.0
        %2348 = vmatpush1.msra.mxu0 0.0
        %2349 = vmatprep.subr.mxu0 0.0
        %2350 = vmatpush1.msra.mxu0 0.0
        %2351 = vmatprep.subr.mxu0 0.0
        %2352 = vmatpush1.msra.mxu0 0.0
        %2353 = vmatprep.subr.mxu0 0.0
        %2354 = vmatpush1.msra.mxu0 0.0
        %2355 = vmatprep.subr.mxu0 0.0
        %2356 = vmatpush1.msra.mxu0 0.0
        %2357 = vmatprep.subr.mxu0 0.0
        %2358 = vmatpush1.msra.mxu0 0.0
        %2359 = vmatprep.subr.mxu0 0.0
        %2360 = vmatpush1.msra.mxu0 0.0
        %2361 = vmatprep.subr.mxu0 0.0
        %2362 = vmatpush1.msra.mxu0 0.0
        %2363 = vmatprep.subr.mxu0 0.0
        %2364 = vmatpush1.msra.mxu0 0.0
        %2365 = vmatprep.subr.mxu0 0.0
        %2366 = vmatpush1.msra.mxu0 0.0
        %2367 = vmatprep.subr.mxu0 0.0
        %2368 = vmatpush1.msra.mxu0 0.0
        %2369 = vmatprep.subr.mxu0 0.0
        %2370 = vmatpush1.msra.mxu0 0.0
        %2371 = vmatprep.subr.mxu0 0.0
        %2372 = vmatpush1.msra.mxu0 0.0
        %2373 = vmatprep.subr.mxu0 0.0
        %2374 = vmatpush1.msra.mxu0 0.0
        %2375 = vmatprep.subr.mxu0 0.0
        %2376 = vmatpush1.msra.mxu0 0.0
        %2377 = vmatprep.subr.mxu0 0.0
        %2378 = vmatpush1.msra.mxu0 0.0
        %2379 = vmatprep.subr.mxu0 0.0
        %2380 = vmatpush1.msra.mxu0 0.0
        %2381 = vmatprep.subr.mxu0 0.0
        %2382 = vmatpush1.msra.mxu0 0.0
        %2383 = vmatprep.subr.mxu0 0.0
        %2384 = vmatpush1.msra.mxu0 0.0
        %2385 = vmatprep.subr.mxu0 0.0
        %2386 = vmatpush1.msra.mxu0 0.0
        %2387 = vmatprep.mubr.f32.mxu0 0.0
        %2388 = vmatmul.mubr.f32.gmra.mrb[0].mxu0 %v2241
        %v2389 = vpop.f32.mrb[0].mxu0
        %v2390 = vadd.f32 0.0, %v2389
        %v2391 = vpop.f32.mrb[0].mxu0
        %2392 = vdwg.mxu0
        %v2393 = vadd.f32 %v1739, %v2319
        %v2394 = vadd.f32 %v1740, %v2321
        %v2395 = vadd.f32 %v1741, %v2390
        %v2397 = vsel %vm277, %v2231, 0
        %v2400 = vsel %vm277, %v2227, 0
        %v2403 = vsel %vm277, %v2235, 0
        %2405 = vmatprep.subr.mxu0 %v2400
        %2406 = vmatpush1.msra.mxu0 %v2397
        %2407 = vmatprep.subr.mxu0 0.0
        %2408 = vmatpush1.msra.mxu0 0.0
        %2409 = vmatprep.subr.mxu0 0.0
        %2410 = vmatpush1.msra.mxu0 0.0
        %2411 = vmatprep.subr.mxu0 0.0
        %2412 = vmatpush1.msra.mxu0 0.0
        %2413 = vmatprep.subr.mxu0 0.0
        %2414 = vmatpush1.msra.mxu0 0.0
        %2415 = vmatprep.subr.mxu0 0.0
        %2416 = vmatpush1.msra.mxu0 0.0
        %2417 = vmatprep.subr.mxu0 0.0
        %2418 = vmatpush1.msra.mxu0 0.0
        %2419 = vmatprep.subr.mxu0 0.0
        %2420 = vmatpush1.msra.mxu0 0.0
        %2421 = vmatprep.subr.mxu0 0.0
        %2422 = vmatpush1.msra.mxu0 0.0
        %2423 = vmatprep.subr.mxu0 0.0
        %2424 = vmatpush1.msra.mxu0 0.0
        %2425 = vmatprep.subr.mxu0 0.0
        %2426 = vmatpush1.msra.mxu0 0.0
        %2427 = vmatprep.subr.mxu0 0.0
        %2428 = vmatpush1.msra.mxu0 0.0
        %2429 = vmatprep.subr.mxu0 0.0
        %2430 = vmatpush1.msra.mxu0 0.0
        %2431 = vmatprep.subr.mxu0 0.0
        %2432 = vmatpush1.msra.mxu0 0.0
        %2433 = vmatprep.subr.mxu0 0.0
        %2434 = vmatpush1.msra.mxu0 0.0
        %2435 = vmatprep.subr.mxu0 0.0
        %2436 = vmatpush1.msra.mxu0 0.0
        %2437 = vmatprep.subr.mxu0 0.0
        %2438 = vmatpush1.msra.mxu0 0.0
        %2439 = vmatprep.subr.mxu0 0.0
        %2440 = vmatpush1.msra.mxu0 0.0
        %2441 = vmatprep.subr.mxu0 0.0
        %2442 = vmatpush1.msra.mxu0 0.0
        %2443 = vmatprep.subr.mxu0 0.0
        %2444 = vmatpush1.msra.mxu0 0.0
        %2445 = vmatprep.subr.mxu0 0.0
        %2446 = vmatpush1.msra.mxu0 0.0
        %2447 = vmatprep.subr.mxu0 0.0
        %2448 = vmatpush1.msra.mxu0 0.0
        %2449 = vmatprep.subr.mxu0 0.0
        %2450 = vmatpush1.msra.mxu0 0.0
        %2451 = vmatprep.subr.mxu0 0.0
        %2452 = vmatpush1.msra.mxu0 0.0
        %2453 = vmatprep.subr.mxu0 0.0
        %2454 = vmatpush1.msra.mxu0 0.0
        %2455 = vmatprep.subr.mxu0 0.0
        %2456 = vmatpush1.msra.mxu0 0.0
        %2457 = vmatprep.subr.mxu0 0.0
        %2458 = vmatpush1.msra.mxu0 0.0
        %2459 = vmatprep.subr.mxu0 0.0
        %2460 = vmatpush1.msra.mxu0 0.0
        %2461 = vmatprep.subr.mxu0 0.0
        %2462 = vmatpush1.msra.mxu0 0.0
        %2463 = vmatprep.subr.mxu0 0.0
        %2464 = vmatpush1.msra.mxu0 0.0
        %2465 = vmatprep.subr.mxu0 0.0
        %2466 = vmatpush1.msra.mxu0 0.0
        %2467 = vmatprep.subr.mxu0 0.0
        %2468 = vmatpush1.msra.mxu0 0.0
        %2469 = vmatprep.mubr.f32.mxu0 0.0
        %2470 = vmatmul.mubr.f32.gmra.mrb[0].mxu0 %v2241
        %v2471 = vpop.f32.mrb[0].mxu0
        %v2472 = vadd.f32 0.0, %v2471
        %v2473 = vpop.f32.mrb[0].mxu0
        %v2474 = vadd.f32 0.0, %v2473
        %2475 = vdwg.mxu0
        %2476 = vmatprep.subr.mxu0 0.0
        %2477 = vmatpush1.msra.mxu0 %v2403
        %2478 = vmatprep.subr.mxu0 0.0
        %2479 = vmatpush1.msra.mxu0 0.0
        %2480 = vmatprep.subr.mxu0 0.0
        %2481 = vmatpush1.msra.mxu0 0.0
        %2482 = vmatprep.subr.mxu0 0.0
        %2483 = vmatpush1.msra.mxu0 0.0
        %2484 = vmatprep.subr.mxu0 0.0
        %2485 = vmatpush1.msra.mxu0 0.0
        %2486 = vmatprep.subr.mxu0 0.0
        %2487 = vmatpush1.msra.mxu0 0.0
        %2488 = vmatprep.subr.mxu0 0.0
        %2489 = vmatpush1.msra.mxu0 0.0
        %2490 = vmatprep.subr.mxu0 0.0
        %2491 = vmatpush1.msra.mxu0 0.0
        %2492 = vmatprep.subr.mxu0 0.0
        %2493 = vmatpush1.msra.mxu0 0.0
        %2494 = vmatprep.subr.mxu0 0.0
        %2495 = vmatpush1.msra.mxu0 0.0
        %2496 = vmatprep.subr.mxu0 0.0
        %2497 = vmatpush1.msra.mxu0 0.0
        %2498 = vmatprep.subr.mxu0 0.0
        %2499 = vmatpush1.msra.mxu0 0.0
        %2500 = vmatprep.subr.mxu0 0.0
        %2501 = vmatpush1.msra.mxu0 0.0
        %2502 = vmatprep.subr.mxu0 0.0
        %2503 = vmatpush1.msra.mxu0 0.0
        %2504 = vmatprep.subr.mxu0 0.0
        %2505 = vmatpush1.msra.mxu0 0.0
        %2506 = vmatprep.subr.mxu0 0.0
        %2507 = vmatpush1.msra.mxu0 0.0
        %2508 = vmatprep.subr.mxu0 0.0
        %2509 = vmatpush1.msra.mxu0 0.0
        %2510 = vmatprep.subr.mxu0 0.0
        %2511 = vmatpush1.msra.mxu0 0.0
        %2512 = vmatprep.subr.mxu0 0.0
        %2513 = vmatpush1.msra.mxu0 0.0
        %2514 = vmatprep.subr.mxu0 0.0
        %2515 = vmatpush1.msra.mxu0 0.0
        %2516 = vmatprep.subr.mxu0 0.0
        %2517 = vmatpush1.msra.mxu0 0.0
        %2518 = vmatprep.subr.mxu0 0.0
        %2519 = vmatpush1.msra.mxu0 0.0
        %2520 = vmatprep.subr.mxu0 0.0
        %2521 = vmatpush1.msra.mxu0 0.0
        %2522 = vmatprep.subr.mxu0 0.0
        %2523 = vmatpush1.msra.mxu0 0.0
        %2524 = vmatprep.subr.mxu0 0.0
        %2525 = vmatpush1.msra.mxu0 0.0
        %2526 = vmatprep.subr.mxu0 0.0
        %2527 = vmatpush1.msra.mxu0 0.0
        %2528 = vmatprep.subr.mxu0 0.0
        %2529 = vmatpush1.msra.mxu0 0.0
        %2530 = vmatprep.subr.mxu0 0.0
        %2531 = vmatpush1.msra.mxu0 0.0
        %2532 = vmatprep.subr.mxu0 0.0
        %2533 = vmatpush1.msra.mxu0 0.0
        %2534 = vmatprep.subr.mxu0 0.0
        %2535 = vmatpush1.msra.mxu0 0.0
        %2536 = vmatprep.subr.mxu0 0.0
        %2537 = vmatpush1.msra.mxu0 0.0
        %2538 = vmatprep.subr.mxu0 0.0
        %2539 = vmatpush1.msra.mxu0 0.0
        %2540 = vmatprep.mubr.f32.mxu0 0.0
        %2541 = vmatmul.mubr.f32.gmra.mrb[0].mxu0 %v2241
        %v2542 = vpop.f32.mrb[0].mxu0
        %v2543 = vadd.f32 0.0, %v2542
        %v2544 = vpop.f32.mrb[0].mxu0
        %2545 = vdwg.mxu0
        %v2546 = vadd.f32 %v1892, %v2472
        %v2547 = vadd.f32 %v1893, %v2474
        %v2548 = vadd.f32 %v1894, %v2543
        %v2550 = vsel %vm277, %v2232, 0
        %v2553 = vsel %vm277, %v2228, 0
        %v2556 = vsel %vm277, %v2236, 0
        %2558 = vmatprep.subr.mxu0 %v2553
        %2559 = vmatpush1.msra.mxu0 %v2550
        %2560 = vmatprep.subr.mxu0 0.0
        %2561 = vmatpush1.msra.mxu0 0.0
        %2562 = vmatprep.subr.mxu0 0.0
        %2563 = vmatpush1.msra.mxu0 0.0
        %2564 = vmatprep.subr.mxu0 0.0
        %2565 = vmatpush1.msra.mxu0 0.0
        %2566 = vmatprep.subr.mxu0 0.0
        %2567 = vmatpush1.msra.mxu0 0.0
        %2568 = vmatprep.subr.mxu0 0.0
        %2569 = vmatpush1.msra.mxu0 0.0
        %2570 = vmatprep.subr.mxu0 0.0
        %2571 = vmatpush1.msra.mxu0 0.0
        %2572 = vmatprep.subr.mxu0 0.0
        %2573 = vmatpush1.msra.mxu0 0.0
        %2574 = vmatprep.subr.mxu0 0.0
        %2575 = vmatpush1.msra.mxu0 0.0
        %2576 = vmatprep.subr.mxu0 0.0
        %2577 = vmatpush1.msra.mxu0 0.0
        %2578 = vmatprep.subr.mxu0 0.0
        %2579 = vmatpush1.msra.mxu0 0.0
        %2580 = vmatprep.subr.mxu0 0.0
        %2581 = vmatpush1.msra.mxu0 0.0
        %2582 = vmatprep.subr.mxu0 0.0
        %2583 = vmatpush1.msra.mxu0 0.0
        %2584 = vmatprep.subr.mxu0 0.0
        %2585 = vmatpush1.msra.mxu0 0.0
        %2586 = vmatprep.subr.mxu0 0.0
        %2587 = vmatpush1.msra.mxu0 0.0
        %2588 = vmatprep.subr.mxu0 0.0
        %2589 = vmatpush1.msra.mxu0 0.0
        %2590 = vmatprep.subr.mxu0 0.0
        %2591 = vmatpush1.msra.mxu0 0.0
        %2592 = vmatprep.subr.mxu0 0.0
        %2593 = vmatpush1.msra.mxu0 0.0
        %2594 = vmatprep.subr.mxu0 0.0
        %2595 = vmatpush1.msra.mxu0 0.0
        %2596 = vmatprep.subr.mxu0 0.0
        %2597 = vmatpush1.msra.mxu0 0.0
        %2598 = vmatprep.subr.mxu0 0.0
        %2599 = vmatpush1.msra.mxu0 0.0
        %2600 = vmatprep.subr.mxu0 0.0
        %2601 = vmatpush1.msra.mxu0 0.0
        %2602 = vmatprep.subr.mxu0 0.0
        %2603 = vmatpush1.msra.mxu0 0.0
        %2604 = vmatprep.subr.mxu0 0.0
        %2605 = vmatpush1.msra.mxu0 0.0
        %2606 = vmatprep.subr.mxu0 0.0
        %2607 = vmatpush1.msra.mxu0 0.0
        %2608 = vmatprep.subr.mxu0 0.0
        %2609 = vmatpush1.msra.mxu0 0.0
        %2610 = vmatprep.subr.mxu0 0.0
        %2611 = vmatpush1.msra.mxu0 0.0
        %2612 = vmatprep.subr.mxu0 0.0
        %2613 = vmatpush1.msra.mxu0 0.0
        %2614 = vmatprep.subr.mxu0 0.0
        %2615 = vmatpush1.msra.mxu0 0.0
        %2616 = vmatprep.subr.mxu0 0.0
        %2617 = vmatpush1.msra.mxu0 0.0
        %2618 = vmatprep.subr.mxu0 0.0
        %2619 = vmatpush1.msra.mxu0 0.0
        %2620 = vmatprep.subr.mxu0 0.0
        %2621 = vmatpush1.msra.mxu0 0.0
        %2622 = vmatprep.mubr.f32.mxu0 0.0
        %2623 = vmatmul.mubr.f32.gmra.mrb[0].mxu0 %v2241
        %v2624 = vpop.f32.mrb[0].mxu0
        %v2625 = vadd.f32 0.0, %v2624
        %v2626 = vpop.f32.mrb[0].mxu0
        %v2627 = vadd.f32 0.0, %v2626
        %2628 = vdwg.mxu0
        %2629 = vmatprep.subr.mxu0 0.0
        %2630 = vmatpush1.msra.mxu0 %v2556
        %2631 = vmatprep.subr.mxu0 0.0
        %2632 = vmatpush1.msra.mxu0 0.0
        %2633 = vmatprep.subr.mxu0 0.0
        %2634 = vmatpush1.msra.mxu0 0.0
        %2635 = vmatprep.subr.mxu0 0.0
        %2636 = vmatpush1.msra.mxu0 0.0
        %2637 = vmatprep.subr.mxu0 0.0
        %2638 = vmatpush1.msra.mxu0 0.0
        %2639 = vmatprep.subr.mxu0 0.0
        %2640 = vmatpush1.msra.mxu0 0.0
        %2641 = vmatprep.subr.mxu0 0.0
        %2642 = vmatpush1.msra.mxu0 0.0
        %2643 = vmatprep.subr.mxu0 0.0
        %2644 = vmatpush1.msra.mxu0 0.0
        %2645 = vmatprep.subr.mxu0 0.0
        %2646 = vmatpush1.msra.mxu0 0.0
        %2647 = vmatprep.subr.mxu0 0.0
        %2648 = vmatpush1.msra.mxu0 0.0
        %2649 = vmatprep.subr.mxu0 0.0
        %2650 = vmatpush1.msra.mxu0 0.0
        %2651 = vmatprep.subr.mxu0 0.0
        %2652 = vmatpush1.msra.mxu0 0.0
        %2653 = vmatprep.subr.mxu0 0.0
        %2654 = vmatpush1.msra.mxu0 0.0
        %2655 = vmatprep.subr.mxu0 0.0
        %2656 = vmatpush1.msra.mxu0 0.0
        %2657 = vmatprep.subr.mxu0 0.0
        %2658 = vmatpush1.msra.mxu0 0.0
        %2659 = vmatprep.subr.mxu0 0.0
        %2660 = vmatpush1.msra.mxu0 0.0
        %2661 = vmatprep.subr.mxu0 0.0
        %2662 = vmatpush1.msra.mxu0 0.0
        %2663 = vmatprep.subr.mxu0 0.0
        %2664 = vmatpush1.msra.mxu0 0.0
        %2665 = vmatprep.subr.mxu0 0.0
        %2666 = vmatpush1.msra.mxu0 0.0
        %2667 = vmatprep.subr.mxu0 0.0
        %2668 = vmatpush1.msra.mxu0 0.0
        %2669 = vmatprep.subr.mxu0 0.0
        %2670 = vmatpush1.msra.mxu0 0.0
        %2671 = vmatprep.subr.mxu0 0.0
        %2672 = vmatpush1.msra.mxu0 0.0
        %2673 = vmatprep.subr.mxu0 0.0
        %2674 = vmatpush1.msra.mxu0 0.0
        %2675 = vmatprep.subr.mxu0 0.0
        %2676 = vmatpush1.msra.mxu0 0.0
        %2677 = vmatprep.subr.mxu0 0.0
        %2678 = vmatpush1.msra.mxu0 0.0
        %2679 = vmatprep.subr.mxu0 0.0
        %2680 = vmatpush1.msra.mxu0 0.0
        %2681 = vmatprep.subr.mxu0 0.0
        %2682 = vmatpush1.msra.mxu0 0.0
        %2683 = vmatprep.subr.mxu0 0.0
        %2684 = vmatpush1.msra.mxu0 0.0
        %2685 = vmatprep.subr.mxu0 0.0
        %2686 = vmatpush1.msra.mxu0 0.0
        %2687 = vmatprep.subr.mxu0 0.0
        %2688 = vmatpush1.msra.mxu0 0.0
        %2689 = vmatprep.subr.mxu0 0.0
        %2690 = vmatpush1.msra.mxu0 0.0
        %2691 = vmatprep.subr.mxu0 0.0
        %2692 = vmatpush1.msra.mxu0 0.0
        %2693 = vmatprep.mubr.f32.mxu0 0.0
        %2694 = vmatmul.mubr.f32.gmra.mrb[0].mxu0 %v2241
        %v2695 = vpop.f32.mrb[0].mxu0
        %v2696 = vadd.f32 0.0, %v2695
        %v2697 = vpop.f32.mrb[0].mxu0
        %2698 = vdwg.mxu0
        %v2699 = vadd.f32 %v2045, %v2625
        %v2700 = vadd.f32 %v2046, %v2627
        %v2701 = vadd.f32 %v2047, %v2696
        %v2703 = vsel %vm277, %v2233, 0
        %v2706 = vsel %vm277, %v2229, 0
        %v2709 = vsel %vm277, %v2237, 0
        %2711 = vmatprep.subr.mxu0 %v2706
        %2712 = vmatpush1.msra.mxu0 %v2703
        %2713 = vmatprep.subr.mxu0 0.0
        %2714 = vmatpush1.msra.mxu0 0.0
        %2715 = vmatprep.subr.mxu0 0.0
        %2716 = vmatpush1.msra.mxu0 0.0
        %2717 = vmatprep.subr.mxu0 0.0
        %2718 = vmatpush1.msra.mxu0 0.0
        %2719 = vmatprep.subr.mxu0 0.0
        %2720 = vmatpush1.msra.mxu0 0.0
        %2721 = vmatprep.subr.mxu0 0.0
        %2722 = vmatpush1.msra.mxu0 0.0
        %2723 = vmatprep.subr.mxu0 0.0
        %2724 = vmatpush1.msra.mxu0 0.0
        %2725 = vmatprep.subr.mxu0 0.0
        %2726 = vmatpush1.msra.mxu0 0.0
        %2727 = vmatprep.subr.mxu0 0.0
        %2728 = vmatpush1.msra.mxu0 0.0
        %2729 = vmatprep.subr.mxu0 0.0
        %2730 = vmatpush1.msra.mxu0 0.0
        %2731 = vmatprep.subr.mxu0 0.0
        %2732 = vmatpush1.msra.mxu0 0.0
        %2733 = vmatprep.subr.mxu0 0.0
        %2734 = vmatpush1.msra.mxu0 0.0
        %2735 = vmatprep.subr.mxu0 0.0
        %2736 = vmatpush1.msra.mxu0 0.0
        %2737 = vmatprep.subr.mxu0 0.0
        %2738 = vmatpush1.msra.mxu0 0.0
        %2739 = vmatprep.subr.mxu0 0.0
        %2740 = vmatpush1.msra.mxu0 0.0
        %2741 = vmatprep.subr.mxu0 0.0
        %2742 = vmatpush1.msra.mxu0 0.0
        %2743 = vmatprep.subr.mxu0 0.0
        %2744 = vmatpush1.msra.mxu0 0.0
        %2745 = vmatprep.subr.mxu0 0.0
        %2746 = vmatpush1.msra.mxu0 0.0
        %2747 = vmatprep.subr.mxu0 0.0
        %2748 = vmatpush1.msra.mxu0 0.0
        %2749 = vmatprep.subr.mxu0 0.0
        %2750 = vmatpush1.msra.mxu0 0.0
        %2751 = vmatprep.subr.mxu0 0.0
        %2752 = vmatpush1.msra.mxu0 0.0
        %2753 = vmatprep.subr.mxu0 0.0
        %2754 = vmatpush1.msra.mxu0 0.0
        %2755 = vmatprep.subr.mxu0 0.0
        %2756 = vmatpush1.msra.mxu0 0.0
        %2757 = vmatprep.subr.mxu0 0.0
        %2758 = vmatpush1.msra.mxu0 0.0
        %2759 = vmatprep.subr.mxu0 0.0
        %2760 = vmatpush1.msra.mxu0 0.0
        %2761 = vmatprep.subr.mxu0 0.0
        %2762 = vmatpush1.msra.mxu0 0.0
        %2763 = vmatprep.subr.mxu0 0.0
        %2764 = vmatpush1.msra.mxu0 0.0
        %2765 = vmatprep.subr.mxu0 0.0
        %2766 = vmatpush1.msra.mxu0 0.0
        %2767 = vmatprep.subr.mxu0 0.0
        %2768 = vmatpush1.msra.mxu0 0.0
        %2769 = vmatprep.subr.mxu0 0.0
        %2770 = vmatpush1.msra.mxu0 0.0
        %2771 = vmatprep.subr.mxu0 0.0
        %2772 = vmatpush1.msra.mxu0 0.0
        %2773 = vmatprep.subr.mxu0 0.0
        %2774 = vmatpush1.msra.mxu0 0.0
        %2775 = vmatprep.mubr.f32.mxu0 0.0
        %2776 = vmatmul.mubr.f32.gmra.mrb[0].mxu0 %v2241
        %v2777 = vpop.f32.mrb[0].mxu0
        %v2778 = vadd.f32 0.0, %v2777
        %v2779 = vpop.f32.mrb[0].mxu0
        %v2780 = vadd.f32 0.0, %v2779
        %2781 = vdwg.mxu0
        %2782 = vmatprep.subr.mxu0 0.0
        %2783 = vmatpush1.msra.mxu0 %v2709
        %2784 = vmatprep.subr.mxu0 0.0
        %2785 = vmatpush1.msra.mxu0 0.0
        %2786 = vmatprep.subr.mxu0 0.0
        %2787 = vmatpush1.msra.mxu0 0.0
        %2788 = vmatprep.subr.mxu0 0.0
        %2789 = vmatpush1.msra.mxu0 0.0
        %2790 = vmatprep.subr.mxu0 0.0
        %2791 = vmatpush1.msra.mxu0 0.0
        %2792 = vmatprep.subr.mxu0 0.0
        %2793 = vmatpush1.msra.mxu0 0.0
        %2794 = vmatprep.subr.mxu0 0.0
        %2795 = vmatpush1.msra.mxu0 0.0
        %2796 = vmatprep.subr.mxu0 0.0
        %2797 = vmatpush1.msra.mxu0 0.0
        %2798 = vmatprep.subr.mxu0 0.0
        %2799 = vmatpush1.msra.mxu0 0.0
        %2800 = vmatprep.subr.mxu0 0.0
        %2801 = vmatpush1.msra.mxu0 0.0
        %2802 = vmatprep.subr.mxu0 0.0
        %2803 = vmatpush1.msra.mxu0 0.0
        %2804 = vmatprep.subr.mxu0 0.0
        %2805 = vmatpush1.msra.mxu0 0.0
        %2806 = vmatprep.subr.mxu0 0.0
        %2807 = vmatpush1.msra.mxu0 0.0
        %2808 = vmatprep.subr.mxu0 0.0
        %2809 = vmatpush1.msra.mxu0 0.0
        %2810 = vmatprep.subr.mxu0 0.0
        %2811 = vmatpush1.msra.mxu0 0.0
        %2812 = vmatprep.subr.mxu0 0.0
        %2813 = vmatpush1.msra.mxu0 0.0
        %2814 = vmatprep.subr.mxu0 0.0
        %2815 = vmatpush1.msra.mxu0 0.0
        %2816 = vmatprep.subr.mxu0 0.0
        %2817 = vmatpush1.msra.mxu0 0.0
        %2818 = vmatprep.subr.mxu0 0.0
        %2819 = vmatpush1.msra.mxu0 0.0
        %2820 = vmatprep.subr.mxu0 0.0
        %2821 = vmatpush1.msra.mxu0 0.0
        %2822 = vmatprep.subr.mxu0 0.0
        %2823 = vmatpush1.msra.mxu0 0.0
        %2824 = vmatprep.subr.mxu0 0.0
        %2825 = vmatpush1.msra.mxu0 0.0
        %2826 = vmatprep.subr.mxu0 0.0
        %2827 = vmatpush1.msra.mxu0 0.0
        %2828 = vmatprep.subr.mxu0 0.0
        %2829 = vmatpush1.msra.mxu0 0.0
        %2830 = vmatprep.subr.mxu0 0.0
        %2831 = vmatpush1.msra.mxu0 0.0
        %2832 = vmatprep.subr.mxu0 0.0
        %2833 = vmatpush1.msra.mxu0 0.0
        %2834 = vmatprep.subr.mxu0 0.0
        %2835 = vmatpush1.msra.mxu0 0.0
        %2836 = vmatprep.subr.mxu0 0.0
        %2837 = vmatpush1.msra.mxu0 0.0
        %2838 = vmatprep.subr.mxu0 0.0
        %2839 = vmatpush1.msra.mxu0 0.0
        %2840 = vmatprep.subr.mxu0 0.0
        %2841 = vmatpush1.msra.mxu0 0.0
        %2842 = vmatprep.subr.mxu0 0.0
        %2843 = vmatpush1.msra.mxu0 0.0
        %2844 = vmatprep.subr.mxu0 0.0
        %2845 = vmatpush1.msra.mxu0 0.0
        %2846 = vmatprep.mubr.f32.mxu0 0.0
        %2847 = vmatmul.mubr.f32.gmra.mrb[0].mxu0 %v2241
        %v2848 = vpop.f32.mrb[0].mxu0
        %v2849 = vadd.f32 0.0, %v2848
        %v2850 = vpop.f32.mrb[0].mxu0
        %2851 = vdwg.mxu0
        %v2852 = vadd.f32 %v2198, %v2778
        %v2853 = vadd.f32 %v2199, %v2780
        %v2854 = vadd.f32 %v2200, %v2849
        %2855 = vrot.lane.b32.xlu0 %v255, 109
        %v2856 = vpop.permute.xlu0 %2855
        %2857 = vrot.lane.b32.xlu0 %v257, 109
        %v2858 = vpop.permute.xlu0 %2857
        %2859 = vrot.lane.b32.xlu0 %v259, 109
        %v2860 = vpop.permute.xlu0 %2859
        %2861 = vrot.lane.b32.xlu0 %v261, 109
        %v2862 = vpop.permute.xlu0 %2861
        %2863 = vrot.lane.b32.xlu0 %v272, 109
        %v2864 = vpop.permute.xlu0 %2863
        %2865 = vrot.lane.b32.xlu0 %v430, 109
        %v2866 = vpop.permute.xlu0 %2865
        %2867 = vrot.lane.b32.xlu0 %v583, 109
        %v2868 = vpop.permute.xlu0 %2867
        %2869 = vrot.lane.b32.xlu0 %v736, 109
        %v2870 = vpop.permute.xlu0 %2869
        %2871 = vrot.lane.b32.xlu0 %v256, 109
        %v2872 = vpop.permute.xlu0 %2871
        %2873 = vrot.lane.b32.xlu0 %v258, 109
        %v2874 = vpop.permute.xlu0 %2873
        %2875 = vrot.lane.b32.xlu0 %v260, 109
        %v2876 = vpop.permute.xlu0 %2875
        %2877 = vrot.lane.b32.xlu0 %v262, 109
        %v2878 = vpop.permute.xlu0 %2877
        %vm2879 = vcmp.lt.s32.totalorder %v916, 109
        %v2880 = vsel %vm2879, %v2864, %v2872
        %v2881 = vsel %vm2879, %v2866, %v2874
        %v2882 = vsel %vm2879, %v2868, %v2876
        %v2883 = vsel %vm2879, %v2870, %v2878
        %v2884 = vsel %vm2879, %v2856, %v2864
        %v2885 = vsel %vm2879, %v2858, %v2866
        %v2886 = vsel %vm2879, %v2860, %v2868
        %v2887 = vsel %vm2879, %v2862, %v2870
        %v2888 = vsel %vm2879, %v2872, %v2856
        %v2889 = vsel %vm2879, %v2874, %v2858
        %v2890 = vsel %vm2879, %v2876, %v2860
        %v2891 = vsel %vm2879, %v2878, %v2862
        %s2892 = scalar_lea.vmem %s1, 32
        %v2893 = vld [vmem:[%s2892] sm:$0xff]
        %v2895 = vsel %vm273, %v2893, 0
        %v2898 = vsel %vm277, %v2884, 0
        %v2901 = vsel %vm277, %v2880, 0
        %v2904 = vsel %vm277, %v2888, 0
        %2906 = vmatprep.subr.mxu0 %v2901
        %2907 = vmatpush1.msra.mxu0 %v2898
        %2908 = vmatprep.subr.mxu0 0.0
        %2909 = vmatpush1.msra.mxu0 0.0
        %2910 = vmatprep.subr.mxu0 0.0
        %2911 = vmatpush1.msra.mxu0 0.0
        %2912 = vmatprep.subr.mxu0 0.0
        %2913 = vmatpush1.msra.mxu0 0.0
        %2914 = vmatprep.subr.mxu0 0.0
        %2915 = vmatpush1.msra.mxu0 0.0
        %2916 = vmatprep.subr.mxu0 0.0
        %2917 = vmatpush1.msra.mxu0 0.0
        %2918 = vmatprep.subr.mxu0 0.0
        %2919 = vmatpush1.msra.mxu0 0.0
        %2920 = vmatprep.subr.mxu0 0.0
        %2921 = vmatpush1.msra.mxu0 0.0
        %2922 = vmatprep.subr.mxu0 0.0
        %2923 = vmatpush1.msra.mxu0 0.0
        %2924 = vmatprep.subr.mxu0 0.0
        %2925 = vmatpush1.msra.mxu0 0.0
        %2926 = vmatprep.subr.mxu0 0.0
        %2927 = vmatpush1.msra.mxu0 0.0
        %2928 = vmatprep.subr.mxu0 0.0
        %2929 = vmatpush1.msra.mxu0 0.0
        %2930 = vmatprep.subr.mxu0 0.0
        %2931 = vmatpush1.msra.mxu0 0.0
        %2932 = vmatprep.subr.mxu0 0.0
        %2933 = vmatpush1.msra.mxu0 0.0
        %2934 = vmatprep.subr.mxu0 0.0
        %2935 = vmatpush1.msra.mxu0 0.0
        %2936 = vmatprep.subr.mxu0 0.0
        %2937 = vmatpush1.msra.mxu0 0.0
        %2938 = vmatprep.subr.mxu0 0.0
        %2939 = vmatpush1.msra.mxu0 0.0
        %2940 = vmatprep.subr.mxu0 0.0
        %2941 = vmatpush1.msra.mxu0 0.0
        %2942 = vmatprep.subr.mxu0 0.0
        %2943 = vmatpush1.msra.mxu0 0.0
        %2944 = vmatprep.subr.mxu0 0.0
        %2945 = vmatpush1.msra.mxu0 0.0
        %2946 = vmatprep.subr.mxu0 0.0
        %2947 = vmatpush1.msra.mxu0 0.0
        %2948 = vmatprep.subr.mxu0 0.0
        %2949 = vmatpush1.msra.mxu0 0.0
        %2950 = vmatprep.subr.mxu0 0.0
        %2951 = vmatpush1.msra.mxu0 0.0
        %2952 = vmatprep.subr.mxu0 0.0
        %2953 = vmatpush1.msra.mxu0 0.0
        %2954 = vmatprep.subr.mxu0 0.0
        %2955 = vmatpush1.msra.mxu0 0.0
        %2956 = vmatprep.subr.mxu0 0.0
        %2957 = vmatpush1.msra.mxu0 0.0
        %2958 = vmatprep.subr.mxu0 0.0
        %2959 = vmatpush1.msra.mxu0 0.0
        %2960 = vmatprep.subr.mxu0 0.0
        %2961 = vmatpush1.msra.mxu0 0.0
        %2962 = vmatprep.subr.mxu0 0.0
        %2963 = vmatpush1.msra.mxu0 0.0
        %2964 = vmatprep.subr.mxu0 0.0
        %2965 = vmatpush1.msra.mxu0 0.0
        %2966 = vmatprep.subr.mxu0 0.0
        %2967 = vmatpush1.msra.mxu0 0.0
        %2968 = vmatprep.subr.mxu0 0.0
        %2969 = vmatpush1.msra.mxu0 0.0
        %2970 = vmatprep.mubr.f32.mxu0 0.0
        %2971 = vmatmul.mubr.f32.gmra.mrb[0].mxu0 %v2895
        %v2972 = vpop.f32.mrb[0].mxu0
        %v2973 = vadd.f32 0.0, %v2972
        %v2974 = vpop.f32.mrb[0].mxu0
        %v2975 = vadd.f32 0.0, %v2974
        %2976 = vdwg.mxu0
        %2977 = vmatprep.subr.mxu0 0.0
        %2978 = vmatpush1.msra.mxu0 %v2904
        %2979 = vmatprep.subr.mxu0 0.0
        %2980 = vmatpush1.msra.mxu0 0.0
        %2981 = vmatprep.subr.mxu0 0.0
        %2982 = vmatpush1.msra.mxu0 0.0
        %2983 = vmatprep.subr.mxu0 0.0
        %2984 = vmatpush1.msra.mxu0 0.0
        %2985 = vmatprep.subr.mxu0 0.0
        %2986 = vmatpush1.msra.mxu0 0.0
        %2987 = vmatprep.subr.mxu0 0.0
        %2988 = vmatpush1.msra.mxu0 0.0
        %2989 = vmatprep.subr.mxu0 0.0
        %2990 = vmatpush1.msra.mxu0 0.0
        %2991 = vmatprep.subr.mxu0 0.0
        %2992 = vmatpush1.msra.mxu0 0.0
        %2993 = vmatprep.subr.mxu0 0.0
        %2994 = vmatpush1.msra.mxu0 0.0
        %2995 = vmatprep.subr.mxu0 0.0
        %2996 = vmatpush1.msra.mxu0 0.0
        %2997 = vmatprep.subr.mxu0 0.0
        %2998 = vmatpush1.msra.mxu0 0.0
        %2999 = vmatprep.subr.mxu0 0.0
        %3000 = vmatpush1.msra.mxu0 0.0
        %3001 = vmatprep.subr.mxu0 0.0
        %3002 = vmatpush1.msra.mxu0 0.0
        %3003 = vmatprep.subr.mxu0 0.0
        %3004 = vmatpush1.msra.mxu0 0.0
        %3005 = vmatprep.subr.mxu0 0.0
        %3006 = vmatpush1.msra.mxu0 0.0
        %3007 = vmatprep.subr.mxu0 0.0
        %3008 = vmatpush1.msra.mxu0 0.0
        %3009 = vmatprep.subr.mxu0 0.0
        %3010 = vmatpush1.msra.mxu0 0.0
        %3011 = vmatprep.subr.mxu0 0.0
        %3012 = vmatpush1.msra.mxu0 0.0
        %3013 = vmatprep.subr.mxu0 0.0
        %3014 = vmatpush1.msra.mxu0 0.0
        %3015 = vmatprep.subr.mxu0 0.0
        %3016 = vmatpush1.msra.mxu0 0.0
        %3017 = vmatprep.subr.mxu0 0.0
        %3018 = vmatpush1.msra.mxu0 0.0
        %3019 = vmatprep.subr.mxu0 0.0
        %3020 = vmatpush1.msra.mxu0 0.0
        %3021 = vmatprep.subr.mxu0 0.0
        %3022 = vmatpush1.msra.mxu0 0.0
        %3023 = vmatprep.subr.mxu0 0.0
        %3024 = vmatpush1.msra.mxu0 0.0
        %3025 = vmatprep.subr.mxu0 0.0
        %3026 = vmatpush1.msra.mxu0 0.0
        %3027 = vmatprep.subr.mxu0 0.0
        %3028 = vmatpush1.msra.mxu0 0.0
        %3029 = vmatprep.subr.mxu0 0.0
        %3030 = vmatpush1.msra.mxu0 0.0
        %3031 = vmatprep.subr.mxu0 0.0
        %3032 = vmatpush1.msra.mxu0 0.0
        %3033 = vmatprep.subr.mxu0 0.0
        %3034 = vmatpush1.msra.mxu0 0.0
        %3035 = vmatprep.subr.mxu0 0.0
        %3036 = vmatpush1.msra.mxu0 0.0
        %3037 = vmatprep.subr.mxu0 0.0
        %3038 = vmatpush1.msra.mxu0 0.0
        %3039 = vmatprep.subr.mxu0 0.0
        %3040 = vmatpush1.msra.mxu0 0.0
        %3041 = vmatprep.mubr.f32.mxu0 0.0
        %3042 = vmatmul.mubr.f32.gmra.mrb[0].mxu0 %v2895
        %v3043 = vpop.f32.mrb[0].mxu0
        %v3044 = vadd.f32 0.0, %v3043
        %v3045 = vpop.f32.mrb[0].mxu0
        %3046 = vdwg.mxu0
        %v3047 = vadd.f32 %v2393, %v2973
        %v3048 = vadd.f32 %v2394, %v2975
        %v3049 = vadd.f32 %v2395, %v3044
        %v3051 = vsel %vm277, %v2885, 0
        %v3054 = vsel %vm277, %v2881, 0
        %v3057 = vsel %vm277, %v2889, 0
        %3059 = vmatprep.subr.mxu0 %v3054
        %3060 = vmatpush1.msra.mxu0 %v3051
        %3061 = vmatprep.subr.mxu0 0.0
        %3062 = vmatpush1.msra.mxu0 0.0
        %3063 = vmatprep.subr.mxu0 0.0
        %3064 = vmatpush1.msra.mxu0 0.0
        %3065 = vmatprep.subr.mxu0 0.0
        %3066 = vmatpush1.msra.mxu0 0.0
        %3067 = vmatprep.subr.mxu0 0.0
        %3068 = vmatpush1.msra.mxu0 0.0
        %3069 = vmatprep.subr.mxu0 0.0
        %3070 = vmatpush1.msra.mxu0 0.0
        %3071 = vmatprep.subr.mxu0 0.0
        %3072 = vmatpush1.msra.mxu0 0.0
        %3073 = vmatprep.subr.mxu0 0.0
        %3074 = vmatpush1.msra.mxu0 0.0
        %3075 = vmatprep.subr.mxu0 0.0
        %3076 = vmatpush1.msra.mxu0 0.0
        %3077 = vmatprep.subr.mxu0 0.0
        %3078 = vmatpush1.msra.mxu0 0.0
        %3079 = vmatprep.subr.mxu0 0.0
        %3080 = vmatpush1.msra.mxu0 0.0
        %3081 = vmatprep.subr.mxu0 0.0
        %3082 = vmatpush1.msra.mxu0 0.0
        %3083 = vmatprep.subr.mxu0 0.0
        %3084 = vmatpush1.msra.mxu0 0.0
        %3085 = vmatprep.subr.mxu0 0.0
        %3086 = vmatpush1.msra.mxu0 0.0
        %3087 = vmatprep.subr.mxu0 0.0
        %3088 = vmatpush1.msra.mxu0 0.0
        %3089 = vmatprep.subr.mxu0 0.0
        %3090 = vmatpush1.msra.mxu0 0.0
        %3091 = vmatprep.subr.mxu0 0.0
        %3092 = vmatpush1.msra.mxu0 0.0
        %3093 = vmatprep.subr.mxu0 0.0
        %3094 = vmatpush1.msra.mxu0 0.0
        %3095 = vmatprep.subr.mxu0 0.0
        %3096 = vmatpush1.msra.mxu0 0.0
        %3097 = vmatprep.subr.mxu0 0.0
        %3098 = vmatpush1.msra.mxu0 0.0
        %3099 = vmatprep.subr.mxu0 0.0
        %3100 = vmatpush1.msra.mxu0 0.0
        %3101 = vmatprep.subr.mxu0 0.0
        %3102 = vmatpush1.msra.mxu0 0.0
        %3103 = vmatprep.subr.mxu0 0.0
        %3104 = vmatpush1.msra.mxu0 0.0
        %3105 = vmatprep.subr.mxu0 0.0
        %3106 = vmatpush1.msra.mxu0 0.0
        %3107 = vmatprep.subr.mxu0 0.0
        %3108 = vmatpush1.msra.mxu0 0.0
        %3109 = vmatprep.subr.mxu0 0.0
        %3110 = vmatpush1.msra.mxu0 0.0
        %3111 = vmatprep.subr.mxu0 0.0
        %3112 = vmatpush1.msra.mxu0 0.0
        %3113 = vmatprep.subr.mxu0 0.0
        %3114 = vmatpush1.msra.mxu0 0.0
        %3115 = vmatprep.subr.mxu0 0.0
        %3116 = vmatpush1.msra.mxu0 0.0
        %3117 = vmatprep.subr.mxu0 0.0
        %3118 = vmatpush1.msra.mxu0 0.0
        %3119 = vmatprep.subr.mxu0 0.0
        %3120 = vmatpush1.msra.mxu0 0.0
        %3121 = vmatprep.subr.mxu0 0.0
        %3122 = vmatpush1.msra.mxu0 0.0
        %3123 = vmatprep.mubr.f32.mxu0 0.0
        %3124 = vmatmul.mubr.f32.gmra.mrb[0].mxu0 %v2895
        %v3125 = vpop.f32.mrb[0].mxu0
        %v3126 = vadd.f32 0.0, %v3125
        %v3127 = vpop.f32.mrb[0].mxu0
        %v3128 = vadd.f32 0.0, %v3127
        %3129 = vdwg.mxu0
        %3130 = vmatprep.subr.mxu0 0.0
        %3131 = vmatpush1.msra.mxu0 %v3057
        %3132 = vmatprep.subr.mxu0 0.0
        %3133 = vmatpush1.msra.mxu0 0.0
        %3134 = vmatprep.subr.mxu0 0.0
        %3135 = vmatpush1.msra.mxu0 0.0
        %3136 = vmatprep.subr.mxu0 0.0
        %3137 = vmatpush1.msra.mxu0 0.0
        %3138 = vmatprep.subr.mxu0 0.0
        %3139 = vmatpush1.msra.mxu0 0.0
        %3140 = vmatprep.subr.mxu0 0.0
        %3141 = vmatpush1.msra.mxu0 0.0
        %3142 = vmatprep.subr.mxu0 0.0
        %3143 = vmatpush1.msra.mxu0 0.0
        %3144 = vmatprep.subr.mxu0 0.0
        %3145 = vmatpush1.msra.mxu0 0.0
        %3146 = vmatprep.subr.mxu0 0.0
        %3147 = vmatpush1.msra.mxu0 0.0
        %3148 = vmatprep.subr.mxu0 0.0
        %3149 = vmatpush1.msra.mxu0 0.0
        %3150 = vmatprep.subr.mxu0 0.0
        %3151 = vmatpush1.msra.mxu0 0.0
        %3152 = vmatprep.subr.mxu0 0.0
        %3153 = vmatpush1.msra.mxu0 0.0
        %3154 = vmatprep.subr.mxu0 0.0
        %3155 = vmatpush1.msra.mxu0 0.0
        %3156 = vmatprep.subr.mxu0 0.0
        %3157 = vmatpush1.msra.mxu0 0.0
        %3158 = vmatprep.subr.mxu0 0.0
        %3159 = vmatpush1.msra.mxu0 0.0
        %3160 = vmatprep.subr.mxu0 0.0
        %3161 = vmatpush1.msra.mxu0 0.0
        %3162 = vmatprep.subr.mxu0 0.0
        %3163 = vmatpush1.msra.mxu0 0.0
        %3164 = vmatprep.subr.mxu0 0.0
        %3165 = vmatpush1.msra.mxu0 0.0
        %3166 = vmatprep.subr.mxu0 0.0
        %3167 = vmatpush1.msra.mxu0 0.0
        %3168 = vmatprep.subr.mxu0 0.0
        %3169 = vmatpush1.msra.mxu0 0.0
        %3170 = vmatprep.subr.mxu0 0.0
        %3171 = vmatpush1.msra.mxu0 0.0
        %3172 = vmatprep.subr.mxu0 0.0
        %3173 = vmatpush1.msra.mxu0 0.0
        %3174 = vmatprep.subr.mxu0 0.0
        %3175 = vmatpush1.msra.mxu0 0.0
        %3176 = vmatprep.subr.mxu0 0.0
        %3177 = vmatpush1.msra.mxu0 0.0
        %3178 = vmatprep.subr.mxu0 0.0
        %3179 = vmatpush1.msra.mxu0 0.0
        %3180 = vmatprep.subr.mxu0 0.0
        %3181 = vmatpush1.msra.mxu0 0.0
        %3182 = vmatprep.subr.mxu0 0.0
        %3183 = vmatpush1.msra.mxu0 0.0
        %3184 = vmatprep.subr.mxu0 0.0
        %3185 = vmatpush1.msra.mxu0 0.0
        %3186 = vmatprep.subr.mxu0 0.0
        %3187 = vmatpush1.msra.mxu0 0.0
        %3188 = vmatprep.subr.mxu0 0.0
        %3189 = vmatpush1.msra.mxu0 0.0
        %3190 = vmatprep.subr.mxu0 0.0
        %3191 = vmatpush1.msra.mxu0 0.0
        %3192 = vmatprep.subr.mxu0 0.0
        %3193 = vmatpush1.msra.mxu0 0.0
        %3194 = vmatprep.mubr.f32.mxu0 0.0
        %3195 = vmatmul.mubr.f32.gmra.mrb[0].mxu0 %v2895
        %v3196 = vpop.f32.mrb[0].mxu0
        %v3197 = vadd.f32 0.0, %v3196
        %v3198 = vpop.f32.mrb[0].mxu0
        %3199 = vdwg.mxu0
        %v3200 = vadd.f32 %v2546, %v3126
        %v3201 = vadd.f32 %v2547, %v3128
        %v3202 = vadd.f32 %v2548, %v3197
        %v3204 = vsel %vm277, %v2886, 0
        %v3207 = vsel %vm277, %v2882, 0
        %v3210 = vsel %vm277, %v2890, 0
        %3212 = vmatprep.subr.mxu0 %v3207
        %3213 = vmatpush1.msra.mxu0 %v3204
        %3214 = vmatprep.subr.mxu0 0.0
        %3215 = vmatpush1.msra.mxu0 0.0
        %3216 = vmatprep.subr.mxu0 0.0
        %3217 = vmatpush1.msra.mxu0 0.0
        %3218 = vmatprep.subr.mxu0 0.0
        %3219 = vmatpush1.msra.mxu0 0.0
        %3220 = vmatprep.subr.mxu0 0.0
        %3221 = vmatpush1.msra.mxu0 0.0
        %3222 = vmatprep.subr.mxu0 0.0
        %3223 = vmatpush1.msra.mxu0 0.0
        %3224 = vmatprep.subr.mxu0 0.0
        %3225 = vmatpush1.msra.mxu0 0.0
        %3226 = vmatprep.subr.mxu0 0.0
        %3227 = vmatpush1.msra.mxu0 0.0
        %3228 = vmatprep.subr.mxu0 0.0
        %3229 = vmatpush1.msra.mxu0 0.0
        %3230 = vmatprep.subr.mxu0 0.0
        %3231 = vmatpush1.msra.mxu0 0.0
        %3232 = vmatprep.subr.mxu0 0.0
        %3233 = vmatpush1.msra.mxu0 0.0
        %3234 = vmatprep.subr.mxu0 0.0
        %3235 = vmatpush1.msra.mxu0 0.0
        %3236 = vmatprep.subr.mxu0 0.0
        %3237 = vmatpush1.msra.mxu0 0.0
        %3238 = vmatprep.subr.mxu0 0.0
        %3239 = vmatpush1.msra.mxu0 0.0
        %3240 = vmatprep.subr.mxu0 0.0
        %3241 = vmatpush1.msra.mxu0 0.0
        %3242 = vmatprep.subr.mxu0 0.0
        %3243 = vmatpush1.msra.mxu0 0.0
        %3244 = vmatprep.subr.mxu0 0.0
        %3245 = vmatpush1.msra.mxu0 0.0
        %3246 = vmatprep.subr.mxu0 0.0
        %3247 = vmatpush1.msra.mxu0 0.0
        %3248 = vmatprep.subr.mxu0 0.0
        %3249 = vmatpush1.msra.mxu0 0.0
        %3250 = vmatprep.subr.mxu0 0.0
        %3251 = vmatpush1.msra.mxu0 0.0
        %3252 = vmatprep.subr.mxu0 0.0
        %3253 = vmatpush1.msra.mxu0 0.0
        %3254 = vmatprep.subr.mxu0 0.0
        %3255 = vmatpush1.msra.mxu0 0.0
        %3256 = vmatprep.subr.mxu0 0.0
        %3257 = vmatpush1.msra.mxu0 0.0
        %3258 = vmatprep.subr.mxu0 0.0
        %3259 = vmatpush1.msra.mxu0 0.0
        %3260 = vmatprep.subr.mxu0 0.0
        %3261 = vmatpush1.msra.mxu0 0.0
        %3262 = vmatprep.subr.mxu0 0.0
        %3263 = vmatpush1.msra.mxu0 0.0
        %3264 = vmatprep.subr.mxu0 0.0
        %3265 = vmatpush1.msra.mxu0 0.0
        %3266 = vmatprep.subr.mxu0 0.0
        %3267 = vmatpush1.msra.mxu0 0.0
        %3268 = vmatprep.subr.mxu0 0.0
        %3269 = vmatpush1.msra.mxu0 0.0
        %3270 = vmatprep.subr.mxu0 0.0
        %3271 = vmatpush1.msra.mxu0 0.0
        %3272 = vmatprep.subr.mxu0 0.0
        %3273 = vmatpush1.msra.mxu0 0.0
        %3274 = vmatprep.subr.mxu0 0.0
        %3275 = vmatpush1.msra.mxu0 0.0
        %3276 = vmatprep.mubr.f32.mxu0 0.0
        %3277 = vmatmul.mubr.f32.gmra.mrb[0].mxu0 %v2895
        %v3278 = vpop.f32.mrb[0].mxu0
        %v3279 = vadd.f32 0.0, %v3278
        %v3280 = vpop.f32.mrb[0].mxu0
        %v3281 = vadd.f32 0.0, %v3280
        %3282 = vdwg.mxu0
        %3283 = vmatprep.subr.mxu0 0.0
        %3284 = vmatpush1.msra.mxu0 %v3210
        %3285 = vmatprep.subr.mxu0 0.0
        %3286 = vmatpush1.msra.mxu0 0.0
        %3287 = vmatprep.subr.mxu0 0.0
        %3288 = vmatpush1.msra.mxu0 0.0
        %3289 = vmatprep.subr.mxu0 0.0
        %3290 = vmatpush1.msra.mxu0 0.0
        %3291 = vmatprep.subr.mxu0 0.0
        %3292 = vmatpush1.msra.mxu0 0.0
        %3293 = vmatprep.subr.mxu0 0.0
        %3294 = vmatpush1.msra.mxu0 0.0
        %3295 = vmatprep.subr.mxu0 0.0
        %3296 = vmatpush1.msra.mxu0 0.0
        %3297 = vmatprep.subr.mxu0 0.0
        %3298 = vmatpush1.msra.mxu0 0.0
        %3299 = vmatprep.subr.mxu0 0.0
        %3300 = vmatpush1.msra.mxu0 0.0
        %3301 = vmatprep.subr.mxu0 0.0
        %3302 = vmatpush1.msra.mxu0 0.0
        %3303 = vmatprep.subr.mxu0 0.0
        %3304 = vmatpush1.msra.mxu0 0.0
        %3305 = vmatprep.subr.mxu0 0.0
        %3306 = vmatpush1.msra.mxu0 0.0
        %3307 = vmatprep.subr.mxu0 0.0
        %3308 = vmatpush1.msra.mxu0 0.0
        %3309 = vmatprep.subr.mxu0 0.0
        %3310 = vmatpush1.msra.mxu0 0.0
        %3311 = vmatprep.subr.mxu0 0.0
        %3312 = vmatpush1.msra.mxu0 0.0
        %3313 = vmatprep.subr.mxu0 0.0
        %3314 = vmatpush1.msra.mxu0 0.0
        %3315 = vmatprep.subr.mxu0 0.0
        %3316 = vmatpush1.msra.mxu0 0.0
        %3317 = vmatprep.subr.mxu0 0.0
        %3318 = vmatpush1.msra.mxu0 0.0
        %3319 = vmatprep.subr.mxu0 0.0
        %3320 = vmatpush1.msra.mxu0 0.0
        %3321 = vmatprep.subr.mxu0 0.0
        %3322 = vmatpush1.msra.mxu0 0.0
        %3323 = vmatprep.subr.mxu0 0.0
        %3324 = vmatpush1.msra.mxu0 0.0
        %3325 = vmatprep.subr.mxu0 0.0
        %3326 = vmatpush1.msra.mxu0 0.0
        %3327 = vmatprep.subr.mxu0 0.0
        %3328 = vmatpush1.msra.mxu0 0.0
        %3329 = vmatprep.subr.mxu0 0.0
        %3330 = vmatpush1.msra.mxu0 0.0
        %3331 = vmatprep.subr.mxu0 0.0
        %3332 = vmatpush1.msra.mxu0 0.0
        %3333 = vmatprep.subr.mxu0 0.0
        %3334 = vmatpush1.msra.mxu0 0.0
        %3335 = vmatprep.subr.mxu0 0.0
        %3336 = vmatpush1.msra.mxu0 0.0
        %3337 = vmatprep.subr.mxu0 0.0
        %3338 = vmatpush1.msra.mxu0 0.0
        %3339 = vmatprep.subr.mxu0 0.0
        %3340 = vmatpush1.msra.mxu0 0.0
        %3341 = vmatprep.subr.mxu0 0.0
        %3342 = vmatpush1.msra.mxu0 0.0
        %3343 = vmatprep.subr.mxu0 0.0
        %3344 = vmatpush1.msra.mxu0 0.0
        %3345 = vmatprep.subr.mxu0 0.0
        %3346 = vmatpush1.msra.mxu0 0.0
        %3347 = vmatprep.mubr.f32.mxu0 0.0
        %3348 = vmatmul.mubr.f32.gmra.mrb[0].mxu0 %v2895
        %v3349 = vpop.f32.mrb[0].mxu0
        %v3350 = vadd.f32 0.0, %v3349
        %v3351 = vpop.f32.mrb[0].mxu0
        %3352 = vdwg.mxu0
        %v3353 = vadd.f32 %v2699, %v3279
        %v3354 = vadd.f32 %v2700, %v3281
        %v3355 = vadd.f32 %v2701, %v3350
        %v3357 = vsel %vm277, %v2887, 0
        %v3360 = vsel %vm277, %v2883, 0
        %v3363 = vsel %vm277, %v2891, 0
        %3365 = vmatprep.subr.mxu0 %v3360
        %3366 = vmatpush1.msra.mxu0 %v3357
        %3367 = vmatprep.subr.mxu0 0.0
        %3368 = vmatpush1.msra.mxu0 0.0
        %3369 = vmatprep.subr.mxu0 0.0
        %3370 = vmatpush1.msra.mxu0 0.0
        %3371 = vmatprep.subr.mxu0 0.0
        %3372 = vmatpush1.msra.mxu0 0.0
        %3373 = vmatprep.subr.mxu0 0.0
        %3374 = vmatpush1.msra.mxu0 0.0
        %3375 = vmatprep.subr.mxu0 0.0
        %3376 = vmatpush1.msra.mxu0 0.0
        %3377 = vmatprep.subr.mxu0 0.0
        %3378 = vmatpush1.msra.mxu0 0.0
        %3379 = vmatprep.subr.mxu0 0.0
        %3380 = vmatpush1.msra.mxu0 0.0
        %3381 = vmatprep.subr.mxu0 0.0
        %3382 = vmatpush1.msra.mxu0 0.0
        %3383 = vmatprep.subr.mxu0 0.0
        %3384 = vmatpush1.msra.mxu0 0.0
        %3385 = vmatprep.subr.mxu0 0.0
        %3386 = vmatpush1.msra.mxu0 0.0
        %3387 = vmatprep.subr.mxu0 0.0
        %3388 = vmatpush1.msra.mxu0 0.0
        %3389 = vmatprep.subr.mxu0 0.0
        %3390 = vmatpush1.msra.mxu0 0.0
        %3391 = vmatprep.subr.mxu0 0.0
        %3392 = vmatpush1.msra.mxu0 0.0
        %3393 = vmatprep.subr.mxu0 0.0
        %3394 = vmatpush1.msra.mxu0 0.0
        %3395 = vmatprep.subr.mxu0 0.0
        %3396 = vmatpush1.msra.mxu0 0.0
        %3397 = vmatprep.subr.mxu0 0.0
        %3398 = vmatpush1.msra.mxu0 0.0
        %3399 = vmatprep.subr.mxu0 0.0
        %3400 = vmatpush1.msra.mxu0 0.0
        %3401 = vmatprep.subr.mxu0 0.0
        %3402 = vmatpush1.msra.mxu0 0.0
        %3403 = vmatprep.subr.mxu0 0.0
        %3404 = vmatpush1.msra.mxu0 0.0
        %3405 = vmatprep.subr.mxu0 0.0
        %3406 = vmatpush1.msra.mxu0 0.0
        %3407 = vmatprep.subr.mxu0 0.0
        %3408 = vmatpush1.msra.mxu0 0.0
        %3409 = vmatprep.subr.mxu0 0.0
        %3410 = vmatpush1.msra.mxu0 0.0
        %3411 = vmatprep.subr.mxu0 0.0
        %3412 = vmatpush1.msra.mxu0 0.0
        %3413 = vmatprep.subr.mxu0 0.0
        %3414 = vmatpush1.msra.mxu0 0.0
        %3415 = vmatprep.subr.mxu0 0.0
        %3416 = vmatpush1.msra.mxu0 0.0
        %3417 = vmatprep.subr.mxu0 0.0
        %3418 = vmatpush1.msra.mxu0 0.0
        %3419 = vmatprep.subr.mxu0 0.0
        %3420 = vmatpush1.msra.mxu0 0.0
        %3421 = vmatprep.subr.mxu0 0.0
        %3422 = vmatpush1.msra.mxu0 0.0
        %3423 = vmatprep.subr.mxu0 0.0
        %3424 = vmatpush1.msra.mxu0 0.0
        %3425 = vmatprep.subr.mxu0 0.0
        %3426 = vmatpush1.msra.mxu0 0.0
        %3427 = vmatprep.subr.mxu0 0.0
        %3428 = vmatpush1.msra.mxu0 0.0
        %3429 = vmatprep.mubr.f32.mxu0 0.0
        %3430 = vmatmul.mubr.f32.gmra.mrb[0].mxu0 %v2895
        %v3431 = vpop.f32.mrb[0].mxu0
        %v3432 = vadd.f32 0.0, %v3431
        %v3433 = vpop.f32.mrb[0].mxu0
        %v3434 = vadd.f32 0.0, %v3433
        %3435 = vdwg.mxu0
        %3436 = vmatprep.subr.mxu0 0.0
        %3437 = vmatpush1.msra.mxu0 %v3363
        %3438 = vmatprep.subr.mxu0 0.0
        %3439 = vmatpush1.msra.mxu0 0.0
        %3440 = vmatprep.subr.mxu0 0.0
        %3441 = vmatpush1.msra.mxu0 0.0
        %3442 = vmatprep.subr.mxu0 0.0
        %3443 = vmatpush1.msra.mxu0 0.0
        %3444 = vmatprep.subr.mxu0 0.0
        %3445 = vmatpush1.msra.mxu0 0.0
        %3446 = vmatprep.subr.mxu0 0.0
        %3447 = vmatpush1.msra.mxu0 0.0
        %3448 = vmatprep.subr.mxu0 0.0
        %3449 = vmatpush1.msra.mxu0 0.0
        %3450 = vmatprep.subr.mxu0 0.0
        %3451 = vmatpush1.msra.mxu0 0.0
        %3452 = vmatprep.subr.mxu0 0.0
        %3453 = vmatpush1.msra.mxu0 0.0
        %3454 = vmatprep.subr.mxu0 0.0
        %3455 = vmatpush1.msra.mxu0 0.0
        %3456 = vmatprep.subr.mxu0 0.0
        %3457 = vmatpush1.msra.mxu0 0.0
        %3458 = vmatprep.subr.mxu0 0.0
        %3459 = vmatpush1.msra.mxu0 0.0
        %3460 = vmatprep.subr.mxu0 0.0
        %3461 = vmatpush1.msra.mxu0 0.0
        %3462 = vmatprep.subr.mxu0 0.0
        %3463 = vmatpush1.msra.mxu0 0.0
        %3464 = vmatprep.subr.mxu0 0.0
        %3465 = vmatpush1.msra.mxu0 0.0
        %3466 = vmatprep.subr.mxu0 0.0
        %3467 = vmatpush1.msra.mxu0 0.0
        %3468 = vmatprep.subr.mxu0 0.0
        %3469 = vmatpush1.msra.mxu0 0.0
        %3470 = vmatprep.subr.mxu0 0.0
        %3471 = vmatpush1.msra.mxu0 0.0
        %3472 = vmatprep.subr.mxu0 0.0
        %3473 = vmatpush1.msra.mxu0 0.0
        %3474 = vmatprep.subr.mxu0 0.0
        %3475 = vmatpush1.msra.mxu0 0.0
        %3476 = vmatprep.subr.mxu0 0.0
        %3477 = vmatpush1.msra.mxu0 0.0
        %3478 = vmatprep.subr.mxu0 0.0
        %3479 = vmatpush1.msra.mxu0 0.0
        %3480 = vmatprep.subr.mxu0 0.0
        %3481 = vmatpush1.msra.mxu0 0.0
        %3482 = vmatprep.subr.mxu0 0.0
        %3483 = vmatpush1.msra.mxu0 0.0
        %3484 = vmatprep.subr.mxu0 0.0
        %3485 = vmatpush1.msra.mxu0 0.0
        %3486 = vmatprep.subr.mxu0 0.0
        %3487 = vmatpush1.msra.mxu0 0.0
        %3488 = vmatprep.subr.mxu0 0.0
        %3489 = vmatpush1.msra.mxu0 0.0
        %3490 = vmatprep.subr.mxu0 0.0
        %3491 = vmatpush1.msra.mxu0 0.0
        %3492 = vmatprep.subr.mxu0 0.0
        %3493 = vmatpush1.msra.mxu0 0.0
        %3494 = vmatprep.subr.mxu0 0.0
        %3495 = vmatpush1.msra.mxu0 0.0
        %3496 = vmatprep.subr.mxu0 0.0
        %3497 = vmatpush1.msra.mxu0 0.0
        %3498 = vmatprep.subr.mxu0 0.0
        %3499 = vmatpush1.msra.mxu0 0.0
        %3500 = vmatprep.mubr.f32.mxu0 0.0
        %3501 = vmatmul.mubr.f32.gmra.mrb[0].mxu0 %v2895
        %v3502 = vpop.f32.mrb[0].mxu0
        %v3503 = vadd.f32 0.0, %v3502
        %v3504 = vpop.f32.mrb[0].mxu0
        %3505 = vdwg.mxu0
        %v3506 = vadd.f32 %v2852, %v3432
        %v3507 = vadd.f32 %v2853, %v3434
        %v3508 = vadd.f32 %v2854, %v3503
        %3509 = vrot.lane.b32.xlu0 %v255, 108
        %v3510 = vpop.permute.xlu0 %3509
        %3511 = vrot.lane.b32.xlu0 %v257, 108
        %v3512 = vpop.permute.xlu0 %3511
        %3513 = vrot.lane.b32.xlu0 %v259, 108
        %v3514 = vpop.permute.xlu0 %3513
        %3515 = vrot.lane.b32.xlu0 %v261, 108
        %v3516 = vpop.permute.xlu0 %3515
        %3517 = vrot.lane.b32.xlu0 %v272, 108
        %v3518 = vpop.permute.xlu0 %3517
        %3519 = vrot.lane.b32.xlu0 %v430, 108
        %v3520 = vpop.permute.xlu0 %3519
        %3521 = vrot.lane.b32.xlu0 %v583, 108
        %v3522 = vpop.permute.xlu0 %3521
        %3523 = vrot.lane.b32.xlu0 %v736, 108
        %v3524 = vpop.permute.xlu0 %3523
        %3525 = vrot.lane.b32.xlu0 %v256, 108
        %v3526 = vpop.permute.xlu0 %3525
        %3527 = vrot.lane.b32.xlu0 %v258, 108
        %v3528 = vpop.permute.xlu0 %3527
        %3529 = vrot.lane.b32.xlu0 %v260, 108
        %v3530 = vpop.permute.xlu0 %3529
        %3531 = vrot.lane.b32.xlu0 %v262, 108
        %v3532 = vpop.permute.xlu0 %3531
        %vm3533 = vcmp.lt.s32.totalorder %v916, 108
        %v3534 = vsel %vm3533, %v3518, %v3526
        %v3535 = vsel %vm3533, %v3520, %v3528
        %v3536 = vsel %vm3533, %v3522, %v3530
        %v3537 = vsel %vm3533, %v3524, %v3532
        %v3538 = vsel %vm3533, %v3510, %v3518
        %v3539 = vsel %vm3533, %v3512, %v3520
        %v3540 = vsel %vm3533, %v3514, %v3522
        %v3541 = vsel %vm3533, %v3516, %v3524
        %v3542 = vsel %vm3533, %v3526, %v3510
        %v3543 = vsel %vm3533, %v3528, %v3512
        %v3544 = vsel %vm3533, %v3530, %v3514
        %v3545 = vsel %vm3533, %v3532, %v3516
        %s3546 = scalar_lea.vmem %s1, 40
        %v3547 = vld [vmem:[%s3546] sm:$0xff]
        %v3549 = vsel %vm273, %v3547, 0
        %v3552 = vsel %vm277, %v3538, 0
        %v3555 = vsel %vm277, %v3534, 0
        %v3558 = vsel %vm277, %v3542, 0
        %3560 = vmatprep.subr.mxu0 %v3555
        %3561 = vmatpush1.msra.mxu0 %v3552
        %3562 = vmatprep.subr.mxu0 0.0
        %3563 = vmatpush1.msra.mxu0 0.0
        %3564 = vmatprep.subr.mxu0 0.0
        %3565 = vmatpush1.msra.mxu0 0.0
        %3566 = vmatprep.subr.mxu0 0.0
        %3567 = vmatpush1.msra.mxu0 0.0
        %3568 = vmatprep.subr.mxu0 0.0
        %3569 = vmatpush1.msra.mxu0 0.0
        %3570 = vmatprep.subr.mxu0 0.0
        %3571 = vmatpush1.msra.mxu0 0.0
        %3572 = vmatprep.subr.mxu0 0.0
        %3573 = vmatpush1.msra.mxu0 0.0
        %3574 = vmatprep.subr.mxu0 0.0
        %3575 = vmatpush1.msra.mxu0 0.0
        %3576 = vmatprep.subr.mxu0 0.0
        %3577 = vmatpush1.msra.mxu0 0.0
        %3578 = vmatprep.subr.mxu0 0.0
        %3579 = vmatpush1.msra.mxu0 0.0
        %3580 = vmatprep.subr.mxu0 0.0
        %3581 = vmatpush1.msra.mxu0 0.0
        %3582 = vmatprep.subr.mxu0 0.0
        %3583 = vmatpush1.msra.mxu0 0.0
        %3584 = vmatprep.subr.mxu0 0.0
        %3585 = vmatpush1.msra.mxu0 0.0
        %3586 = vmatprep.subr.mxu0 0.0
        %3587 = vmatpush1.msra.mxu0 0.0
        %3588 = vmatprep.subr.mxu0 0.0
        %3589 = vmatpush1.msra.mxu0 0.0
        %3590 = vmatprep.subr.mxu0 0.0
        %3591 = vmatpush1.msra.mxu0 0.0
        %3592 = vmatprep.subr.mxu0 0.0
        %3593 = vmatpush1.msra.mxu0 0.0
        %3594 = vmatprep.subr.mxu0 0.0
        %3595 = vmatpush1.msra.mxu0 0.0
        %3596 = vmatprep.subr.mxu0 0.0
        %3597 = vmatpush1.msra.mxu0 0.0
        %3598 = vmatprep.subr.mxu0 0.0
        %3599 = vmatpush1.msra.mxu0 0.0
        %3600 = vmatprep.subr.mxu0 0.0
        %3601 = vmatpush1.msra.mxu0 0.0
        %3602 = vmatprep.subr.mxu0 0.0
        %3603 = vmatpush1.msra.mxu0 0.0
        %3604 = vmatprep.subr.mxu0 0.0
        %3605 = vmatpush1.msra.mxu0 0.0
        %3606 = vmatprep.subr.mxu0 0.0
        %3607 = vmatpush1.msra.mxu0 0.0
        %3608 = vmatprep.subr.mxu0 0.0
        %3609 = vmatpush1.msra.mxu0 0.0
        %3610 = vmatprep.subr.mxu0 0.0
        %3611 = vmatpush1.msra.mxu0 0.0
        %3612 = vmatprep.subr.mxu0 0.0
        %3613 = vmatpush1.msra.mxu0 0.0
        %3614 = vmatprep.subr.mxu0 0.0
        %3615 = vmatpush1.msra.mxu0 0.0
        %3616 = vmatprep.subr.mxu0 0.0
        %3617 = vmatpush1.msra.mxu0 0.0
        %3618 = vmatprep.subr.mxu0 0.0
        %3619 = vmatpush1.msra.mxu0 0.0
        %3620 = vmatprep.subr.mxu0 0.0
        %3621 = vmatpush1.msra.mxu0 0.0
        %3622 = vmatprep.subr.mxu0 0.0
        %3623 = vmatpush1.msra.mxu0 0.0
        %3624 = vmatprep.mubr.f32.mxu0 0.0
        %3625 = vmatmul.mubr.f32.gmra.mrb[0].mxu0 %v3549
        %v3626 = vpop.f32.mrb[0].mxu0
        %v3627 = vadd.f32 0.0, %v3626
        %v3628 = vpop.f32.mrb[0].mxu0
        %v3629 = vadd.f32 0.0, %v3628
        %3630 = vdwg.mxu0
        %3631 = vmatprep.subr.mxu0 0.0
        %3632 = vmatpush1.msra.mxu0 %v3558
        %3633 = vmatprep.subr.mxu0 0.0
        %3634 = vmatpush1.msra.mxu0 0.0
        %3635 = vmatprep.subr.mxu0 0.0
        %3636 = vmatpush1.msra.mxu0 0.0
        %3637 = vmatprep.subr.mxu0 0.0
        %3638 = vmatpush1.msra.mxu0 0.0
        %3639 = vmatprep.subr.mxu0 0.0
        %3640 = vmatpush1.msra.mxu0 0.0
        %3641 = vmatprep.subr.mxu0 0.0
        %3642 = vmatpush1.msra.mxu0 0.0
        %3643 = vmatprep.subr.mxu0 0.0
        %3644 = vmatpush1.msra.mxu0 0.0
        %3645 = vmatprep.subr.mxu0 0.0
        %3646 = vmatpush1.msra.mxu0 0.0
        %3647 = vmatprep.subr.mxu0 0.0
        %3648 = vmatpush1.msra.mxu0 0.0
        %3649 = vmatprep.subr.mxu0 0.0
        %3650 = vmatpush1.msra.mxu0 0.0
        %3651 = vmatprep.subr.mxu0 0.0
        %3652 = vmatpush1.msra.mxu0 0.0
        %3653 = vmatprep.subr.mxu0 0.0
        %3654 = vmatpush1.msra.mxu0 0.0
        %3655 = vmatprep.subr.mxu0 0.0
        %3656 = vmatpush1.msra.mxu0 0.0
        %3657 = vmatprep.subr.mxu0 0.0
        %3658 = vmatpush1.msra.mxu0 0.0
        %3659 = vmatprep.subr.mxu0 0.0
        %3660 = vmatpush1.msra.mxu0 0.0
        %3661 = vmatprep.subr.mxu0 0.0
        %3662 = vmatpush1.msra.mxu0 0.0
        %3663 = vmatprep.subr.mxu0 0.0
        %3664 = vmatpush1.msra.mxu0 0.0
        %3665 = vmatprep.subr.mxu0 0.0
        %3666 = vmatpush1.msra.mxu0 0.0
        %3667 = vmatprep.subr.mxu0 0.0
        %3668 = vmatpush1.msra.mxu0 0.0
        %3669 = vmatprep.subr.mxu0 0.0
        %3670 = vmatpush1.msra.mxu0 0.0
        %3671 = vmatprep.subr.mxu0 0.0
        %3672 = vmatpush1.msra.mxu0 0.0
        %3673 = vmatprep.subr.mxu0 0.0
        %3674 = vmatpush1.msra.mxu0 0.0
        %3675 = vmatprep.subr.mxu0 0.0
        %3676 = vmatpush1.msra.mxu0 0.0
        %3677 = vmatprep.subr.mxu0 0.0
        %3678 = vmatpush1.msra.mxu0 0.0
        %3679 = vmatprep.subr.mxu0 0.0
        %3680 = vmatpush1.msra.mxu0 0.0
        %3681 = vmatprep.subr.mxu0 0.0
        %3682 = vmatpush1.msra.mxu0 0.0
        %3683 = vmatprep.subr.mxu0 0.0
        %3684 = vmatpush1.msra.mxu0 0.0
        %3685 = vmatprep.subr.mxu0 0.0
        %3686 = vmatpush1.msra.mxu0 0.0
        %3687 = vmatprep.subr.mxu0 0.0
        %3688 = vmatpush1.msra.mxu0 0.0
        %3689 = vmatprep.subr.mxu0 0.0
        %3690 = vmatpush1.msra.mxu0 0.0
        %3691 = vmatprep.subr.mxu0 0.0
        %3692 = vmatpush1.msra.mxu0 0.0
        %3693 = vmatprep.subr.mxu0 0.0
        %3694 = vmatpush1.msra.mxu0 0.0
        %3695 = vmatprep.mubr.f32.mxu0 0.0
        %3696 = vmatmul.mubr.f32.gmra.mrb[0].mxu0 %v3549
        %v3697 = vpop.f32.mrb[0].mxu0
        %v3698 = vadd.f32 0.0, %v3697
        %v3699 = vpop.f32.mrb[0].mxu0
        %3700 = vdwg.mxu0
        %v3701 = vadd.f32 %v3047, %v3627
        %v3702 = vadd.f32 %v3048, %v3629
        %v3703 = vadd.f32 %v3049, %v3698
        %v3705 = vsel %vm277, %v3539, 0
        %v3708 = vsel %vm277, %v3535, 0
        %v3711 = vsel %vm277, %v3543, 0
        %3713 = vmatprep.subr.mxu0 %v3708
        %3714 = vmatpush1.msra.mxu0 %v3705
        %3715 = vmatprep.subr.mxu0 0.0
        %3716 = vmatpush1.msra.mxu0 0.0
        %3717 = vmatprep.subr.mxu0 0.0
        %3718 = vmatpush1.msra.mxu0 0.0
        %3719 = vmatprep.subr.mxu0 0.0
        %3720 = vmatpush1.msra.mxu0 0.0
        %3721 = vmatprep.subr.mxu0 0.0
        %3722 = vmatpush1.msra.mxu0 0.0
        %3723 = vmatprep.subr.mxu0 0.0
        %3724 = vmatpush1.msra.mxu0 0.0
        %3725 = vmatprep.subr.mxu0 0.0
        %3726 = vmatpush1.msra.mxu0 0.0
        %3727 = vmatprep.subr.mxu0 0.0
        %3728 = vmatpush1.msra.mxu0 0.0
        %3729 = vmatprep.subr.mxu0 0.0
        %3730 = vmatpush1.msra.mxu0 0.0
        %3731 = vmatprep.subr.mxu0 0.0
        %3732 = vmatpush1.msra.mxu0 0.0
        %3733 = vmatprep.subr.mxu0 0.0
        %3734 = vmatpush1.msra.mxu0 0.0
        %3735 = vmatprep.subr.mxu0 0.0
        %3736 = vmatpush1.msra.mxu0 0.0
        %3737 = vmatprep.subr.mxu0 0.0
        %3738 = vmatpush1.msra.mxu0 0.0
        %3739 = vmatprep.subr.mxu0 0.0
        %3740 = vmatpush1.msra.mxu0 0.0
        %3741 = vmatprep.subr.mxu0 0.0
        %3742 = vmatpush1.msra.mxu0 0.0
        %3743 = vmatprep.subr.mxu0 0.0
        %3744 = vmatpush1.msra.mxu0 0.0
        %3745 = vmatprep.subr.mxu0 0.0
        %3746 = vmatpush1.msra.mxu0 0.0
        %3747 = vmatprep.subr.mxu0 0.0
        %3748 = vmatpush1.msra.mxu0 0.0
        %3749 = vmatprep.subr.mxu0 0.0
        %3750 = vmatpush1.msra.mxu0 0.0
        %3751 = vmatprep.subr.mxu0 0.0
        %3752 = vmatpush1.msra.mxu0 0.0
        %3753 = vmatprep.subr.mxu0 0.0
        %3754 = vmatpush1.msra.mxu0 0.0
        %3755 = vmatprep.subr.mxu0 0.0
        %3756 = vmatpush1.msra.mxu0 0.0
        %3757 = vmatprep.subr.mxu0 0.0
        %3758 = vmatpush1.msra.mxu0 0.0
        %3759 = vmatprep.subr.mxu0 0.0
        %3760 = vmatpush1.msra.mxu0 0.0
        %3761 = vmatprep.subr.mxu0 0.0
        %3762 = vmatpush1.msra.mxu0 0.0
        %3763 = vmatprep.subr.mxu0 0.0
        %3764 = vmatpush1.msra.mxu0 0.0
        %3765 = vmatprep.subr.mxu0 0.0
        %3766 = vmatpush1.msra.mxu0 0.0
        %3767 = vmatprep.subr.mxu0 0.0
        %3768 = vmatpush1.msra.mxu0 0.0
        %3769 = vmatprep.subr.mxu0 0.0
        %3770 = vmatpush1.msra.mxu0 0.0
        %3771 = vmatprep.subr.mxu0 0.0
        %3772 = vmatpush1.msra.mxu0 0.0
        %3773 = vmatprep.subr.mxu0 0.0
        %3774 = vmatpush1.msra.mxu0 0.0
        %3775 = vmatprep.subr.mxu0 0.0
        %3776 = vmatpush1.msra.mxu0 0.0
        %3777 = vmatprep.mubr.f32.mxu0 0.0
        %3778 = vmatmul.mubr.f32.gmra.mrb[0].mxu0 %v3549
        %v3779 = vpop.f32.mrb[0].mxu0
        %v3780 = vadd.f32 0.0, %v3779
        %v3781 = vpop.f32.mrb[0].mxu0
        %v3782 = vadd.f32 0.0, %v3781
        %3783 = vdwg.mxu0
        %3784 = vmatprep.subr.mxu0 0.0
        %3785 = vmatpush1.msra.mxu0 %v3711
        %3786 = vmatprep.subr.mxu0 0.0
        %3787 = vmatpush1.msra.mxu0 0.0
        %3788 = vmatprep.subr.mxu0 0.0
        %3789 = vmatpush1.msra.mxu0 0.0
        %3790 = vmatprep.subr.mxu0 0.0
        %3791 = vmatpush1.msra.mxu0 0.0
        %3792 = vmatprep.subr.mxu0 0.0
        %3793 = vmatpush1.msra.mxu0 0.0
        %3794 = vmatprep.subr.mxu0 0.0
        %3795 = vmatpush1.msra.mxu0 0.0
        %3796 = vmatprep.subr.mxu0 0.0
        %3797 = vmatpush1.msra.mxu0 0.0
        %3798 = vmatprep.subr.mxu0 0.0
        %3799 = vmatpush1.msra.mxu0 0.0
        %3800 = vmatprep.subr.mxu0 0.0
        %3801 = vmatpush1.msra.mxu0 0.0
        %3802 = vmatprep.subr.mxu0 0.0
        %3803 = vmatpush1.msra.mxu0 0.0
        %3804 = vmatprep.subr.mxu0 0.0
        %3805 = vmatpush1.msra.mxu0 0.0
        %3806 = vmatprep.subr.mxu0 0.0
        %3807 = vmatpush1.msra.mxu0 0.0
        %3808 = vmatprep.subr.mxu0 0.0
        %3809 = vmatpush1.msra.mxu0 0.0
        %3810 = vmatprep.subr.mxu0 0.0
        %3811 = vmatpush1.msra.mxu0 0.0
        %3812 = vmatprep.subr.mxu0 0.0
        %3813 = vmatpush1.msra.mxu0 0.0
        %3814 = vmatprep.subr.mxu0 0.0
        %3815 = vmatpush1.msra.mxu0 0.0
        %3816 = vmatprep.subr.mxu0 0.0
        %3817 = vmatpush1.msra.mxu0 0.0
        %3818 = vmatprep.subr.mxu0 0.0
        %3819 = vmatpush1.msra.mxu0 0.0
        %3820 = vmatprep.subr.mxu0 0.0
        %3821 = vmatpush1.msra.mxu0 0.0
        %3822 = vmatprep.subr.mxu0 0.0
        %3823 = vmatpush1.msra.mxu0 0.0
        %3824 = vmatprep.subr.mxu0 0.0
        %3825 = vmatpush1.msra.mxu0 0.0
        %3826 = vmatprep.subr.mxu0 0.0
        %3827 = vmatpush1.msra.mxu0 0.0
        %3828 = vmatprep.subr.mxu0 0.0
        %3829 = vmatpush1.msra.mxu0 0.0
        %3830 = vmatprep.subr.mxu0 0.0
        %3831 = vmatpush1.msra.mxu0 0.0
        %3832 = vmatprep.subr.mxu0 0.0
        %3833 = vmatpush1.msra.mxu0 0.0
        %3834 = vmatprep.subr.mxu0 0.0
        %3835 = vmatpush1.msra.mxu0 0.0
        %3836 = vmatprep.subr.mxu0 0.0
        %3837 = vmatpush1.msra.mxu0 0.0
        %3838 = vmatprep.subr.mxu0 0.0
        %3839 = vmatpush1.msra.mxu0 0.0
        %3840 = vmatprep.subr.mxu0 0.0
        %3841 = vmatpush1.msra.mxu0 0.0
        %3842 = vmatprep.subr.mxu0 0.0
        %3843 = vmatpush1.msra.mxu0 0.0
        %3844 = vmatprep.subr.mxu0 0.0
        %3845 = vmatpush1.msra.mxu0 0.0
        %3846 = vmatprep.subr.mxu0 0.0
        %3847 = vmatpush1.msra.mxu0 0.0
        %3848 = vmatprep.mubr.f32.mxu0 0.0
        %3849 = vmatmul.mubr.f32.gmra.mrb[0].mxu0 %v3549
        %v3850 = vpop.f32.mrb[0].mxu0
        %v3851 = vadd.f32 0.0, %v3850
        %v3852 = vpop.f32.mrb[0].mxu0
        %3853 = vdwg.mxu0
        %v3854 = vadd.f32 %v3200, %v3780
        %v3855 = vadd.f32 %v3201, %v3782
        %v3856 = vadd.f32 %v3202, %v3851
        %v3858 = vsel %vm277, %v3540, 0
        %v3861 = vsel %vm277, %v3536, 0
        %v3864 = vsel %vm277, %v3544, 0
        %3866 = vmatprep.subr.mxu0 %v3861
        %3867 = vmatpush1.msra.mxu0 %v3858
        %3868 = vmatprep.subr.mxu0 0.0
        %3869 = vmatpush1.msra.mxu0 0.0
        %3870 = vmatprep.subr.mxu0 0.0
        %3871 = vmatpush1.msra.mxu0 0.0
        %3872 = vmatprep.subr.mxu0 0.0
        %3873 = vmatpush1.msra.mxu0 0.0
        %3874 = vmatprep.subr.mxu0 0.0
        %3875 = vmatpush1.msra.mxu0 0.0
        %3876 = vmatprep.subr.mxu0 0.0
        %3877 = vmatpush1.msra.mxu0 0.0
        %3878 = vmatprep.subr.mxu0 0.0
        %3879 = vmatpush1.msra.mxu0 0.0
        %3880 = vmatprep.subr.mxu0 0.0
        %3881 = vmatpush1.msra.mxu0 0.0
        %3882 = vmatprep.subr.mxu0 0.0
        %3883 = vmatpush1.msra.mxu0 0.0
        %3884 = vmatprep.subr.mxu0 0.0
        %3885 = vmatpush1.msra.mxu0 0.0
        %3886 = vmatprep.subr.mxu0 0.0
        %3887 = vmatpush1.msra.mxu0 0.0
        %3888 = vmatprep.subr.mxu0 0.0
        %3889 = vmatpush1.msra.mxu0 0.0
        %3890 = vmatprep.subr.mxu0 0.0
        %3891 = vmatpush1.msra.mxu0 0.0
        %3892 = vmatprep.subr.mxu0 0.0
        %3893 = vmatpush1.msra.mxu0 0.0
        %3894 = vmatprep.subr.mxu0 0.0
        %3895 = vmatpush1.msra.mxu0 0.0
        %3896 = vmatprep.subr.mxu0 0.0
        %3897 = vmatpush1.msra.mxu0 0.0
        %3898 = vmatprep.subr.mxu0 0.0
        %3899 = vmatpush1.msra.mxu0 0.0
        %3900 = vmatprep.subr.mxu0 0.0
        %3901 = vmatpush1.msra.mxu0 0.0
        %3902 = vmatprep.subr.mxu0 0.0
        %3903 = vmatpush1.msra.mxu0 0.0
        %3904 = vmatprep.subr.mxu0 0.0
        %3905 = vmatpush1.msra.mxu0 0.0
        %3906 = vmatprep.subr.mxu0 0.0
        %3907 = vmatpush1.msra.mxu0 0.0
        %3908 = vmatprep.subr.mxu0 0.0
        %3909 = vmatpush1.msra.mxu0 0.0
        %3910 = vmatprep.subr.mxu0 0.0
        %3911 = vmatpush1.msra.mxu0 0.0
        %3912 = vmatprep.subr.mxu0 0.0
        %3913 = vmatpush1.msra.mxu0 0.0
        %3914 = vmatprep.subr.mxu0 0.0
        %3915 = vmatpush1.msra.mxu0 0.0
        %3916 = vmatprep.subr.mxu0 0.0
        %3917 = vmatpush1.msra.mxu0 0.0
        %3918 = vmatprep.subr.mxu0 0.0
        %3919 = vmatpush1.msra.mxu0 0.0
        %3920 = vmatprep.subr.mxu0 0.0
        %3921 = vmatpush1.msra.mxu0 0.0
        %3922 = vmatprep.subr.mxu0 0.0
        %3923 = vmatpush1.msra.mxu0 0.0
        %3924 = vmatprep.subr.mxu0 0.0
        %3925 = vmatpush1.msra.mxu0 0.0
        %3926 = vmatprep.subr.mxu0 0.0
        %3927 = vmatpush1.msra.mxu0 0.0
        %3928 = vmatprep.subr.mxu0 0.0
        %3929 = vmatpush1.msra.mxu0 0.0
        %3930 = vmatprep.mubr.f32.mxu0 0.0
        %3931 = vmatmul.mubr.f32.gmra.mrb[0].mxu0 %v3549
        %v3932 = vpop.f32.mrb[0].mxu0
        %v3933 = vadd.f32 0.0, %v3932
        %v3934 = vpop.f32.mrb[0].mxu0
        %v3935 = vadd.f32 0.0, %v3934
        %3936 = vdwg.mxu0
        %3937 = vmatprep.subr.mxu0 0.0
        %3938 = vmatpush1.msra.mxu0 %v3864
        %3939 = vmatprep.subr.mxu0 0.0
        %3940 = vmatpush1.msra.mxu0 0.0
        %3941 = vmatprep.subr.mxu0 0.0
        %3942 = vmatpush1.msra.mxu0 0.0
        %3943 = vmatprep.subr.mxu0 0.0
        %3944 = vmatpush1.msra.mxu0 0.0
        %3945 = vmatprep.subr.mxu0 0.0
        %3946 = vmatpush1.msra.mxu0 0.0
        %3947 = vmatprep.subr.mxu0 0.0
        %3948 = vmatpush1.msra.mxu0 0.0
        %3949 = vmatprep.subr.mxu0 0.0
        %3950 = vmatpush1.msra.mxu0 0.0
        %3951 = vmatprep.subr.mxu0 0.0
        %3952 = vmatpush1.msra.mxu0 0.0
        %3953 = vmatprep.subr.mxu0 0.0
        %3954 = vmatpush1.msra.mxu0 0.0
        %3955 = vmatprep.subr.mxu0 0.0
        %3956 = vmatpush1.msra.mxu0 0.0
        %3957 = vmatprep.subr.mxu0 0.0
        %3958 = vmatpush1.msra.mxu0 0.0
        %3959 = vmatprep.subr.mxu0 0.0
        %3960 = vmatpush1.msra.mxu0 0.0
        %3961 = vmatprep.subr.mxu0 0.0
        %3962 = vmatpush1.msra.mxu0 0.0
        %3963 = vmatprep.subr.mxu0 0.0
        %3964 = vmatpush1.msra.mxu0 0.0
        %3965 = vmatprep.subr.mxu0 0.0
        %3966 = vmatpush1.msra.mxu0 0.0
        %3967 = vmatprep.subr.mxu0 0.0
        %3968 = vmatpush1.msra.mxu0 0.0
        %3969 = vmatprep.subr.mxu0 0.0
        %3970 = vmatpush1.msra.mxu0 0.0
        %3971 = vmatprep.subr.mxu0 0.0
        %3972 = vmatpush1.msra.mxu0 0.0
        %3973 = vmatprep.subr.mxu0 0.0
        %3974 = vmatpush1.msra.mxu0 0.0
        %3975 = vmatprep.subr.mxu0 0.0
        %3976 = vmatpush1.msra.mxu0 0.0
        %3977 = vmatprep.subr.mxu0 0.0
        %3978 = vmatpush1.msra.mxu0 0.0
        %3979 = vmatprep.subr.mxu0 0.0
        %3980 = vmatpush1.msra.mxu0 0.0
        %3981 = vmatprep.subr.mxu0 0.0
        %3982 = vmatpush1.msra.mxu0 0.0
        %3983 = vmatprep.subr.mxu0 0.0
        %3984 = vmatpush1.msra.mxu0 0.0
        %3985 = vmatprep.subr.mxu0 0.0
        %3986 = vmatpush1.msra.mxu0 0.0
        %3987 = vmatprep.subr.mxu0 0.0
        %3988 = vmatpush1.msra.mxu0 0.0
        %3989 = vmatprep.subr.mxu0 0.0
        %3990 = vmatpush1.msra.mxu0 0.0
        %3991 = vmatprep.subr.mxu0 0.0
        %3992 = vmatpush1.msra.mxu0 0.0
        %3993 = vmatprep.subr.mxu0 0.0
        %3994 = vmatpush1.msra.mxu0 0.0
        %3995 = vmatprep.subr.mxu0 0.0
        %3996 = vmatpush1.msra.mxu0 0.0
        %3997 = vmatprep.subr.mxu0 0.0
        %3998 = vmatpush1.msra.mxu0 0.0
        %3999 = vmatprep.subr.mxu0 0.0
        %4000 = vmatpush1.msra.mxu0 0.0
        %4001 = vmatprep.mubr.f32.mxu0 0.0
        %4002 = vmatmul.mubr.f32.gmra.mrb[0].mxu0 %v3549
        %v4003 = vpop.f32.mrb[0].mxu0
        %v4004 = vadd.f32 0.0, %v4003
        %v4005 = vpop.f32.mrb[0].mxu0
        %4006 = vdwg.mxu0
        %v4007 = vadd.f32 %v3353, %v3933
        %v4008 = vadd.f32 %v3354, %v3935
        %v4009 = vadd.f32 %v3355, %v4004
        %v4011 = vsel %vm277, %v3541, 0
        %v4014 = vsel %vm277, %v3537, 0
        %v4017 = vsel %vm277, %v3545, 0
        %4019 = vmatprep.subr.mxu0 %v4014
        %4020 = vmatpush1.msra.mxu0 %v4011
        %4021 = vmatprep.subr.mxu0 0.0
        %4022 = vmatpush1.msra.mxu0 0.0
        %4023 = vmatprep.subr.mxu0 0.0
        %4024 = vmatpush1.msra.mxu0 0.0
        %4025 = vmatprep.subr.mxu0 0.0
        %4026 = vmatpush1.msra.mxu0 0.0
        %4027 = vmatprep.subr.mxu0 0.0
        %4028 = vmatpush1.msra.mxu0 0.0
        %4029 = vmatprep.subr.mxu0 0.0
        %4030 = vmatpush1.msra.mxu0 0.0
        %4031 = vmatprep.subr.mxu0 0.0
        %4032 = vmatpush1.msra.mxu0 0.0
        %4033 = vmatprep.subr.mxu0 0.0
        %4034 = vmatpush1.msra.mxu0 0.0
        %4035 = vmatprep.subr.mxu0 0.0
        %4036 = vmatpush1.msra.mxu0 0.0
        %4037 = vmatprep.subr.mxu0 0.0
        %4038 = vmatpush1.msra.mxu0 0.0
        %4039 = vmatprep.subr.mxu0 0.0
        %4040 = vmatpush1.msra.mxu0 0.0
        %4041 = vmatprep.subr.mxu0 0.0
        %4042 = vmatpush1.msra.mxu0 0.0
        %4043 = vmatprep.subr.mxu0 0.0
        %4044 = vmatpush1.msra.mxu0 0.0
        %4045 = vmatprep.subr.mxu0 0.0
        %4046 = vmatpush1.msra.mxu0 0.0
        %4047 = vmatprep.subr.mxu0 0.0
        %4048 = vmatpush1.msra.mxu0 0.0
        %4049 = vmatprep.subr.mxu0 0.0
        %4050 = vmatpush1.msra.mxu0 0.0
        %4051 = vmatprep.subr.mxu0 0.0
        %4052 = vmatpush1.msra.mxu0 0.0
        %4053 = vmatprep.subr.mxu0 0.0
        %4054 = vmatpush1.msra.mxu0 0.0
        %4055 = vmatprep.subr.mxu0 0.0
        %4056 = vmatpush1.msra.mxu0 0.0
        %4057 = vmatprep.subr.mxu0 0.0
        %4058 = vmatpush1.msra.mxu0 0.0
        %4059 = vmatprep.subr.mxu0 0.0
        %4060 = vmatpush1.msra.mxu0 0.0
        %4061 = vmatprep.subr.mxu0 0.0
        %4062 = vmatpush1.msra.mxu0 0.0
        %4063 = vmatprep.subr.mxu0 0.0
        %4064 = vmatpush1.msra.mxu0 0.0
        %4065 = vmatprep.subr.mxu0 0.0
        %4066 = vmatpush1.msra.mxu0 0.0
        %4067 = vmatprep.subr.mxu0 0.0
        %4068 = vmatpush1.msra.mxu0 0.0
        %4069 = vmatprep.subr.mxu0 0.0
        %4070 = vmatpush1.msra.mxu0 0.0
        %4071 = vmatprep.subr.mxu0 0.0
        %4072 = vmatpush1.msra.mxu0 0.0
        %4073 = vmatprep.subr.mxu0 0.0
        %4074 = vmatpush1.msra.mxu0 0.0
        %4075 = vmatprep.subr.mxu0 0.0
        %4076 = vmatpush1.msra.mxu0 0.0
        %4077 = vmatprep.subr.mxu0 0.0
        %4078 = vmatpush1.msra.mxu0 0.0
        %4079 = vmatprep.subr.mxu0 0.0
        %4080 = vmatpush1.msra.mxu0 0.0
        %4081 = vmatprep.subr.mxu0 0.0
        %4082 = vmatpush1.msra.mxu0 0.0
        %4083 = vmatprep.mubr.f32.mxu0 0.0
        %4084 = vmatmul.mubr.f32.gmra.mrb[0].mxu0 %v3549
        %v4085 = vpop.f32.mrb[0].mxu0
        %v4086 = vadd.f32 0.0, %v4085
        %v4087 = vpop.f32.mrb[0].mxu0
        %v4088 = vadd.f32 0.0, %v4087
        %4089 = vdwg.mxu0
        %4090 = vmatprep.subr.mxu0 0.0
        %4091 = vmatpush1.msra.mxu0 %v4017
        %4092 = vmatprep.subr.mxu0 0.0
        %4093 = vmatpush1.msra.mxu0 0.0
        %4094 = vmatprep.subr.mxu0 0.0
        %4095 = vmatpush1.msra.mxu0 0.0
        %4096 = vmatprep.subr.mxu0 0.0
        %4097 = vmatpush1.msra.mxu0 0.0
        %4098 = vmatprep.subr.mxu0 0.0
        %4099 = vmatpush1.msra.mxu0 0.0
        %4100 = vmatprep.subr.mxu0 0.0
        %4101 = vmatpush1.msra.mxu0 0.0
        %4102 = vmatprep.subr.mxu0 0.0
        %4103 = vmatpush1.msra.mxu0 0.0
        %4104 = vmatprep.subr.mxu0 0.0
        %4105 = vmatpush1.msra.mxu0 0.0
        %4106 = vmatprep.subr.mxu0 0.0
        %4107 = vmatpush1.msra.mxu0 0.0
        %4108 = vmatprep.subr.mxu0 0.0
        %4109 = vmatpush1.msra.mxu0 0.0
        %4110 = vmatprep.subr.mxu0 0.0
        %4111 = vmatpush1.msra.mxu0 0.0
        %4112 = vmatprep.subr.mxu0 0.0
        %4113 = vmatpush1.msra.mxu0 0.0
        %4114 = vmatprep.subr.mxu0 0.0
        %4115 = vmatpush1.msra.mxu0 0.0
        %4116 = vmatprep.subr.mxu0 0.0
        %4117 = vmatpush1.msra.mxu0 0.0
        %4118 = vmatprep.subr.mxu0 0.0
        %4119 = vmatpush1.msra.mxu0 0.0
        %4120 = vmatprep.subr.mxu0 0.0
        %4121 = vmatpush1.msra.mxu0 0.0
        %4122 = vmatprep.subr.mxu0 0.0
        %4123 = vmatpush1.msra.mxu0 0.0
        %4124 = vmatprep.subr.mxu0 0.0
        %4125 = vmatpush1.msra.mxu0 0.0
        %4126 = vmatprep.subr.mxu0 0.0
        %4127 = vmatpush1.msra.mxu0 0.0
        %4128 = vmatprep.subr.mxu0 0.0
        %4129 = vmatpush1.msra.mxu0 0.0
        %4130 = vmatprep.subr.mxu0 0.0
        %4131 = vmatpush1.msra.mxu0 0.0
        %4132 = vmatprep.subr.mxu0 0.0
        %4133 = vmatpush1.msra.mxu0 0.0
        %4134 = vmatprep.subr.mxu0 0.0
        %4135 = vmatpush1.msra.mxu0 0.0
        %4136 = vmatprep.subr.mxu0 0.0
        %4137 = vmatpush1.msra.mxu0 0.0
        %4138 = vmatprep.subr.mxu0 0.0
        %4139 = vmatpush1.msra.mxu0 0.0
        %4140 = vmatprep.subr.mxu0 0.0
        %4141 = vmatpush1.msra.mxu0 0.0
        %4142 = vmatprep.subr.mxu0 0.0
        %4143 = vmatpush1.msra.mxu0 0.0
        %4144 = vmatprep.subr.mxu0 0.0
        %4145 = vmatpush1.msra.mxu0 0.0
        %4146 = vmatprep.subr.mxu0 0.0
        %4147 = vmatpush1.msra.mxu0 0.0
        %4148 = vmatprep.subr.mxu0 0.0
        %4149 = vmatpush1.msra.mxu0 0.0
        %4150 = vmatprep.subr.mxu0 0.0
        %4151 = vmatpush1.msra.mxu0 0.0
        %4152 = vmatprep.subr.mxu0 0.0
        %4153 = vmatpush1.msra.mxu0 0.0
        %4154 = vmatprep.mubr.f32.mxu0 0.0
        %4155 = vmatmul.mubr.f32.gmra.mrb[0].mxu0 %v3549
        %v4156 = vpop.f32.mrb[0].mxu0
        %v4157 = vadd.f32 0.0, %v4156
        %v4158 = vpop.f32.mrb[0].mxu0
        %4159 = vdwg.mxu0
        %v4160 = vadd.f32 %v3506, %v4086
        %v4161 = vadd.f32 %v3507, %v4088
        %v4162 = vadd.f32 %v3508, %v4157
        %4163 = vrot.lane.b32.xlu0 %v255, 92
        %v4164 = vpop.permute.xlu0 %4163
        %4165 = vrot.lane.b32.xlu0 %v257, 92
        %v4166 = vpop.permute.xlu0 %4165
        %4167 = vrot.lane.b32.xlu0 %v259, 92
        %v4168 = vpop.permute.xlu0 %4167
        %4169 = vrot.lane.b32.xlu0 %v261, 92
        %v4170 = vpop.permute.xlu0 %4169
        %4171 = vrot.lane.b32.xlu0 %v272, 92
        %v4172 = vpop.permute.xlu0 %4171
        %4173 = vrot.lane.b32.xlu0 %v430, 92
        %v4174 = vpop.permute.xlu0 %4173
        %4175 = vrot.lane.b32.xlu0 %v583, 92
        %v4176 = vpop.permute.xlu0 %4175
        %4177 = vrot.lane.b32.xlu0 %v736, 92
        %v4178 = vpop.permute.xlu0 %4177
        %4179 = vrot.lane.b32.xlu0 %v256, 92
        %v4180 = vpop.permute.xlu0 %4179
        %4181 = vrot.lane.b32.xlu0 %v258, 92
        %v4182 = vpop.permute.xlu0 %4181
        %4183 = vrot.lane.b32.xlu0 %v260, 92
        %v4184 = vpop.permute.xlu0 %4183
        %4185 = vrot.lane.b32.xlu0 %v262, 92
        %v4186 = vpop.permute.xlu0 %4185
        %vm4187 = vcmp.lt.s32.totalorder %v916, 92
        %v4188 = vsel %vm4187, %v4172, %v4180
        %v4189 = vsel %vm4187, %v4174, %v4182
        %v4190 = vsel %vm4187, %v4176, %v4184
        %v4191 = vsel %vm4187, %v4178, %v4186
        %v4192 = vsel %vm4187, %v4164, %v4172
        %v4193 = vsel %vm4187, %v4166, %v4174
        %v4194 = vsel %vm4187, %v4168, %v4176
        %v4195 = vsel %vm4187, %v4170, %v4178
        %v4196 = vsel %vm4187, %v4180, %v4164
        %v4197 = vsel %vm4187, %v4182, %v4166
        %v4198 = vsel %vm4187, %v4184, %v4168
        %v4199 = vsel %vm4187, %v4186, %v4170
        %s4200 = scalar_lea.vmem %s1, 48
        %v4201 = vld [vmem:[%s4200] sm:$0xff]
        %v4203 = vsel %vm273, %v4201, 0
        %v4206 = vsel %vm277, %v4192, 0
        %v4209 = vsel %vm277, %v4188, 0
        %v4212 = vsel %vm277, %v4196, 0
        %4214 = vmatprep.subr.mxu0 %v4209
        %4215 = vmatpush1.msra.mxu0 %v4206
        %4216 = vmatprep.subr.mxu0 0.0
        %4217 = vmatpush1.msra.mxu0 0.0
        %4218 = vmatprep.subr.mxu0 0.0
        %4219 = vmatpush1.msra.mxu0 0.0
        %4220 = vmatprep.subr.mxu0 0.0
        %4221 = vmatpush1.msra.mxu0 0.0
        %4222 = vmatprep.subr.mxu0 0.0
        %4223 = vmatpush1.msra.mxu0 0.0
        %4224 = vmatprep.subr.mxu0 0.0
        %4225 = vmatpush1.msra.mxu0 0.0
        %4226 = vmatprep.subr.mxu0 0.0
        %4227 = vmatpush1.msra.mxu0 0.0
        %4228 = vmatprep.subr.mxu0 0.0
        %4229 = vmatpush1.msra.mxu0 0.0
        %4230 = vmatprep.subr.mxu0 0.0
        %4231 = vmatpush1.msra.mxu0 0.0
        %4232 = vmatprep.subr.mxu0 0.0
        %4233 = vmatpush1.msra.mxu0 0.0
        %4234 = vmatprep.subr.mxu0 0.0
        %4235 = vmatpush1.msra.mxu0 0.0
        %4236 = vmatprep.subr.mxu0 0.0
        %4237 = vmatpush1.msra.mxu0 0.0
        %4238 = vmatprep.subr.mxu0 0.0
        %4239 = vmatpush1.msra.mxu0 0.0
        %4240 = vmatprep.subr.mxu0 0.0
        %4241 = vmatpush1.msra.mxu0 0.0
        %4242 = vmatprep.subr.mxu0 0.0
        %4243 = vmatpush1.msra.mxu0 0.0
        %4244 = vmatprep.subr.mxu0 0.0
        %4245 = vmatpush1.msra.mxu0 0.0
        %4246 = vmatprep.subr.mxu0 0.0
        %4247 = vmatpush1.msra.mxu0 0.0
        %4248 = vmatprep.subr.mxu0 0.0
        %4249 = vmatpush1.msra.mxu0 0.0
        %4250 = vmatprep.subr.mxu0 0.0
        %4251 = vmatpush1.msra.mxu0 0.0
        %4252 = vmatprep.subr.mxu0 0.0
        %4253 = vmatpush1.msra.mxu0 0.0
        %4254 = vmatprep.subr.mxu0 0.0
        %4255 = vmatpush1.msra.mxu0 0.0
        %4256 = vmatprep.subr.mxu0 0.0
        %4257 = vmatpush1.msra.mxu0 0.0
        %4258 = vmatprep.subr.mxu0 0.0
        %4259 = vmatpush1.msra.mxu0 0.0
        %4260 = vmatprep.subr.mxu0 0.0
        %4261 = vmatpush1.msra.mxu0 0.0
        %4262 = vmatprep.subr.mxu0 0.0
        %4263 = vmatpush1.msra.mxu0 0.0
        %4264 = vmatprep.subr.mxu0 0.0
        %4265 = vmatpush1.msra.mxu0 0.0
        %4266 = vmatprep.subr.mxu0 0.0
        %4267 = vmatpush1.msra.mxu0 0.0
        %4268 = vmatprep.subr.mxu0 0.0
        %4269 = vmatpush1.msra.mxu0 0.0
        %4270 = vmatprep.subr.mxu0 0.0
        %4271 = vmatpush1.msra.mxu0 0.0
        %4272 = vmatprep.subr.mxu0 0.0
        %4273 = vmatpush1.msra.mxu0 0.0
        %4274 = vmatprep.subr.mxu0 0.0
        %4275 = vmatpush1.msra.mxu0 0.0
        %4276 = vmatprep.subr.mxu0 0.0
        %4277 = vmatpush1.msra.mxu0 0.0
        %4278 = vmatprep.mubr.f32.mxu0 0.0
        %4279 = vmatmul.mubr.f32.gmra.mrb[0].mxu0 %v4203
        %v4280 = vpop.f32.mrb[0].mxu0
        %v4281 = vadd.f32 0.0, %v4280
        %v4282 = vpop.f32.mrb[0].mxu0
        %v4283 = vadd.f32 0.0, %v4282
        %4284 = vdwg.mxu0
        %4285 = vmatprep.subr.mxu0 0.0
        %4286 = vmatpush1.msra.mxu0 %v4212
        %4287 = vmatprep.subr.mxu0 0.0
        %4288 = vmatpush1.msra.mxu0 0.0
        %4289 = vmatprep.subr.mxu0 0.0
        %4290 = vmatpush1.msra.mxu0 0.0
        %4291 = vmatprep.subr.mxu0 0.0
        %4292 = vmatpush1.msra.mxu0 0.0
        %4293 = vmatprep.subr.mxu0 0.0
        %4294 = vmatpush1.msra.mxu0 0.0
        %4295 = vmatprep.subr.mxu0 0.0
        %4296 = vmatpush1.msra.mxu0 0.0
        %4297 = vmatprep.subr.mxu0 0.0
        %4298 = vmatpush1.msra.mxu0 0.0
        %4299 = vmatprep.subr.mxu0 0.0
        %4300 = vmatpush1.msra.mxu0 0.0
        %4301 = vmatprep.subr.mxu0 0.0
        %4302 = vmatpush1.msra.mxu0 0.0
        %4303 = vmatprep.subr.mxu0 0.0
        %4304 = vmatpush1.msra.mxu0 0.0
        %4305 = vmatprep.subr.mxu0 0.0
        %4306 = vmatpush1.msra.mxu0 0.0
        %4307 = vmatprep.subr.mxu0 0.0
        %4308 = vmatpush1.msra.mxu0 0.0
        %4309 = vmatprep.subr.mxu0 0.0
        %4310 = vmatpush1.msra.mxu0 0.0
        %4311 = vmatprep.subr.mxu0 0.0
        %4312 = vmatpush1.msra.mxu0 0.0
        %4313 = vmatprep.subr.mxu0 0.0
        %4314 = vmatpush1.msra.mxu0 0.0
        %4315 = vmatprep.subr.mxu0 0.0
        %4316 = vmatpush1.msra.mxu0 0.0
        %4317 = vmatprep.subr.mxu0 0.0
        %4318 = vmatpush1.msra.mxu0 0.0
        %4319 = vmatprep.subr.mxu0 0.0
        %4320 = vmatpush1.msra.mxu0 0.0
        %4321 = vmatprep.subr.mxu0 0.0
        %4322 = vmatpush1.msra.mxu0 0.0
        %4323 = vmatprep.subr.mxu0 0.0
        %4324 = vmatpush1.msra.mxu0 0.0
        %4325 = vmatprep.subr.mxu0 0.0
        %4326 = vmatpush1.msra.mxu0 0.0
        %4327 = vmatprep.subr.mxu0 0.0
        %4328 = vmatpush1.msra.mxu0 0.0
        %4329 = vmatprep.subr.mxu0 0.0
        %4330 = vmatpush1.msra.mxu0 0.0
        %4331 = vmatprep.subr.mxu0 0.0
        %4332 = vmatpush1.msra.mxu0 0.0
        %4333 = vmatprep.subr.mxu0 0.0
        %4334 = vmatpush1.msra.mxu0 0.0
        %4335 = vmatprep.subr.mxu0 0.0
        %4336 = vmatpush1.msra.mxu0 0.0
        %4337 = vmatprep.subr.mxu0 0.0
        %4338 = vmatpush1.msra.mxu0 0.0
        %4339 = vmatprep.subr.mxu0 0.0
        %4340 = vmatpush1.msra.mxu0 0.0
        %4341 = vmatprep.subr.mxu0 0.0
        %4342 = vmatpush1.msra.mxu0 0.0
        %4343 = vmatprep.subr.mxu0 0.0
        %4344 = vmatpush1.msra.mxu0 0.0
        %4345 = vmatprep.subr.mxu0 0.0
        %4346 = vmatpush1.msra.mxu0 0.0
        %4347 = vmatprep.subr.mxu0 0.0
        %4348 = vmatpush1.msra.mxu0 0.0
        %4349 = vmatprep.mubr.f32.mxu0 0.0
        %4350 = vmatmul.mubr.f32.gmra.mrb[0].mxu0 %v4203
        %v4351 = vpop.f32.mrb[0].mxu0
        %v4352 = vadd.f32 0.0, %v4351
        %v4353 = vpop.f32.mrb[0].mxu0
        %4354 = vdwg.mxu0
        %v4355 = vadd.f32 %v3701, %v4281
        %v4356 = vadd.f32 %v3702, %v4283
        %v4357 = vadd.f32 %v3703, %v4352
        %v4359 = vsel %vm277, %v4193, 0
        %v4362 = vsel %vm277, %v4189, 0
        %v4365 = vsel %vm277, %v4197, 0
        %4367 = vmatprep.subr.mxu0 %v4362
        %4368 = vmatpush1.msra.mxu0 %v4359
        %4369 = vmatprep.subr.mxu0 0.0
        %4370 = vmatpush1.msra.mxu0 0.0
        %4371 = vmatprep.subr.mxu0 0.0
        %4372 = vmatpush1.msra.mxu0 0.0
        %4373 = vmatprep.subr.mxu0 0.0
        %4374 = vmatpush1.msra.mxu0 0.0
        %4375 = vmatprep.subr.mxu0 0.0
        %4376 = vmatpush1.msra.mxu0 0.0
        %4377 = vmatprep.subr.mxu0 0.0
        %4378 = vmatpush1.msra.mxu0 0.0
        %4379 = vmatprep.subr.mxu0 0.0
        %4380 = vmatpush1.msra.mxu0 0.0
        %4381 = vmatprep.subr.mxu0 0.0
        %4382 = vmatpush1.msra.mxu0 0.0
        %4383 = vmatprep.subr.mxu0 0.0
        %4384 = vmatpush1.msra.mxu0 0.0
        %4385 = vmatprep.subr.mxu0 0.0
        %4386 = vmatpush1.msra.mxu0 0.0
        %4387 = vmatprep.subr.mxu0 0.0
        %4388 = vmatpush1.msra.mxu0 0.0
        %4389 = vmatprep.subr.mxu0 0.0
        %4390 = vmatpush1.msra.mxu0 0.0
        %4391 = vmatprep.subr.mxu0 0.0
        %4392 = vmatpush1.msra.mxu0 0.0
        %4393 = vmatprep.subr.mxu0 0.0
        %4394 = vmatpush1.msra.mxu0 0.0
        %4395 = vmatprep.subr.mxu0 0.0
        %4396 = vmatpush1.msra.mxu0 0.0
        %4397 = vmatprep.subr.mxu0 0.0
        %4398 = vmatpush1.msra.mxu0 0.0
        %4399 = vmatprep.subr.mxu0 0.0
        %4400 = vmatpush1.msra.mxu0 0.0
        %4401 = vmatprep.subr.mxu0 0.0
        %4402 = vmatpush1.msra.mxu0 0.0
        %4403 = vmatprep.subr.mxu0 0.0
        %4404 = vmatpush1.msra.mxu0 0.0
        %4405 = vmatprep.subr.mxu0 0.0
        %4406 = vmatpush1.msra.mxu0 0.0
        %4407 = vmatprep.subr.mxu0 0.0
        %4408 = vmatpush1.msra.mxu0 0.0
        %4409 = vmatprep.subr.mxu0 0.0
        %4410 = vmatpush1.msra.mxu0 0.0
        %4411 = vmatprep.subr.mxu0 0.0
        %4412 = vmatpush1.msra.mxu0 0.0
        %4413 = vmatprep.subr.mxu0 0.0
        %4414 = vmatpush1.msra.mxu0 0.0
        %4415 = vmatprep.subr.mxu0 0.0
        %4416 = vmatpush1.msra.mxu0 0.0
        %4417 = vmatprep.subr.mxu0 0.0
        %4418 = vmatpush1.msra.mxu0 0.0
        %4419 = vmatprep.subr.mxu0 0.0
        %4420 = vmatpush1.msra.mxu0 0.0
        %4421 = vmatprep.subr.mxu0 0.0
        %4422 = vmatpush1.msra.mxu0 0.0
        %4423 = vmatprep.subr.mxu0 0.0
        %4424 = vmatpush1.msra.mxu0 0.0
        %4425 = vmatprep.subr.mxu0 0.0
        %4426 = vmatpush1.msra.mxu0 0.0
        %4427 = vmatprep.subr.mxu0 0.0
        %4428 = vmatpush1.msra.mxu0 0.0
        %4429 = vmatprep.subr.mxu0 0.0
        %4430 = vmatpush1.msra.mxu0 0.0
        %4431 = vmatprep.mubr.f32.mxu0 0.0
        %4432 = vmatmul.mubr.f32.gmra.mrb[0].mxu0 %v4203
        %v4433 = vpop.f32.mrb[0].mxu0
        %v4434 = vadd.f32 0.0, %v4433
        %v4435 = vpop.f32.mrb[0].mxu0
        %v4436 = vadd.f32 0.0, %v4435
        %4437 = vdwg.mxu0
        %4438 = vmatprep.subr.mxu0 0.0
        %4439 = vmatpush1.msra.mxu0 %v4365
        %4440 = vmatprep.subr.mxu0 0.0
        %4441 = vmatpush1.msra.mxu0 0.0
        %4442 = vmatprep.subr.mxu0 0.0
        %4443 = vmatpush1.msra.mxu0 0.0
        %4444 = vmatprep.subr.mxu0 0.0
        %4445 = vmatpush1.msra.mxu0 0.0
        %4446 = vmatprep.subr.mxu0 0.0
        %4447 = vmatpush1.msra.mxu0 0.0
        %4448 = vmatprep.subr.mxu0 0.0
        %4449 = vmatpush1.msra.mxu0 0.0
        %4450 = vmatprep.subr.mxu0 0.0
        %4451 = vmatpush1.msra.mxu0 0.0
        %4452 = vmatprep.subr.mxu0 0.0
        %4453 = vmatpush1.msra.mxu0 0.0
        %4454 = vmatprep.subr.mxu0 0.0
        %4455 = vmatpush1.msra.mxu0 0.0
        %4456 = vmatprep.subr.mxu0 0.0
        %4457 = vmatpush1.msra.mxu0 0.0
        %4458 = vmatprep.subr.mxu0 0.0
        %4459 = vmatpush1.msra.mxu0 0.0
        %4460 = vmatprep.subr.mxu0 0.0
        %4461 = vmatpush1.msra.mxu0 0.0
        %4462 = vmatprep.subr.mxu0 0.0
        %4463 = vmatpush1.msra.mxu0 0.0
        %4464 = vmatprep.subr.mxu0 0.0
        %4465 = vmatpush1.msra.mxu0 0.0
        %4466 = vmatprep.subr.mxu0 0.0
        %4467 = vmatpush1.msra.mxu0 0.0
        %4468 = vmatprep.subr.mxu0 0.0
        %4469 = vmatpush1.msra.mxu0 0.0
        %4470 = vmatprep.subr.mxu0 0.0
        %4471 = vmatpush1.msra.mxu0 0.0
        %4472 = vmatprep.subr.mxu0 0.0
        %4473 = vmatpush1.msra.mxu0 0.0
        %4474 = vmatprep.subr.mxu0 0.0
        %4475 = vmatpush1.msra.mxu0 0.0
        %4476 = vmatprep.subr.mxu0 0.0
        %4477 = vmatpush1.msra.mxu0 0.0
        %4478 = vmatprep.subr.mxu0 0.0
        %4479 = vmatpush1.msra.mxu0 0.0
        %4480 = vmatprep.subr.mxu0 0.0
        %4481 = vmatpush1.msra.mxu0 0.0
        %4482 = vmatprep.subr.mxu0 0.0
        %4483 = vmatpush1.msra.mxu0 0.0
        %4484 = vmatprep.subr.mxu0 0.0
        %4485 = vmatpush1.msra.mxu0 0.0
        %4486 = vmatprep.subr.mxu0 0.0
        %4487 = vmatpush1.msra.mxu0 0.0
        %4488 = vmatprep.subr.mxu0 0.0
        %4489 = vmatpush1.msra.mxu0 0.0
        %4490 = vmatprep.subr.mxu0 0.0
        %4491 = vmatpush1.msra.mxu0 0.0
        %4492 = vmatprep.subr.mxu0 0.0
        %4493 = vmatpush1.msra.mxu0 0.0
        %4494 = vmatprep.subr.mxu0 0.0
        %4495 = vmatpush1.msra.mxu0 0.0
        %4496 = vmatprep.subr.mxu0 0.0
        %4497 = vmatpush1.msra.mxu0 0.0
        %4498 = vmatprep.subr.mxu0 0.0
        %4499 = vmatpush1.msra.mxu0 0.0
        %4500 = vmatprep.subr.mxu0 0.0
        %4501 = vmatpush1.msra.mxu0 0.0
        %4502 = vmatprep.mubr.f32.mxu0 0.0
        %4503 = vmatmul.mubr.f32.gmra.mrb[0].mxu0 %v4203
        %v4504 = vpop.f32.mrb[0].mxu0
        %v4505 = vadd.f32 0.0, %v4504
        %v4506 = vpop.f32.mrb[0].mxu0
        %4507 = vdwg.mxu0
        %v4508 = vadd.f32 %v3854, %v4434
        %v4509 = vadd.f32 %v3855, %v4436
        %v4510 = vadd.f32 %v3856, %v4505
        %v4512 = vsel %vm277, %v4194, 0
        %v4515 = vsel %vm277, %v4190, 0
        %v4518 = vsel %vm277, %v4198, 0
        %4520 = vmatprep.subr.mxu0 %v4515
        %4521 = vmatpush1.msra.mxu0 %v4512
        %4522 = vmatprep.subr.mxu0 0.0
        %4523 = vmatpush1.msra.mxu0 0.0
        %4524 = vmatprep.subr.mxu0 0.0
        %4525 = vmatpush1.msra.mxu0 0.0
        %4526 = vmatprep.subr.mxu0 0.0
        %4527 = vmatpush1.msra.mxu0 0.0
        %4528 = vmatprep.subr.mxu0 0.0
        %4529 = vmatpush1.msra.mxu0 0.0
        %4530 = vmatprep.subr.mxu0 0.0
        %4531 = vmatpush1.msra.mxu0 0.0
        %4532 = vmatprep.subr.mxu0 0.0
        %4533 = vmatpush1.msra.mxu0 0.0
        %4534 = vmatprep.subr.mxu0 0.0
        %4535 = vmatpush1.msra.mxu0 0.0
        %4536 = vmatprep.subr.mxu0 0.0
        %4537 = vmatpush1.msra.mxu0 0.0
        %4538 = vmatprep.subr.mxu0 0.0
        %4539 = vmatpush1.msra.mxu0 0.0
        %4540 = vmatprep.subr.mxu0 0.0
        %4541 = vmatpush1.msra.mxu0 0.0
        %4542 = vmatprep.subr.mxu0 0.0
        %4543 = vmatpush1.msra.mxu0 0.0
        %4544 = vmatprep.subr.mxu0 0.0
        %4545 = vmatpush1.msra.mxu0 0.0
        %4546 = vmatprep.subr.mxu0 0.0
        %4547 = vmatpush1.msra.mxu0 0.0
        %4548 = vmatprep.subr.mxu0 0.0
        %4549 = vmatpush1.msra.mxu0 0.0
        %4550 = vmatprep.subr.mxu0 0.0
        %4551 = vmatpush1.msra.mxu0 0.0
        %4552 = vmatprep.subr.mxu0 0.0
        %4553 = vmatpush1.msra.mxu0 0.0
        %4554 = vmatprep.subr.mxu0 0.0
        %4555 = vmatpush1.msra.mxu0 0.0
        %4556 = vmatprep.subr.mxu0 0.0
        %4557 = vmatpush1.msra.mxu0 0.0
        %4558 = vmatprep.subr.mxu0 0.0
        %4559 = vmatpush1.msra.mxu0 0.0
        %4560 = vmatprep.subr.mxu0 0.0
        %4561 = vmatpush1.msra.mxu0 0.0
        %4562 = vmatprep.subr.mxu0 0.0
        %4563 = vmatpush1.msra.mxu0 0.0
        %4564 = vmatprep.subr.mxu0 0.0
        %4565 = vmatpush1.msra.mxu0 0.0
        %4566 = vmatprep.subr.mxu0 0.0
        %4567 = vmatpush1.msra.mxu0 0.0
        %4568 = vmatprep.subr.mxu0 0.0
        %4569 = vmatpush1.msra.mxu0 0.0
        %4570 = vmatprep.subr.mxu0 0.0
        %4571 = vmatpush1.msra.mxu0 0.0
        %4572 = vmatprep.subr.mxu0 0.0
        %4573 = vmatpush1.msra.mxu0 0.0
        %4574 = vmatprep.subr.mxu0 0.0
        %4575 = vmatpush1.msra.mxu0 0.0
        %4576 = vmatprep.subr.mxu0 0.0
        %4577 = vmatpush1.msra.mxu0 0.0
        %4578 = vmatprep.subr.mxu0 0.0
        %4579 = vmatpush1.msra.mxu0 0.0
        %4580 = vmatprep.subr.mxu0 0.0
        %4581 = vmatpush1.msra.mxu0 0.0
        %4582 = vmatprep.subr.mxu0 0.0
        %4583 = vmatpush1.msra.mxu0 0.0
        %4584 = vmatprep.mubr.f32.mxu0 0.0
        %4585 = vmatmul.mubr.f32.gmra.mrb[0].mxu0 %v4203
        %v4586 = vpop.f32.mrb[0].mxu0
        %v4587 = vadd.f32 0.0, %v4586
        %v4588 = vpop.f32.mrb[0].mxu0
        %v4589 = vadd.f32 0.0, %v4588
        %4590 = vdwg.mxu0
        %4591 = vmatprep.subr.mxu0 0.0
        %4592 = vmatpush1.msra.mxu0 %v4518
        %4593 = vmatprep.subr.mxu0 0.0
        %4594 = vmatpush1.msra.mxu0 0.0
        %4595 = vmatprep.subr.mxu0 0.0
        %4596 = vmatpush1.msra.mxu0 0.0
        %4597 = vmatprep.subr.mxu0 0.0
        %4598 = vmatpush1.msra.mxu0 0.0
        %4599 = vmatprep.subr.mxu0 0.0
        %4600 = vmatpush1.msra.mxu0 0.0
        %4601 = vmatprep.subr.mxu0 0.0
        %4602 = vmatpush1.msra.mxu0 0.0
        %4603 = vmatprep.subr.mxu0 0.0
        %4604 = vmatpush1.msra.mxu0 0.0
        %4605 = vmatprep.subr.mxu0 0.0
        %4606 = vmatpush1.msra.mxu0 0.0
        %4607 = vmatprep.subr.mxu0 0.0
        %4608 = vmatpush1.msra.mxu0 0.0
        %4609 = vmatprep.subr.mxu0 0.0
        %4610 = vmatpush1.msra.mxu0 0.0
        %4611 = vmatprep.subr.mxu0 0.0
        %4612 = vmatpush1.msra.mxu0 0.0
        %4613 = vmatprep.subr.mxu0 0.0
        %4614 = vmatpush1.msra.mxu0 0.0
        %4615 = vmatprep.subr.mxu0 0.0
        %4616 = vmatpush1.msra.mxu0 0.0
        %4617 = vmatprep.subr.mxu0 0.0
        %4618 = vmatpush1.msra.mxu0 0.0
        %4619 = vmatprep.subr.mxu0 0.0
        %4620 = vmatpush1.msra.mxu0 0.0
        %4621 = vmatprep.subr.mxu0 0.0
        %4622 = vmatpush1.msra.mxu0 0.0
        %4623 = vmatprep.subr.mxu0 0.0
        %4624 = vmatpush1.msra.mxu0 0.0
        %4625 = vmatprep.subr.mxu0 0.0
        %4626 = vmatpush1.msra.mxu0 0.0
        %4627 = vmatprep.subr.mxu0 0.0
        %4628 = vmatpush1.msra.mxu0 0.0
        %4629 = vmatprep.subr.mxu0 0.0
        %4630 = vmatpush1.msra.mxu0 0.0
        %4631 = vmatprep.subr.mxu0 0.0
        %4632 = vmatpush1.msra.mxu0 0.0
        %4633 = vmatprep.subr.mxu0 0.0
        %4634 = vmatpush1.msra.mxu0 0.0
        %4635 = vmatprep.subr.mxu0 0.0
        %4636 = vmatpush1.msra.mxu0 0.0
        %4637 = vmatprep.subr.mxu0 0.0
        %4638 = vmatpush1.msra.mxu0 0.0
        %4639 = vmatprep.subr.mxu0 0.0
        %4640 = vmatpush1.msra.mxu0 0.0
        %4641 = vmatprep.subr.mxu0 0.0
        %4642 = vmatpush1.msra.mxu0 0.0
        %4643 = vmatprep.subr.mxu0 0.0
        %4644 = vmatpush1.msra.mxu0 0.0
        %4645 = vmatprep.subr.mxu0 0.0
        %4646 = vmatpush1.msra.mxu0 0.0
        %4647 = vmatprep.subr.mxu0 0.0
        %4648 = vmatpush1.msra.mxu0 0.0
        %4649 = vmatprep.subr.mxu0 0.0
        %4650 = vmatpush1.msra.mxu0 0.0
        %4651 = vmatprep.subr.mxu0 0.0
        %4652 = vmatpush1.msra.mxu0 0.0
        %4653 = vmatprep.subr.mxu0 0.0
        %4654 = vmatpush1.msra.mxu0 0.0
        %4655 = vmatprep.mubr.f32.mxu0 0.0
        %4656 = vmatmul.mubr.f32.gmra.mrb[0].mxu0 %v4203
        %v4657 = vpop.f32.mrb[0].mxu0
        %v4658 = vadd.f32 0.0, %v4657
        %v4659 = vpop.f32.mrb[0].mxu0
        %4660 = vdwg.mxu0
        %v4661 = vadd.f32 %v4007, %v4587
        %v4662 = vadd.f32 %v4008, %v4589
        %v4663 = vadd.f32 %v4009, %v4658
        %v4665 = vsel %vm277, %v4195, 0
        %v4668 = vsel %vm277, %v4191, 0
        %v4671 = vsel %vm277, %v4199, 0
        %4673 = vmatprep.subr.mxu0 %v4668
        %4674 = vmatpush1.msra.mxu0 %v4665
        %4675 = vmatprep.subr.mxu0 0.0
        %4676 = vmatpush1.msra.mxu0 0.0
        %4677 = vmatprep.subr.mxu0 0.0
        %4678 = vmatpush1.msra.mxu0 0.0
        %4679 = vmatprep.subr.mxu0 0.0
        %4680 = vmatpush1.msra.mxu0 0.0
        %4681 = vmatprep.subr.mxu0 0.0
        %4682 = vmatpush1.msra.mxu0 0.0
        %4683 = vmatprep.subr.mxu0 0.0
        %4684 = vmatpush1.msra.mxu0 0.0
        %4685 = vmatprep.subr.mxu0 0.0
        %4686 = vmatpush1.msra.mxu0 0.0
        %4687 = vmatprep.subr.mxu0 0.0
        %4688 = vmatpush1.msra.mxu0 0.0
        %4689 = vmatprep.subr.mxu0 0.0
        %4690 = vmatpush1.msra.mxu0 0.0
        %4691 = vmatprep.subr.mxu0 0.0
        %4692 = vmatpush1.msra.mxu0 0.0
        %4693 = vmatprep.subr.mxu0 0.0
        %4694 = vmatpush1.msra.mxu0 0.0
        %4695 = vmatprep.subr.mxu0 0.0
        %4696 = vmatpush1.msra.mxu0 0.0
        %4697 = vmatprep.subr.mxu0 0.0
        %4698 = vmatpush1.msra.mxu0 0.0
        %4699 = vmatprep.subr.mxu0 0.0
        %4700 = vmatpush1.msra.mxu0 0.0
        %4701 = vmatprep.subr.mxu0 0.0
        %4702 = vmatpush1.msra.mxu0 0.0
        %4703 = vmatprep.subr.mxu0 0.0
        %4704 = vmatpush1.msra.mxu0 0.0
        %4705 = vmatprep.subr.mxu0 0.0
        %4706 = vmatpush1.msra.mxu0 0.0
        %4707 = vmatprep.subr.mxu0 0.0
        %4708 = vmatpush1.msra.mxu0 0.0
        %4709 = vmatprep.subr.mxu0 0.0
        %4710 = vmatpush1.msra.mxu0 0.0
        %4711 = vmatprep.subr.mxu0 0.0
        %4712 = vmatpush1.msra.mxu0 0.0
        %4713 = vmatprep.subr.mxu0 0.0
        %4714 = vmatpush1.msra.mxu0 0.0
        %4715 = vmatprep.subr.mxu0 0.0
        %4716 = vmatpush1.msra.mxu0 0.0
        %4717 = vmatprep.subr.mxu0 0.0
        %4718 = vmatpush1.msra.mxu0 0.0
        %4719 = vmatprep.subr.mxu0 0.0
        %4720 = vmatpush1.msra.mxu0 0.0
        %4721 = vmatprep.subr.mxu0 0.0
        %4722 = vmatpush1.msra.mxu0 0.0
        %4723 = vmatprep.subr.mxu0 0.0
        %4724 = vmatpush1.msra.mxu0 0.0
        %4725 = vmatprep.subr.mxu0 0.0
        %4726 = vmatpush1.msra.mxu0 0.0
        %4727 = vmatprep.subr.mxu0 0.0
        %4728 = vmatpush1.msra.mxu0 0.0
        %4729 = vmatprep.subr.mxu0 0.0
        %4730 = vmatpush1.msra.mxu0 0.0
        %4731 = vmatprep.subr.mxu0 0.0
        %4732 = vmatpush1.msra.mxu0 0.0
        %4733 = vmatprep.subr.mxu0 0.0
        %4734 = vmatpush1.msra.mxu0 0.0
        %4735 = vmatprep.subr.mxu0 0.0
        %4736 = vmatpush1.msra.mxu0 0.0
        %4737 = vmatprep.mubr.f32.mxu0 0.0
        %4738 = vmatmul.mubr.f32.gmra.mrb[0].mxu0 %v4203
        %v4739 = vpop.f32.mrb[0].mxu0
        %v4740 = vadd.f32 0.0, %v4739
        %v4741 = vpop.f32.mrb[0].mxu0
        %v4742 = vadd.f32 0.0, %v4741
        %4743 = vdwg.mxu0
        %4744 = vmatprep.subr.mxu0 0.0
        %4745 = vmatpush1.msra.mxu0 %v4671
        %4746 = vmatprep.subr.mxu0 0.0
        %4747 = vmatpush1.msra.mxu0 0.0
        %4748 = vmatprep.subr.mxu0 0.0
        %4749 = vmatpush1.msra.mxu0 0.0
        %4750 = vmatprep.subr.mxu0 0.0
        %4751 = vmatpush1.msra.mxu0 0.0
        %4752 = vmatprep.subr.mxu0 0.0
        %4753 = vmatpush1.msra.mxu0 0.0
        %4754 = vmatprep.subr.mxu0 0.0
        %4755 = vmatpush1.msra.mxu0 0.0
        %4756 = vmatprep.subr.mxu0 0.0
        %4757 = vmatpush1.msra.mxu0 0.0
        %4758 = vmatprep.subr.mxu0 0.0
        %4759 = vmatpush1.msra.mxu0 0.0
        %4760 = vmatprep.subr.mxu0 0.0
        %4761 = vmatpush1.msra.mxu0 0.0
        %4762 = vmatprep.subr.mxu0 0.0
        %4763 = vmatpush1.msra.mxu0 0.0
        %4764 = vmatprep.subr.mxu0 0.0
        %4765 = vmatpush1.msra.mxu0 0.0
        %4766 = vmatprep.subr.mxu0 0.0
        %4767 = vmatpush1.msra.mxu0 0.0
        %4768 = vmatprep.subr.mxu0 0.0
        %4769 = vmatpush1.msra.mxu0 0.0
        %4770 = vmatprep.subr.mxu0 0.0
        %4771 = vmatpush1.msra.mxu0 0.0
        %4772 = vmatprep.subr.mxu0 0.0
        %4773 = vmatpush1.msra.mxu0 0.0
        %4774 = vmatprep.subr.mxu0 0.0
        %4775 = vmatpush1.msra.mxu0 0.0
        %4776 = vmatprep.subr.mxu0 0.0
        %4777 = vmatpush1.msra.mxu0 0.0
        %4778 = vmatprep.subr.mxu0 0.0
        %4779 = vmatpush1.msra.mxu0 0.0
        %4780 = vmatprep.subr.mxu0 0.0
        %4781 = vmatpush1.msra.mxu0 0.0
        %4782 = vmatprep.subr.mxu0 0.0
        %4783 = vmatpush1.msra.mxu0 0.0
        %4784 = vmatprep.subr.mxu0 0.0
        %4785 = vmatpush1.msra.mxu0 0.0
        %4786 = vmatprep.subr.mxu0 0.0
        %4787 = vmatpush1.msra.mxu0 0.0
        %4788 = vmatprep.subr.mxu0 0.0
        %4789 = vmatpush1.msra.mxu0 0.0
        %4790 = vmatprep.subr.mxu0 0.0
        %4791 = vmatpush1.msra.mxu0 0.0
        %4792 = vmatprep.subr.mxu0 0.0
        %4793 = vmatpush1.msra.mxu0 0.0
        %4794 = vmatprep.subr.mxu0 0.0
        %4795 = vmatpush1.msra.mxu0 0.0
        %4796 = vmatprep.subr.mxu0 0.0
        %4797 = vmatpush1.msra.mxu0 0.0
        %4798 = vmatprep.subr.mxu0 0.0
        %4799 = vmatpush1.msra.mxu0 0.0
        %4800 = vmatprep.subr.mxu0 0.0
        %4801 = vmatpush1.msra.mxu0 0.0
        %4802 = vmatprep.subr.mxu0 0.0
        %4803 = vmatpush1.msra.mxu0 0.0
        %4804 = vmatprep.subr.mxu0 0.0
        %4805 = vmatpush1.msra.mxu0 0.0
        %4806 = vmatprep.subr.mxu0 0.0
        %4807 = vmatpush1.msra.mxu0 0.0
        %4808 = vmatprep.mubr.f32.mxu0 0.0
        %4809 = vmatmul.mubr.f32.gmra.mrb[0].mxu0 %v4203
        %v4810 = vpop.f32.mrb[0].mxu0
        %v4811 = vadd.f32 0.0, %v4810
        %v4812 = vpop.f32.mrb[0].mxu0
        %4813 = vdwg.mxu0
        %v4814 = vadd.f32 %v4160, %v4740
        %v4815 = vadd.f32 %v4161, %v4742
        %v4816 = vadd.f32 %v4162, %v4811
        %4817 = vrot.lane.b32.xlu0 %v255, 91
        %v4818 = vpop.permute.xlu0 %4817
        %4819 = vrot.lane.b32.xlu0 %v257, 91
        %v4820 = vpop.permute.xlu0 %4819
        %4821 = vrot.lane.b32.xlu0 %v259, 91
        %v4822 = vpop.permute.xlu0 %4821
        %4823 = vrot.lane.b32.xlu0 %v261, 91
        %v4824 = vpop.permute.xlu0 %4823
        %4825 = vrot.lane.b32.xlu0 %v272, 91
        %v4826 = vpop.permute.xlu0 %4825
        %4827 = vrot.lane.b32.xlu0 %v430, 91
        %v4828 = vpop.permute.xlu0 %4827
        %4829 = vrot.lane.b32.xlu0 %v583, 91
        %v4830 = vpop.permute.xlu0 %4829
        %4831 = vrot.lane.b32.xlu0 %v736, 91
        %v4832 = vpop.permute.xlu0 %4831
        %4833 = vrot.lane.b32.xlu0 %v256, 91
        %v4834 = vpop.permute.xlu0 %4833
        %4835 = vrot.lane.b32.xlu0 %v258, 91
        %v4836 = vpop.permute.xlu0 %4835
        %4837 = vrot.lane.b32.xlu0 %v260, 91
        %v4838 = vpop.permute.xlu0 %4837
        %4839 = vrot.lane.b32.xlu0 %v262, 91
        %v4840 = vpop.permute.xlu0 %4839
        %vm4841 = vcmp.lt.s32.totalorder %v916, 91
        %v4842 = vsel %vm4841, %v4826, %v4834
        %v4843 = vsel %vm4841, %v4828, %v4836
        %v4844 = vsel %vm4841, %v4830, %v4838
        %v4845 = vsel %vm4841, %v4832, %v4840
        %v4846 = vsel %vm4841, %v4818, %v4826
        %v4847 = vsel %vm4841, %v4820, %v4828
        %v4848 = vsel %vm4841, %v4822, %v4830
        %v4849 = vsel %vm4841, %v4824, %v4832
        %v4850 = vsel %vm4841, %v4834, %v4818
        %v4851 = vsel %vm4841, %v4836, %v4820
        %v4852 = vsel %vm4841, %v4838, %v4822
        %v4853 = vsel %vm4841, %v4840, %v4824
        %s4854 = scalar_lea.vmem %s1, 56
        %v4855 = vld [vmem:[%s4854] sm:$0xff]
        %v4857 = vsel %vm273, %v4855, 0
        %v4860 = vsel %vm277, %v4846, 0
        %v4863 = vsel %vm277, %v4842, 0
        %v4866 = vsel %vm277, %v4850, 0
        %4868 = vmatprep.subr.mxu0 %v4863
        %4869 = vmatpush1.msra.mxu0 %v4860
        %4870 = vmatprep.subr.mxu0 0.0
        %4871 = vmatpush1.msra.mxu0 0.0
        %4872 = vmatprep.subr.mxu0 0.0
        %4873 = vmatpush1.msra.mxu0 0.0
        %4874 = vmatprep.subr.mxu0 0.0
        %4875 = vmatpush1.msra.mxu0 0.0
        %4876 = vmatprep.subr.mxu0 0.0
        %4877 = vmatpush1.msra.mxu0 0.0
        %4878 = vmatprep.subr.mxu0 0.0
        %4879 = vmatpush1.msra.mxu0 0.0
        %4880 = vmatprep.subr.mxu0 0.0
        %4881 = vmatpush1.msra.mxu0 0.0
        %4882 = vmatprep.subr.mxu0 0.0
        %4883 = vmatpush1.msra.mxu0 0.0
        %4884 = vmatprep.subr.mxu0 0.0
        %4885 = vmatpush1.msra.mxu0 0.0
        %4886 = vmatprep.subr.mxu0 0.0
        %4887 = vmatpush1.msra.mxu0 0.0
        %4888 = vmatprep.subr.mxu0 0.0
        %4889 = vmatpush1.msra.mxu0 0.0
        %4890 = vmatprep.subr.mxu0 0.0
        %4891 = vmatpush1.msra.mxu0 0.0
        %4892 = vmatprep.subr.mxu0 0.0
        %4893 = vmatpush1.msra.mxu0 0.0
        %4894 = vmatprep.subr.mxu0 0.0
        %4895 = vmatpush1.msra.mxu0 0.0
        %4896 = vmatprep.subr.mxu0 0.0
        %4897 = vmatpush1.msra.mxu0 0.0
        %4898 = vmatprep.subr.mxu0 0.0
        %4899 = vmatpush1.msra.mxu0 0.0
        %4900 = vmatprep.subr.mxu0 0.0
        %4901 = vmatpush1.msra.mxu0 0.0
        %4902 = vmatprep.subr.mxu0 0.0
        %4903 = vmatpush1.msra.mxu0 0.0
        %4904 = vmatprep.subr.mxu0 0.0
        %4905 = vmatpush1.msra.mxu0 0.0
        %4906 = vmatprep.subr.mxu0 0.0
        %4907 = vmatpush1.msra.mxu0 0.0
        %4908 = vmatprep.subr.mxu0 0.0
        %4909 = vmatpush1.msra.mxu0 0.0
        %4910 = vmatprep.subr.mxu0 0.0
        %4911 = vmatpush1.msra.mxu0 0.0
        %4912 = vmatprep.subr.mxu0 0.0
        %4913 = vmatpush1.msra.mxu0 0.0
        %4914 = vmatprep.subr.mxu0 0.0
        %4915 = vmatpush1.msra.mxu0 0.0
        %4916 = vmatprep.subr.mxu0 0.0
        %4917 = vmatpush1.msra.mxu0 0.0
        %4918 = vmatprep.subr.mxu0 0.0
        %4919 = vmatpush1.msra.mxu0 0.0
        %4920 = vmatprep.subr.mxu0 0.0
        %4921 = vmatpush1.msra.mxu0 0.0
        %4922 = vmatprep.subr.mxu0 0.0
        %4923 = vmatpush1.msra.mxu0 0.0
        %4924 = vmatprep.subr.mxu0 0.0
        %4925 = vmatpush1.msra.mxu0 0.0
        %4926 = vmatprep.subr.mxu0 0.0
        %4927 = vmatpush1.msra.mxu0 0.0
        %4928 = vmatprep.subr.mxu0 0.0
        %4929 = vmatpush1.msra.mxu0 0.0
        %4930 = vmatprep.subr.mxu0 0.0
        %4931 = vmatpush1.msra.mxu0 0.0
        %4932 = vmatprep.mubr.f32.mxu0 0.0
        %4933 = vmatmul.mubr.f32.gmra.mrb[0].mxu0 %v4857
        %v4934 = vpop.f32.mrb[0].mxu0
        %v4935 = vadd.f32 0.0, %v4934
        %v4936 = vpop.f32.mrb[0].mxu0
        %v4937 = vadd.f32 0.0, %v4936
        %4938 = vdwg.mxu0
        %4939 = vmatprep.subr.mxu0 0.0
        %4940 = vmatpush1.msra.mxu0 %v4866
        %4941 = vmatprep.subr.mxu0 0.0
        %4942 = vmatpush1.msra.mxu0 0.0
        %4943 = vmatprep.subr.mxu0 0.0
        %4944 = vmatpush1.msra.mxu0 0.0
        %4945 = vmatprep.subr.mxu0 0.0
        %4946 = vmatpush1.msra.mxu0 0.0
        %4947 = vmatprep.subr.mxu0 0.0
        %4948 = vmatpush1.msra.mxu0 0.0
        %4949 = vmatprep.subr.mxu0 0.0
        %4950 = vmatpush1.msra.mxu0 0.0
        %4951 = vmatprep.subr.mxu0 0.0
        %4952 = vmatpush1.msra.mxu0 0.0
        %4953 = vmatprep.subr.mxu0 0.0
        %4954 = vmatpush1.msra.mxu0 0.0
        %4955 = vmatprep.subr.mxu0 0.0
        %4956 = vmatpush1.msra.mxu0 0.0
        %4957 = vmatprep.subr.mxu0 0.0
        %4958 = vmatpush1.msra.mxu0 0.0
        %4959 = vmatprep.subr.mxu0 0.0
        %4960 = vmatpush1.msra.mxu0 0.0
        %4961 = vmatprep.subr.mxu0 0.0
        %4962 = vmatpush1.msra.mxu0 0.0
        %4963 = vmatprep.subr.mxu0 0.0
        %4964 = vmatpush1.msra.mxu0 0.0
        %4965 = vmatprep.subr.mxu0 0.0
        %4966 = vmatpush1.msra.mxu0 0.0
        %4967 = vmatprep.subr.mxu0 0.0
        %4968 = vmatpush1.msra.mxu0 0.0
        %4969 = vmatprep.subr.mxu0 0.0
        %4970 = vmatpush1.msra.mxu0 0.0
        %4971 = vmatprep.subr.mxu0 0.0
        %4972 = vmatpush1.msra.mxu0 0.0
        %4973 = vmatprep.subr.mxu0 0.0
        %4974 = vmatpush1.msra.mxu0 0.0
        %4975 = vmatprep.subr.mxu0 0.0
        %4976 = vmatpush1.msra.mxu0 0.0
        %4977 = vmatprep.subr.mxu0 0.0
        %4978 = vmatpush1.msra.mxu0 0.0
        %4979 = vmatprep.subr.mxu0 0.0
        %4980 = vmatpush1.msra.mxu0 0.0
        %4981 = vmatprep.subr.mxu0 0.0
        %4982 = vmatpush1.msra.mxu0 0.0
        %4983 = vmatprep.subr.mxu0 0.0
        %4984 = vmatpush1.msra.mxu0 0.0
        %4985 = vmatprep.subr.mxu0 0.0
        %4986 = vmatpush1.msra.mxu0 0.0
        %4987 = vmatprep.subr.mxu0 0.0
        %4988 = vmatpush1.msra.mxu0 0.0
        %4989 = vmatprep.subr.mxu0 0.0
        %4990 = vmatpush1.msra.mxu0 0.0
        %4991 = vmatprep.subr.mxu0 0.0
        %4992 = vmatpush1.msra.mxu0 0.0
        %4993 = vmatprep.subr.mxu0 0.0
        %4994 = vmatpush1.msra.mxu0 0.0
        %4995 = vmatprep.subr.mxu0 0.0
        %4996 = vmatpush1.msra.mxu0 0.0
        %4997 = vmatprep.subr.mxu0 0.0
        %4998 = vmatpush1.msra.mxu0 0.0
        %4999 = vmatprep.subr.mxu0 0.0
        %5000 = vmatpush1.msra.mxu0 0.0
        %5001 = vmatprep.subr.mxu0 0.0
        %5002 = vmatpush1.msra.mxu0 0.0
        %5003 = vmatprep.mubr.f32.mxu0 0.0
        %5004 = vmatmul.mubr.f32.gmra.mrb[0].mxu0 %v4857
        %v5005 = vpop.f32.mrb[0].mxu0
        %v5006 = vadd.f32 0.0, %v5005
        %v5007 = vpop.f32.mrb[0].mxu0
        %5008 = vdwg.mxu0
        %v5009 = vadd.f32 %v4355, %v4935
        %v5010 = vadd.f32 %v4356, %v4937
        %v5011 = vadd.f32 %v4357, %v5006
        %v5013 = vsel %vm277, %v4847, 0
        %v5016 = vsel %vm277, %v4843, 0
        %v5019 = vsel %vm277, %v4851, 0
        %5021 = vmatprep.subr.mxu0 %v5016
        %5022 = vmatpush1.msra.mxu0 %v5013
        %5023 = vmatprep.subr.mxu0 0.0
        %5024 = vmatpush1.msra.mxu0 0.0
        %5025 = vmatprep.subr.mxu0 0.0
        %5026 = vmatpush1.msra.mxu0 0.0
        %5027 = vmatprep.subr.mxu0 0.0
        %5028 = vmatpush1.msra.mxu0 0.0
        %5029 = vmatprep.subr.mxu0 0.0
        %5030 = vmatpush1.msra.mxu0 0.0
        %5031 = vmatprep.subr.mxu0 0.0
        %5032 = vmatpush1.msra.mxu0 0.0
        %5033 = vmatprep.subr.mxu0 0.0
        %5034 = vmatpush1.msra.mxu0 0.0
        %5035 = vmatprep.subr.mxu0 0.0
        %5036 = vmatpush1.msra.mxu0 0.0
        %5037 = vmatprep.subr.mxu0 0.0
        %5038 = vmatpush1.msra.mxu0 0.0
        %5039 = vmatprep.subr.mxu0 0.0
        %5040 = vmatpush1.msra.mxu0 0.0
        %5041 = vmatprep.subr.mxu0 0.0
        %5042 = vmatpush1.msra.mxu0 0.0
        %5043 = vmatprep.subr.mxu0 0.0
        %5044 = vmatpush1.msra.mxu0 0.0
        %5045 = vmatprep.subr.mxu0 0.0
        %5046 = vmatpush1.msra.mxu0 0.0
        %5047 = vmatprep.subr.mxu0 0.0
        %5048 = vmatpush1.msra.mxu0 0.0
        %5049 = vmatprep.subr.mxu0 0.0
        %5050 = vmatpush1.msra.mxu0 0.0
        %5051 = vmatprep.subr.mxu0 0.0
        %5052 = vmatpush1.msra.mxu0 0.0
        %5053 = vmatprep.subr.mxu0 0.0
        %5054 = vmatpush1.msra.mxu0 0.0
        %5055 = vmatprep.subr.mxu0 0.0
        %5056 = vmatpush1.msra.mxu0 0.0
        %5057 = vmatprep.subr.mxu0 0.0
        %5058 = vmatpush1.msra.mxu0 0.0
        %5059 = vmatprep.subr.mxu0 0.0
        %5060 = vmatpush1.msra.mxu0 0.0
        %5061 = vmatprep.subr.mxu0 0.0
        %5062 = vmatpush1.msra.mxu0 0.0
        %5063 = vmatprep.subr.mxu0 0.0
        %5064 = vmatpush1.msra.mxu0 0.0
        %5065 = vmatprep.subr.mxu0 0.0
        %5066 = vmatpush1.msra.mxu0 0.0
        %5067 = vmatprep.subr.mxu0 0.0
        %5068 = vmatpush1.msra.mxu0 0.0
        %5069 = vmatprep.subr.mxu0 0.0
        %5070 = vmatpush1.msra.mxu0 0.0
        %5071 = vmatprep.subr.mxu0 0.0
        %5072 = vmatpush1.msra.mxu0 0.0
        %5073 = vmatprep.subr.mxu0 0.0
        %5074 = vmatpush1.msra.mxu0 0.0
        %5075 = vmatprep.subr.mxu0 0.0
        %5076 = vmatpush1.msra.mxu0 0.0
        %5077 = vmatprep.subr.mxu0 0.0
        %5078 = vmatpush1.msra.mxu0 0.0
        %5079 = vmatprep.subr.mxu0 0.0
        %5080 = vmatpush1.msra.mxu0 0.0
        %5081 = vmatprep.subr.mxu0 0.0
        %5082 = vmatpush1.msra.mxu0 0.0
        %5083 = vmatprep.subr.mxu0 0.0
        %5084 = vmatpush1.msra.mxu0 0.0
        %5085 = vmatprep.mubr.f32.mxu0 0.0
        %5086 = vmatmul.mubr.f32.gmra.mrb[0].mxu0 %v4857
        %v5087 = vpop.f32.mrb[0].mxu0
        %v5088 = vadd.f32 0.0, %v5087
        %v5089 = vpop.f32.mrb[0].mxu0
        %v5090 = vadd.f32 0.0, %v5089
        %5091 = vdwg.mxu0
        %5092 = vmatprep.subr.mxu0 0.0
        %5093 = vmatpush1.msra.mxu0 %v5019
        %5094 = vmatprep.subr.mxu0 0.0
        %5095 = vmatpush1.msra.mxu0 0.0
        %5096 = vmatprep.subr.mxu0 0.0
        %5097 = vmatpush1.msra.mxu0 0.0
        %5098 = vmatprep.subr.mxu0 0.0
        %5099 = vmatpush1.msra.mxu0 0.0
        %5100 = vmatprep.subr.mxu0 0.0
        %5101 = vmatpush1.msra.mxu0 0.0
        %5102 = vmatprep.subr.mxu0 0.0
        %5103 = vmatpush1.msra.mxu0 0.0
        %5104 = vmatprep.subr.mxu0 0.0
        %5105 = vmatpush1.msra.mxu0 0.0
        %5106 = vmatprep.subr.mxu0 0.0
        %5107 = vmatpush1.msra.mxu0 0.0
        %5108 = vmatprep.subr.mxu0 0.0
        %5109 = vmatpush1.msra.mxu0 0.0
        %5110 = vmatprep.subr.mxu0 0.0
        %5111 = vmatpush1.msra.mxu0 0.0
        %5112 = vmatprep.subr.mxu0 0.0
        %5113 = vmatpush1.msra.mxu0 0.0
        %5114 = vmatprep.subr.mxu0 0.0
        %5115 = vmatpush1.msra.mxu0 0.0
        %5116 = vmatprep.subr.mxu0 0.0
        %5117 = vmatpush1.msra.mxu0 0.0
        %5118 = vmatprep.subr.mxu0 0.0
        %5119 = vmatpush1.msra.mxu0 0.0
        %5120 = vmatprep.subr.mxu0 0.0
        %5121 = vmatpush1.msra.mxu0 0.0
        %5122 = vmatprep.subr.mxu0 0.0
        %5123 = vmatpush1.msra.mxu0 0.0
        %5124 = vmatprep.subr.mxu0 0.0
        %5125 = vmatpush1.msra.mxu0 0.0
        %5126 = vmatprep.subr.mxu0 0.0
        %5127 = vmatpush1.msra.mxu0 0.0
        %5128 = vmatprep.subr.mxu0 0.0
        %5129 = vmatpush1.msra.mxu0 0.0
        %5130 = vmatprep.subr.mxu0 0.0
        %5131 = vmatpush1.msra.mxu0 0.0
        %5132 = vmatprep.subr.mxu0 0.0
        %5133 = vmatpush1.msra.mxu0 0.0
        %5134 = vmatprep.subr.mxu0 0.0
        %5135 = vmatpush1.msra.mxu0 0.0
        %5136 = vmatprep.subr.mxu0 0.0
        %5137 = vmatpush1.msra.mxu0 0.0
        %5138 = vmatprep.subr.mxu0 0.0
        %5139 = vmatpush1.msra.mxu0 0.0
        %5140 = vmatprep.subr.mxu0 0.0
        %5141 = vmatpush1.msra.mxu0 0.0
        %5142 = vmatprep.subr.mxu0 0.0
        %5143 = vmatpush1.msra.mxu0 0.0
        %5144 = vmatprep.subr.mxu0 0.0
        %5145 = vmatpush1.msra.mxu0 0.0
        %5146 = vmatprep.subr.mxu0 0.0
        %5147 = vmatpush1.msra.mxu0 0.0
        %5148 = vmatprep.subr.mxu0 0.0
        %5149 = vmatpush1.msra.mxu0 0.0
        %5150 = vmatprep.subr.mxu0 0.0
        %5151 = vmatpush1.msra.mxu0 0.0
        %5152 = vmatprep.subr.mxu0 0.0
        %5153 = vmatpush1.msra.mxu0 0.0
        %5154 = vmatprep.subr.mxu0 0.0
        %5155 = vmatpush1.msra.mxu0 0.0
        %5156 = vmatprep.mubr.f32.mxu0 0.0
        %5157 = vmatmul.mubr.f32.gmra.mrb[0].mxu0 %v4857
        %v5158 = vpop.f32.mrb[0].mxu0
        %v5159 = vadd.f32 0.0, %v5158
        %v5160 = vpop.f32.mrb[0].mxu0
        %5161 = vdwg.mxu0
        %v5162 = vadd.f32 %v4508, %v5088
        %v5163 = vadd.f32 %v4509, %v5090
        %v5164 = vadd.f32 %v4510, %v5159
        %v5166 = vsel %vm277, %v4848, 0
        %v5169 = vsel %vm277, %v4844, 0
        %v5172 = vsel %vm277, %v4852, 0
        %5174 = vmatprep.subr.mxu0 %v5169
        %5175 = vmatpush1.msra.mxu0 %v5166
        %5176 = vmatprep.subr.mxu0 0.0
        %5177 = vmatpush1.msra.mxu0 0.0
        %5178 = vmatprep.subr.mxu0 0.0
        %5179 = vmatpush1.msra.mxu0 0.0
        %5180 = vmatprep.subr.mxu0 0.0
        %5181 = vmatpush1.msra.mxu0 0.0
        %5182 = vmatprep.subr.mxu0 0.0
        %5183 = vmatpush1.msra.mxu0 0.0
        %5184 = vmatprep.subr.mxu0 0.0
        %5185 = vmatpush1.msra.mxu0 0.0
        %5186 = vmatprep.subr.mxu0 0.0
        %5187 = vmatpush1.msra.mxu0 0.0
        %5188 = vmatprep.subr.mxu0 0.0
        %5189 = vmatpush1.msra.mxu0 0.0
        %5190 = vmatprep.subr.mxu0 0.0
        %5191 = vmatpush1.msra.mxu0 0.0
        %5192 = vmatprep.subr.mxu0 0.0
        %5193 = vmatpush1.msra.mxu0 0.0
        %5194 = vmatprep.subr.mxu0 0.0
        %5195 = vmatpush1.msra.mxu0 0.0
        %5196 = vmatprep.subr.mxu0 0.0
        %5197 = vmatpush1.msra.mxu0 0.0
        %5198 = vmatprep.subr.mxu0 0.0
        %5199 = vmatpush1.msra.mxu0 0.0
        %5200 = vmatprep.subr.mxu0 0.0
        %5201 = vmatpush1.msra.mxu0 0.0
        %5202 = vmatprep.subr.mxu0 0.0
        %5203 = vmatpush1.msra.mxu0 0.0
        %5204 = vmatprep.subr.mxu0 0.0
        %5205 = vmatpush1.msra.mxu0 0.0
        %5206 = vmatprep.subr.mxu0 0.0
        %5207 = vmatpush1.msra.mxu0 0.0
        %5208 = vmatprep.subr.mxu0 0.0
        %5209 = vmatpush1.msra.mxu0 0.0
        %5210 = vmatprep.subr.mxu0 0.0
        %5211 = vmatpush1.msra.mxu0 0.0
        %5212 = vmatprep.subr.mxu0 0.0
        %5213 = vmatpush1.msra.mxu0 0.0
        %5214 = vmatprep.subr.mxu0 0.0
        %5215 = vmatpush1.msra.mxu0 0.0
        %5216 = vmatprep.subr.mxu0 0.0
        %5217 = vmatpush1.msra.mxu0 0.0
        %5218 = vmatprep.subr.mxu0 0.0
        %5219 = vmatpush1.msra.mxu0 0.0
        %5220 = vmatprep.subr.mxu0 0.0
        %5221 = vmatpush1.msra.mxu0 0.0
        %5222 = vmatprep.subr.mxu0 0.0
        %5223 = vmatpush1.msra.mxu0 0.0
        %5224 = vmatprep.subr.mxu0 0.0
        %5225 = vmatpush1.msra.mxu0 0.0
        %5226 = vmatprep.subr.mxu0 0.0
        %5227 = vmatpush1.msra.mxu0 0.0
        %5228 = vmatprep.subr.mxu0 0.0
        %5229 = vmatpush1.msra.mxu0 0.0
        %5230 = vmatprep.subr.mxu0 0.0
        %5231 = vmatpush1.msra.mxu0 0.0
        %5232 = vmatprep.subr.mxu0 0.0
        %5233 = vmatpush1.msra.mxu0 0.0
        %5234 = vmatprep.subr.mxu0 0.0
        %5235 = vmatpush1.msra.mxu0 0.0
        %5236 = vmatprep.subr.mxu0 0.0
        %5237 = vmatpush1.msra.mxu0 0.0
        %5238 = vmatprep.mubr.f32.mxu0 0.0
        %5239 = vmatmul.mubr.f32.gmra.mrb[0].mxu0 %v4857
        %v5240 = vpop.f32.mrb[0].mxu0
        %v5241 = vadd.f32 0.0, %v5240
        %v5242 = vpop.f32.mrb[0].mxu0
        %v5243 = vadd.f32 0.0, %v5242
        %5244 = vdwg.mxu0
        %5245 = vmatprep.subr.mxu0 0.0
        %5246 = vmatpush1.msra.mxu0 %v5172
        %5247 = vmatprep.subr.mxu0 0.0
        %5248 = vmatpush1.msra.mxu0 0.0
        %5249 = vmatprep.subr.mxu0 0.0
        %5250 = vmatpush1.msra.mxu0 0.0
        %5251 = vmatprep.subr.mxu0 0.0
        %5252 = vmatpush1.msra.mxu0 0.0
        %5253 = vmatprep.subr.mxu0 0.0
        %5254 = vmatpush1.msra.mxu0 0.0
        %5255 = vmatprep.subr.mxu0 0.0
        %5256 = vmatpush1.msra.mxu0 0.0
        %5257 = vmatprep.subr.mxu0 0.0
        %5258 = vmatpush1.msra.mxu0 0.0
        %5259 = vmatprep.subr.mxu0 0.0
        %5260 = vmatpush1.msra.mxu0 0.0
        %5261 = vmatprep.subr.mxu0 0.0
        %5262 = vmatpush1.msra.mxu0 0.0
        %5263 = vmatprep.subr.mxu0 0.0
        %5264 = vmatpush1.msra.mxu0 0.0
        %5265 = vmatprep.subr.mxu0 0.0
        %5266 = vmatpush1.msra.mxu0 0.0
        %5267 = vmatprep.subr.mxu0 0.0
        %5268 = vmatpush1.msra.mxu0 0.0
        %5269 = vmatprep.subr.mxu0 0.0
        %5270 = vmatpush1.msra.mxu0 0.0
        %5271 = vmatprep.subr.mxu0 0.0
        %5272 = vmatpush1.msra.mxu0 0.0
        %5273 = vmatprep.subr.mxu0 0.0
        %5274 = vmatpush1.msra.mxu0 0.0
        %5275 = vmatprep.subr.mxu0 0.0
        %5276 = vmatpush1.msra.mxu0 0.0
        %5277 = vmatprep.subr.mxu0 0.0
        %5278 = vmatpush1.msra.mxu0 0.0
        %5279 = vmatprep.subr.mxu0 0.0
        %5280 = vmatpush1.msra.mxu0 0.0
        %5281 = vmatprep.subr.mxu0 0.0
        %5282 = vmatpush1.msra.mxu0 0.0
        %5283 = vmatprep.subr.mxu0 0.0
        %5284 = vmatpush1.msra.mxu0 0.0
        %5285 = vmatprep.subr.mxu0 0.0
        %5286 = vmatpush1.msra.mxu0 0.0
        %5287 = vmatprep.subr.mxu0 0.0
        %5288 = vmatpush1.msra.mxu0 0.0
        %5289 = vmatprep.subr.mxu0 0.0
        %5290 = vmatpush1.msra.mxu0 0.0
        %5291 = vmatprep.subr.mxu0 0.0
        %5292 = vmatpush1.msra.mxu0 0.0
        %5293 = vmatprep.subr.mxu0 0.0
        %5294 = vmatpush1.msra.mxu0 0.0
        %5295 = vmatprep.subr.mxu0 0.0
        %5296 = vmatpush1.msra.mxu0 0.0
        %5297 = vmatprep.subr.mxu0 0.0
        %5298 = vmatpush1.msra.mxu0 0.0
        %5299 = vmatprep.subr.mxu0 0.0
        %5300 = vmatpush1.msra.mxu0 0.0
        %5301 = vmatprep.subr.mxu0 0.0
        %5302 = vmatpush1.msra.mxu0 0.0
        %5303 = vmatprep.subr.mxu0 0.0
        %5304 = vmatpush1.msra.mxu0 0.0
        %5305 = vmatprep.subr.mxu0 0.0
        %5306 = vmatpush1.msra.mxu0 0.0
        %5307 = vmatprep.subr.mxu0 0.0
        %5308 = vmatpush1.msra.mxu0 0.0
        %5309 = vmatprep.mubr.f32.mxu0 0.0
        %5310 = vmatmul.mubr.f32.gmra.mrb[0].mxu0 %v4857
        %v5311 = vpop.f32.mrb[0].mxu0
        %v5312 = vadd.f32 0.0, %v5311
        %v5313 = vpop.f32.mrb[0].mxu0
        %5314 = vdwg.mxu0
        %v5315 = vadd.f32 %v4661, %v5241
        %v5316 = vadd.f32 %v4662, %v5243
        %v5317 = vadd.f32 %v4663, %v5312
        %v5319 = vsel %vm277, %v4849, 0
        %v5322 = vsel %vm277, %v4845, 0
        %v5325 = vsel %vm277, %v4853, 0
        %5327 = vmatprep.subr.mxu0 %v5322
        %5328 = vmatpush1.msra.mxu0 %v5319
        %5329 = vmatprep.subr.mxu0 0.0
        %5330 = vmatpush1.msra.mxu0 0.0
        %5331 = vmatprep.subr.mxu0 0.0
        %5332 = vmatpush1.msra.mxu0 0.0
        %5333 = vmatprep.subr.mxu0 0.0
        %5334 = vmatpush1.msra.mxu0 0.0
        %5335 = vmatprep.subr.mxu0 0.0
        %5336 = vmatpush1.msra.mxu0 0.0
        %5337 = vmatprep.subr.mxu0 0.0
        %5338 = vmatpush1.msra.mxu0 0.0
        %5339 = vmatprep.subr.mxu0 0.0
        %5340 = vmatpush1.msra.mxu0 0.0
        %5341 = vmatprep.subr.mxu0 0.0
        %5342 = vmatpush1.msra.mxu0 0.0
        %5343 = vmatprep.subr.mxu0 0.0
        %5344 = vmatpush1.msra.mxu0 0.0
        %5345 = vmatprep.subr.mxu0 0.0
        %5346 = vmatpush1.msra.mxu0 0.0
        %5347 = vmatprep.subr.mxu0 0.0
        %5348 = vmatpush1.msra.mxu0 0.0
        %5349 = vmatprep.subr.mxu0 0.0
        %5350 = vmatpush1.msra.mxu0 0.0
        %5351 = vmatprep.subr.mxu0 0.0
        %5352 = vmatpush1.msra.mxu0 0.0
        %5353 = vmatprep.subr.mxu0 0.0
        %5354 = vmatpush1.msra.mxu0 0.0
        %5355 = vmatprep.subr.mxu0 0.0
        %5356 = vmatpush1.msra.mxu0 0.0
        %5357 = vmatprep.subr.mxu0 0.0
        %5358 = vmatpush1.msra.mxu0 0.0
        %5359 = vmatprep.subr.mxu0 0.0
        %5360 = vmatpush1.msra.mxu0 0.0
        %5361 = vmatprep.subr.mxu0 0.0
        %5362 = vmatpush1.msra.mxu0 0.0
        %5363 = vmatprep.subr.mxu0 0.0
        %5364 = vmatpush1.msra.mxu0 0.0
        %5365 = vmatprep.subr.mxu0 0.0
        %5366 = vmatpush1.msra.mxu0 0.0
        %5367 = vmatprep.subr.mxu0 0.0
        %5368 = vmatpush1.msra.mxu0 0.0
        %5369 = vmatprep.subr.mxu0 0.0
        %5370 = vmatpush1.msra.mxu0 0.0
        %5371 = vmatprep.subr.mxu0 0.0
        %5372 = vmatpush1.msra.mxu0 0.0
        %5373 = vmatprep.subr.mxu0 0.0
        %5374 = vmatpush1.msra.mxu0 0.0
        %5375 = vmatprep.subr.mxu0 0.0
        %5376 = vmatpush1.msra.mxu0 0.0
        %5377 = vmatprep.subr.mxu0 0.0
        %5378 = vmatpush1.msra.mxu0 0.0
        %5379 = vmatprep.subr.mxu0 0.0
        %5380 = vmatpush1.msra.mxu0 0.0
        %5381 = vmatprep.subr.mxu0 0.0
        %5382 = vmatpush1.msra.mxu0 0.0
        %5383 = vmatprep.subr.mxu0 0.0
        %5384 = vmatpush1.msra.mxu0 0.0
        %5385 = vmatprep.subr.mxu0 0.0
        %5386 = vmatpush1.msra.mxu0 0.0
        %5387 = vmatprep.subr.mxu0 0.0
        %5388 = vmatpush1.msra.mxu0 0.0
        %5389 = vmatprep.subr.mxu0 0.0
        %5390 = vmatpush1.msra.mxu0 0.0
        %5391 = vmatprep.mubr.f32.mxu0 0.0
        %5392 = vmatmul.mubr.f32.gmra.mrb[0].mxu0 %v4857
        %v5393 = vpop.f32.mrb[0].mxu0
        %v5394 = vadd.f32 0.0, %v5393
        %v5395 = vpop.f32.mrb[0].mxu0
        %v5396 = vadd.f32 0.0, %v5395
        %5397 = vdwg.mxu0
        %5398 = vmatprep.subr.mxu0 0.0
        %5399 = vmatpush1.msra.mxu0 %v5325
        %5400 = vmatprep.subr.mxu0 0.0
        %5401 = vmatpush1.msra.mxu0 0.0
        %5402 = vmatprep.subr.mxu0 0.0
        %5403 = vmatpush1.msra.mxu0 0.0
        %5404 = vmatprep.subr.mxu0 0.0
        %5405 = vmatpush1.msra.mxu0 0.0
        %5406 = vmatprep.subr.mxu0 0.0
        %5407 = vmatpush1.msra.mxu0 0.0
        %5408 = vmatprep.subr.mxu0 0.0
        %5409 = vmatpush1.msra.mxu0 0.0
        %5410 = vmatprep.subr.mxu0 0.0
        %5411 = vmatpush1.msra.mxu0 0.0
        %5412 = vmatprep.subr.mxu0 0.0
        %5413 = vmatpush1.msra.mxu0 0.0
        %5414 = vmatprep.subr.mxu0 0.0
        %5415 = vmatpush1.msra.mxu0 0.0
        %5416 = vmatprep.subr.mxu0 0.0
        %5417 = vmatpush1.msra.mxu0 0.0
        %5418 = vmatprep.subr.mxu0 0.0
        %5419 = vmatpush1.msra.mxu0 0.0
        %5420 = vmatprep.subr.mxu0 0.0
        %5421 = vmatpush1.msra.mxu0 0.0
        %5422 = vmatprep.subr.mxu0 0.0
        %5423 = vmatpush1.msra.mxu0 0.0
        %5424 = vmatprep.subr.mxu0 0.0
        %5425 = vmatpush1.msra.mxu0 0.0
        %5426 = vmatprep.subr.mxu0 0.0
        %5427 = vmatpush1.msra.mxu0 0.0
        %5428 = vmatprep.subr.mxu0 0.0
        %5429 = vmatpush1.msra.mxu0 0.0
        %5430 = vmatprep.subr.mxu0 0.0
        %5431 = vmatpush1.msra.mxu0 0.0
        %5432 = vmatprep.subr.mxu0 0.0
        %5433 = vmatpush1.msra.mxu0 0.0
        %5434 = vmatprep.subr.mxu0 0.0
        %5435 = vmatpush1.msra.mxu0 0.0
        %5436 = vmatprep.subr.mxu0 0.0
        %5437 = vmatpush1.msra.mxu0 0.0
        %5438 = vmatprep.subr.mxu0 0.0
        %5439 = vmatpush1.msra.mxu0 0.0
        %5440 = vmatprep.subr.mxu0 0.0
        %5441 = vmatpush1.msra.mxu0 0.0
        %5442 = vmatprep.subr.mxu0 0.0
        %5443 = vmatpush1.msra.mxu0 0.0
        %5444 = vmatprep.subr.mxu0 0.0
        %5445 = vmatpush1.msra.mxu0 0.0
        %5446 = vmatprep.subr.mxu0 0.0
        %5447 = vmatpush1.msra.mxu0 0.0
        %5448 = vmatprep.subr.mxu0 0.0
        %5449 = vmatpush1.msra.mxu0 0.0
        %5450 = vmatprep.subr.mxu0 0.0
        %5451 = vmatpush1.msra.mxu0 0.0
        %5452 = vmatprep.subr.mxu0 0.0
        %5453 = vmatpush1.msra.mxu0 0.0
        %5454 = vmatprep.subr.mxu0 0.0
        %5455 = vmatpush1.msra.mxu0 0.0
        %5456 = vmatprep.subr.mxu0 0.0
        %5457 = vmatpush1.msra.mxu0 0.0
        %5458 = vmatprep.subr.mxu0 0.0
        %5459 = vmatpush1.msra.mxu0 0.0
        %5460 = vmatprep.subr.mxu0 0.0
        %5461 = vmatpush1.msra.mxu0 0.0
        %5462 = vmatprep.mubr.f32.mxu0 0.0
        %5463 = vmatmul.mubr.f32.gmra.mrb[0].mxu0 %v4857
        %v5464 = vpop.f32.mrb[0].mxu0
        %v5465 = vadd.f32 0.0, %v5464
        %v5466 = vpop.f32.mrb[0].mxu0
        %5467 = vdwg.mxu0
        %v5468 = vadd.f32 %v4814, %v5394
        %v5469 = vadd.f32 %v4815, %v5396
        %v5470 = vadd.f32 %v4816, %v5465
        %5471 = vrot.lane.b32.xlu0 %v255, 90
        %v5472 = vpop.permute.xlu0 %5471
        %5473 = vrot.lane.b32.xlu0 %v257, 90
        %v5474 = vpop.permute.xlu0 %5473
        %5475 = vrot.lane.b32.xlu0 %v259, 90
        %v5476 = vpop.permute.xlu0 %5475
        %5477 = vrot.lane.b32.xlu0 %v261, 90
        %v5478 = vpop.permute.xlu0 %5477
        %5479 = vrot.lane.b32.xlu0 %v272, 90
        %v5480 = vpop.permute.xlu0 %5479
        %5481 = vrot.lane.b32.xlu0 %v430, 90
        %v5482 = vpop.permute.xlu0 %5481
        %5483 = vrot.lane.b32.xlu0 %v583, 90
        %v5484 = vpop.permute.xlu0 %5483
        %5485 = vrot.lane.b32.xlu0 %v736, 90
        %v5486 = vpop.permute.xlu0 %5485
        %5487 = vrot.lane.b32.xlu0 %v256, 90
        %v5488 = vpop.permute.xlu0 %5487
        %5489 = vrot.lane.b32.xlu0 %v258, 90
        %v5490 = vpop.permute.xlu0 %5489
        %5491 = vrot.lane.b32.xlu0 %v260, 90
        %v5492 = vpop.permute.xlu0 %5491
        %5493 = vrot.lane.b32.xlu0 %v262, 90
        %v5494 = vpop.permute.xlu0 %5493
        %vm5495 = vcmp.lt.s32.totalorder %v916, 90
        %v5496 = vsel %vm5495, %v5480, %v5488
        %v5497 = vsel %vm5495, %v5482, %v5490
        %v5498 = vsel %vm5495, %v5484, %v5492
        %v5499 = vsel %vm5495, %v5486, %v5494
        %v5500 = vsel %vm5495, %v5472, %v5480
        %v5501 = vsel %vm5495, %v5474, %v5482
        %v5502 = vsel %vm5495, %v5476, %v5484
        %v5503 = vsel %vm5495, %v5478, %v5486
        %v5504 = vsel %vm5495, %v5488, %v5472
        %v5505 = vsel %vm5495, %v5490, %v5474
        %v5506 = vsel %vm5495, %v5492, %v5476
        %v5507 = vsel %vm5495, %v5494, %v5478
        %s5508 = scalar_lea.vmem %s1, 64
        %v5509 = vld [vmem:[%s5508] sm:$0xff]
        %v5511 = vsel %vm273, %v5509, 0
        %v5514 = vsel %vm277, %v5500, 0
        %v5517 = vsel %vm277, %v5496, 0
        %v5520 = vsel %vm277, %v5504, 0
        %5522 = vmatprep.subr.mxu0 %v5517
        %5523 = vmatpush1.msra.mxu0 %v5514
        %5524 = vmatprep.subr.mxu0 0.0
        %5525 = vmatpush1.msra.mxu0 0.0
        %5526 = vmatprep.subr.mxu0 0.0
        %5527 = vmatpush1.msra.mxu0 0.0
        %5528 = vmatprep.subr.mxu0 0.0
        %5529 = vmatpush1.msra.mxu0 0.0
        %5530 = vmatprep.subr.mxu0 0.0
        %5531 = vmatpush1.msra.mxu0 0.0
        %5532 = vmatprep.subr.mxu0 0.0
        %5533 = vmatpush1.msra.mxu0 0.0
        %5534 = vmatprep.subr.mxu0 0.0
        %5535 = vmatpush1.msra.mxu0 0.0
        %5536 = vmatprep.subr.mxu0 0.0
        %5537 = vmatpush1.msra.mxu0 0.0
        %5538 = vmatprep.subr.mxu0 0.0
        %5539 = vmatpush1.msra.mxu0 0.0
        %5540 = vmatprep.subr.mxu0 0.0
        %5541 = vmatpush1.msra.mxu0 0.0
        %5542 = vmatprep.subr.mxu0 0.0
        %5543 = vmatpush1.msra.mxu0 0.0
        %5544 = vmatprep.subr.mxu0 0.0
        %5545 = vmatpush1.msra.mxu0 0.0
        %5546 = vmatprep.subr.mxu0 0.0
        %5547 = vmatpush1.msra.mxu0 0.0
        %5548 = vmatprep.subr.mxu0 0.0
        %5549 = vmatpush1.msra.mxu0 0.0
        %5550 = vmatprep.subr.mxu0 0.0
        %5551 = vmatpush1.msra.mxu0 0.0
        %5552 = vmatprep.subr.mxu0 0.0
        %5553 = vmatpush1.msra.mxu0 0.0
        %5554 = vmatprep.subr.mxu0 0.0
        %5555 = vmatpush1.msra.mxu0 0.0
        %5556 = vmatprep.subr.mxu0 0.0
        %5557 = vmatpush1.msra.mxu0 0.0
        %5558 = vmatprep.subr.mxu0 0.0
        %5559 = vmatpush1.msra.mxu0 0.0
        %5560 = vmatprep.subr.mxu0 0.0
        %5561 = vmatpush1.msra.mxu0 0.0
        %5562 = vmatprep.subr.mxu0 0.0
        %5563 = vmatpush1.msra.mxu0 0.0
        %5564 = vmatprep.subr.mxu0 0.0
        %5565 = vmatpush1.msra.mxu0 0.0
        %5566 = vmatprep.subr.mxu0 0.0
        %5567 = vmatpush1.msra.mxu0 0.0
        %5568 = vmatprep.subr.mxu0 0.0
        %5569 = vmatpush1.msra.mxu0 0.0
        %5570 = vmatprep.subr.mxu0 0.0
        %5571 = vmatpush1.msra.mxu0 0.0
        %5572 = vmatprep.subr.mxu0 0.0
        %5573 = vmatpush1.msra.mxu0 0.0
        %5574 = vmatprep.subr.mxu0 0.0
        %5575 = vmatpush1.msra.mxu0 0.0
        %5576 = vmatprep.subr.mxu0 0.0
        %5577 = vmatpush1.msra.mxu0 0.0
        %5578 = vmatprep.subr.mxu0 0.0
        %5579 = vmatpush1.msra.mxu0 0.0
        %5580 = vmatprep.subr.mxu0 0.0
        %5581 = vmatpush1.msra.mxu0 0.0
        %5582 = vmatprep.subr.mxu0 0.0
        %5583 = vmatpush1.msra.mxu0 0.0
        %5584 = vmatprep.subr.mxu0 0.0
        %5585 = vmatpush1.msra.mxu0 0.0
        %5586 = vmatprep.mubr.f32.mxu0 0.0
        %5587 = vmatmul.mubr.f32.gmra.mrb[0].mxu0 %v5511
        %v5588 = vpop.f32.mrb[0].mxu0
        %v5589 = vadd.f32 0.0, %v5588
        %v5590 = vpop.f32.mrb[0].mxu0
        %v5591 = vadd.f32 0.0, %v5590
        %5592 = vdwg.mxu0
        %5593 = vmatprep.subr.mxu0 0.0
        %5594 = vmatpush1.msra.mxu0 %v5520
        %5595 = vmatprep.subr.mxu0 0.0
        %5596 = vmatpush1.msra.mxu0 0.0
        %5597 = vmatprep.subr.mxu0 0.0
        %5598 = vmatpush1.msra.mxu0 0.0
        %5599 = vmatprep.subr.mxu0 0.0
        %5600 = vmatpush1.msra.mxu0 0.0
        %5601 = vmatprep.subr.mxu0 0.0
        %5602 = vmatpush1.msra.mxu0 0.0
        %5603 = vmatprep.subr.mxu0 0.0
        %5604 = vmatpush1.msra.mxu0 0.0
        %5605 = vmatprep.subr.mxu0 0.0
        %5606 = vmatpush1.msra.mxu0 0.0
        %5607 = vmatprep.subr.mxu0 0.0
        %5608 = vmatpush1.msra.mxu0 0.0
        %5609 = vmatprep.subr.mxu0 0.0
        %5610 = vmatpush1.msra.mxu0 0.0
        %5611 = vmatprep.subr.mxu0 0.0
        %5612 = vmatpush1.msra.mxu0 0.0
        %5613 = vmatprep.subr.mxu0 0.0
        %5614 = vmatpush1.msra.mxu0 0.0
        %5615 = vmatprep.subr.mxu0 0.0
        %5616 = vmatpush1.msra.mxu0 0.0
        %5617 = vmatprep.subr.mxu0 0.0
        %5618 = vmatpush1.msra.mxu0 0.0
        %5619 = vmatprep.subr.mxu0 0.0
        %5620 = vmatpush1.msra.mxu0 0.0
        %5621 = vmatprep.subr.mxu0 0.0
        %5622 = vmatpush1.msra.mxu0 0.0
        %5623 = vmatprep.subr.mxu0 0.0
        %5624 = vmatpush1.msra.mxu0 0.0
        %5625 = vmatprep.subr.mxu0 0.0
        %5626 = vmatpush1.msra.mxu0 0.0
        %5627 = vmatprep.subr.mxu0 0.0
        %5628 = vmatpush1.msra.mxu0 0.0
        %5629 = vmatprep.subr.mxu0 0.0
        %5630 = vmatpush1.msra.mxu0 0.0
        %5631 = vmatprep.subr.mxu0 0.0
        %5632 = vmatpush1.msra.mxu0 0.0
        %5633 = vmatprep.subr.mxu0 0.0
        %5634 = vmatpush1.msra.mxu0 0.0
        %5635 = vmatprep.subr.mxu0 0.0
        %5636 = vmatpush1.msra.mxu0 0.0
        %5637 = vmatprep.subr.mxu0 0.0
        %5638 = vmatpush1.msra.mxu0 0.0
        %5639 = vmatprep.subr.mxu0 0.0
        %5640 = vmatpush1.msra.mxu0 0.0
        %5641 = vmatprep.subr.mxu0 0.0
        %5642 = vmatpush1.msra.mxu0 0.0
        %5643 = vmatprep.subr.mxu0 0.0
        %5644 = vmatpush1.msra.mxu0 0.0
        %5645 = vmatprep.subr.mxu0 0.0
        %5646 = vmatpush1.msra.mxu0 0.0
        %5647 = vmatprep.subr.mxu0 0.0
        %5648 = vmatpush1.msra.mxu0 0.0
        %5649 = vmatprep.subr.mxu0 0.0
        %5650 = vmatpush1.msra.mxu0 0.0
        %5651 = vmatprep.subr.mxu0 0.0
        %5652 = vmatpush1.msra.mxu0 0.0
        %5653 = vmatprep.subr.mxu0 0.0
        %5654 = vmatpush1.msra.mxu0 0.0
        %5655 = vmatprep.subr.mxu0 0.0
        %5656 = vmatpush1.msra.mxu0 0.0
        %5657 = vmatprep.mubr.f32.mxu0 0.0
        %5658 = vmatmul.mubr.f32.gmra.mrb[0].mxu0 %v5511
        %v5659 = vpop.f32.mrb[0].mxu0
        %v5660 = vadd.f32 0.0, %v5659
        %v5661 = vpop.f32.mrb[0].mxu0
        %5662 = vdwg.mxu0
        %v5663 = vadd.f32 %v5009, %v5589
        %v5664 = vadd.f32 %v5010, %v5591
        %v5665 = vadd.f32 %v5011, %v5660
        %v5667 = vsel %vm277, %v5501, 0
        %v5670 = vsel %vm277, %v5497, 0
        %v5673 = vsel %vm277, %v5505, 0
        %5675 = vmatprep.subr.mxu0 %v5670
        %5676 = vmatpush1.msra.mxu0 %v5667
        %5677 = vmatprep.subr.mxu0 0.0
        %5678 = vmatpush1.msra.mxu0 0.0
        %5679 = vmatprep.subr.mxu0 0.0
        %5680 = vmatpush1.msra.mxu0 0.0
        %5681 = vmatprep.subr.mxu0 0.0
        %5682 = vmatpush1.msra.mxu0 0.0
        %5683 = vmatprep.subr.mxu0 0.0
        %5684 = vmatpush1.msra.mxu0 0.0
        %5685 = vmatprep.subr.mxu0 0.0
        %5686 = vmatpush1.msra.mxu0 0.0
        %5687 = vmatprep.subr.mxu0 0.0
        %5688 = vmatpush1.msra.mxu0 0.0
        %5689 = vmatprep.subr.mxu0 0.0
        %5690 = vmatpush1.msra.mxu0 0.0
        %5691 = vmatprep.subr.mxu0 0.0
        %5692 = vmatpush1.msra.mxu0 0.0
        %5693 = vmatprep.subr.mxu0 0.0
        %5694 = vmatpush1.msra.mxu0 0.0
        %5695 = vmatprep.subr.mxu0 0.0
        %5696 = vmatpush1.msra.mxu0 0.0
        %5697 = vmatprep.subr.mxu0 0.0
        %5698 = vmatpush1.msra.mxu0 0.0
        %5699 = vmatprep.subr.mxu0 0.0
        %5700 = vmatpush1.msra.mxu0 0.0
        %5701 = vmatprep.subr.mxu0 0.0
        %5702 = vmatpush1.msra.mxu0 0.0
        %5703 = vmatprep.subr.mxu0 0.0
        %5704 = vmatpush1.msra.mxu0 0.0
        %5705 = vmatprep.subr.mxu0 0.0
        %5706 = vmatpush1.msra.mxu0 0.0
        %5707 = vmatprep.subr.mxu0 0.0
        %5708 = vmatpush1.msra.mxu0 0.0
        %5709 = vmatprep.subr.mxu0 0.0
        %5710 = vmatpush1.msra.mxu0 0.0
        %5711 = vmatprep.subr.mxu0 0.0
        %5712 = vmatpush1.msra.mxu0 0.0
        %5713 = vmatprep.subr.mxu0 0.0
        %5714 = vmatpush1.msra.mxu0 0.0
        %5715 = vmatprep.subr.mxu0 0.0
        %5716 = vmatpush1.msra.mxu0 0.0
        %5717 = vmatprep.subr.mxu0 0.0
        %5718 = vmatpush1.msra.mxu0 0.0
        %5719 = vmatprep.subr.mxu0 0.0
        %5720 = vmatpush1.msra.mxu0 0.0
        %5721 = vmatprep.subr.mxu0 0.0
        %5722 = vmatpush1.msra.mxu0 0.0
        %5723 = vmatprep.subr.mxu0 0.0
        %5724 = vmatpush1.msra.mxu0 0.0
        %5725 = vmatprep.subr.mxu0 0.0
        %5726 = vmatpush1.msra.mxu0 0.0
        %5727 = vmatprep.subr.mxu0 0.0
        %5728 = vmatpush1.msra.mxu0 0.0
        %5729 = vmatprep.subr.mxu0 0.0
        %5730 = vmatpush1.msra.mxu0 0.0
        %5731 = vmatprep.subr.mxu0 0.0
        %5732 = vmatpush1.msra.mxu0 0.0
        %5733 = vmatprep.subr.mxu0 0.0
        %5734 = vmatpush1.msra.mxu0 0.0
        %5735 = vmatprep.subr.mxu0 0.0
        %5736 = vmatpush1.msra.mxu0 0.0
        %5737 = vmatprep.subr.mxu0 0.0
        %5738 = vmatpush1.msra.mxu0 0.0
        %5739 = vmatprep.mubr.f32.mxu0 0.0
        %5740 = vmatmul.mubr.f32.gmra.mrb[0].mxu0 %v5511
        %v5741 = vpop.f32.mrb[0].mxu0
        %v5742 = vadd.f32 0.0, %v5741
        %v5743 = vpop.f32.mrb[0].mxu0
        %v5744 = vadd.f32 0.0, %v5743
        %5745 = vdwg.mxu0
        %5746 = vmatprep.subr.mxu0 0.0
        %5747 = vmatpush1.msra.mxu0 %v5673
        %5748 = vmatprep.subr.mxu0 0.0
        %5749 = vmatpush1.msra.mxu0 0.0
        %5750 = vmatprep.subr.mxu0 0.0
        %5751 = vmatpush1.msra.mxu0 0.0
        %5752 = vmatprep.subr.mxu0 0.0
        %5753 = vmatpush1.msra.mxu0 0.0
        %5754 = vmatprep.subr.mxu0 0.0
        %5755 = vmatpush1.msra.mxu0 0.0
        %5756 = vmatprep.subr.mxu0 0.0
        %5757 = vmatpush1.msra.mxu0 0.0
        %5758 = vmatprep.subr.mxu0 0.0
        %5759 = vmatpush1.msra.mxu0 0.0
        %5760 = vmatprep.subr.mxu0 0.0
        %5761 = vmatpush1.msra.mxu0 0.0
        %5762 = vmatprep.subr.mxu0 0.0
        %5763 = vmatpush1.msra.mxu0 0.0
        %5764 = vmatprep.subr.mxu0 0.0
        %5765 = vmatpush1.msra.mxu0 0.0
        %5766 = vmatprep.subr.mxu0 0.0
        %5767 = vmatpush1.msra.mxu0 0.0
        %5768 = vmatprep.subr.mxu0 0.0
        %5769 = vmatpush1.msra.mxu0 0.0
        %5770 = vmatprep.subr.mxu0 0.0
        %5771 = vmatpush1.msra.mxu0 0.0
        %5772 = vmatprep.subr.mxu0 0.0
        %5773 = vmatpush1.msra.mxu0 0.0
        %5774 = vmatprep.subr.mxu0 0.0
        %5775 = vmatpush1.msra.mxu0 0.0
        %5776 = vmatprep.subr.mxu0 0.0
        %5777 = vmatpush1.msra.mxu0 0.0
        %5778 = vmatprep.subr.mxu0 0.0
        %5779 = vmatpush1.msra.mxu0 0.0
        %5780 = vmatprep.subr.mxu0 0.0
        %5781 = vmatpush1.msra.mxu0 0.0
        %5782 = vmatprep.subr.mxu0 0.0
        %5783 = vmatpush1.msra.mxu0 0.0
        %5784 = vmatprep.subr.mxu0 0.0
        %5785 = vmatpush1.msra.mxu0 0.0
        %5786 = vmatprep.subr.mxu0 0.0
        %5787 = vmatpush1.msra.mxu0 0.0
        %5788 = vmatprep.subr.mxu0 0.0
        %5789 = vmatpush1.msra.mxu0 0.0
        %5790 = vmatprep.subr.mxu0 0.0
        %5791 = vmatpush1.msra.mxu0 0.0
        %5792 = vmatprep.subr.mxu0 0.0
        %5793 = vmatpush1.msra.mxu0 0.0
        %5794 = vmatprep.subr.mxu0 0.0
        %5795 = vmatpush1.msra.mxu0 0.0
        %5796 = vmatprep.subr.mxu0 0.0
        %5797 = vmatpush1.msra.mxu0 0.0
        %5798 = vmatprep.subr.mxu0 0.0
        %5799 = vmatpush1.msra.mxu0 0.0
        %5800 = vmatprep.subr.mxu0 0.0
        %5801 = vmatpush1.msra.mxu0 0.0
        %5802 = vmatprep.subr.mxu0 0.0
        %5803 = vmatpush1.msra.mxu0 0.0
        %5804 = vmatprep.subr.mxu0 0.0
        %5805 = vmatpush1.msra.mxu0 0.0
        %5806 = vmatprep.subr.mxu0 0.0
        %5807 = vmatpush1.msra.mxu0 0.0
        %5808 = vmatprep.subr.mxu0 0.0
        %5809 = vmatpush1.msra.mxu0 0.0
        %5810 = vmatprep.mubr.f32.mxu0 0.0
        %5811 = vmatmul.mubr.f32.gmra.mrb[0].mxu0 %v5511
        %v5812 = vpop.f32.mrb[0].mxu0
        %v5813 = vadd.f32 0.0, %v5812
        %v5814 = vpop.f32.mrb[0].mxu0
        %5815 = vdwg.mxu0
        %v5816 = vadd.f32 %v5162, %v5742
        %v5817 = vadd.f32 %v5163, %v5744
        %v5818 = vadd.f32 %v5164, %v5813
        %v5820 = vsel %vm277, %v5502, 0
        %v5823 = vsel %vm277, %v5498, 0
        %v5826 = vsel %vm277, %v5506, 0
        %5828 = vmatprep.subr.mxu0 %v5823
        %5829 = vmatpush1.msra.mxu0 %v5820
        %5830 = vmatprep.subr.mxu0 0.0
        %5831 = vmatpush1.msra.mxu0 0.0
        %5832 = vmatprep.subr.mxu0 0.0
        %5833 = vmatpush1.msra.mxu0 0.0
        %5834 = vmatprep.subr.mxu0 0.0
        %5835 = vmatpush1.msra.mxu0 0.0
        %5836 = vmatprep.subr.mxu0 0.0
        %5837 = vmatpush1.msra.mxu0 0.0
        %5838 = vmatprep.subr.mxu0 0.0
        %5839 = vmatpush1.msra.mxu0 0.0
        %5840 = vmatprep.subr.mxu0 0.0
        %5841 = vmatpush1.msra.mxu0 0.0
        %5842 = vmatprep.subr.mxu0 0.0
        %5843 = vmatpush1.msra.mxu0 0.0
        %5844 = vmatprep.subr.mxu0 0.0
        %5845 = vmatpush1.msra.mxu0 0.0
        %5846 = vmatprep.subr.mxu0 0.0
        %5847 = vmatpush1.msra.mxu0 0.0
        %5848 = vmatprep.subr.mxu0 0.0
        %5849 = vmatpush1.msra.mxu0 0.0
        %5850 = vmatprep.subr.mxu0 0.0
        %5851 = vmatpush1.msra.mxu0 0.0
        %5852 = vmatprep.subr.mxu0 0.0
        %5853 = vmatpush1.msra.mxu0 0.0
        %5854 = vmatprep.subr.mxu0 0.0
        %5855 = vmatpush1.msra.mxu0 0.0
        %5856 = vmatprep.subr.mxu0 0.0
        %5857 = vmatpush1.msra.mxu0 0.0
        %5858 = vmatprep.subr.mxu0 0.0
        %5859 = vmatpush1.msra.mxu0 0.0
        %5860 = vmatprep.subr.mxu0 0.0
        %5861 = vmatpush1.msra.mxu0 0.0
        %5862 = vmatprep.subr.mxu0 0.0
        %5863 = vmatpush1.msra.mxu0 0.0
        %5864 = vmatprep.subr.mxu0 0.0
        %5865 = vmatpush1.msra.mxu0 0.0
        %5866 = vmatprep.subr.mxu0 0.0
        %5867 = vmatpush1.msra.mxu0 0.0
        %5868 = vmatprep.subr.mxu0 0.0
        %5869 = vmatpush1.msra.mxu0 0.0
        %5870 = vmatprep.subr.mxu0 0.0
        %5871 = vmatpush1.msra.mxu0 0.0
        %5872 = vmatprep.subr.mxu0 0.0
        %5873 = vmatpush1.msra.mxu0 0.0
        %5874 = vmatprep.subr.mxu0 0.0
        %5875 = vmatpush1.msra.mxu0 0.0
        %5876 = vmatprep.subr.mxu0 0.0
        %5877 = vmatpush1.msra.mxu0 0.0
        %5878 = vmatprep.subr.mxu0 0.0
        %5879 = vmatpush1.msra.mxu0 0.0
        %5880 = vmatprep.subr.mxu0 0.0
        %5881 = vmatpush1.msra.mxu0 0.0
        %5882 = vmatprep.subr.mxu0 0.0
        %5883 = vmatpush1.msra.mxu0 0.0
        %5884 = vmatprep.subr.mxu0 0.0
        %5885 = vmatpush1.msra.mxu0 0.0
        %5886 = vmatprep.subr.mxu0 0.0
        %5887 = vmatpush1.msra.mxu0 0.0
        %5888 = vmatprep.subr.mxu0 0.0
        %5889 = vmatpush1.msra.mxu0 0.0
        %5890 = vmatprep.subr.mxu0 0.0
        %5891 = vmatpush1.msra.mxu0 0.0
        %5892 = vmatprep.mubr.f32.mxu0 0.0
        %5893 = vmatmul.mubr.f32.gmra.mrb[0].mxu0 %v5511
        %v5894 = vpop.f32.mrb[0].mxu0
        %v5895 = vadd.f32 0.0, %v5894
        %v5896 = vpop.f32.mrb[0].mxu0
        %v5897 = vadd.f32 0.0, %v5896
        %5898 = vdwg.mxu0
        %5899 = vmatprep.subr.mxu0 0.0
        %5900 = vmatpush1.msra.mxu0 %v5826
        %5901 = vmatprep.subr.mxu0 0.0
        %5902 = vmatpush1.msra.mxu0 0.0
        %5903 = vmatprep.subr.mxu0 0.0
        %5904 = vmatpush1.msra.mxu0 0.0
        %5905 = vmatprep.subr.mxu0 0.0
        %5906 = vmatpush1.msra.mxu0 0.0
        %5907 = vmatprep.subr.mxu0 0.0
        %5908 = vmatpush1.msra.mxu0 0.0
        %5909 = vmatprep.subr.mxu0 0.0
        %5910 = vmatpush1.msra.mxu0 0.0
        %5911 = vmatprep.subr.mxu0 0.0
        %5912 = vmatpush1.msra.mxu0 0.0
        %5913 = vmatprep.subr.mxu0 0.0
        %5914 = vmatpush1.msra.mxu0 0.0
        %5915 = vmatprep.subr.mxu0 0.0
        %5916 = vmatpush1.msra.mxu0 0.0
        %5917 = vmatprep.subr.mxu0 0.0
        %5918 = vmatpush1.msra.mxu0 0.0
        %5919 = vmatprep.subr.mxu0 0.0
        %5920 = vmatpush1.msra.mxu0 0.0
        %5921 = vmatprep.subr.mxu0 0.0
        %5922 = vmatpush1.msra.mxu0 0.0
        %5923 = vmatprep.subr.mxu0 0.0
        %5924 = vmatpush1.msra.mxu0 0.0
        %5925 = vmatprep.subr.mxu0 0.0
        %5926 = vmatpush1.msra.mxu0 0.0
        %5927 = vmatprep.subr.mxu0 0.0
        %5928 = vmatpush1.msra.mxu0 0.0
        %5929 = vmatprep.subr.mxu0 0.0
        %5930 = vmatpush1.msra.mxu0 0.0
        %5931 = vmatprep.subr.mxu0 0.0
        %5932 = vmatpush1.msra.mxu0 0.0
        %5933 = vmatprep.subr.mxu0 0.0
        %5934 = vmatpush1.msra.mxu0 0.0
        %5935 = vmatprep.subr.mxu0 0.0
        %5936 = vmatpush1.msra.mxu0 0.0
        %5937 = vmatprep.subr.mxu0 0.0
        %5938 = vmatpush1.msra.mxu0 0.0
        %5939 = vmatprep.subr.mxu0 0.0
        %5940 = vmatpush1.msra.mxu0 0.0
        %5941 = vmatprep.subr.mxu0 0.0
        %5942 = vmatpush1.msra.mxu0 0.0
        %5943 = vmatprep.subr.mxu0 0.0
        %5944 = vmatpush1.msra.mxu0 0.0
        %5945 = vmatprep.subr.mxu0 0.0
        %5946 = vmatpush1.msra.mxu0 0.0
        %5947 = vmatprep.subr.mxu0 0.0
        %5948 = vmatpush1.msra.mxu0 0.0
        %5949 = vmatprep.subr.mxu0 0.0
        %5950 = vmatpush1.msra.mxu0 0.0
        %5951 = vmatprep.subr.mxu0 0.0
        %5952 = vmatpush1.msra.mxu0 0.0
        %5953 = vmatprep.subr.mxu0 0.0
        %5954 = vmatpush1.msra.mxu0 0.0
        %5955 = vmatprep.subr.mxu0 0.0
        %5956 = vmatpush1.msra.mxu0 0.0
        %5957 = vmatprep.subr.mxu0 0.0
        %5958 = vmatpush1.msra.mxu0 0.0
        %5959 = vmatprep.subr.mxu0 0.0
        %5960 = vmatpush1.msra.mxu0 0.0
        %5961 = vmatprep.subr.mxu0 0.0
        %5962 = vmatpush1.msra.mxu0 0.0
        %5963 = vmatprep.mubr.f32.mxu0 0.0
        %5964 = vmatmul.mubr.f32.gmra.mrb[0].mxu0 %v5511
        %v5965 = vpop.f32.mrb[0].mxu0
        %v5966 = vadd.f32 0.0, %v5965
        %v5967 = vpop.f32.mrb[0].mxu0
        %5968 = vdwg.mxu0
        %v5969 = vadd.f32 %v5315, %v5895
        %v5970 = vadd.f32 %v5316, %v5897
        %v5971 = vadd.f32 %v5317, %v5966
        %v5973 = vsel %vm277, %v5503, 0
        %v5976 = vsel %vm277, %v5499, 0
        %v5979 = vsel %vm277, %v5507, 0
        %5981 = vmatprep.subr.mxu0 %v5976
        %5982 = vmatpush1.msra.mxu0 %v5973
        %5983 = vmatprep.subr.mxu0 0.0
        %5984 = vmatpush1.msra.mxu0 0.0
        %5985 = vmatprep.subr.mxu0 0.0
        %5986 = vmatpush1.msra.mxu0 0.0
        %5987 = vmatprep.subr.mxu0 0.0
        %5988 = vmatpush1.msra.mxu0 0.0
        %5989 = vmatprep.subr.mxu0 0.0
        %5990 = vmatpush1.msra.mxu0 0.0
        %5991 = vmatprep.subr.mxu0 0.0
        %5992 = vmatpush1.msra.mxu0 0.0
        %5993 = vmatprep.subr.mxu0 0.0
        %5994 = vmatpush1.msra.mxu0 0.0
        %5995 = vmatprep.subr.mxu0 0.0
        %5996 = vmatpush1.msra.mxu0 0.0
        %5997 = vmatprep.subr.mxu0 0.0
        %5998 = vmatpush1.msra.mxu0 0.0
        %5999 = vmatprep.subr.mxu0 0.0
        %6000 = vmatpush1.msra.mxu0 0.0
        %6001 = vmatprep.subr.mxu0 0.0
        %6002 = vmatpush1.msra.mxu0 0.0
        %6003 = vmatprep.subr.mxu0 0.0
        %6004 = vmatpush1.msra.mxu0 0.0
        %6005 = vmatprep.subr.mxu0 0.0
        %6006 = vmatpush1.msra.mxu0 0.0
        %6007 = vmatprep.subr.mxu0 0.0
        %6008 = vmatpush1.msra.mxu0 0.0
        %6009 = vmatprep.subr.mxu0 0.0
        %6010 = vmatpush1.msra.mxu0 0.0
        %6011 = vmatprep.subr.mxu0 0.0
        %6012 = vmatpush1.msra.mxu0 0.0
        %6013 = vmatprep.subr.mxu0 0.0
        %6014 = vmatpush1.msra.mxu0 0.0
        %6015 = vmatprep.subr.mxu0 0.0
        %6016 = vmatpush1.msra.mxu0 0.0
        %6017 = vmatprep.subr.mxu0 0.0
        %6018 = vmatpush1.msra.mxu0 0.0
        %6019 = vmatprep.subr.mxu0 0.0
        %6020 = vmatpush1.msra.mxu0 0.0
        %6021 = vmatprep.subr.mxu0 0.0
        %6022 = vmatpush1.msra.mxu0 0.0
        %6023 = vmatprep.subr.mxu0 0.0
        %6024 = vmatpush1.msra.mxu0 0.0
        %6025 = vmatprep.subr.mxu0 0.0
        %6026 = vmatpush1.msra.mxu0 0.0
        %6027 = vmatprep.subr.mxu0 0.0
        %6028 = vmatpush1.msra.mxu0 0.0
        %6029 = vmatprep.subr.mxu0 0.0
        %6030 = vmatpush1.msra.mxu0 0.0
        %6031 = vmatprep.subr.mxu0 0.0
        %6032 = vmatpush1.msra.mxu0 0.0
        %6033 = vmatprep.subr.mxu0 0.0
        %6034 = vmatpush1.msra.mxu0 0.0
        %6035 = vmatprep.subr.mxu0 0.0
        %6036 = vmatpush1.msra.mxu0 0.0
        %6037 = vmatprep.subr.mxu0 0.0
        %6038 = vmatpush1.msra.mxu0 0.0
        %6039 = vmatprep.subr.mxu0 0.0
        %6040 = vmatpush1.msra.mxu0 0.0
        %6041 = vmatprep.subr.mxu0 0.0
        %6042 = vmatpush1.msra.mxu0 0.0
        %6043 = vmatprep.subr.mxu0 0.0
        %6044 = vmatpush1.msra.mxu0 0.0
        %6045 = vmatprep.mubr.f32.mxu0 0.0
        %6046 = vmatmul.mubr.f32.gmra.mrb[0].mxu0 %v5511
        %v6047 = vpop.f32.mrb[0].mxu0
        %v6048 = vadd.f32 0.0, %v6047
        %v6049 = vpop.f32.mrb[0].mxu0
        %v6050 = vadd.f32 0.0, %v6049
        %6051 = vdwg.mxu0
        %6052 = vmatprep.subr.mxu0 0.0
        %6053 = vmatpush1.msra.mxu0 %v5979
        %6054 = vmatprep.subr.mxu0 0.0
        %6055 = vmatpush1.msra.mxu0 0.0
        %6056 = vmatprep.subr.mxu0 0.0
        %6057 = vmatpush1.msra.mxu0 0.0
        %6058 = vmatprep.subr.mxu0 0.0
        %6059 = vmatpush1.msra.mxu0 0.0
        %6060 = vmatprep.subr.mxu0 0.0
        %6061 = vmatpush1.msra.mxu0 0.0
        %6062 = vmatprep.subr.mxu0 0.0
        %6063 = vmatpush1.msra.mxu0 0.0
        %6064 = vmatprep.subr.mxu0 0.0
        %6065 = vmatpush1.msra.mxu0 0.0
        %6066 = vmatprep.subr.mxu0 0.0
        %6067 = vmatpush1.msra.mxu0 0.0
        %6068 = vmatprep.subr.mxu0 0.0
        %6069 = vmatpush1.msra.mxu0 0.0
        %6070 = vmatprep.subr.mxu0 0.0
        %6071 = vmatpush1.msra.mxu0 0.0
        %6072 = vmatprep.subr.mxu0 0.0
        %6073 = vmatpush1.msra.mxu0 0.0
        %6074 = vmatprep.subr.mxu0 0.0
        %6075 = vmatpush1.msra.mxu0 0.0
        %6076 = vmatprep.subr.mxu0 0.0
        %6077 = vmatpush1.msra.mxu0 0.0
        %6078 = vmatprep.subr.mxu0 0.0
        %6079 = vmatpush1.msra.mxu0 0.0
        %6080 = vmatprep.subr.mxu0 0.0
        %6081 = vmatpush1.msra.mxu0 0.0
        %6082 = vmatprep.subr.mxu0 0.0
        %6083 = vmatpush1.msra.mxu0 0.0
        %6084 = vmatprep.subr.mxu0 0.0
        %6085 = vmatpush1.msra.mxu0 0.0
        %6086 = vmatprep.subr.mxu0 0.0
        %6087 = vmatpush1.msra.mxu0 0.0
        %6088 = vmatprep.subr.mxu0 0.0
        %6089 = vmatpush1.msra.mxu0 0.0
        %6090 = vmatprep.subr.mxu0 0.0
        %6091 = vmatpush1.msra.mxu0 0.0
        %6092 = vmatprep.subr.mxu0 0.0
        %6093 = vmatpush1.msra.mxu0 0.0
        %6094 = vmatprep.subr.mxu0 0.0
        %6095 = vmatpush1.msra.mxu0 0.0
        %6096 = vmatprep.subr.mxu0 0.0
        %6097 = vmatpush1.msra.mxu0 0.0
        %6098 = vmatprep.subr.mxu0 0.0
        %6099 = vmatpush1.msra.mxu0 0.0
        %6100 = vmatprep.subr.mxu0 0.0
        %6101 = vmatpush1.msra.mxu0 0.0
        %6102 = vmatprep.subr.mxu0 0.0
        %6103 = vmatpush1.msra.mxu0 0.0
        %6104 = vmatprep.subr.mxu0 0.0
        %6105 = vmatpush1.msra.mxu0 0.0
        %6106 = vmatprep.subr.mxu0 0.0
        %6107 = vmatpush1.msra.mxu0 0.0
        %6108 = vmatprep.subr.mxu0 0.0
        %6109 = vmatpush1.msra.mxu0 0.0
        %6110 = vmatprep.subr.mxu0 0.0
        %6111 = vmatpush1.msra.mxu0 0.0
        %6112 = vmatprep.subr.mxu0 0.0
        %6113 = vmatpush1.msra.mxu0 0.0
        %6114 = vmatprep.subr.mxu0 0.0
        %6115 = vmatpush1.msra.mxu0 0.0
        %6116 = vmatprep.mubr.f32.mxu0 0.0
        %6117 = vmatmul.mubr.f32.gmra.mrb[0].mxu0 %v5511
        %v6118 = vpop.f32.mrb[0].mxu0
        %v6119 = vadd.f32 0.0, %v6118
        %v6120 = vpop.f32.mrb[0].mxu0
        %6121 = vdwg.mxu0
        %v6122 = vadd.f32 %v5468, %v6048
        %v6123 = vadd.f32 %v5469, %v6050
        %v6124 = vadd.f32 %v5470, %v6119
        %v6125 = vld [vmem:[#allocation2] sm:$0xff]
        %v6126 = vld [vmem:[#allocation2 + $0x8] sm:$0xff]
        %v6127 = vld [vmem:[#allocation2 + $0x10] sm:$0xff]
        %v6128 = vmul.f32 %v6125, 0.9
        %v6129 = vmul.f32 %v6126, 0.9
        %v6130 = vmul.f32 %v6127, 0.9
        %v6131 = vadd.f32 %v6128, %v5663
        %v6132 = vadd.f32 %v6129, %v5664
        %v6133 = vadd.f32 %v6130, %v5665
        %6134 = vst [vmem:[%s241] sm:$0xff] %v6131
        %6135 = vst [vmem:[%s241 + $0x8] sm:$0xff] %v6132
        %6136 = vst [vmem:[%s241 + $0x10] sm:$0xff] %v6133
        %v6137 = vmul.f32 %v6131, 0.9
        %v6138 = vmul.f32 %v6132, 0.9
        %v6139 = vmul.f32 %v6133, 0.9
        %v6140 = vadd.f32 %v6137, %v5816
        %v6141 = vadd.f32 %v6138, %v5817
        %v6142 = vadd.f32 %v6139, %v5818
        %s6143 = scalar_lea.vmem %s241, 24 [#allocation4]
        %6144 = vst [vmem:[%s6143] sm:$0xff] %v6140
        %6145 = vst [vmem:[%s6143 + $0x8] sm:$0xff] %v6141
        %6146 = vst [vmem:[%s6143 + $0x10] sm:$0xff] %v6142
        %v6147 = vmul.f32 %v6140, 0.9
        %v6148 = vmul.f32 %v6141, 0.9
        %v6149 = vmul.f32 %v6142, 0.9
        %v6150 = vadd.f32 %v6147, %v5969
        %v6151 = vadd.f32 %v6148, %v5970
        %v6152 = vadd.f32 %v6149, %v5971
        %s6153 = scalar_lea.vmem %s241, 48 [#allocation4]
        %6154 = vst [vmem:[%s6153] sm:$0xff] %v6150
        %6155 = vst [vmem:[%s6153 + $0x8] sm:$0xff] %v6151
        %6156 = vst [vmem:[%s6153 + $0x10] sm:$0xff] %v6152
        %v6157 = vmul.f32 %v6150, 0.9
        %v6158 = vmul.f32 %v6151, 0.9
        %v6159 = vmul.f32 %v6152, 0.9
        %v6160 = vadd.f32 %v6157, %v6122
        %v6161 = vadd.f32 %v6158, %v6123
        %v6162 = vadd.f32 %v6159, %v6124
        %s6163 = scalar_lea.vmem %s241, 72 [#allocation4]
        %6164 = vst [vmem:[%s6163] sm:$0xff] %v6160
        %6165 = vst [vmem:[%s6163 + $0x8] sm:$0xff] %v6161
        %6166 = vst [vmem:[%s6163 + $0x10] sm:$0xff] %v6162
        %6167 = vst [vmem:[#allocation2] sm:$0xff] %v6160
        %6168 = vst [vmem:[#allocation2 + $0x8] sm:$0xff] %v6161
        %6169 = vst [vmem:[#allocation2 + $0x10] sm:$0xff] %v6162
        %s6170 = sand.u32 %s109, 1
        %s6171 = scalar_lea.sflag [#allocation5], %s6170
        %s6172 = sand.u32 %s109, 1
        %s6173 = smul.addr %s6172, 96
        %s6174 = scalar_lea.vmem [#allocation4], %s6173
        // Predicated region
        $region78: #{tpu_custom_call.1} parent=68 // pred_check
          %p6175 = pneg %p119
        $region79: #{tpu_custom_call.1} parent=68 // pred_check_branch
          %6177 = sbr.rel (%p6175) target = $region81
        $region80: #{tpu_custom_call.1} parent=68 // pred_region
          %s6178 = smul.u32 4, %s22
          %s6180 = ssub.s32 1536, 1536
          %6181 = vsyncadd %s6171, %s6180
          %s6182 = smul.addr %s21, 3
          %s6183 = smul.addr %s6178, 6
          %s6184 = sadd.s32 %s6182, %s6183
          %s6185 = smul.addr %s6184, 128
          %s6186 = scalar_lea.hbm %s3, %s6185
          %s6187 = sshll.u32 %s6174, 4
          %s6188 = int_to_ptr.vmem [resolvable:$true] %s6187
          %6193 = dma.vmem_to_hbm [thread:$0]  %s6188, 1536, %s6186, %s6171, 384, 768, 24
        $region81: #{tpu_custom_call.1} parent=68 // pred_fallthru
          _
      $region69: #{tpu_custom_call.1} parent=5 // pred_fallthru
        _
      %p6194 = scmp.le.s32.totalorder 2, %s12
      // Predicated region
      $region82: #{tpu_custom_call.1} parent=5 // pred_check
        %p6195 = pneg %p6194
      $region83: #{tpu_custom_call.1} parent=5 // pred_check_branch
        %6197 = sbr.rel (%p6195) target = $region85
      $region84: #{tpu_custom_call.1} parent=5 // pred_region
        %s6198 = ssub.s32 %s12, 2
        // Predicated region
        $region86: #{tpu_custom_call.1} parent=84 // pred_check
          %p6199 = pneg %p125
        $region87: #{tpu_custom_call.1} parent=84 // pred_check_branch
          %6201 = sbr.rel (%p6199) target = $region89
        $region88: #{tpu_custom_call.1} parent=84 // pred_region
          %s6202 = sand.u32 %s110, 1
          %s6203 = scalar_lea.sflag [#allocation5], %s6202
          %s6204 = sand.u32 %s110, 1
          %s6205 = smul.addr %s6204, 96
          %s6206 = scalar_lea.vmem [#allocation4], %s6205
          %6207 = dma.done %s6203, 1536
        $region89: #{tpu_custom_call.1} parent=84 // pred_fallthru
          _
      $region85: #{tpu_custom_call.1} parent=5 // pred_fallthru
        _
    $region6: #{tpu_custom_call.1} parent=1 // loop_footer
      %s16 = sadd.s32 1, %s12
    $region7: #{tpu_custom_call.1} parent=1 // loop_footer_branch
      %11 = sbr.rel target = $region3
    $region8: #{tpu_custom_call.1} parent=1 // loop_exit
      _
    %6208 = vsyncpa [#allocation5], 1
    %s6209 = scalar_lea.sflag [#allocation5], 1
    %6210 = vsyncpa %s6209, 1

</llo_original>
